<compile_context>
chip_gen: v7x
topology: tpu7x:2x2x1
jax: 0.10.0
libtpu: 0.0.40
codegen_flags: <defaults>
</compile_context>

<pallas_src>
import itertools

import jax
import jax.numpy as jnp
from jax.experimental import pallas as pl
from jax.experimental.pallas import tpu as pltpu

# ----------------------------- configuration ------------------------------
NC = 8              # channels (nc)
N_RBF = 8           # radial basis size
LOMAX = 2           # max output tensor order
LINMAX = 2          # max input tensor order
AVG_NEIGHBORS = 3.0
N_ATOMS = 8
N_EDGES = 16

EDGE_TILE = 8       # edges per grid step (size to VMEM budget in production)
LANE_PAD = 128      # node / output slab lane width (13*NC=104 padded to 128)

L_OFF = (0, NC, 4 * NC, 13 * NC)                   # l-block column offsets
MSG_WIDTH = tuple(3 * (3 ** l) * NC for l in range(LOMAX + 1))   # (24, 72, 216)
MSG_OFF = (0, MSG_WIDTH[0], MSG_WIDTH[0] + MSG_WIDTH[1])          # (0, 24, 96)
MSG_W = sum(MSG_WIDTH)                                            # 312


# ----------------------- Cartesian tensor-product helpers ------------------
def _flat(idx):
    f = 0
    for i in idx:
        f = 3 * f + i
    return f


def _tp_combos(mx, my, mz):
    out = []
    for lx in range(mx + 1):
        for ly in range(my + 1):
            for lz in range(mz + 1):
                if abs(lx - ly) <= lz <= lx + ly and (lx + ly - lz) % 2 == 0:
                    out.append((lx, ly, lz))
    return out


def _contract(xt, yt, lx, ly, lz):
    """Channel-wise Cartesian contraction of per-component tile lists."""
    k = (lx + ly - lz) // 2
    out = []
    for oidx in itertools.product(range(3), repeat=lz):
        a, b = oidx[:lx - k], oidx[lx - k:]
        acc = None
        for m in itertools.product(range(3), repeat=k):
            t = xt[_flat(a + m)] * yt[_flat(m + b)]
            acc = t if acc is None else acc + t
        out.append(acc)
    return out


def _tensor_product(x, y, mx, my, mz):
    """TensorProductLayer (stacking=False): sum all valid (lx,ly,lz) combos."""
    out = {}
    for (lx, ly, lz) in _tp_combos(mx, my, mz):
        if lx not in x or ly not in y:
            continue
        r = _contract(x[lx], y[ly], lx, ly, lz)
        if lz in out:
            out[lz] = [a + b for a, b in zip(out[lz], r)]
        else:
            out[lz] = r
    return out


# ------------------------------- fused kernel ------------------------------
def _fused_kernel(nf_ref, ii_ref, ij_ref, ir_ref, rhat_ref, rbf_ref,
                  wself_ref, whi_ref, whj_ref, wmrhj_ref,
                  aw1_ref, ab1_ref, aw2_ref, ab2_ref, aw3_ref, ab3_ref, wrbf_ref,
                  ffw_w_ref, fb1_ref, fw2_ref, fb2_ref,
                  o_ref,
                  norm_ws, acc_ws):
    f32 = jnp.float32
    C = NC
    n = nf_ref.shape[0]          # atoms
    te = rbf_ref.shape[0]        # edges in this tile
    ke = pl.program_id(0)

    def dot(a, b):
        return jnp.dot(a, b, preferred_element_type=f32)

    def silu(x):
        return x * jax.nn.sigmoid(x)

    def rowstack(ts):
        return jnp.concatenate(ts, axis=0) if len(ts) > 1 else ts[0]

    def lanestack(ts):
        return jnp.concatenate(ts, axis=1) if len(ts) > 1 else ts[0]

    def mix_fused(tiles, w, n_out):
        """TensorLinearMixing for n_out weight sets that share one input:
        one row-stacked [comp*rows, C] @ [C, n_out*C] matmul, sliced back."""
        r = tiles[0].shape[0]
        y = dot(rowstack(tiles), w)
        return [[y[k * r:(k + 1) * r, o * C:(o + 1) * C]
                 for k in range(len(tiles))] for o in range(n_out)]

    def split_l(slab):
        return {l: [slab[:, L_OFF[l] + k * C:L_OFF[l] + (k + 1) * C]
                    for k in range(3 ** l)] for l in range(LINMAX + 1)}

    # ---------------- step 0: normalize node features once -----------------
    # TODO(synk): normalize_tensors assumed = per-node RMS over (components x
    # channels) of each order l, with +1.0 inside the sqrt (source not given).
    @pl.when(ke == 0)
    def _():
        blocks = []
        for l in range(LINMAX + 1):
            c0, c1 = L_OFF[l], L_OFF[l + 1]
            blk = nf_ref[:, c0:c1]
            ss = jnp.sum(blk * blk, axis=-1, keepdims=True)
            blocks.append(blk * jax.lax.rsqrt(ss / float(c1 - c0) + 1.0))
        blocks.append(jnp.zeros((n, LANE_PAD - L_OFF[LINMAX + 1]), f32))
        norm_ws[...] = lanestack(blocks)
        acc_ws[...] = jnp.zeros_like(acc_ws)

    nslab = norm_ws[...]                               # [n, 128] normalized nodes

    # ------------- gather h_i / h_j via in-VMEM one-hot matmuls ------------
    # Only O(E) int32 index streams come from HBM; the one-hots live in VMEM.
    # TODO(synk): at large atom counts replace with per-row DMA gather
    # (scalar-prefetched indices + make_async_copy) to drop the O(E*N) MACs.
    lane_iota = jax.lax.broadcasted_iota(jnp.int32, (te, n), 1)
    gi = (ii_ref[...] == lane_iota).astype(f32)        # [te, n]
    gj = (ij_ref[...] == lane_iota).astype(f32)
    hi_slab = dot(gi, nslab)                           # [te, 128]
    hj_slab = dot(gj, nslab)
    hfi = split_l(hi_slab)
    hfj = split_l(hj_slab)

    # ------------- Cartesian moments of the unit bond vector ---------------
    # TODO(synk): find_moment assumed = outer powers of the unit bond vector;
    # [te,1] columns broadcast against the [te,C] tiles inside _contract.
    rc = [rhat_ref[:, k:k + 1] for k in range(3)]
    u = {0: [jnp.ones((te, 1), f32)],
         1: [rc[k] for k in range(3)],
         2: [rc[a] * rc[b] for a in range(3) for b in range(3)]}

    # ------------- per-edge channel mixings (3 weight sets fused) ----------
    a1, m1, t1i = {}, {}, {}
    a2, m2, t2i = {}, {}, {}
    for l in range(LINMAX + 1):
        a1[l], m1[l], t1i[l] = mix_fused(hfi[l], whi_ref[l], 3)
        a2[l], m2[l], t2i[l] = mix_fused(hfj[l], whj_ref[l], 3)

    # ------------- edge messages (calc_hi_r_hj) -----------------------------
    att_combos = [_contract(a1[lx], a2[ly], lx, ly, 0)[0]
                  for (lx, ly, lz) in _tp_combos(LINMAX, LINMAX, 0)]
    em = _tensor_product(u, m2, LOMAX, LINMAX, LOMAX)             # tp_right
    em = {l: mix_fused(em[l], wmrhj_ref[l], 1)[0] for l in range(LOMAX + 1)}
    em = _tensor_product(m1, em, LINMAX, LOMAX, LOMAX)            # tp_left
    t1 = _tensor_product(t1i, u, LINMAX, LOMAX, LOMAX)            # tp_hi_r
    t2 = _tensor_product(u, t2i, LOMAX, LINMAX, LOMAX)            # tp_r_hj
    branches = {l: (em[l], t1[l], t2[l]) for l in range(LOMAX + 1)}

    # ------------- attention MLP + rbf gates (all l / heads fused) ---------
    feed = lanestack(att_combos + [em[0][0], t1[0][0], t2[0][0]])  # [te, 48]
    h = silu(dot(feed, aw1_ref[...]) + ab1_ref[...])
    h = silu(dot(h, aw2_ref[...]) + ab2_ref[...])
    gates = ((dot(h, aw3_ref[...]) + ab3_ref[...])
             * dot(rbf_ref[...], wrbf_ref[...]))                   # [te, 72]

    # ------------- gate, lane-dense pack, scatter-add -----------------------
    msg_blocks = []
    for l in range(LOMAX + 1):
        comp = 3 ** l
        for br in range(3):
            g = gates[:, (3 * l + br) * C:(3 * l + br + 1) * C]
            msg_blocks.append(lanestack([branches[l][br][k] * g
                                         for k in range(comp)]))
    msg = lanestack(msg_blocks)                                    # [te, 312]

    sub_iota = jax.lax.broadcasted_iota(jnp.int32, (n, te), 0)
    sc = (sub_iota == ir_ref[0]).astype(f32)                       # [n, te]
    acc_ws[...] += dot(sc, msg)

    # ------------- last step: self interaction + feed forward ---------------
    @pl.when(ke == pl.num_programs(0) - 1)
    def _():
        node = split_l(nslab)
        left, right = {}, {}
        for l in range(LINMAX + 1):
            left[l], right[l] = mix_fused(node[l], wself_ref[l], 2)
        self_tp = _tensor_product(left, right, LINMAX, LINMAX, LOMAX)

        acc = acc_ws[...]
        out_blocks = []
        for l in range(LOMAX + 1):
            comp = 3 ** l
            pieces = [rowstack(self_tp[l]), rowstack(node[l])]
            for br in range(3):
                off = MSG_OFF[l] + br * comp * C
                pieces.append(rowstack([acc[:, off + k * C:off + (k + 1) * C]
                                        for k in range(comp)]))
            # TODO(synk): TensorFeedForward assumed: l=0 Linear+SiLU+Linear,
            # l>0 pure channel mixing (keeps equivariance); irrep_mixing /
            # stacking branches (off by default) not implemented.
            y = dot(lanestack(pieces), ffw_w_ref[l])               # [comp*n, C]
            if l == 0:
                y = silu(y + fb1_ref[...])
                y = dot(y, fw2_ref[...]) + fb2_ref[...]
            out_blocks.append(lanestack([y[k * n:(k + 1) * n, :]
                                         for k in range(comp)]))
        out_blocks.append(jnp.zeros((n, LANE_PAD - L_OFF[LOMAX + 1]), f32))
        o_ref[...] = lanestack(out_blocks)


# ------------------------------- parameters --------------------------------
def init_params(key):
    ks = iter(jax.random.split(key, 64))

    def w(shape, scale=0.3):
        return scale * jax.random.normal(next(ks), shape, dtype=jnp.float32)

    CC = 3 * NC          # combo_count[l] * nc == 24 for every l (3 tensor layers)
    ATT_IN = 2 * CC      # att_feed width: att0 (3*nc) ++ edge_messages[0] (3*nc)

    # TensorLinearMixing weight sets that share an input, fused to [C, k*C]:
    w_self = jnp.stack([jnp.concatenate([w((NC, NC)) for _ in range(2)], axis=1)
                        for _ in range(LINMAX + 1)])              # [3, 8, 16]
    w_hi = jnp.stack([jnp.concatenate([w((NC, NC)) for _ in range(3)], axis=1)
                      for _ in range(LINMAX + 1)])                # [3, 8, 24]
    w_hj = jnp.stack([jnp.concatenate([w((NC, NC)) for _ in range(3)], axis=1)
                      for _ in range(LINMAX + 1)])                # [3, 8, 24]
    w_mrhj = jnp.stack([w((NC, NC)) for _ in range(LOMAX + 1)])   # [3, 8, 8]

    # attention MLPs (identical input for every l) -> batched weights
    W1 = [w((ATT_IN, CC)) for _ in range(LOMAX + 1)]
    b1 = [w((CC,), 0.05) for _ in range(LOMAX + 1)]
    W2 = [w((CC, CC)) for _ in range(LOMAX + 1)]
    b2 = [w((CC,), 0.05) for _ in range(LOMAX + 1)]
    W3 = [w((CC, CC)) for _ in range(LOMAX + 1)]
    b3 = [w((CC,), 0.05) for _ in range(LOMAX + 1)]
    Wr = [w((N_RBF, CC)) for _ in range(LOMAX + 1)]

    aw1 = jnp.concatenate(W1, axis=1)                             # [48, 72]
    ab1 = jnp.concatenate(b1).reshape(1, -1)                      # [1, 72]
    aw2 = jnp.zeros((3 * CC, 3 * CC), jnp.float32)                # block-diag
    aw3 = jnp.zeros((3 * CC, 3 * CC), jnp.float32)                # block-diag
    for l in range(LOMAX + 1):
        aw2 = aw2.at[l * CC:(l + 1) * CC, l * CC:(l + 1) * CC].set(W2[l])
        aw3 = aw3.at[l * CC:(l + 1) * CC, l * CC:(l + 1) * CC].set(W3[l])
    ab2 = jnp.concatenate(b2).reshape(1, -1)
    ab3 = jnp.concatenate(b3).reshape(1, -1)
    # rbf mixing for all (l, branch) heads in one matrix; the 1/avg_neighbors
    # of the scatter mean is folded in here (free at init time).
    wrbf = jnp.concatenate(Wr, axis=1) / AVG_NEIGHBORS            # [8, 72]

    # TensorFeedForward
    ffw_w = jnp.stack([w((2 * NC + CC, NC)) for _ in range(LOMAX + 1)])  # [3,40,8]
    fb1 = w((1, NC), 0.05)
    fw2 = w((NC, NC))
    fb2 = w((1, NC), 0.05)

    return dict(w_self=w_self, w_hi=w_hi, w_hj=w_hj, w_mrhj=w_mrhj,
                aw1=aw1, ab1=ab1, aw2=aw2, ab2=ab2, aw3=aw3, ab3=ab3,
                wrbf=wrbf, ffw_w=ffw_w, fb1=fb1, fw2=fw2, fb2=fb2)


# -------------------------------- forward ----------------------------------
def message_passing_forward(params, node_feats, edge_index, rbf_ij, r_hat):
    n_atoms = node_feats[0].shape[1]
    n_edges = edge_index.shape[1]

    # component-major dict {l: [3^l, N, C]} -> lane-dense [N, 104] slab, padded
    # to 128 lanes so node-row loads/stores are unmasked full tiles.
    slabs = [jnp.transpose(node_feats[l], (1, 0, 2)).reshape(n_atoms, -1)
             for l in range(LINMAX + 1)]
    nf = jnp.concatenate(slabs, axis=-1).astype(jnp.float32)
    nf = jnp.pad(nf, ((0, 0), (0, LANE_PAD - nf.shape[1])))

    # pad the edge axis to a multiple of the edge tile; padded edges get
    # rbf == 0 so their gated messages vanish and the scatter sum is unchanged.
    n_tiles = pl.cdiv(n_edges, EDGE_TILE)
    e_pad = n_tiles * EDGE_TILE
    pad = e_pad - n_edges
    idx_i = jnp.pad(edge_index[0].astype(jnp.int32), (0, pad))
    idx_j = jnp.pad(edge_index[1].astype(jnp.int32), (0, pad))
    rbf = jnp.pad(rbf_ij.astype(jnp.float32), ((0, pad), (0, 0)))
    rh = jnp.pad(r_hat.astype(jnp.float32), ((0, pad), (0, 0)))

    ii_col = idx_i.reshape(e_pad, 1)                 # sublane layout (gather)
    ij_col = idx_j.reshape(e_pad, 1)
    ii_row = idx_i.reshape(n_tiles, 1, EDGE_TILE)    # lane layout (scatter)

    weight_names = ('w_self', 'w_hi', 'w_hj', 'w_mrhj', 'aw1', 'ab1', 'aw2',
                    'ab2', 'aw3', 'ab3', 'wrbf', 'ffw_w', 'fb1', 'fw2', 'fb2')
    weights = [params[k] for k in weight_names]

    def const_spec(a):
        nd = a.ndim
        return pl.BlockSpec(a.shape, lambda ke, _nd=nd: (0,) * _nd)

    def edge_spec(width):
        return pl.BlockSpec((EDGE_TILE, width), lambda ke: (ke, 0))

    in_specs = ([const_spec(nf),
                 edge_spec(1), edge_spec(1),
                 pl.BlockSpec((1, 1, EDGE_TILE), lambda ke: (ke, 0, 0)),
                 edge_spec(3), edge_spec(N_RBF)]
                + [const_spec(wt) for wt in weights])

    # TODO(synk): at production sizes also tile the atom axis ('parallel', to
    # use v7x's second TensorCore) and size EDGE_TILE / vmem_limit_bytes to the
    # per-chip VMEM budget (64 MiB per TC on v7x, 128 MiB on v5e/v6e).
    out = pl.pallas_call(
        _fused_kernel,
        out_shape=jax.ShapeDtypeStruct((n_atoms, LANE_PAD), jnp.float32),
        grid_spec=pltpu.PrefetchScalarGridSpec(
            num_scalar_prefetch=0,
            grid=(n_tiles,),
            in_specs=in_specs,
            out_specs=pl.BlockSpec((n_atoms, LANE_PAD), lambda ke: (0, 0)),
            scratch_shapes=[
                pltpu.VMEM((n_atoms, LANE_PAD), jnp.float32),   # normalized nodes
                pltpu.VMEM((n_atoms, MSG_W), jnp.float32),      # scatter accumulator
            ]),
        compiler_params=pltpu.CompilerParams(
            dimension_semantics=("arbitrary",),
            vmem_limit_bytes=48 * 1024 * 1024),
    )(nf, ii_col, ij_col, ii_row, rh, rbf, *weights)

    # padded lane-dense slab -> component-major dict {l: [3^l, N, C]}
    res = {}
    for l in range(LOMAX + 1):
        comp = 3 ** l
        blk = out[:, L_OFF[l]:L_OFF[l + 1]]
        res[l] = jnp.transpose(blk.reshape(n_atoms, comp, NC), (1, 0, 2))
    return res


# ---------------------------------- main ------------------------------------
if __name__ == "__main__":
    key = jax.random.PRNGKey(0)
    kp, k0, k1, k2, kidx, kr, kv = jax.random.split(key, 7)
    params = init_params(kp)

    node_feats = {
        0: jax.random.normal(k0, (1, N_ATOMS, NC), dtype=jnp.float32),
        1: jax.random.normal(k1, (3, N_ATOMS, NC), dtype=jnp.float32),
        2: jax.random.normal(k2, (9, N_ATOMS, NC), dtype=jnp.float32),
    }
    edge_index = jax.random.randint(kidx, (2, N_EDGES), 0, N_ATOMS, dtype=jnp.int32)
    rbf_ij = jax.random.uniform(kr, (N_EDGES, N_RBF), dtype=jnp.float32)
    r_ij = jax.random.normal(kv, (N_EDGES, 3), dtype=jnp.float32)
    r_hat = r_ij / jnp.linalg.norm(r_ij, axis=-1, keepdims=True)

    out = message_passing_forward(params, node_feats, edge_index, rbf_ij, r_hat)
    out = jax.tree_util.tree_map(jax.block_until_ready, out)

    assert out[0].shape == (1, N_ATOMS, NC)
    assert out[1].shape == (3, N_ATOMS, NC)
    assert out[2].shape == (9, N_ATOMS, NC)
    for l in range(LOMAX + 1):
        assert bool(jnp.all(jnp.isfinite(out[l])))
    print("KERNEL_OK")
</pallas_src>

<mosaic_0001>
module attributes {stable_mosaic.version = 11 : i64} {
  func.func @_fused_kernel(%arg0: i32, %arg1: memref<8x128xf32, #tpu.memory_space<vmem>>, %arg2: memref<8x1xi32, #tpu.memory_space<vmem>>, %arg3: memref<8x1xi32, #tpu.memory_space<vmem>>, %arg4: memref<1x1x8xi32, #tpu.memory_space<vmem>>, %arg5: memref<8x3xf32, #tpu.memory_space<vmem>>, %arg6: memref<8x8xf32, #tpu.memory_space<vmem>>, %arg7: memref<3x8x16xf32, #tpu.memory_space<vmem>>, %arg8: memref<3x8x24xf32, #tpu.memory_space<vmem>>, %arg9: memref<3x8x24xf32, #tpu.memory_space<vmem>>, %arg10: memref<3x8x8xf32, #tpu.memory_space<vmem>>, %arg11: memref<48x72xf32, #tpu.memory_space<vmem>>, %arg12: memref<1x72xf32, #tpu.memory_space<vmem>>, %arg13: memref<72x72xf32, #tpu.memory_space<vmem>>, %arg14: memref<1x72xf32, #tpu.memory_space<vmem>>, %arg15: memref<72x72xf32, #tpu.memory_space<vmem>>, %arg16: memref<1x72xf32, #tpu.memory_space<vmem>>, %arg17: memref<8x72xf32, #tpu.memory_space<vmem>>, %arg18: memref<3x40x8xf32, #tpu.memory_space<vmem>>, %arg19: memref<1x8xf32, #tpu.memory_space<vmem>>, %arg20: memref<8x8xf32, #tpu.memory_space<vmem>>, %arg21: memref<1x8xf32, #tpu.memory_space<vmem>>, %arg22: memref<8x128xf32, #tpu.memory_space<vmem>>, %arg23: memref<8x128xf32, #tpu.memory_space<vmem>>, %arg24: memref<8x312xf32, #tpu.memory_space<vmem>>) attributes {dimension_semantics = [#tpu.dimension_semantics<arbitrary>], iteration_bounds = array<i64: 2>, scalar_prefetch = 0 : i64, scratch_operands = 2 : i64, tpu.core_type = #tpu.core_type<tc>, window_params = [{pipeline_mode = #tpu.pipeline_mode<synchronous>, transform_indices = @transform_0, window_bounds = array<i64: 8, 128>}, {transform_indices = @transform_1, window_bounds = array<i64: 8, 1>}, {transform_indices = @transform_2, window_bounds = array<i64: 8, 1>}, {transform_indices = @transform_3, window_bounds = array<i64: 1, 1, 8>}, {transform_indices = @transform_4, window_bounds = array<i64: 8, 3>}, {transform_indices = @transform_5, window_bounds = array<i64: 8, 8>}, {pipeline_mode = #tpu.pipeline_mode<synchronous>, transform_indices = @transform_6, window_bounds = array<i64: 3, 8, 16>}, {pipeline_mode = #tpu.pipeline_mode<synchronous>, transform_indices = @transform_7, window_bounds = array<i64: 3, 8, 24>}, {pipeline_mode = #tpu.pipeline_mode<synchronous>, transform_indices = @transform_8, window_bounds = array<i64: 3, 8, 24>}, {pipeline_mode = #tpu.pipeline_mode<synchronous>, transform_indices = @transform_9, window_bounds = array<i64: 3, 8, 8>}, {pipeline_mode = #tpu.pipeline_mode<synchronous>, transform_indices = @transform_10, window_bounds = array<i64: 48, 72>}, {pipeline_mode = #tpu.pipeline_mode<synchronous>, transform_indices = @transform_11, window_bounds = array<i64: 1, 72>}, {pipeline_mode = #tpu.pipeline_mode<synchronous>, transform_indices = @transform_12, window_bounds = array<i64: 72, 72>}, {pipeline_mode = #tpu.pipeline_mode<synchronous>, transform_indices = @transform_13, window_bounds = array<i64: 1, 72>}, {pipeline_mode = #tpu.pipeline_mode<synchronous>, transform_indices = @transform_14, window_bounds = array<i64: 72, 72>}, {pipeline_mode = #tpu.pipeline_mode<synchronous>, transform_indices = @transform_15, window_bounds = array<i64: 1, 72>}, {pipeline_mode = #tpu.pipeline_mode<synchronous>, transform_indices = @transform_16, window_bounds = array<i64: 8, 72>}, {pipeline_mode = #tpu.pipeline_mode<synchronous>, transform_indices = @transform_17, window_bounds = array<i64: 3, 40, 8>}, {pipeline_mode = #tpu.pipeline_mode<synchronous>, transform_indices = @transform_18, window_bounds = array<i64: 1, 8>}, {pipeline_mode = #tpu.pipeline_mode<synchronous>, transform_indices = @transform_19, window_bounds = array<i64: 8, 8>}, {pipeline_mode = #tpu.pipeline_mode<synchronous>, transform_indices = @transform_20, window_bounds = array<i64: 1, 8>}, {pipeline_mode = #tpu.pipeline_mode<synchronous>, transform_indices = @transform_21, window_bounds = array<i64: 8, 128>}]} {
    %c0_i32 = arith.constant 0 : i32
    %0 = arith.cmpi eq, %arg0, %c0_i32 : i32
    %1 = arith.extui %0 : i1 to i32
    %c0_i32_0 = arith.constant 0 : i32
    %2 = arith.cmpi ne, %1, %c0_i32_0 : i32
    scf.if %2 {
      %c0_79 = arith.constant 0 : index
      %c0_80 = arith.constant 0 : index
      %1252 = vector.load %arg1[%c0_79, %c0_80] : memref<8x128xf32, #tpu.memory_space<vmem>>, vector<8x8xf32>
      %1253 = arith.mulf %1252, %1252 : vector<8x8xf32>
      %cst_81 = arith.constant dense<0.000000e+00> : vector<8xf32>
      %1254 = vector.multi_reduction <add>, %1253, %cst_81 [1] : vector<8x8xf32> to vector<8xf32>
      %1255 = vector.shape_cast %1254 : vector<8xf32> to vector<8x1xf32>
      %cst_82 = arith.constant 8.000000e+00 : f32
      %1256 = vector.broadcast %cst_82 : f32 to vector<8x1xf32>
      %1257 = arith.divf %1255, %1256 : vector<8x1xf32>
      %cst_83 = arith.constant 1.000000e+00 : f32
      %1258 = vector.broadcast %cst_83 : f32 to vector<8x1xf32>
      %1259 = arith.addf %1257, %1258 : vector<8x1xf32>
      %1260 = math.rsqrt %1259 : vector<8x1xf32>
      %1261 = vector.broadcast %1260 : vector<8x1xf32> to vector<8x8xf32>
      %1262 = arith.mulf %1252, %1261 : vector<8x8xf32>
      %c0_84 = arith.constant 0 : index
      %c8 = arith.constant 8 : index
      %1263 = vector.load %arg1[%c0_84, %c8] : memref<8x128xf32, #tpu.memory_space<vmem>>, vector<8x24xf32>
      %1264 = arith.mulf %1263, %1263 : vector<8x24xf32>
      %cst_85 = arith.constant dense<0.000000e+00> : vector<8xf32>
      %1265 = vector.multi_reduction <add>, %1264, %cst_85 [1] : vector<8x24xf32> to vector<8xf32>
      %1266 = vector.shape_cast %1265 : vector<8xf32> to vector<8x1xf32>
      %cst_86 = arith.constant 2.400000e+01 : f32
      %1267 = vector.broadcast %cst_86 : f32 to vector<8x1xf32>
      %1268 = arith.divf %1266, %1267 : vector<8x1xf32>
      %cst_87 = arith.constant 1.000000e+00 : f32
      %1269 = vector.broadcast %cst_87 : f32 to vector<8x1xf32>
      %1270 = arith.addf %1268, %1269 : vector<8x1xf32>
      %1271 = math.rsqrt %1270 : vector<8x1xf32>
      %1272 = vector.broadcast %1271 : vector<8x1xf32> to vector<8x24xf32>
      %1273 = arith.mulf %1263, %1272 : vector<8x24xf32>
      %c0_88 = arith.constant 0 : index
      %c32 = arith.constant 32 : index
      %1274 = vector.load %arg1[%c0_88, %c32] : memref<8x128xf32, #tpu.memory_space<vmem>>, vector<8x72xf32>
      %1275 = arith.mulf %1274, %1274 : vector<8x72xf32>
      %cst_89 = arith.constant dense<0.000000e+00> : vector<8xf32>
      %1276 = vector.multi_reduction <add>, %1275, %cst_89 [1] : vector<8x72xf32> to vector<8xf32>
      %1277 = vector.shape_cast %1276 : vector<8xf32> to vector<8x1xf32>
      %cst_90 = arith.constant 7.200000e+01 : f32
      %1278 = vector.broadcast %cst_90 : f32 to vector<8x1xf32>
      %1279 = arith.divf %1277, %1278 : vector<8x1xf32>
      %cst_91 = arith.constant 1.000000e+00 : f32
      %1280 = vector.broadcast %cst_91 : f32 to vector<8x1xf32>
      %1281 = arith.addf %1279, %1280 : vector<8x1xf32>
      %1282 = math.rsqrt %1281 : vector<8x1xf32>
      %1283 = vector.broadcast %1282 : vector<8x1xf32> to vector<8x72xf32>
      %1284 = arith.mulf %1274, %1283 : vector<8x72xf32>
      %cst_92 = arith.constant 0.000000e+00 : f32
      %1285 = vector.broadcast %cst_92 : f32 to vector<8x24xf32>
      %1286 = tpu.concatenate %1262, %1273, %1284, %1285 in 1 : vector<8x8xf32>, vector<8x24xf32>, vector<8x72xf32>, vector<8x24xf32> -> vector<8x128xf32>
      %c0_93 = arith.constant 0 : index
      %c0_94 = arith.constant 0 : index
      %1287 = vector.load %arg23[%c0_93, %c0_94] : memref<8x128xf32, #tpu.memory_space<vmem>>, vector<8x128xf32>
      tpu.vector_store %arg23[%c0_93, %c0_94], %1286 {strides = array<i32>} : memref<8x128xf32, #tpu.memory_space<vmem>>, vector<8x128xf32>,
      %cst_95 = arith.constant 0.000000e+00 : f32
      %1288 = vector.broadcast %cst_95 : f32 to vector<8x312xf32>
      %c0_96 = arith.constant 0 : index
      %c0_97 = arith.constant 0 : index
      %1289 = vector.load %arg24[%c0_96, %c0_97] : memref<8x312xf32, #tpu.memory_space<vmem>>, vector<8x312xf32>
      tpu.vector_store %arg24[%c0_96, %c0_97], %1288 {strides = array<i32>} : memref<8x312xf32, #tpu.memory_space<vmem>>, vector<8x312xf32>,
    } else {
    }
    %c0 = arith.constant 0 : index
    %c0_1 = arith.constant 0 : index
    %3 = vector.load %arg23[%c0, %c0_1] : memref<8x128xf32, #tpu.memory_space<vmem>>, vector<8x128xf32>
    %4 = tpu.iota {dimensions = array<i32: 1>} : vector<8x8xi32>
    %c0_2 = arith.constant 0 : index
    %c0_3 = arith.constant 0 : index
    %5 = vector.load %arg2[%c0_2, %c0_3] : memref<8x1xi32, #tpu.memory_space<vmem>>, vector<8x1xi32>
    %6 = vector.broadcast %5 : vector<8x1xi32> to vector<8x8xi32>
    %7 = arith.cmpi eq, %6, %4 : vector<8x8xi32>
    %8 = arith.extui %7 : vector<8x8xi1> to vector<8x8xi32>
    %9 = arith.sitofp %8 : vector<8x8xi32> to vector<8x8xf32>
    %c0_4 = arith.constant 0 : index
    %c0_5 = arith.constant 0 : index
    %10 = vector.load %arg3[%c0_4, %c0_5] : memref<8x1xi32, #tpu.memory_space<vmem>>, vector<8x1xi32>
    %11 = vector.broadcast %10 : vector<8x1xi32> to vector<8x8xi32>
    %12 = arith.cmpi eq, %11, %4 : vector<8x8xi32>
    %13 = arith.extui %12 : vector<8x8xi1> to vector<8x8xi32>
    %14 = arith.sitofp %13 : vector<8x8xi32> to vector<8x8xf32>
    %cst = arith.constant dense<0.000000e+00> : vector<8x128xf32>
    %15 = tpu.matmul %9, %3, %cst {dimension_numbers = #tpu.dot_dimension_numbers<[1], [0], [0], [1], [0, 0, 1, 1], [], []>} : vector<8x8xf32>, vector<8x128xf32>, vector<8x128xf32> -> vector<8x128xf32>
    %cst_6 = arith.constant dense<0.000000e+00> : vector<8x128xf32>
    %16 = tpu.matmul %14, %3, %cst_6 {dimension_numbers = #tpu.dot_dimension_numbers<[1], [0], [0], [1], [0, 0, 1, 1], [], []>} : vector<8x8xf32>, vector<8x128xf32>, vector<8x128xf32> -> vector<8x128xf32>
    %17 = vector.extract_strided_slice %15 {offsets = [0, 0], sizes = [8, 8], strides = [1, 1]} : vector<8x128xf32> to vector<8x8xf32>
    %18 = vector.extract_strided_slice %15 {offsets = [0, 8], sizes = [8, 8], strides = [1, 1]} : vector<8x128xf32> to vector<8x8xf32>
    %19 = vector.extract_strided_slice %15 {offsets = [0, 16], sizes = [8, 8], strides = [1, 1]} : vector<8x128xf32> to vector<8x8xf32>
    %20 = vector.extract_strided_slice %15 {offsets = [0, 24], sizes = [8, 8], strides = [1, 1]} : vector<8x128xf32> to vector<8x8xf32>
    %21 = vector.extract_strided_slice %15 {offsets = [0, 32], sizes = [8, 8], strides = [1, 1]} : vector<8x128xf32> to vector<8x8xf32>
    %22 = vector.extract_strided_slice %15 {offsets = [0, 40], sizes = [8, 8], strides = [1, 1]} : vector<8x128xf32> to vector<8x8xf32>
    %23 = vector.extract_strided_slice %15 {offsets = [0, 48], sizes = [8, 8], strides = [1, 1]} : vector<8x128xf32> to vector<8x8xf32>
    %24 = vector.extract_strided_slice %15 {offsets = [0, 56], sizes = [8, 8], strides = [1, 1]} : vector<8x128xf32> to vector<8x8xf32>
    %25 = vector.extract_strided_slice %15 {offsets = [0, 64], sizes = [8, 8], strides = [1, 1]} : vector<8x128xf32> to vector<8x8xf32>
    %26 = vector.extract_strided_slice %15 {offsets = [0, 72], sizes = [8, 8], strides = [1, 1]} : vector<8x128xf32> to vector<8x8xf32>
    %27 = vector.extract_strided_slice %15 {offsets = [0, 80], sizes = [8, 8], strides = [1, 1]} : vector<8x128xf32> to vector<8x8xf32>
    %28 = vector.extract_strided_slice %15 {offsets = [0, 88], sizes = [8, 8], strides = [1, 1]} : vector<8x128xf32> to vector<8x8xf32>
    %29 = vector.extract_strided_slice %15 {offsets = [0, 96], sizes = [8, 8], strides = [1, 1]} : vector<8x128xf32> to vector<8x8xf32>
    %30 = vector.extract_strided_slice %16 {offsets = [0, 0], sizes = [8, 8], strides = [1, 1]} : vector<8x128xf32> to vector<8x8xf32>
    %31 = vector.extract_strided_slice %16 {offsets = [0, 8], sizes = [8, 8], strides = [1, 1]} : vector<8x128xf32> to vector<8x8xf32>
    %32 = vector.extract_strided_slice %16 {offsets = [0, 16], sizes = [8, 8], strides = [1, 1]} : vector<8x128xf32> to vector<8x8xf32>
    %33 = vector.extract_strided_slice %16 {offsets = [0, 24], sizes = [8, 8], strides = [1, 1]} : vector<8x128xf32> to vector<8x8xf32>
    %34 = vector.extract_strided_slice %16 {offsets = [0, 32], sizes = [8, 8], strides = [1, 1]} : vector<8x128xf32> to vector<8x8xf32>
    %35 = vector.extract_strided_slice %16 {offsets = [0, 40], sizes = [8, 8], strides = [1, 1]} : vector<8x128xf32> to vector<8x8xf32>
    %36 = vector.extract_strided_slice %16 {offsets = [0, 48], sizes = [8, 8], strides = [1, 1]} : vector<8x128xf32> to vector<8x8xf32>
    %37 = vector.extract_strided_slice %16 {offsets = [0, 56], sizes = [8, 8], strides = [1, 1]} : vector<8x128xf32> to vector<8x8xf32>
    %38 = vector.extract_strided_slice %16 {offsets = [0, 64], sizes = [8, 8], strides = [1, 1]} : vector<8x128xf32> to vector<8x8xf32>
    %39 = vector.extract_strided_slice %16 {offsets = [0, 72], sizes = [8, 8], strides = [1, 1]} : vector<8x128xf32> to vector<8x8xf32>
    %40 = vector.extract_strided_slice %16 {offsets = [0, 80], sizes = [8, 8], strides = [1, 1]} : vector<8x128xf32> to vector<8x8xf32>
    %41 = vector.extract_strided_slice %16 {offsets = [0, 88], sizes = [8, 8], strides = [1, 1]} : vector<8x128xf32> to vector<8x8xf32>
    %42 = vector.extract_strided_slice %16 {offsets = [0, 96], sizes = [8, 8], strides = [1, 1]} : vector<8x128xf32> to vector<8x8xf32>
    %c0_7 = arith.constant 0 : index
    %c0_8 = arith.constant 0 : index
    %43 = vector.load %arg5[%c0_7, %c0_8] : memref<8x3xf32, #tpu.memory_space<vmem>>, vector<8x1xf32>
    %c0_9 = arith.constant 0 : index
    %c1 = arith.constant 1 : index
    %44 = vector.load %arg5[%c0_9, %c1] : memref<8x3xf32, #tpu.memory_space<vmem>>, vector<8x1xf32>
    %c0_10 = arith.constant 0 : index
    %c2 = arith.constant 2 : index
    %45 = vector.load %arg5[%c0_10, %c2] : memref<8x3xf32, #tpu.memory_space<vmem>>, vector<8x1xf32>
    %cst_11 = arith.constant 1.000000e+00 : f32
    %46 = vector.broadcast %cst_11 : f32 to vector<8x1xf32>
    %47 = arith.mulf %43, %43 : vector<8x1xf32>
    %48 = arith.mulf %43, %44 : vector<8x1xf32>
    %49 = arith.mulf %43, %45 : vector<8x1xf32>
    %50 = arith.mulf %44, %43 : vector<8x1xf32>
    %51 = arith.mulf %44, %44 : vector<8x1xf32>
    %52 = arith.mulf %44, %45 : vector<8x1xf32>
    %53 = arith.mulf %45, %43 : vector<8x1xf32>
    %54 = arith.mulf %45, %44 : vector<8x1xf32>
    %55 = arith.mulf %45, %45 : vector<8x1xf32>
    %c0_12 = arith.constant 0 : index
    %c0_13 = arith.constant 0 : index
    %c0_14 = arith.constant 0 : index
    %56 = vector.load %arg8[%c0_12, %c0_13, %c0_14] : memref<3x8x24xf32, #tpu.memory_space<vmem>>, vector<1x8x24xf32>
    %57 = vector.shape_cast %56 : vector<1x8x24xf32> to vector<8x24xf32>
    %cst_15 = arith.constant dense<0.000000e+00> : vector<8x24xf32>
    %58 = tpu.matmul %17, %57, %cst_15 {dimension_numbers = #tpu.dot_dimension_numbers<[1], [0], [0], [1], [0, 0, 1, 1], [], []>} : vector<8x8xf32>, vector<8x24xf32>, vector<8x24xf32> -> vector<8x24xf32>
    %59 = vector.extract_strided_slice %58 {offsets = [0, 0], sizes = [8, 8], strides = [1, 1]} : vector<8x24xf32> to vector<8x8xf32>
    %60 = vector.extract_strided_slice %58 {offsets = [0, 8], sizes = [8, 8], strides = [1, 1]} : vector<8x24xf32> to vector<8x8xf32>
    %61 = vector.extract_strided_slice %58 {offsets = [0, 16], sizes = [8, 8], strides = [1, 1]} : vector<8x24xf32> to vector<8x8xf32>
    %c0_16 = arith.constant 0 : index
    %c0_17 = arith.constant 0 : index
    %c0_18 = arith.constant 0 : index
    %62 = vector.load %arg9[%c0_16, %c0_17, %c0_18] : memref<3x8x24xf32, #tpu.memory_space<vmem>>, vector<1x8x24xf32>
    %63 = vector.shape_cast %62 : vector<1x8x24xf32> to vector<8x24xf32>
    %cst_19 = arith.constant dense<0.000000e+00> : vector<8x24xf32>
    %64 = tpu.matmul %30, %63, %cst_19 {dimension_numbers = #tpu.dot_dimension_numbers<[1], [0], [0], [1], [0, 0, 1, 1], [], []>} : vector<8x8xf32>, vector<8x24xf32>, vector<8x24xf32> -> vector<8x24xf32>
    %65 = vector.extract_strided_slice %64 {offsets = [0, 0], sizes = [8, 8], strides = [1, 1]} : vector<8x24xf32> to vector<8x8xf32>
    %66 = vector.extract_strided_slice %64 {offsets = [0, 8], sizes = [8, 8], strides = [1, 1]} : vector<8x24xf32> to vector<8x8xf32>
    %67 = vector.extract_strided_slice %64 {offsets = [0, 16], sizes = [8, 8], strides = [1, 1]} : vector<8x24xf32> to vector<8x8xf32>
    %c1_20 = arith.constant 1 : index
    %c0_21 = arith.constant 0 : index
    %c0_22 = arith.constant 0 : index
    %68 = vector.load %arg8[%c1_20, %c0_21, %c0_22] : memref<3x8x24xf32, #tpu.memory_space<vmem>>, vector<1x8x24xf32>
    %69 = vector.shape_cast %68 : vector<1x8x24xf32> to vector<8x24xf32>
    %70 = tpu.concatenate %18, %19, %20 in 0 : vector<8x8xf32>, vector<8x8xf32>, vector<8x8xf32> -> vector<24x8xf32>
    %cst_23 = arith.constant dense<0.000000e+00> : vector<24x24xf32>
    %71 = tpu.matmul %70, %69, %cst_23 {dimension_numbers = #tpu.dot_dimension_numbers<[1], [0], [0], [1], [0, 0, 1, 1], [], []>} : vector<24x8xf32>, vector<8x24xf32>, vector<24x24xf32> -> vector<24x24xf32>
    %72 = vector.extract_strided_slice %71 {offsets = [0, 0], sizes = [8, 8], strides = [1, 1]} : vector<24x24xf32> to vector<8x8xf32>
    %73 = vector.extract_strided_slice %71 {offsets = [8, 0], sizes = [8, 8], strides = [1, 1]} : vector<24x24xf32> to vector<8x8xf32>
    %74 = vector.extract_strided_slice %71 {offsets = [16, 0], sizes = [8, 8], strides = [1, 1]} : vector<24x24xf32> to vector<8x8xf32>
    %75 = vector.extract_strided_slice %71 {offsets = [0, 8], sizes = [8, 8], strides = [1, 1]} : vector<24x24xf32> to vector<8x8xf32>
    %76 = vector.extract_strided_slice %71 {offsets = [8, 8], sizes = [8, 8], strides = [1, 1]} : vector<24x24xf32> to vector<8x8xf32>
    %77 = vector.extract_strided_slice %71 {offsets = [16, 8], sizes = [8, 8], strides = [1, 1]} : vector<24x24xf32> to vector<8x8xf32>
    %78 = vector.extract_strided_slice %71 {offsets = [0, 16], sizes = [8, 8], strides = [1, 1]} : vector<24x24xf32> to vector<8x8xf32>
    %79 = vector.extract_strided_slice %71 {offsets = [8, 16], sizes = [8, 8], strides = [1, 1]} : vector<24x24xf32> to vector<8x8xf32>
    %80 = vector.extract_strided_slice %71 {offsets = [16, 16], sizes = [8, 8], strides = [1, 1]} : vector<24x24xf32> to vector<8x8xf32>
    %c1_24 = arith.constant 1 : index
    %c0_25 = arith.constant 0 : index
    %c0_26 = arith.constant 0 : index
    %81 = vector.load %arg9[%c1_24, %c0_25, %c0_26] : memref<3x8x24xf32, #tpu.memory_space<vmem>>, vector<1x8x24xf32>
    %82 = vector.shape_cast %81 : vector<1x8x24xf32> to vector<8x24xf32>
    %83 = tpu.concatenate %31, %32, %33 in 0 : vector<8x8xf32>, vector<8x8xf32>, vector<8x8xf32> -> vector<24x8xf32>
    %cst_27 = arith.constant dense<0.000000e+00> : vector<24x24xf32>
    %84 = tpu.matmul %83, %82, %cst_27 {dimension_numbers = #tpu.dot_dimension_numbers<[1], [0], [0], [1], [0, 0, 1, 1], [], []>} : vector<24x8xf32>, vector<8x24xf32>, vector<24x24xf32> -> vector<24x24xf32>
    %85 = vector.extract_strided_slice %84 {offsets = [0, 0], sizes = [8, 8], strides = [1, 1]} : vector<24x24xf32> to vector<8x8xf32>
    %86 = vector.extract_strided_slice %84 {offsets = [8, 0], sizes = [8, 8], strides = [1, 1]} : vector<24x24xf32> to vector<8x8xf32>
    %87 = vector.extract_strided_slice %84 {offsets = [16, 0], sizes = [8, 8], strides = [1, 1]} : vector<24x24xf32> to vector<8x8xf32>
    %88 = vector.extract_strided_slice %84 {offsets = [0, 8], sizes = [8, 8], strides = [1, 1]} : vector<24x24xf32> to vector<8x8xf32>
    %89 = vector.extract_strided_slice %84 {offsets = [8, 8], sizes = [8, 8], strides = [1, 1]} : vector<24x24xf32> to vector<8x8xf32>
    %90 = vector.extract_strided_slice %84 {offsets = [16, 8], sizes = [8, 8], strides = [1, 1]} : vector<24x24xf32> to vector<8x8xf32>
    %91 = vector.extract_strided_slice %84 {offsets = [0, 16], sizes = [8, 8], strides = [1, 1]} : vector<24x24xf32> to vector<8x8xf32>
    %92 = vector.extract_strided_slice %84 {offsets = [8, 16], sizes = [8, 8], strides = [1, 1]} : vector<24x24xf32> to vector<8x8xf32>
    %93 = vector.extract_strided_slice %84 {offsets = [16, 16], sizes = [8, 8], strides = [1, 1]} : vector<24x24xf32> to vector<8x8xf32>
    %c2_28 = arith.constant 2 : index
    %c0_29 = arith.constant 0 : index
    %c0_30 = arith.constant 0 : index
    %94 = vector.load %arg8[%c2_28, %c0_29, %c0_30] : memref<3x8x24xf32, #tpu.memory_space<vmem>>, vector<1x8x24xf32>
    %95 = vector.shape_cast %94 : vector<1x8x24xf32> to vector<8x24xf32>
    %96 = tpu.concatenate %21, %22, %23, %24, %25, %26, %27, %28, %29 in 0 : vector<8x8xf32>, vector<8x8xf32>, vector<8x8xf32>, vector<8x8xf32>, vector<8x8xf32>, vector<8x8xf32>, vector<8x8xf32>, vector<8x8xf32>, vector<8x8xf32> -> vector<72x8xf32>
    %cst_31 = arith.constant dense<0.000000e+00> : vector<72x24xf32>
    %97 = tpu.matmul %96, %95, %cst_31 {dimension_numbers = #tpu.dot_dimension_numbers<[1], [0], [0], [1], [0, 0, 1, 1], [], []>} : vector<72x8xf32>, vector<8x24xf32>, vector<72x24xf32> -> vector<72x24xf32>
    %98 = vector.extract_strided_slice %97 {offsets = [0, 0], sizes = [8, 8], strides = [1, 1]} : vector<72x24xf32> to vector<8x8xf32>
    %99 = vector.extract_strided_slice %97 {offsets = [8, 0], sizes = [8, 8], strides = [1, 1]} : vector<72x24xf32> to vector<8x8xf32>
    %100 = vector.extract_strided_slice %97 {offsets = [16, 0], sizes = [8, 8], strides = [1, 1]} : vector<72x24xf32> to vector<8x8xf32>
    %101 = vector.extract_strided_slice %97 {offsets = [24, 0], sizes = [8, 8], strides = [1, 1]} : vector<72x24xf32> to vector<8x8xf32>
    %102 = vector.extract_strided_slice %97 {offsets = [32, 0], sizes = [8, 8], strides = [1, 1]} : vector<72x24xf32> to vector<8x8xf32>
    %103 = vector.extract_strided_slice %97 {offsets = [40, 0], sizes = [8, 8], strides = [1, 1]} : vector<72x24xf32> to vector<8x8xf32>
    %104 = vector.extract_strided_slice %97 {offsets = [48, 0], sizes = [8, 8], strides = [1, 1]} : vector<72x24xf32> to vector<8x8xf32>
    %105 = vector.extract_strided_slice %97 {offsets = [56, 0], sizes = [8, 8], strides = [1, 1]} : vector<72x24xf32> to vector<8x8xf32>
    %106 = vector.extract_strided_slice %97 {offsets = [64, 0], sizes = [8, 8], strides = [1, 1]} : vector<72x24xf32> to vector<8x8xf32>
    %107 = vector.extract_strided_slice %97 {offsets = [0, 8], sizes = [8, 8], strides = [1, 1]} : vector<72x24xf32> to vector<8x8xf32>
    %108 = vector.extract_strided_slice %97 {offsets = [8, 8], sizes = [8, 8], strides = [1, 1]} : vector<72x24xf32> to vector<8x8xf32>
    %109 = vector.extract_strided_slice %97 {offsets = [16, 8], sizes = [8, 8], strides = [1, 1]} : vector<72x24xf32> to vector<8x8xf32>
    %110 = vector.extract_strided_slice %97 {offsets = [24, 8], sizes = [8, 8], strides = [1, 1]} : vector<72x24xf32> to vector<8x8xf32>
    %111 = vector.extract_strided_slice %97 {offsets = [32, 8], sizes = [8, 8], strides = [1, 1]} : vector<72x24xf32> to vector<8x8xf32>
    %112 = vector.extract_strided_slice %97 {offsets = [40, 8], sizes = [8, 8], strides = [1, 1]} : vector<72x24xf32> to vector<8x8xf32>
    %113 = vector.extract_strided_slice %97 {offsets = [48, 8], sizes = [8, 8], strides = [1, 1]} : vector<72x24xf32> to vector<8x8xf32>
    %114 = vector.extract_strided_slice %97 {offsets = [56, 8], sizes = [8, 8], strides = [1, 1]} : vector<72x24xf32> to vector<8x8xf32>
    %115 = vector.extract_strided_slice %97 {offsets = [64, 8], sizes = [8, 8], strides = [1, 1]} : vector<72x24xf32> to vector<8x8xf32>
    %116 = vector.extract_strided_slice %97 {offsets = [0, 16], sizes = [8, 8], strides = [1, 1]} : vector<72x24xf32> to vector<8x8xf32>
    %117 = vector.extract_strided_slice %97 {offsets = [8, 16], sizes = [8, 8], strides = [1, 1]} : vector<72x24xf32> to vector<8x8xf32>
    %118 = vector.extract_strided_slice %97 {offsets = [16, 16], sizes = [8, 8], strides = [1, 1]} : vector<72x24xf32> to vector<8x8xf32>
    %119 = vector.extract_strided_slice %97 {offsets = [24, 16], sizes = [8, 8], strides = [1, 1]} : vector<72x24xf32> to vector<8x8xf32>
    %120 = vector.extract_strided_slice %97 {offsets = [32, 16], sizes = [8, 8], strides = [1, 1]} : vector<72x24xf32> to vector<8x8xf32>
    %121 = vector.extract_strided_slice %97 {offsets = [40, 16], sizes = [8, 8], strides = [1, 1]} : vector<72x24xf32> to vector<8x8xf32>
    %122 = vector.extract_strided_slice %97 {offsets = [48, 16], sizes = [8, 8], strides = [1, 1]} : vector<72x24xf32> to vector<8x8xf32>
    %123 = vector.extract_strided_slice %97 {offsets = [56, 16], sizes = [8, 8], strides = [1, 1]} : vector<72x24xf32> to vector<8x8xf32>
    %124 = vector.extract_strided_slice %97 {offsets = [64, 16], sizes = [8, 8], strides = [1, 1]} : vector<72x24xf32> to vector<8x8xf32>
    %c2_32 = arith.constant 2 : index
    %c0_33 = arith.constant 0 : index
    %c0_34 = arith.constant 0 : index
    %125 = vector.load %arg9[%c2_32, %c0_33, %c0_34] : memref<3x8x24xf32, #tpu.memory_space<vmem>>, vector<1x8x24xf32>
    %126 = vector.shape_cast %125 : vector<1x8x24xf32> to vector<8x24xf32>
    %127 = tpu.concatenate %34, %35, %36, %37, %38, %39, %40, %41, %42 in 0 : vector<8x8xf32>, vector<8x8xf32>, vector<8x8xf32>, vector<8x8xf32>, vector<8x8xf32>, vector<8x8xf32>, vector<8x8xf32>, vector<8x8xf32>, vector<8x8xf32> -> vector<72x8xf32>
    %cst_35 = arith.constant dense<0.000000e+00> : vector<72x24xf32>
    %128 = tpu.matmul %127, %126, %cst_35 {dimension_numbers = #tpu.dot_dimension_numbers<[1], [0], [0], [1], [0, 0, 1, 1], [], []>} : vector<72x8xf32>, vector<8x24xf32>, vector<72x24xf32> -> vector<72x24xf32>
    %129 = vector.extract_strided_slice %128 {offsets = [0, 0], sizes = [8, 8], strides = [1, 1]} : vector<72x24xf32> to vector<8x8xf32>
    %130 = vector.extract_strided_slice %128 {offsets = [8, 0], sizes = [8, 8], strides = [1, 1]} : vector<72x24xf32> to vector<8x8xf32>
    %131 = vector.extract_strided_slice %128 {offsets = [16, 0], sizes = [8, 8], strides = [1, 1]} : vector<72x24xf32> to vector<8x8xf32>
    %132 = vector.extract_strided_slice %128 {offsets = [24, 0], sizes = [8, 8], strides = [1, 1]} : vector<72x24xf32> to vector<8x8xf32>
    %133 = vector.extract_strided_slice %128 {offsets = [32, 0], sizes = [8, 8], strides = [1, 1]} : vector<72x24xf32> to vector<8x8xf32>
    %134 = vector.extract_strided_slice %128 {offsets = [40, 0], sizes = [8, 8], strides = [1, 1]} : vector<72x24xf32> to vector<8x8xf32>
    %135 = vector.extract_strided_slice %128 {offsets = [48, 0], sizes = [8, 8], strides = [1, 1]} : vector<72x24xf32> to vector<8x8xf32>
    %136 = vector.extract_strided_slice %128 {offsets = [56, 0], sizes = [8, 8], strides = [1, 1]} : vector<72x24xf32> to vector<8x8xf32>
    %137 = vector.extract_strided_slice %128 {offsets = [64, 0], sizes = [8, 8], strides = [1, 1]} : vector<72x24xf32> to vector<8x8xf32>
    %138 = vector.extract_strided_slice %128 {offsets = [0, 8], sizes = [8, 8], strides = [1, 1]} : vector<72x24xf32> to vector<8x8xf32>
    %139 = vector.extract_strided_slice %128 {offsets = [8, 8], sizes = [8, 8], strides = [1, 1]} : vector<72x24xf32> to vector<8x8xf32>
    %140 = vector.extract_strided_slice %128 {offsets = [16, 8], sizes = [8, 8], strides = [1, 1]} : vector<72x24xf32> to vector<8x8xf32>
    %141 = vector.extract_strided_slice %128 {offsets = [24, 8], sizes = [8, 8], strides = [1, 1]} : vector<72x24xf32> to vector<8x8xf32>
    %142 = vector.extract_strided_slice %128 {offsets = [32, 8], sizes = [8, 8], strides = [1, 1]} : vector<72x24xf32> to vector<8x8xf32>
    %143 = vector.extract_strided_slice %128 {offsets = [40, 8], sizes = [8, 8], strides = [1, 1]} : vector<72x24xf32> to vector<8x8xf32>
    %144 = vector.extract_strided_slice %128 {offsets = [48, 8], sizes = [8, 8], strides = [1, 1]} : vector<72x24xf32> to vector<8x8xf32>
    %145 = vector.extract_strided_slice %128 {offsets = [56, 8], sizes = [8, 8], strides = [1, 1]} : vector<72x24xf32> to vector<8x8xf32>
    %146 = vector.extract_strided_slice %128 {offsets = [64, 8], sizes = [8, 8], strides = [1, 1]} : vector<72x24xf32> to vector<8x8xf32>
    %147 = vector.extract_strided_slice %128 {offsets = [0, 16], sizes = [8, 8], strides = [1, 1]} : vector<72x24xf32> to vector<8x8xf32>
    %148 = vector.extract_strided_slice %128 {offsets = [8, 16], sizes = [8, 8], strides = [1, 1]} : vector<72x24xf32> to vector<8x8xf32>
    %149 = vector.extract_strided_slice %128 {offsets = [16, 16], sizes = [8, 8], strides = [1, 1]} : vector<72x24xf32> to vector<8x8xf32>
    %150 = vector.extract_strided_slice %128 {offsets = [24, 16], sizes = [8, 8], strides = [1, 1]} : vector<72x24xf32> to vector<8x8xf32>
    %151 = vector.extract_strided_slice %128 {offsets = [32, 16], sizes = [8, 8], strides = [1, 1]} : vector<72x24xf32> to vector<8x8xf32>
    %152 = vector.extract_strided_slice %128 {offsets = [40, 16], sizes = [8, 8], strides = [1, 1]} : vector<72x24xf32> to vector<8x8xf32>
    %153 = vector.extract_strided_slice %128 {offsets = [48, 16], sizes = [8, 8], strides = [1, 1]} : vector<72x24xf32> to vector<8x8xf32>
    %154 = vector.extract_strided_slice %128 {offsets = [56, 16], sizes = [8, 8], strides = [1, 1]} : vector<72x24xf32> to vector<8x8xf32>
    %155 = vector.extract_strided_slice %128 {offsets = [64, 16], sizes = [8, 8], strides = [1, 1]} : vector<72x24xf32> to vector<8x8xf32>
    %156 = arith.mulf %59, %65 : vector<8x8xf32>
    %157 = arith.mulf %72, %85 : vector<8x8xf32>
    %158 = arith.mulf %73, %86 : vector<8x8xf32>
    %159 = arith.addf %157, %158 : vector<8x8xf32>
    %160 = arith.mulf %74, %87 : vector<8x8xf32>
    %161 = arith.addf %159, %160 : vector<8x8xf32>
    %162 = arith.mulf %98, %129 : vector<8x8xf32>
    %163 = arith.mulf %99, %130 : vector<8x8xf32>
    %164 = arith.addf %162, %163 : vector<8x8xf32>
    %165 = arith.mulf %100, %131 : vector<8x8xf32>
    %166 = arith.addf %164, %165 : vector<8x8xf32>
    %167 = arith.mulf %101, %132 : vector<8x8xf32>
    %168 = arith.addf %166, %167 : vector<8x8xf32>
    %169 = arith.mulf %102, %133 : vector<8x8xf32>
    %170 = arith.addf %168, %169 : vector<8x8xf32>
    %171 = arith.mulf %103, %134 : vector<8x8xf32>
    %172 = arith.addf %170, %171 : vector<8x8xf32>
    %173 = arith.mulf %104, %135 : vector<8x8xf32>
    %174 = arith.addf %172, %173 : vector<8x8xf32>
    %175 = arith.mulf %105, %136 : vector<8x8xf32>
    %176 = arith.addf %174, %175 : vector<8x8xf32>
    %177 = arith.mulf %106, %137 : vector<8x8xf32>
    %178 = arith.addf %176, %177 : vector<8x8xf32>
    %179 = vector.broadcast %46 : vector<8x1xf32> to vector<8x8xf32>
    %180 = arith.mulf %179, %66 : vector<8x8xf32>
    %181 = vector.broadcast %46 : vector<8x1xf32> to vector<8x8xf32>
    %182 = arith.mulf %181, %88 : vector<8x8xf32>
    %183 = vector.broadcast %46 : vector<8x1xf32> to vector<8x8xf32>
    %184 = arith.mulf %183, %89 : vector<8x8xf32>
    %185 = vector.broadcast %46 : vector<8x1xf32> to vector<8x8xf32>
    %186 = arith.mulf %185, %90 : vector<8x8xf32>
    %187 = vector.broadcast %46 : vector<8x1xf32> to vector<8x8xf32>
    %188 = arith.mulf %187, %138 : vector<8x8xf32>
    %189 = vector.broadcast %46 : vector<8x1xf32> to vector<8x8xf32>
    %190 = arith.mulf %189, %139 : vector<8x8xf32>
    %191 = vector.broadcast %46 : vector<8x1xf32> to vector<8x8xf32>
    %192 = arith.mulf %191, %140 : vector<8x8xf32>
    %193 = vector.broadcast %46 : vector<8x1xf32> to vector<8x8xf32>
    %194 = arith.mulf %193, %141 : vector<8x8xf32>
    %195 = vector.broadcast %46 : vector<8x1xf32> to vector<8x8xf32>
    %196 = arith.mulf %195, %142 : vector<8x8xf32>
    %197 = vector.broadcast %46 : vector<8x1xf32> to vector<8x8xf32>
    %198 = arith.mulf %197, %143 : vector<8x8xf32>
    %199 = vector.broadcast %46 : vector<8x1xf32> to vector<8x8xf32>
    %200 = arith.mulf %199, %144 : vector<8x8xf32>
    %201 = vector.broadcast %46 : vector<8x1xf32> to vector<8x8xf32>
    %202 = arith.mulf %201, %145 : vector<8x8xf32>
    %203 = vector.broadcast %46 : vector<8x1xf32> to vector<8x8xf32>
    %204 = arith.mulf %203, %146 : vector<8x8xf32>
    %205 = vector.broadcast %43 : vector<8x1xf32> to vector<8x8xf32>
    %206 = arith.mulf %205, %66 : vector<8x8xf32>
    %207 = vector.broadcast %44 : vector<8x1xf32> to vector<8x8xf32>
    %208 = arith.mulf %207, %66 : vector<8x8xf32>
    %209 = vector.broadcast %45 : vector<8x1xf32> to vector<8x8xf32>
    %210 = arith.mulf %209, %66 : vector<8x8xf32>
    %211 = arith.addf %182, %206 : vector<8x8xf32>
    %212 = arith.addf %184, %208 : vector<8x8xf32>
    %213 = arith.addf %186, %210 : vector<8x8xf32>
    %214 = vector.broadcast %43 : vector<8x1xf32> to vector<8x8xf32>
    %215 = arith.mulf %214, %88 : vector<8x8xf32>
    %216 = vector.broadcast %44 : vector<8x1xf32> to vector<8x8xf32>
    %217 = arith.mulf %216, %89 : vector<8x8xf32>
    %218 = arith.addf %215, %217 : vector<8x8xf32>
    %219 = vector.broadcast %45 : vector<8x1xf32> to vector<8x8xf32>
    %220 = arith.mulf %219, %90 : vector<8x8xf32>
    %221 = arith.addf %218, %220 : vector<8x8xf32>
    %222 = arith.addf %180, %221 : vector<8x8xf32>
    %223 = vector.broadcast %43 : vector<8x1xf32> to vector<8x8xf32>
    %224 = arith.mulf %223, %88 : vector<8x8xf32>
    %225 = vector.broadcast %43 : vector<8x1xf32> to vector<8x8xf32>
    %226 = arith.mulf %225, %89 : vector<8x8xf32>
    %227 = vector.broadcast %43 : vector<8x1xf32> to vector<8x8xf32>
    %228 = arith.mulf %227, %90 : vector<8x8xf32>
    %229 = vector.broadcast %44 : vector<8x1xf32> to vector<8x8xf32>
    %230 = arith.mulf %229, %88 : vector<8x8xf32>
    %231 = vector.broadcast %44 : vector<8x1xf32> to vector<8x8xf32>
    %232 = arith.mulf %231, %89 : vector<8x8xf32>
    %233 = vector.broadcast %44 : vector<8x1xf32> to vector<8x8xf32>
    %234 = arith.mulf %233, %90 : vector<8x8xf32>
    %235 = vector.broadcast %45 : vector<8x1xf32> to vector<8x8xf32>
    %236 = arith.mulf %235, %88 : vector<8x8xf32>
    %237 = vector.broadcast %45 : vector<8x1xf32> to vector<8x8xf32>
    %238 = arith.mulf %237, %89 : vector<8x8xf32>
    %239 = vector.broadcast %45 : vector<8x1xf32> to vector<8x8xf32>
    %240 = arith.mulf %239, %90 : vector<8x8xf32>
    %241 = arith.addf %188, %224 : vector<8x8xf32>
    %242 = arith.addf %190, %226 : vector<8x8xf32>
    %243 = arith.addf %192, %228 : vector<8x8xf32>
    %244 = arith.addf %194, %230 : vector<8x8xf32>
    %245 = arith.addf %196, %232 : vector<8x8xf32>
    %246 = arith.addf %198, %234 : vector<8x8xf32>
    %247 = arith.addf %200, %236 : vector<8x8xf32>
    %248 = arith.addf %202, %238 : vector<8x8xf32>
    %249 = arith.addf %204, %240 : vector<8x8xf32>
    %250 = vector.broadcast %43 : vector<8x1xf32> to vector<8x8xf32>
    %251 = arith.mulf %250, %138 : vector<8x8xf32>
    %252 = vector.broadcast %44 : vector<8x1xf32> to vector<8x8xf32>
    %253 = arith.mulf %252, %141 : vector<8x8xf32>
    %254 = arith.addf %251, %253 : vector<8x8xf32>
    %255 = vector.broadcast %45 : vector<8x1xf32> to vector<8x8xf32>
    %256 = arith.mulf %255, %144 : vector<8x8xf32>
    %257 = arith.addf %254, %256 : vector<8x8xf32>
    %258 = vector.broadcast %43 : vector<8x1xf32> to vector<8x8xf32>
    %259 = arith.mulf %258, %139 : vector<8x8xf32>
    %260 = vector.broadcast %44 : vector<8x1xf32> to vector<8x8xf32>
    %261 = arith.mulf %260, %142 : vector<8x8xf32>
    %262 = arith.addf %259, %261 : vector<8x8xf32>
    %263 = vector.broadcast %45 : vector<8x1xf32> to vector<8x8xf32>
    %264 = arith.mulf %263, %145 : vector<8x8xf32>
    %265 = arith.addf %262, %264 : vector<8x8xf32>
    %266 = vector.broadcast %43 : vector<8x1xf32> to vector<8x8xf32>
    %267 = arith.mulf %266, %140 : vector<8x8xf32>
    %268 = vector.broadcast %44 : vector<8x1xf32> to vector<8x8xf32>
    %269 = arith.mulf %268, %143 : vector<8x8xf32>
    %270 = arith.addf %267, %269 : vector<8x8xf32>
    %271 = vector.broadcast %45 : vector<8x1xf32> to vector<8x8xf32>
    %272 = arith.mulf %271, %146 : vector<8x8xf32>
    %273 = arith.addf %270, %272 : vector<8x8xf32>
    %274 = arith.addf %211, %257 : vector<8x8xf32>
    %275 = arith.addf %212, %265 : vector<8x8xf32>
    %276 = arith.addf %213, %273 : vector<8x8xf32>
    %277 = vector.broadcast %47 : vector<8x1xf32> to vector<8x8xf32>
    %278 = arith.mulf %277, %66 : vector<8x8xf32>
    %279 = vector.broadcast %48 : vector<8x1xf32> to vector<8x8xf32>
    %280 = arith.mulf %279, %66 : vector<8x8xf32>
    %281 = vector.broadcast %49 : vector<8x1xf32> to vector<8x8xf32>
    %282 = arith.mulf %281, %66 : vector<8x8xf32>
    %283 = vector.broadcast %50 : vector<8x1xf32> to vector<8x8xf32>
    %284 = arith.mulf %283, %66 : vector<8x8xf32>
    %285 = vector.broadcast %51 : vector<8x1xf32> to vector<8x8xf32>
    %286 = arith.mulf %285, %66 : vector<8x8xf32>
    %287 = vector.broadcast %52 : vector<8x1xf32> to vector<8x8xf32>
    %288 = arith.mulf %287, %66 : vector<8x8xf32>
    %289 = vector.broadcast %53 : vector<8x1xf32> to vector<8x8xf32>
    %290 = arith.mulf %289, %66 : vector<8x8xf32>
    %291 = vector.broadcast %54 : vector<8x1xf32> to vector<8x8xf32>
    %292 = arith.mulf %291, %66 : vector<8x8xf32>
    %293 = vector.broadcast %55 : vector<8x1xf32> to vector<8x8xf32>
    %294 = arith.mulf %293, %66 : vector<8x8xf32>
    %295 = arith.addf %241, %278 : vector<8x8xf32>
    %296 = arith.addf %242, %280 : vector<8x8xf32>
    %297 = arith.addf %243, %282 : vector<8x8xf32>
    %298 = arith.addf %244, %284 : vector<8x8xf32>
    %299 = arith.addf %245, %286 : vector<8x8xf32>
    %300 = arith.addf %246, %288 : vector<8x8xf32>
    %301 = arith.addf %247, %290 : vector<8x8xf32>
    %302 = arith.addf %248, %292 : vector<8x8xf32>
    %303 = arith.addf %249, %294 : vector<8x8xf32>
    %304 = vector.broadcast %47 : vector<8x1xf32> to vector<8x8xf32>
    %305 = arith.mulf %304, %88 : vector<8x8xf32>
    %306 = vector.broadcast %48 : vector<8x1xf32> to vector<8x8xf32>
    %307 = arith.mulf %306, %89 : vector<8x8xf32>
    %308 = arith.addf %305, %307 : vector<8x8xf32>
    %309 = vector.broadcast %49 : vector<8x1xf32> to vector<8x8xf32>
    %310 = arith.mulf %309, %90 : vector<8x8xf32>
    %311 = arith.addf %308, %310 : vector<8x8xf32>
    %312 = vector.broadcast %50 : vector<8x1xf32> to vector<8x8xf32>
    %313 = arith.mulf %312, %88 : vector<8x8xf32>
    %314 = vector.broadcast %51 : vector<8x1xf32> to vector<8x8xf32>
    %315 = arith.mulf %314, %89 : vector<8x8xf32>
    %316 = arith.addf %313, %315 : vector<8x8xf32>
    %317 = vector.broadcast %52 : vector<8x1xf32> to vector<8x8xf32>
    %318 = arith.mulf %317, %90 : vector<8x8xf32>
    %319 = arith.addf %316, %318 : vector<8x8xf32>
    %320 = vector.broadcast %53 : vector<8x1xf32> to vector<8x8xf32>
    %321 = arith.mulf %320, %88 : vector<8x8xf32>
    %322 = vector.broadcast %54 : vector<8x1xf32> to vector<8x8xf32>
    %323 = arith.mulf %322, %89 : vector<8x8xf32>
    %324 = arith.addf %321, %323 : vector<8x8xf32>
    %325 = vector.broadcast %55 : vector<8x1xf32> to vector<8x8xf32>
    %326 = arith.mulf %325, %90 : vector<8x8xf32>
    %327 = arith.addf %324, %326 : vector<8x8xf32>
    %328 = arith.addf %274, %311 : vector<8x8xf32>
    %329 = arith.addf %275, %319 : vector<8x8xf32>
    %330 = arith.addf %276, %327 : vector<8x8xf32>
    %331 = vector.broadcast %47 : vector<8x1xf32> to vector<8x8xf32>
    %332 = arith.mulf %331, %138 : vector<8x8xf32>
    %333 = vector.broadcast %48 : vector<8x1xf32> to vector<8x8xf32>
    %334 = arith.mulf %333, %139 : vector<8x8xf32>
    %335 = arith.addf %332, %334 : vector<8x8xf32>
    %336 = vector.broadcast %49 : vector<8x1xf32> to vector<8x8xf32>
    %337 = arith.mulf %336, %140 : vector<8x8xf32>
    %338 = arith.addf %335, %337 : vector<8x8xf32>
    %339 = vector.broadcast %50 : vector<8x1xf32> to vector<8x8xf32>
    %340 = arith.mulf %339, %141 : vector<8x8xf32>
    %341 = arith.addf %338, %340 : vector<8x8xf32>
    %342 = vector.broadcast %51 : vector<8x1xf32> to vector<8x8xf32>
    %343 = arith.mulf %342, %142 : vector<8x8xf32>
    %344 = arith.addf %341, %343 : vector<8x8xf32>
    %345 = vector.broadcast %52 : vector<8x1xf32> to vector<8x8xf32>
    %346 = arith.mulf %345, %143 : vector<8x8xf32>
    %347 = arith.addf %344, %346 : vector<8x8xf32>
    %348 = vector.broadcast %53 : vector<8x1xf32> to vector<8x8xf32>
    %349 = arith.mulf %348, %144 : vector<8x8xf32>
    %350 = arith.addf %347, %349 : vector<8x8xf32>
    %351 = vector.broadcast %54 : vector<8x1xf32> to vector<8x8xf32>
    %352 = arith.mulf %351, %145 : vector<8x8xf32>
    %353 = arith.addf %350, %352 : vector<8x8xf32>
    %354 = vector.broadcast %55 : vector<8x1xf32> to vector<8x8xf32>
    %355 = arith.mulf %354, %146 : vector<8x8xf32>
    %356 = arith.addf %353, %355 : vector<8x8xf32>
    %357 = arith.addf %222, %356 : vector<8x8xf32>
    %358 = vector.broadcast %47 : vector<8x1xf32> to vector<8x8xf32>
    %359 = arith.mulf %358, %138 : vector<8x8xf32>
    %360 = vector.broadcast %48 : vector<8x1xf32> to vector<8x8xf32>
    %361 = arith.mulf %360, %141 : vector<8x8xf32>
    %362 = arith.addf %359, %361 : vector<8x8xf32>
    %363 = vector.broadcast %49 : vector<8x1xf32> to vector<8x8xf32>
    %364 = arith.mulf %363, %144 : vector<8x8xf32>
    %365 = arith.addf %362, %364 : vector<8x8xf32>
    %366 = vector.broadcast %47 : vector<8x1xf32> to vector<8x8xf32>
    %367 = arith.mulf %366, %139 : vector<8x8xf32>
    %368 = vector.broadcast %48 : vector<8x1xf32> to vector<8x8xf32>
    %369 = arith.mulf %368, %142 : vector<8x8xf32>
    %370 = arith.addf %367, %369 : vector<8x8xf32>
    %371 = vector.broadcast %49 : vector<8x1xf32> to vector<8x8xf32>
    %372 = arith.mulf %371, %145 : vector<8x8xf32>
    %373 = arith.addf %370, %372 : vector<8x8xf32>
    %374 = vector.broadcast %47 : vector<8x1xf32> to vector<8x8xf32>
    %375 = arith.mulf %374, %140 : vector<8x8xf32>
    %376 = vector.broadcast %48 : vector<8x1xf32> to vector<8x8xf32>
    %377 = arith.mulf %376, %143 : vector<8x8xf32>
    %378 = arith.addf %375, %377 : vector<8x8xf32>
    %379 = vector.broadcast %49 : vector<8x1xf32> to vector<8x8xf32>
    %380 = arith.mulf %379, %146 : vector<8x8xf32>
    %381 = arith.addf %378, %380 : vector<8x8xf32>
    %382 = vector.broadcast %50 : vector<8x1xf32> to vector<8x8xf32>
    %383 = arith.mulf %382, %138 : vector<8x8xf32>
    %384 = vector.broadcast %51 : vector<8x1xf32> to vector<8x8xf32>
    %385 = arith.mulf %384, %141 : vector<8x8xf32>
    %386 = arith.addf %383, %385 : vector<8x8xf32>
    %387 = vector.broadcast %52 : vector<8x1xf32> to vector<8x8xf32>
    %388 = arith.mulf %387, %144 : vector<8x8xf32>
    %389 = arith.addf %386, %388 : vector<8x8xf32>
    %390 = vector.broadcast %50 : vector<8x1xf32> to vector<8x8xf32>
    %391 = arith.mulf %390, %139 : vector<8x8xf32>
    %392 = vector.broadcast %51 : vector<8x1xf32> to vector<8x8xf32>
    %393 = arith.mulf %392, %142 : vector<8x8xf32>
    %394 = arith.addf %391, %393 : vector<8x8xf32>
    %395 = vector.broadcast %52 : vector<8x1xf32> to vector<8x8xf32>
    %396 = arith.mulf %395, %145 : vector<8x8xf32>
    %397 = arith.addf %394, %396 : vector<8x8xf32>
    %398 = vector.broadcast %50 : vector<8x1xf32> to vector<8x8xf32>
    %399 = arith.mulf %398, %140 : vector<8x8xf32>
    %400 = vector.broadcast %51 : vector<8x1xf32> to vector<8x8xf32>
    %401 = arith.mulf %400, %143 : vector<8x8xf32>
    %402 = arith.addf %399, %401 : vector<8x8xf32>
    %403 = vector.broadcast %52 : vector<8x1xf32> to vector<8x8xf32>
    %404 = arith.mulf %403, %146 : vector<8x8xf32>
    %405 = arith.addf %402, %404 : vector<8x8xf32>
    %406 = vector.broadcast %53 : vector<8x1xf32> to vector<8x8xf32>
    %407 = arith.mulf %406, %138 : vector<8x8xf32>
    %408 = vector.broadcast %54 : vector<8x1xf32> to vector<8x8xf32>
    %409 = arith.mulf %408, %141 : vector<8x8xf32>
    %410 = arith.addf %407, %409 : vector<8x8xf32>
    %411 = vector.broadcast %55 : vector<8x1xf32> to vector<8x8xf32>
    %412 = arith.mulf %411, %144 : vector<8x8xf32>
    %413 = arith.addf %410, %412 : vector<8x8xf32>
    %414 = vector.broadcast %53 : vector<8x1xf32> to vector<8x8xf32>
    %415 = arith.mulf %414, %139 : vector<8x8xf32>
    %416 = vector.broadcast %54 : vector<8x1xf32> to vector<8x8xf32>
    %417 = arith.mulf %416, %142 : vector<8x8xf32>
    %418 = arith.addf %415, %417 : vector<8x8xf32>
    %419 = vector.broadcast %55 : vector<8x1xf32> to vector<8x8xf32>
    %420 = arith.mulf %419, %145 : vector<8x8xf32>
    %421 = arith.addf %418, %420 : vector<8x8xf32>
    %422 = vector.broadcast %53 : vector<8x1xf32> to vector<8x8xf32>
    %423 = arith.mulf %422, %140 : vector<8x8xf32>
    %424 = vector.broadcast %54 : vector<8x1xf32> to vector<8x8xf32>
    %425 = arith.mulf %424, %143 : vector<8x8xf32>
    %426 = arith.addf %423, %425 : vector<8x8xf32>
    %427 = vector.broadcast %55 : vector<8x1xf32> to vector<8x8xf32>
    %428 = arith.mulf %427, %146 : vector<8x8xf32>
    %429 = arith.addf %426, %428 : vector<8x8xf32>
    %430 = arith.addf %295, %365 : vector<8x8xf32>
    %431 = arith.addf %296, %373 : vector<8x8xf32>
    %432 = arith.addf %297, %381 : vector<8x8xf32>
    %433 = arith.addf %298, %389 : vector<8x8xf32>
    %434 = arith.addf %299, %397 : vector<8x8xf32>
    %435 = arith.addf %300, %405 : vector<8x8xf32>
    %436 = arith.addf %301, %413 : vector<8x8xf32>
    %437 = arith.addf %302, %421 : vector<8x8xf32>
    %438 = arith.addf %303, %429 : vector<8x8xf32>
    %c0_36 = arith.constant 0 : index
    %c0_37 = arith.constant 0 : index
    %c0_38 = arith.constant 0 : index
    %439 = vector.load %arg10[%c0_36, %c0_37, %c0_38] : memref<3x8x8xf32, #tpu.memory_space<vmem>>, vector<1x8x8xf32>
    %440 = vector.shape_cast %439 : vector<1x8x8xf32> to vector<8x8xf32>
    %cst_39 = arith.constant dense<0.000000e+00> : vector<8x8xf32>
    %441 = tpu.matmul %357, %440, %cst_39 {dimension_numbers = #tpu.dot_dimension_numbers<[1], [0], [0], [1], [0, 0, 1, 1], [], []>} : vector<8x8xf32>, vector<8x8xf32>, vector<8x8xf32> -> vector<8x8xf32>
    %c1_40 = arith.constant 1 : index
    %c0_41 = arith.constant 0 : index
    %c0_42 = arith.constant 0 : index
    %442 = vector.load %arg10[%c1_40, %c0_41, %c0_42] : memref<3x8x8xf32, #tpu.memory_space<vmem>>, vector<1x8x8xf32>
    %443 = vector.shape_cast %442 : vector<1x8x8xf32> to vector<8x8xf32>
    %444 = tpu.concatenate %328, %329, %330 in 0 : vector<8x8xf32>, vector<8x8xf32>, vector<8x8xf32> -> vector<24x8xf32>
    %cst_43 = arith.constant dense<0.000000e+00> : vector<24x8xf32>
    %445 = tpu.matmul %444, %443, %cst_43 {dimension_numbers = #tpu.dot_dimension_numbers<[1], [0], [0], [1], [0, 0, 1, 1], [], []>} : vector<24x8xf32>, vector<8x8xf32>, vector<24x8xf32> -> vector<24x8xf32>
    %446 = vector.extract_strided_slice %445 {offsets = [0, 0], sizes = [8, 8], strides = [1, 1]} : vector<24x8xf32> to vector<8x8xf32>
    %447 = vector.extract_strided_slice %445 {offsets = [8, 0], sizes = [8, 8], strides = [1, 1]} : vector<24x8xf32> to vector<8x8xf32>
    %448 = vector.extract_strided_slice %445 {offsets = [16, 0], sizes = [8, 8], strides = [1, 1]} : vector<24x8xf32> to vector<8x8xf32>
    %c2_44 = arith.constant 2 : index
    %c0_45 = arith.constant 0 : index
    %c0_46 = arith.constant 0 : index
    %449 = vector.load %arg10[%c2_44, %c0_45, %c0_46] : memref<3x8x8xf32, #tpu.memory_space<vmem>>, vector<1x8x8xf32>
    %450 = vector.shape_cast %449 : vector<1x8x8xf32> to vector<8x8xf32>
    %451 = tpu.concatenate %430, %431, %432, %433, %434, %435, %436, %437, %438 in 0 : vector<8x8xf32>, vector<8x8xf32>, vector<8x8xf32>, vector<8x8xf32>, vector<8x8xf32>, vector<8x8xf32>, vector<8x8xf32>, vector<8x8xf32>, vector<8x8xf32> -> vector<72x8xf32>
    %cst_47 = arith.constant dense<0.000000e+00> : vector<72x8xf32>
    %452 = tpu.matmul %451, %450, %cst_47 {dimension_numbers = #tpu.dot_dimension_numbers<[1], [0], [0], [1], [0, 0, 1, 1], [], []>} : vector<72x8xf32>, vector<8x8xf32>, vector<72x8xf32> -> vector<72x8xf32>
    %453 = vector.extract_strided_slice %452 {offsets = [0, 0], sizes = [8, 8], strides = [1, 1]} : vector<72x8xf32> to vector<8x8xf32>
    %454 = vector.extract_strided_slice %452 {offsets = [8, 0], sizes = [8, 8], strides = [1, 1]} : vector<72x8xf32> to vector<8x8xf32>
    %455 = vector.extract_strided_slice %452 {offsets = [16, 0], sizes = [8, 8], strides = [1, 1]} : vector<72x8xf32> to vector<8x8xf32>
    %456 = vector.extract_strided_slice %452 {offsets = [24, 0], sizes = [8, 8], strides = [1, 1]} : vector<72x8xf32> to vector<8x8xf32>
    %457 = vector.extract_strided_slice %452 {offsets = [32, 0], sizes = [8, 8], strides = [1, 1]} : vector<72x8xf32> to vector<8x8xf32>
    %458 = vector.extract_strided_slice %452 {offsets = [40, 0], sizes = [8, 8], strides = [1, 1]} : vector<72x8xf32> to vector<8x8xf32>
    %459 = vector.extract_strided_slice %452 {offsets = [48, 0], sizes = [8, 8], strides = [1, 1]} : vector<72x8xf32> to vector<8x8xf32>
    %460 = vector.extract_strided_slice %452 {offsets = [56, 0], sizes = [8, 8], strides = [1, 1]} : vector<72x8xf32> to vector<8x8xf32>
    %461 = vector.extract_strided_slice %452 {offsets = [64, 0], sizes = [8, 8], strides = [1, 1]} : vector<72x8xf32> to vector<8x8xf32>
    %462 = arith.mulf %60, %441 : vector<8x8xf32>
    %463 = arith.mulf %60, %446 : vector<8x8xf32>
    %464 = arith.mulf %60, %447 : vector<8x8xf32>
    %465 = arith.mulf %60, %448 : vector<8x8xf32>
    %466 = arith.mulf %60, %453 : vector<8x8xf32>
    %467 = arith.mulf %60, %454 : vector<8x8xf32>
    %468 = arith.mulf %60, %455 : vector<8x8xf32>
    %469 = arith.mulf %60, %456 : vector<8x8xf32>
    %470 = arith.mulf %60, %457 : vector<8x8xf32>
    %471 = arith.mulf %60, %458 : vector<8x8xf32>
    %472 = arith.mulf %60, %459 : vector<8x8xf32>
    %473 = arith.mulf %60, %460 : vector<8x8xf32>
    %474 = arith.mulf %60, %461 : vector<8x8xf32>
    %475 = arith.mulf %75, %441 : vector<8x8xf32>
    %476 = arith.mulf %76, %441 : vector<8x8xf32>
    %477 = arith.mulf %77, %441 : vector<8x8xf32>
    %478 = arith.addf %463, %475 : vector<8x8xf32>
    %479 = arith.addf %464, %476 : vector<8x8xf32>
    %480 = arith.addf %465, %477 : vector<8x8xf32>
    %481 = arith.mulf %75, %446 : vector<8x8xf32>
    %482 = arith.mulf %76, %447 : vector<8x8xf32>
    %483 = arith.addf %481, %482 : vector<8x8xf32>
    %484 = arith.mulf %77, %448 : vector<8x8xf32>
    %485 = arith.addf %483, %484 : vector<8x8xf32>
    %486 = arith.addf %462, %485 : vector<8x8xf32>
    %487 = arith.mulf %75, %446 : vector<8x8xf32>
    %488 = arith.mulf %75, %447 : vector<8x8xf32>
    %489 = arith.mulf %75, %448 : vector<8x8xf32>
    %490 = arith.mulf %76, %446 : vector<8x8xf32>
    %491 = arith.mulf %76, %447 : vector<8x8xf32>
    %492 = arith.mulf %76, %448 : vector<8x8xf32>
    %493 = arith.mulf %77, %446 : vector<8x8xf32>
    %494 = arith.mulf %77, %447 : vector<8x8xf32>
    %495 = arith.mulf %77, %448 : vector<8x8xf32>
    %496 = arith.addf %466, %487 : vector<8x8xf32>
    %497 = arith.addf %467, %488 : vector<8x8xf32>
    %498 = arith.addf %468, %489 : vector<8x8xf32>
    %499 = arith.addf %469, %490 : vector<8x8xf32>
    %500 = arith.addf %470, %491 : vector<8x8xf32>
    %501 = arith.addf %471, %492 : vector<8x8xf32>
    %502 = arith.addf %472, %493 : vector<8x8xf32>
    %503 = arith.addf %473, %494 : vector<8x8xf32>
    %504 = arith.addf %474, %495 : vector<8x8xf32>
    %505 = arith.mulf %75, %453 : vector<8x8xf32>
    %506 = arith.mulf %76, %456 : vector<8x8xf32>
    %507 = arith.addf %505, %506 : vector<8x8xf32>
    %508 = arith.mulf %77, %459 : vector<8x8xf32>
    %509 = arith.addf %507, %508 : vector<8x8xf32>
    %510 = arith.mulf %75, %454 : vector<8x8xf32>
    %511 = arith.mulf %76, %457 : vector<8x8xf32>
    %512 = arith.addf %510, %511 : vector<8x8xf32>
    %513 = arith.mulf %77, %460 : vector<8x8xf32>
    %514 = arith.addf %512, %513 : vector<8x8xf32>
    %515 = arith.mulf %75, %455 : vector<8x8xf32>
    %516 = arith.mulf %76, %458 : vector<8x8xf32>
    %517 = arith.addf %515, %516 : vector<8x8xf32>
    %518 = arith.mulf %77, %461 : vector<8x8xf32>
    %519 = arith.addf %517, %518 : vector<8x8xf32>
    %520 = arith.addf %478, %509 : vector<8x8xf32>
    %521 = arith.addf %479, %514 : vector<8x8xf32>
    %522 = arith.addf %480, %519 : vector<8x8xf32>
    %523 = arith.mulf %107, %441 : vector<8x8xf32>
    %524 = arith.mulf %108, %441 : vector<8x8xf32>
    %525 = arith.mulf %109, %441 : vector<8x8xf32>
    %526 = arith.mulf %110, %441 : vector<8x8xf32>
    %527 = arith.mulf %111, %441 : vector<8x8xf32>
    %528 = arith.mulf %112, %441 : vector<8x8xf32>
    %529 = arith.mulf %113, %441 : vector<8x8xf32>
    %530 = arith.mulf %114, %441 : vector<8x8xf32>
    %531 = arith.mulf %115, %441 : vector<8x8xf32>
    %532 = arith.addf %496, %523 : vector<8x8xf32>
    %533 = arith.addf %497, %524 : vector<8x8xf32>
    %534 = arith.addf %498, %525 : vector<8x8xf32>
    %535 = arith.addf %499, %526 : vector<8x8xf32>
    %536 = arith.addf %500, %527 : vector<8x8xf32>
    %537 = arith.addf %501, %528 : vector<8x8xf32>
    %538 = arith.addf %502, %529 : vector<8x8xf32>
    %539 = arith.addf %503, %530 : vector<8x8xf32>
    %540 = arith.addf %504, %531 : vector<8x8xf32>
    %541 = arith.mulf %107, %446 : vector<8x8xf32>
    %542 = arith.mulf %108, %447 : vector<8x8xf32>
    %543 = arith.addf %541, %542 : vector<8x8xf32>
    %544 = arith.mulf %109, %448 : vector<8x8xf32>
    %545 = arith.addf %543, %544 : vector<8x8xf32>
    %546 = arith.mulf %110, %446 : vector<8x8xf32>
    %547 = arith.mulf %111, %447 : vector<8x8xf32>
    %548 = arith.addf %546, %547 : vector<8x8xf32>
    %549 = arith.mulf %112, %448 : vector<8x8xf32>
    %550 = arith.addf %548, %549 : vector<8x8xf32>
    %551 = arith.mulf %113, %446 : vector<8x8xf32>
    %552 = arith.mulf %114, %447 : vector<8x8xf32>
    %553 = arith.addf %551, %552 : vector<8x8xf32>
    %554 = arith.mulf %115, %448 : vector<8x8xf32>
    %555 = arith.addf %553, %554 : vector<8x8xf32>
    %556 = arith.addf %520, %545 : vector<8x8xf32>
    %557 = arith.addf %521, %550 : vector<8x8xf32>
    %558 = arith.addf %522, %555 : vector<8x8xf32>
    %559 = arith.mulf %107, %453 : vector<8x8xf32>
    %560 = arith.mulf %108, %454 : vector<8x8xf32>
    %561 = arith.addf %559, %560 : vector<8x8xf32>
    %562 = arith.mulf %109, %455 : vector<8x8xf32>
    %563 = arith.addf %561, %562 : vector<8x8xf32>
    %564 = arith.mulf %110, %456 : vector<8x8xf32>
    %565 = arith.addf %563, %564 : vector<8x8xf32>
    %566 = arith.mulf %111, %457 : vector<8x8xf32>
    %567 = arith.addf %565, %566 : vector<8x8xf32>
    %568 = arith.mulf %112, %458 : vector<8x8xf32>
    %569 = arith.addf %567, %568 : vector<8x8xf32>
    %570 = arith.mulf %113, %459 : vector<8x8xf32>
    %571 = arith.addf %569, %570 : vector<8x8xf32>
    %572 = arith.mulf %114, %460 : vector<8x8xf32>
    %573 = arith.addf %571, %572 : vector<8x8xf32>
    %574 = arith.mulf %115, %461 : vector<8x8xf32>
    %575 = arith.addf %573, %574 : vector<8x8xf32>
    %576 = arith.addf %486, %575 : vector<8x8xf32>
    %577 = arith.mulf %107, %453 : vector<8x8xf32>
    %578 = arith.mulf %108, %456 : vector<8x8xf32>
    %579 = arith.addf %577, %578 : vector<8x8xf32>
    %580 = arith.mulf %109, %459 : vector<8x8xf32>
    %581 = arith.addf %579, %580 : vector<8x8xf32>
    %582 = arith.mulf %107, %454 : vector<8x8xf32>
    %583 = arith.mulf %108, %457 : vector<8x8xf32>
    %584 = arith.addf %582, %583 : vector<8x8xf32>
    %585 = arith.mulf %109, %460 : vector<8x8xf32>
    %586 = arith.addf %584, %585 : vector<8x8xf32>
    %587 = arith.mulf %107, %455 : vector<8x8xf32>
    %588 = arith.mulf %108, %458 : vector<8x8xf32>
    %589 = arith.addf %587, %588 : vector<8x8xf32>
    %590 = arith.mulf %109, %461 : vector<8x8xf32>
    %591 = arith.addf %589, %590 : vector<8x8xf32>
    %592 = arith.mulf %110, %453 : vector<8x8xf32>
    %593 = arith.mulf %111, %456 : vector<8x8xf32>
    %594 = arith.addf %592, %593 : vector<8x8xf32>
    %595 = arith.mulf %112, %459 : vector<8x8xf32>
    %596 = arith.addf %594, %595 : vector<8x8xf32>
    %597 = arith.mulf %110, %454 : vector<8x8xf32>
    %598 = arith.mulf %111, %457 : vector<8x8xf32>
    %599 = arith.addf %597, %598 : vector<8x8xf32>
    %600 = arith.mulf %112, %460 : vector<8x8xf32>
    %601 = arith.addf %599, %600 : vector<8x8xf32>
    %602 = arith.mulf %110, %455 : vector<8x8xf32>
    %603 = arith.mulf %111, %458 : vector<8x8xf32>
    %604 = arith.addf %602, %603 : vector<8x8xf32>
    %605 = arith.mulf %112, %461 : vector<8x8xf32>
    %606 = arith.addf %604, %605 : vector<8x8xf32>
    %607 = arith.mulf %113, %453 : vector<8x8xf32>
    %608 = arith.mulf %114, %456 : vector<8x8xf32>
    %609 = arith.addf %607, %608 : vector<8x8xf32>
    %610 = arith.mulf %115, %459 : vector<8x8xf32>
    %611 = arith.addf %609, %610 : vector<8x8xf32>
    %612 = arith.mulf %113, %454 : vector<8x8xf32>
    %613 = arith.mulf %114, %457 : vector<8x8xf32>
    %614 = arith.addf %612, %613 : vector<8x8xf32>
    %615 = arith.mulf %115, %460 : vector<8x8xf32>
    %616 = arith.addf %614, %615 : vector<8x8xf32>
    %617 = arith.mulf %113, %455 : vector<8x8xf32>
    %618 = arith.mulf %114, %458 : vector<8x8xf32>
    %619 = arith.addf %617, %618 : vector<8x8xf32>
    %620 = arith.mulf %115, %461 : vector<8x8xf32>
    %621 = arith.addf %619, %620 : vector<8x8xf32>
    %622 = arith.addf %532, %581 : vector<8x8xf32>
    %623 = arith.addf %533, %586 : vector<8x8xf32>
    %624 = arith.addf %534, %591 : vector<8x8xf32>
    %625 = arith.addf %535, %596 : vector<8x8xf32>
    %626 = arith.addf %536, %601 : vector<8x8xf32>
    %627 = arith.addf %537, %606 : vector<8x8xf32>
    %628 = arith.addf %538, %611 : vector<8x8xf32>
    %629 = arith.addf %539, %616 : vector<8x8xf32>
    %630 = arith.addf %540, %621 : vector<8x8xf32>
    %631 = vector.broadcast %46 : vector<8x1xf32> to vector<8x8xf32>
    %632 = arith.mulf %61, %631 : vector<8x8xf32>
    %633 = vector.broadcast %43 : vector<8x1xf32> to vector<8x8xf32>
    %634 = arith.mulf %61, %633 : vector<8x8xf32>
    %635 = vector.broadcast %44 : vector<8x1xf32> to vector<8x8xf32>
    %636 = arith.mulf %61, %635 : vector<8x8xf32>
    %637 = vector.broadcast %45 : vector<8x1xf32> to vector<8x8xf32>
    %638 = arith.mulf %61, %637 : vector<8x8xf32>
    %639 = vector.broadcast %47 : vector<8x1xf32> to vector<8x8xf32>
    %640 = arith.mulf %61, %639 : vector<8x8xf32>
    %641 = vector.broadcast %48 : vector<8x1xf32> to vector<8x8xf32>
    %642 = arith.mulf %61, %641 : vector<8x8xf32>
    %643 = vector.broadcast %49 : vector<8x1xf32> to vector<8x8xf32>
    %644 = arith.mulf %61, %643 : vector<8x8xf32>
    %645 = vector.broadcast %50 : vector<8x1xf32> to vector<8x8xf32>
    %646 = arith.mulf %61, %645 : vector<8x8xf32>
    %647 = vector.broadcast %51 : vector<8x1xf32> to vector<8x8xf32>
    %648 = arith.mulf %61, %647 : vector<8x8xf32>
    %649 = vector.broadcast %52 : vector<8x1xf32> to vector<8x8xf32>
    %650 = arith.mulf %61, %649 : vector<8x8xf32>
    %651 = vector.broadcast %53 : vector<8x1xf32> to vector<8x8xf32>
    %652 = arith.mulf %61, %651 : vector<8x8xf32>
    %653 = vector.broadcast %54 : vector<8x1xf32> to vector<8x8xf32>
    %654 = arith.mulf %61, %653 : vector<8x8xf32>
    %655 = vector.broadcast %55 : vector<8x1xf32> to vector<8x8xf32>
    %656 = arith.mulf %61, %655 : vector<8x8xf32>
    %657 = vector.broadcast %46 : vector<8x1xf32> to vector<8x8xf32>
    %658 = arith.mulf %78, %657 : vector<8x8xf32>
    %659 = vector.broadcast %46 : vector<8x1xf32> to vector<8x8xf32>
    %660 = arith.mulf %79, %659 : vector<8x8xf32>
    %661 = vector.broadcast %46 : vector<8x1xf32> to vector<8x8xf32>
    %662 = arith.mulf %80, %661 : vector<8x8xf32>
    %663 = arith.addf %634, %658 : vector<8x8xf32>
    %664 = arith.addf %636, %660 : vector<8x8xf32>
    %665 = arith.addf %638, %662 : vector<8x8xf32>
    %666 = vector.broadcast %43 : vector<8x1xf32> to vector<8x8xf32>
    %667 = arith.mulf %78, %666 : vector<8x8xf32>
    %668 = vector.broadcast %44 : vector<8x1xf32> to vector<8x8xf32>
    %669 = arith.mulf %79, %668 : vector<8x8xf32>
    %670 = arith.addf %667, %669 : vector<8x8xf32>
    %671 = vector.broadcast %45 : vector<8x1xf32> to vector<8x8xf32>
    %672 = arith.mulf %80, %671 : vector<8x8xf32>
    %673 = arith.addf %670, %672 : vector<8x8xf32>
    %674 = arith.addf %632, %673 : vector<8x8xf32>
    %675 = vector.broadcast %43 : vector<8x1xf32> to vector<8x8xf32>
    %676 = arith.mulf %78, %675 : vector<8x8xf32>
    %677 = vector.broadcast %44 : vector<8x1xf32> to vector<8x8xf32>
    %678 = arith.mulf %78, %677 : vector<8x8xf32>
    %679 = vector.broadcast %45 : vector<8x1xf32> to vector<8x8xf32>
    %680 = arith.mulf %78, %679 : vector<8x8xf32>
    %681 = vector.broadcast %43 : vector<8x1xf32> to vector<8x8xf32>
    %682 = arith.mulf %79, %681 : vector<8x8xf32>
    %683 = vector.broadcast %44 : vector<8x1xf32> to vector<8x8xf32>
    %684 = arith.mulf %79, %683 : vector<8x8xf32>
    %685 = vector.broadcast %45 : vector<8x1xf32> to vector<8x8xf32>
    %686 = arith.mulf %79, %685 : vector<8x8xf32>
    %687 = vector.broadcast %43 : vector<8x1xf32> to vector<8x8xf32>
    %688 = arith.mulf %80, %687 : vector<8x8xf32>
    %689 = vector.broadcast %44 : vector<8x1xf32> to vector<8x8xf32>
    %690 = arith.mulf %80, %689 : vector<8x8xf32>
    %691 = vector.broadcast %45 : vector<8x1xf32> to vector<8x8xf32>
    %692 = arith.mulf %80, %691 : vector<8x8xf32>
    %693 = arith.addf %640, %676 : vector<8x8xf32>
    %694 = arith.addf %642, %678 : vector<8x8xf32>
    %695 = arith.addf %644, %680 : vector<8x8xf32>
    %696 = arith.addf %646, %682 : vector<8x8xf32>
    %697 = arith.addf %648, %684 : vector<8x8xf32>
    %698 = arith.addf %650, %686 : vector<8x8xf32>
    %699 = arith.addf %652, %688 : vector<8x8xf32>
    %700 = arith.addf %654, %690 : vector<8x8xf32>
    %701 = arith.addf %656, %692 : vector<8x8xf32>
    %702 = vector.broadcast %47 : vector<8x1xf32> to vector<8x8xf32>
    %703 = arith.mulf %78, %702 : vector<8x8xf32>
    %704 = vector.broadcast %50 : vector<8x1xf32> to vector<8x8xf32>
    %705 = arith.mulf %79, %704 : vector<8x8xf32>
    %706 = arith.addf %703, %705 : vector<8x8xf32>
    %707 = vector.broadcast %53 : vector<8x1xf32> to vector<8x8xf32>
    %708 = arith.mulf %80, %707 : vector<8x8xf32>
    %709 = arith.addf %706, %708 : vector<8x8xf32>
    %710 = vector.broadcast %48 : vector<8x1xf32> to vector<8x8xf32>
    %711 = arith.mulf %78, %710 : vector<8x8xf32>
    %712 = vector.broadcast %51 : vector<8x1xf32> to vector<8x8xf32>
    %713 = arith.mulf %79, %712 : vector<8x8xf32>
    %714 = arith.addf %711, %713 : vector<8x8xf32>
    %715 = vector.broadcast %54 : vector<8x1xf32> to vector<8x8xf32>
    %716 = arith.mulf %80, %715 : vector<8x8xf32>
    %717 = arith.addf %714, %716 : vector<8x8xf32>
    %718 = vector.broadcast %49 : vector<8x1xf32> to vector<8x8xf32>
    %719 = arith.mulf %78, %718 : vector<8x8xf32>
    %720 = vector.broadcast %52 : vector<8x1xf32> to vector<8x8xf32>
    %721 = arith.mulf %79, %720 : vector<8x8xf32>
    %722 = arith.addf %719, %721 : vector<8x8xf32>
    %723 = vector.broadcast %55 : vector<8x1xf32> to vector<8x8xf32>
    %724 = arith.mulf %80, %723 : vector<8x8xf32>
    %725 = arith.addf %722, %724 : vector<8x8xf32>
    %726 = arith.addf %663, %709 : vector<8x8xf32>
    %727 = arith.addf %664, %717 : vector<8x8xf32>
    %728 = arith.addf %665, %725 : vector<8x8xf32>
    %729 = vector.broadcast %46 : vector<8x1xf32> to vector<8x8xf32>
    %730 = arith.mulf %116, %729 : vector<8x8xf32>
    %731 = vector.broadcast %46 : vector<8x1xf32> to vector<8x8xf32>
    %732 = arith.mulf %117, %731 : vector<8x8xf32>
    %733 = vector.broadcast %46 : vector<8x1xf32> to vector<8x8xf32>
    %734 = arith.mulf %118, %733 : vector<8x8xf32>
    %735 = vector.broadcast %46 : vector<8x1xf32> to vector<8x8xf32>
    %736 = arith.mulf %119, %735 : vector<8x8xf32>
    %737 = vector.broadcast %46 : vector<8x1xf32> to vector<8x8xf32>
    %738 = arith.mulf %120, %737 : vector<8x8xf32>
    %739 = vector.broadcast %46 : vector<8x1xf32> to vector<8x8xf32>
    %740 = arith.mulf %121, %739 : vector<8x8xf32>
    %741 = vector.broadcast %46 : vector<8x1xf32> to vector<8x8xf32>
    %742 = arith.mulf %122, %741 : vector<8x8xf32>
    %743 = vector.broadcast %46 : vector<8x1xf32> to vector<8x8xf32>
    %744 = arith.mulf %123, %743 : vector<8x8xf32>
    %745 = vector.broadcast %46 : vector<8x1xf32> to vector<8x8xf32>
    %746 = arith.mulf %124, %745 : vector<8x8xf32>
    %747 = arith.addf %693, %730 : vector<8x8xf32>
    %748 = arith.addf %694, %732 : vector<8x8xf32>
    %749 = arith.addf %695, %734 : vector<8x8xf32>
    %750 = arith.addf %696, %736 : vector<8x8xf32>
    %751 = arith.addf %697, %738 : vector<8x8xf32>
    %752 = arith.addf %698, %740 : vector<8x8xf32>
    %753 = arith.addf %699, %742 : vector<8x8xf32>
    %754 = arith.addf %700, %744 : vector<8x8xf32>
    %755 = arith.addf %701, %746 : vector<8x8xf32>
    %756 = vector.broadcast %43 : vector<8x1xf32> to vector<8x8xf32>
    %757 = arith.mulf %116, %756 : vector<8x8xf32>
    %758 = vector.broadcast %44 : vector<8x1xf32> to vector<8x8xf32>
    %759 = arith.mulf %117, %758 : vector<8x8xf32>
    %760 = arith.addf %757, %759 : vector<8x8xf32>
    %761 = vector.broadcast %45 : vector<8x1xf32> to vector<8x8xf32>
    %762 = arith.mulf %118, %761 : vector<8x8xf32>
    %763 = arith.addf %760, %762 : vector<8x8xf32>
    %764 = vector.broadcast %43 : vector<8x1xf32> to vector<8x8xf32>
    %765 = arith.mulf %119, %764 : vector<8x8xf32>
    %766 = vector.broadcast %44 : vector<8x1xf32> to vector<8x8xf32>
    %767 = arith.mulf %120, %766 : vector<8x8xf32>
    %768 = arith.addf %765, %767 : vector<8x8xf32>
    %769 = vector.broadcast %45 : vector<8x1xf32> to vector<8x8xf32>
    %770 = arith.mulf %121, %769 : vector<8x8xf32>
    %771 = arith.addf %768, %770 : vector<8x8xf32>
    %772 = vector.broadcast %43 : vector<8x1xf32> to vector<8x8xf32>
    %773 = arith.mulf %122, %772 : vector<8x8xf32>
    %774 = vector.broadcast %44 : vector<8x1xf32> to vector<8x8xf32>
    %775 = arith.mulf %123, %774 : vector<8x8xf32>
    %776 = arith.addf %773, %775 : vector<8x8xf32>
    %777 = vector.broadcast %45 : vector<8x1xf32> to vector<8x8xf32>
    %778 = arith.mulf %124, %777 : vector<8x8xf32>
    %779 = arith.addf %776, %778 : vector<8x8xf32>
    %780 = arith.addf %726, %763 : vector<8x8xf32>
    %781 = arith.addf %727, %771 : vector<8x8xf32>
    %782 = arith.addf %728, %779 : vector<8x8xf32>
    %783 = vector.broadcast %47 : vector<8x1xf32> to vector<8x8xf32>
    %784 = arith.mulf %116, %783 : vector<8x8xf32>
    %785 = vector.broadcast %48 : vector<8x1xf32> to vector<8x8xf32>
    %786 = arith.mulf %117, %785 : vector<8x8xf32>
    %787 = arith.addf %784, %786 : vector<8x8xf32>
    %788 = vector.broadcast %49 : vector<8x1xf32> to vector<8x8xf32>
    %789 = arith.mulf %118, %788 : vector<8x8xf32>
    %790 = arith.addf %787, %789 : vector<8x8xf32>
    %791 = vector.broadcast %50 : vector<8x1xf32> to vector<8x8xf32>
    %792 = arith.mulf %119, %791 : vector<8x8xf32>
    %793 = arith.addf %790, %792 : vector<8x8xf32>
    %794 = vector.broadcast %51 : vector<8x1xf32> to vector<8x8xf32>
    %795 = arith.mulf %120, %794 : vector<8x8xf32>
    %796 = arith.addf %793, %795 : vector<8x8xf32>
    %797 = vector.broadcast %52 : vector<8x1xf32> to vector<8x8xf32>
    %798 = arith.mulf %121, %797 : vector<8x8xf32>
    %799 = arith.addf %796, %798 : vector<8x8xf32>
    %800 = vector.broadcast %53 : vector<8x1xf32> to vector<8x8xf32>
    %801 = arith.mulf %122, %800 : vector<8x8xf32>
    %802 = arith.addf %799, %801 : vector<8x8xf32>
    %803 = vector.broadcast %54 : vector<8x1xf32> to vector<8x8xf32>
    %804 = arith.mulf %123, %803 : vector<8x8xf32>
    %805 = arith.addf %802, %804 : vector<8x8xf32>
    %806 = vector.broadcast %55 : vector<8x1xf32> to vector<8x8xf32>
    %807 = arith.mulf %124, %806 : vector<8x8xf32>
    %808 = arith.addf %805, %807 : vector<8x8xf32>
    %809 = arith.addf %674, %808 : vector<8x8xf32>
    %810 = vector.broadcast %47 : vector<8x1xf32> to vector<8x8xf32>
    %811 = arith.mulf %116, %810 : vector<8x8xf32>
    %812 = vector.broadcast %50 : vector<8x1xf32> to vector<8x8xf32>
    %813 = arith.mulf %117, %812 : vector<8x8xf32>
    %814 = arith.addf %811, %813 : vector<8x8xf32>
    %815 = vector.broadcast %53 : vector<8x1xf32> to vector<8x8xf32>
    %816 = arith.mulf %118, %815 : vector<8x8xf32>
    %817 = arith.addf %814, %816 : vector<8x8xf32>
    %818 = vector.broadcast %48 : vector<8x1xf32> to vector<8x8xf32>
    %819 = arith.mulf %116, %818 : vector<8x8xf32>
    %820 = vector.broadcast %51 : vector<8x1xf32> to vector<8x8xf32>
    %821 = arith.mulf %117, %820 : vector<8x8xf32>
    %822 = arith.addf %819, %821 : vector<8x8xf32>
    %823 = vector.broadcast %54 : vector<8x1xf32> to vector<8x8xf32>
    %824 = arith.mulf %118, %823 : vector<8x8xf32>
    %825 = arith.addf %822, %824 : vector<8x8xf32>
    %826 = vector.broadcast %49 : vector<8x1xf32> to vector<8x8xf32>
    %827 = arith.mulf %116, %826 : vector<8x8xf32>
    %828 = vector.broadcast %52 : vector<8x1xf32> to vector<8x8xf32>
    %829 = arith.mulf %117, %828 : vector<8x8xf32>
    %830 = arith.addf %827, %829 : vector<8x8xf32>
    %831 = vector.broadcast %55 : vector<8x1xf32> to vector<8x8xf32>
    %832 = arith.mulf %118, %831 : vector<8x8xf32>
    %833 = arith.addf %830, %832 : vector<8x8xf32>
    %834 = vector.broadcast %47 : vector<8x1xf32> to vector<8x8xf32>
    %835 = arith.mulf %119, %834 : vector<8x8xf32>
    %836 = vector.broadcast %50 : vector<8x1xf32> to vector<8x8xf32>
    %837 = arith.mulf %120, %836 : vector<8x8xf32>
    %838 = arith.addf %835, %837 : vector<8x8xf32>
    %839 = vector.broadcast %53 : vector<8x1xf32> to vector<8x8xf32>
    %840 = arith.mulf %121, %839 : vector<8x8xf32>
    %841 = arith.addf %838, %840 : vector<8x8xf32>
    %842 = vector.broadcast %48 : vector<8x1xf32> to vector<8x8xf32>
    %843 = arith.mulf %119, %842 : vector<8x8xf32>
    %844 = vector.broadcast %51 : vector<8x1xf32> to vector<8x8xf32>
    %845 = arith.mulf %120, %844 : vector<8x8xf32>
    %846 = arith.addf %843, %845 : vector<8x8xf32>
    %847 = vector.broadcast %54 : vector<8x1xf32> to vector<8x8xf32>
    %848 = arith.mulf %121, %847 : vector<8x8xf32>
    %849 = arith.addf %846, %848 : vector<8x8xf32>
    %850 = vector.broadcast %49 : vector<8x1xf32> to vector<8x8xf32>
    %851 = arith.mulf %119, %850 : vector<8x8xf32>
    %852 = vector.broadcast %52 : vector<8x1xf32> to vector<8x8xf32>
    %853 = arith.mulf %120, %852 : vector<8x8xf32>
    %854 = arith.addf %851, %853 : vector<8x8xf32>
    %855 = vector.broadcast %55 : vector<8x1xf32> to vector<8x8xf32>
    %856 = arith.mulf %121, %855 : vector<8x8xf32>
    %857 = arith.addf %854, %856 : vector<8x8xf32>
    %858 = vector.broadcast %47 : vector<8x1xf32> to vector<8x8xf32>
    %859 = arith.mulf %122, %858 : vector<8x8xf32>
    %860 = vector.broadcast %50 : vector<8x1xf32> to vector<8x8xf32>
    %861 = arith.mulf %123, %860 : vector<8x8xf32>
    %862 = arith.addf %859, %861 : vector<8x8xf32>
    %863 = vector.broadcast %53 : vector<8x1xf32> to vector<8x8xf32>
    %864 = arith.mulf %124, %863 : vector<8x8xf32>
    %865 = arith.addf %862, %864 : vector<8x8xf32>
    %866 = vector.broadcast %48 : vector<8x1xf32> to vector<8x8xf32>
    %867 = arith.mulf %122, %866 : vector<8x8xf32>
    %868 = vector.broadcast %51 : vector<8x1xf32> to vector<8x8xf32>
    %869 = arith.mulf %123, %868 : vector<8x8xf32>
    %870 = arith.addf %867, %869 : vector<8x8xf32>
    %871 = vector.broadcast %54 : vector<8x1xf32> to vector<8x8xf32>
    %872 = arith.mulf %124, %871 : vector<8x8xf32>
    %873 = arith.addf %870, %872 : vector<8x8xf32>
    %874 = vector.broadcast %49 : vector<8x1xf32> to vector<8x8xf32>
    %875 = arith.mulf %122, %874 : vector<8x8xf32>
    %876 = vector.broadcast %52 : vector<8x1xf32> to vector<8x8xf32>
    %877 = arith.mulf %123, %876 : vector<8x8xf32>
    %878 = arith.addf %875, %877 : vector<8x8xf32>
    %879 = vector.broadcast %55 : vector<8x1xf32> to vector<8x8xf32>
    %880 = arith.mulf %124, %879 : vector<8x8xf32>
    %881 = arith.addf %878, %880 : vector<8x8xf32>
    %882 = arith.addf %747, %817 : vector<8x8xf32>
    %883 = arith.addf %748, %825 : vector<8x8xf32>
    %884 = arith.addf %749, %833 : vector<8x8xf32>
    %885 = arith.addf %750, %841 : vector<8x8xf32>
    %886 = arith.addf %751, %849 : vector<8x8xf32>
    %887 = arith.addf %752, %857 : vector<8x8xf32>
    %888 = arith.addf %753, %865 : vector<8x8xf32>
    %889 = arith.addf %754, %873 : vector<8x8xf32>
    %890 = arith.addf %755, %881 : vector<8x8xf32>
    %891 = vector.broadcast %46 : vector<8x1xf32> to vector<8x8xf32>
    %892 = arith.mulf %891, %67 : vector<8x8xf32>
    %893 = vector.broadcast %46 : vector<8x1xf32> to vector<8x8xf32>
    %894 = arith.mulf %893, %91 : vector<8x8xf32>
    %895 = vector.broadcast %46 : vector<8x1xf32> to vector<8x8xf32>
    %896 = arith.mulf %895, %92 : vector<8x8xf32>
    %897 = vector.broadcast %46 : vector<8x1xf32> to vector<8x8xf32>
    %898 = arith.mulf %897, %93 : vector<8x8xf32>
    %899 = vector.broadcast %46 : vector<8x1xf32> to vector<8x8xf32>
    %900 = arith.mulf %899, %147 : vector<8x8xf32>
    %901 = vector.broadcast %46 : vector<8x1xf32> to vector<8x8xf32>
    %902 = arith.mulf %901, %148 : vector<8x8xf32>
    %903 = vector.broadcast %46 : vector<8x1xf32> to vector<8x8xf32>
    %904 = arith.mulf %903, %149 : vector<8x8xf32>
    %905 = vector.broadcast %46 : vector<8x1xf32> to vector<8x8xf32>
    %906 = arith.mulf %905, %150 : vector<8x8xf32>
    %907 = vector.broadcast %46 : vector<8x1xf32> to vector<8x8xf32>
    %908 = arith.mulf %907, %151 : vector<8x8xf32>
    %909 = vector.broadcast %46 : vector<8x1xf32> to vector<8x8xf32>
    %910 = arith.mulf %909, %152 : vector<8x8xf32>
    %911 = vector.broadcast %46 : vector<8x1xf32> to vector<8x8xf32>
    %912 = arith.mulf %911, %153 : vector<8x8xf32>
    %913 = vector.broadcast %46 : vector<8x1xf32> to vector<8x8xf32>
    %914 = arith.mulf %913, %154 : vector<8x8xf32>
    %915 = vector.broadcast %46 : vector<8x1xf32> to vector<8x8xf32>
    %916 = arith.mulf %915, %155 : vector<8x8xf32>
    %917 = vector.broadcast %43 : vector<8x1xf32> to vector<8x8xf32>
    %918 = arith.mulf %917, %67 : vector<8x8xf32>
    %919 = vector.broadcast %44 : vector<8x1xf32> to vector<8x8xf32>
    %920 = arith.mulf %919, %67 : vector<8x8xf32>
    %921 = vector.broadcast %45 : vector<8x1xf32> to vector<8x8xf32>
    %922 = arith.mulf %921, %67 : vector<8x8xf32>
    %923 = arith.addf %894, %918 : vector<8x8xf32>
    %924 = arith.addf %896, %920 : vector<8x8xf32>
    %925 = arith.addf %898, %922 : vector<8x8xf32>
    %926 = vector.broadcast %43 : vector<8x1xf32> to vector<8x8xf32>
    %927 = arith.mulf %926, %91 : vector<8x8xf32>
    %928 = vector.broadcast %44 : vector<8x1xf32> to vector<8x8xf32>
    %929 = arith.mulf %928, %92 : vector<8x8xf32>
    %930 = arith.addf %927, %929 : vector<8x8xf32>
    %931 = vector.broadcast %45 : vector<8x1xf32> to vector<8x8xf32>
    %932 = arith.mulf %931, %93 : vector<8x8xf32>
    %933 = arith.addf %930, %932 : vector<8x8xf32>
    %934 = arith.addf %892, %933 : vector<8x8xf32>
    %935 = vector.broadcast %43 : vector<8x1xf32> to vector<8x8xf32>
    %936 = arith.mulf %935, %91 : vector<8x8xf32>
    %937 = vector.broadcast %43 : vector<8x1xf32> to vector<8x8xf32>
    %938 = arith.mulf %937, %92 : vector<8x8xf32>
    %939 = vector.broadcast %43 : vector<8x1xf32> to vector<8x8xf32>
    %940 = arith.mulf %939, %93 : vector<8x8xf32>
    %941 = vector.broadcast %44 : vector<8x1xf32> to vector<8x8xf32>
    %942 = arith.mulf %941, %91 : vector<8x8xf32>
    %943 = vector.broadcast %44 : vector<8x1xf32> to vector<8x8xf32>
    %944 = arith.mulf %943, %92 : vector<8x8xf32>
    %945 = vector.broadcast %44 : vector<8x1xf32> to vector<8x8xf32>
    %946 = arith.mulf %945, %93 : vector<8x8xf32>
    %947 = vector.broadcast %45 : vector<8x1xf32> to vector<8x8xf32>
    %948 = arith.mulf %947, %91 : vector<8x8xf32>
    %949 = vector.broadcast %45 : vector<8x1xf32> to vector<8x8xf32>
    %950 = arith.mulf %949, %92 : vector<8x8xf32>
    %951 = vector.broadcast %45 : vector<8x1xf32> to vector<8x8xf32>
    %952 = arith.mulf %951, %93 : vector<8x8xf32>
    %953 = arith.addf %900, %936 : vector<8x8xf32>
    %954 = arith.addf %902, %938 : vector<8x8xf32>
    %955 = arith.addf %904, %940 : vector<8x8xf32>
    %956 = arith.addf %906, %942 : vector<8x8xf32>
    %957 = arith.addf %908, %944 : vector<8x8xf32>
    %958 = arith.addf %910, %946 : vector<8x8xf32>
    %959 = arith.addf %912, %948 : vector<8x8xf32>
    %960 = arith.addf %914, %950 : vector<8x8xf32>
    %961 = arith.addf %916, %952 : vector<8x8xf32>
    %962 = vector.broadcast %43 : vector<8x1xf32> to vector<8x8xf32>
    %963 = arith.mulf %962, %147 : vector<8x8xf32>
    %964 = vector.broadcast %44 : vector<8x1xf32> to vector<8x8xf32>
    %965 = arith.mulf %964, %150 : vector<8x8xf32>
    %966 = arith.addf %963, %965 : vector<8x8xf32>
    %967 = vector.broadcast %45 : vector<8x1xf32> to vector<8x8xf32>
    %968 = arith.mulf %967, %153 : vector<8x8xf32>
    %969 = arith.addf %966, %968 : vector<8x8xf32>
    %970 = vector.broadcast %43 : vector<8x1xf32> to vector<8x8xf32>
    %971 = arith.mulf %970, %148 : vector<8x8xf32>
    %972 = vector.broadcast %44 : vector<8x1xf32> to vector<8x8xf32>
    %973 = arith.mulf %972, %151 : vector<8x8xf32>
    %974 = arith.addf %971, %973 : vector<8x8xf32>
    %975 = vector.broadcast %45 : vector<8x1xf32> to vector<8x8xf32>
    %976 = arith.mulf %975, %154 : vector<8x8xf32>
    %977 = arith.addf %974, %976 : vector<8x8xf32>
    %978 = vector.broadcast %43 : vector<8x1xf32> to vector<8x8xf32>
    %979 = arith.mulf %978, %149 : vector<8x8xf32>
    %980 = vector.broadcast %44 : vector<8x1xf32> to vector<8x8xf32>
    %981 = arith.mulf %980, %152 : vector<8x8xf32>
    %982 = arith.addf %979, %981 : vector<8x8xf32>
    %983 = vector.broadcast %45 : vector<8x1xf32> to vector<8x8xf32>
    %984 = arith.mulf %983, %155 : vector<8x8xf32>
    %985 = arith.addf %982, %984 : vector<8x8xf32>
    %986 = arith.addf %923, %969 : vector<8x8xf32>
    %987 = arith.addf %924, %977 : vector<8x8xf32>
    %988 = arith.addf %925, %985 : vector<8x8xf32>
    %989 = vector.broadcast %47 : vector<8x1xf32> to vector<8x8xf32>
    %990 = arith.mulf %989, %67 : vector<8x8xf32>
    %991 = vector.broadcast %48 : vector<8x1xf32> to vector<8x8xf32>
    %992 = arith.mulf %991, %67 : vector<8x8xf32>
    %993 = vector.broadcast %49 : vector<8x1xf32> to vector<8x8xf32>
    %994 = arith.mulf %993, %67 : vector<8x8xf32>
    %995 = vector.broadcast %50 : vector<8x1xf32> to vector<8x8xf32>
    %996 = arith.mulf %995, %67 : vector<8x8xf32>
    %997 = vector.broadcast %51 : vector<8x1xf32> to vector<8x8xf32>
    %998 = arith.mulf %997, %67 : vector<8x8xf32>
    %999 = vector.broadcast %52 : vector<8x1xf32> to vector<8x8xf32>
    %1000 = arith.mulf %999, %67 : vector<8x8xf32>
    %1001 = vector.broadcast %53 : vector<8x1xf32> to vector<8x8xf32>
    %1002 = arith.mulf %1001, %67 : vector<8x8xf32>
    %1003 = vector.broadcast %54 : vector<8x1xf32> to vector<8x8xf32>
    %1004 = arith.mulf %1003, %67 : vector<8x8xf32>
    %1005 = vector.broadcast %55 : vector<8x1xf32> to vector<8x8xf32>
    %1006 = arith.mulf %1005, %67 : vector<8x8xf32>
    %1007 = arith.addf %953, %990 : vector<8x8xf32>
    %1008 = arith.addf %954, %992 : vector<8x8xf32>
    %1009 = arith.addf %955, %994 : vector<8x8xf32>
    %1010 = arith.addf %956, %996 : vector<8x8xf32>
    %1011 = arith.addf %957, %998 : vector<8x8xf32>
    %1012 = arith.addf %958, %1000 : vector<8x8xf32>
    %1013 = arith.addf %959, %1002 : vector<8x8xf32>
    %1014 = arith.addf %960, %1004 : vector<8x8xf32>
    %1015 = arith.addf %961, %1006 : vector<8x8xf32>
    %1016 = vector.broadcast %47 : vector<8x1xf32> to vector<8x8xf32>
    %1017 = arith.mulf %1016, %91 : vector<8x8xf32>
    %1018 = vector.broadcast %48 : vector<8x1xf32> to vector<8x8xf32>
    %1019 = arith.mulf %1018, %92 : vector<8x8xf32>
    %1020 = arith.addf %1017, %1019 : vector<8x8xf32>
    %1021 = vector.broadcast %49 : vector<8x1xf32> to vector<8x8xf32>
    %1022 = arith.mulf %1021, %93 : vector<8x8xf32>
    %1023 = arith.addf %1020, %1022 : vector<8x8xf32>
    %1024 = vector.broadcast %50 : vector<8x1xf32> to vector<8x8xf32>
    %1025 = arith.mulf %1024, %91 : vector<8x8xf32>
    %1026 = vector.broadcast %51 : vector<8x1xf32> to vector<8x8xf32>
    %1027 = arith.mulf %1026, %92 : vector<8x8xf32>
    %1028 = arith.addf %1025, %1027 : vector<8x8xf32>
    %1029 = vector.broadcast %52 : vector<8x1xf32> to vector<8x8xf32>
    %1030 = arith.mulf %1029, %93 : vector<8x8xf32>
    %1031 = arith.addf %1028, %1030 : vector<8x8xf32>
    %1032 = vector.broadcast %53 : vector<8x1xf32> to vector<8x8xf32>
    %1033 = arith.mulf %1032, %91 : vector<8x8xf32>
    %1034 = vector.broadcast %54 : vector<8x1xf32> to vector<8x8xf32>
    %1035 = arith.mulf %1034, %92 : vector<8x8xf32>
    %1036 = arith.addf %1033, %1035 : vector<8x8xf32>
    %1037 = vector.broadcast %55 : vector<8x1xf32> to vector<8x8xf32>
    %1038 = arith.mulf %1037, %93 : vector<8x8xf32>
    %1039 = arith.addf %1036, %1038 : vector<8x8xf32>
    %1040 = arith.addf %986, %1023 : vector<8x8xf32>
    %1041 = arith.addf %987, %1031 : vector<8x8xf32>
    %1042 = arith.addf %988, %1039 : vector<8x8xf32>
    %1043 = vector.broadcast %47 : vector<8x1xf32> to vector<8x8xf32>
    %1044 = arith.mulf %1043, %147 : vector<8x8xf32>
    %1045 = vector.broadcast %48 : vector<8x1xf32> to vector<8x8xf32>
    %1046 = arith.mulf %1045, %148 : vector<8x8xf32>
    %1047 = arith.addf %1044, %1046 : vector<8x8xf32>
    %1048 = vector.broadcast %49 : vector<8x1xf32> to vector<8x8xf32>
    %1049 = arith.mulf %1048, %149 : vector<8x8xf32>
    %1050 = arith.addf %1047, %1049 : vector<8x8xf32>
    %1051 = vector.broadcast %50 : vector<8x1xf32> to vector<8x8xf32>
    %1052 = arith.mulf %1051, %150 : vector<8x8xf32>
    %1053 = arith.addf %1050, %1052 : vector<8x8xf32>
    %1054 = vector.broadcast %51 : vector<8x1xf32> to vector<8x8xf32>
    %1055 = arith.mulf %1054, %151 : vector<8x8xf32>
    %1056 = arith.addf %1053, %1055 : vector<8x8xf32>
    %1057 = vector.broadcast %52 : vector<8x1xf32> to vector<8x8xf32>
    %1058 = arith.mulf %1057, %152 : vector<8x8xf32>
    %1059 = arith.addf %1056, %1058 : vector<8x8xf32>
    %1060 = vector.broadcast %53 : vector<8x1xf32> to vector<8x8xf32>
    %1061 = arith.mulf %1060, %153 : vector<8x8xf32>
    %1062 = arith.addf %1059, %1061 : vector<8x8xf32>
    %1063 = vector.broadcast %54 : vector<8x1xf32> to vector<8x8xf32>
    %1064 = arith.mulf %1063, %154 : vector<8x8xf32>
    %1065 = arith.addf %1062, %1064 : vector<8x8xf32>
    %1066 = vector.broadcast %55 : vector<8x1xf32> to vector<8x8xf32>
    %1067 = arith.mulf %1066, %155 : vector<8x8xf32>
    %1068 = arith.addf %1065, %1067 : vector<8x8xf32>
    %1069 = arith.addf %934, %1068 : vector<8x8xf32>
    %1070 = vector.broadcast %47 : vector<8x1xf32> to vector<8x8xf32>
    %1071 = arith.mulf %1070, %147 : vector<8x8xf32>
    %1072 = vector.broadcast %48 : vector<8x1xf32> to vector<8x8xf32>
    %1073 = arith.mulf %1072, %150 : vector<8x8xf32>
    %1074 = arith.addf %1071, %1073 : vector<8x8xf32>
    %1075 = vector.broadcast %49 : vector<8x1xf32> to vector<8x8xf32>
    %1076 = arith.mulf %1075, %153 : vector<8x8xf32>
    %1077 = arith.addf %1074, %1076 : vector<8x8xf32>
    %1078 = vector.broadcast %47 : vector<8x1xf32> to vector<8x8xf32>
    %1079 = arith.mulf %1078, %148 : vector<8x8xf32>
    %1080 = vector.broadcast %48 : vector<8x1xf32> to vector<8x8xf32>
    %1081 = arith.mulf %1080, %151 : vector<8x8xf32>
    %1082 = arith.addf %1079, %1081 : vector<8x8xf32>
    %1083 = vector.broadcast %49 : vector<8x1xf32> to vector<8x8xf32>
    %1084 = arith.mulf %1083, %154 : vector<8x8xf32>
    %1085 = arith.addf %1082, %1084 : vector<8x8xf32>
    %1086 = vector.broadcast %47 : vector<8x1xf32> to vector<8x8xf32>
    %1087 = arith.mulf %1086, %149 : vector<8x8xf32>
    %1088 = vector.broadcast %48 : vector<8x1xf32> to vector<8x8xf32>
    %1089 = arith.mulf %1088, %152 : vector<8x8xf32>
    %1090 = arith.addf %1087, %1089 : vector<8x8xf32>
    %1091 = vector.broadcast %49 : vector<8x1xf32> to vector<8x8xf32>
    %1092 = arith.mulf %1091, %155 : vector<8x8xf32>
    %1093 = arith.addf %1090, %1092 : vector<8x8xf32>
    %1094 = vector.broadcast %50 : vector<8x1xf32> to vector<8x8xf32>
    %1095 = arith.mulf %1094, %147 : vector<8x8xf32>
    %1096 = vector.broadcast %51 : vector<8x1xf32> to vector<8x8xf32>
    %1097 = arith.mulf %1096, %150 : vector<8x8xf32>
    %1098 = arith.addf %1095, %1097 : vector<8x8xf32>
    %1099 = vector.broadcast %52 : vector<8x1xf32> to vector<8x8xf32>
    %1100 = arith.mulf %1099, %153 : vector<8x8xf32>
    %1101 = arith.addf %1098, %1100 : vector<8x8xf32>
    %1102 = vector.broadcast %50 : vector<8x1xf32> to vector<8x8xf32>
    %1103 = arith.mulf %1102, %148 : vector<8x8xf32>
    %1104 = vector.broadcast %51 : vector<8x1xf32> to vector<8x8xf32>
    %1105 = arith.mulf %1104, %151 : vector<8x8xf32>
    %1106 = arith.addf %1103, %1105 : vector<8x8xf32>
    %1107 = vector.broadcast %52 : vector<8x1xf32> to vector<8x8xf32>
    %1108 = arith.mulf %1107, %154 : vector<8x8xf32>
    %1109 = arith.addf %1106, %1108 : vector<8x8xf32>
    %1110 = vector.broadcast %50 : vector<8x1xf32> to vector<8x8xf32>
    %1111 = arith.mulf %1110, %149 : vector<8x8xf32>
    %1112 = vector.broadcast %51 : vector<8x1xf32> to vector<8x8xf32>
    %1113 = arith.mulf %1112, %152 : vector<8x8xf32>
    %1114 = arith.addf %1111, %1113 : vector<8x8xf32>
    %1115 = vector.broadcast %52 : vector<8x1xf32> to vector<8x8xf32>
    %1116 = arith.mulf %1115, %155 : vector<8x8xf32>
    %1117 = arith.addf %1114, %1116 : vector<8x8xf32>
    %1118 = vector.broadcast %53 : vector<8x1xf32> to vector<8x8xf32>
    %1119 = arith.mulf %1118, %147 : vector<8x8xf32>
    %1120 = vector.broadcast %54 : vector<8x1xf32> to vector<8x8xf32>
    %1121 = arith.mulf %1120, %150 : vector<8x8xf32>
    %1122 = arith.addf %1119, %1121 : vector<8x8xf32>
    %1123 = vector.broadcast %55 : vector<8x1xf32> to vector<8x8xf32>
    %1124 = arith.mulf %1123, %153 : vector<8x8xf32>
    %1125 = arith.addf %1122, %1124 : vector<8x8xf32>
    %1126 = vector.broadcast %53 : vector<8x1xf32> to vector<8x8xf32>
    %1127 = arith.mulf %1126, %148 : vector<8x8xf32>
    %1128 = vector.broadcast %54 : vector<8x1xf32> to vector<8x8xf32>
    %1129 = arith.mulf %1128, %151 : vector<8x8xf32>
    %1130 = arith.addf %1127, %1129 : vector<8x8xf32>
    %1131 = vector.broadcast %55 : vector<8x1xf32> to vector<8x8xf32>
    %1132 = arith.mulf %1131, %154 : vector<8x8xf32>
    %1133 = arith.addf %1130, %1132 : vector<8x8xf32>
    %1134 = vector.broadcast %53 : vector<8x1xf32> to vector<8x8xf32>
    %1135 = arith.mulf %1134, %149 : vector<8x8xf32>
    %1136 = vector.broadcast %54 : vector<8x1xf32> to vector<8x8xf32>
    %1137 = arith.mulf %1136, %152 : vector<8x8xf32>
    %1138 = arith.addf %1135, %1137 : vector<8x8xf32>
    %1139 = vector.broadcast %55 : vector<8x1xf32> to vector<8x8xf32>
    %1140 = arith.mulf %1139, %155 : vector<8x8xf32>
    %1141 = arith.addf %1138, %1140 : vector<8x8xf32>
    %1142 = arith.addf %1007, %1077 : vector<8x8xf32>
    %1143 = arith.addf %1008, %1085 : vector<8x8xf32>
    %1144 = arith.addf %1009, %1093 : vector<8x8xf32>
    %1145 = arith.addf %1010, %1101 : vector<8x8xf32>
    %1146 = arith.addf %1011, %1109 : vector<8x8xf32>
    %1147 = arith.addf %1012, %1117 : vector<8x8xf32>
    %1148 = arith.addf %1013, %1125 : vector<8x8xf32>
    %1149 = arith.addf %1014, %1133 : vector<8x8xf32>
    %1150 = arith.addf %1015, %1141 : vector<8x8xf32>
    %1151 = tpu.concatenate %156, %161, %178, %576, %809, %1069 in 1 : vector<8x8xf32>, vector<8x8xf32>, vector<8x8xf32>, vector<8x8xf32>, vector<8x8xf32>, vector<8x8xf32> -> vector<8x48xf32>
    %c0_48 = arith.constant 0 : index
    %c0_49 = arith.constant 0 : index
    %1152 = vector.load %arg11[%c0_48, %c0_49] : memref<48x72xf32, #tpu.memory_space<vmem>>, vector<48x72xf32>
    %cst_50 = arith.constant dense<0.000000e+00> : vector<8x72xf32>
    %1153 = tpu.matmul %1151, %1152, %cst_50 {dimension_numbers = #tpu.dot_dimension_numbers<[1], [0], [0], [1], [0, 0, 1, 1], [], []>} : vector<8x48xf32>, vector<48x72xf32>, vector<8x72xf32> -> vector<8x72xf32>
    %c0_51 = arith.constant 0 : index
    %c0_52 = arith.constant 0 : index
    %1154 = vector.load %arg12[%c0_51, %c0_52] : memref<1x72xf32, #tpu.memory_space<vmem>>, vector<1x72xf32>
    %1155 = vector.broadcast %1154 : vector<1x72xf32> to vector<8x72xf32>
    %1156 = arith.addf %1153, %1155 : vector<8x72xf32>
    %1157 = arith.negf %1156 : vector<8x72xf32>
    %1158 = math.exp %1157 : vector<8x72xf32>
    %cst_53 = arith.constant 1.000000e+00 : f32
    %1159 = vector.broadcast %cst_53 : f32 to vector<8x72xf32>
    %1160 = arith.addf %1159, %1158 : vector<8x72xf32>
    %1161 = arith.divf %1159, %1160 : vector<8x72xf32>
    %1162 = arith.mulf %1156, %1161 : vector<8x72xf32>
    %c0_54 = arith.constant 0 : index
    %c0_55 = arith.constant 0 : index
    %1163 = vector.load %arg13[%c0_54, %c0_55] : memref<72x72xf32, #tpu.memory_space<vmem>>, vector<72x72xf32>
    %cst_56 = arith.constant dense<0.000000e+00> : vector<8x72xf32>
    %1164 = tpu.matmul %1162, %1163, %cst_56 {dimension_numbers = #tpu.dot_dimension_numbers<[1], [0], [0], [1], [0, 0, 1, 1], [], []>} : vector<8x72xf32>, vector<72x72xf32>, vector<8x72xf32> -> vector<8x72xf32>
    %c0_57 = arith.constant 0 : index
    %c0_58 = arith.constant 0 : index
    %1165 = vector.load %arg14[%c0_57, %c0_58] : memref<1x72xf32, #tpu.memory_space<vmem>>, vector<1x72xf32>
    %1166 = vector.broadcast %1165 : vector<1x72xf32> to vector<8x72xf32>
    %1167 = arith.addf %1164, %1166 : vector<8x72xf32>
    %1168 = arith.negf %1167 : vector<8x72xf32>
    %1169 = math.exp %1168 : vector<8x72xf32>
    %cst_59 = arith.constant 1.000000e+00 : f32
    %1170 = vector.broadcast %cst_59 : f32 to vector<8x72xf32>
    %1171 = arith.addf %1170, %1169 : vector<8x72xf32>
    %1172 = arith.divf %1170, %1171 : vector<8x72xf32>
    %1173 = arith.mulf %1167, %1172 : vector<8x72xf32>
    %c0_60 = arith.constant 0 : index
    %c0_61 = arith.constant 0 : index
    %1174 = vector.load %arg15[%c0_60, %c0_61] : memref<72x72xf32, #tpu.memory_space<vmem>>, vector<72x72xf32>
    %cst_62 = arith.constant dense<0.000000e+00> : vector<8x72xf32>
    %1175 = tpu.matmul %1173, %1174, %cst_62 {dimension_numbers = #tpu.dot_dimension_numbers<[1], [0], [0], [1], [0, 0, 1, 1], [], []>} : vector<8x72xf32>, vector<72x72xf32>, vector<8x72xf32> -> vector<8x72xf32>
    %c0_63 = arith.constant 0 : index
    %c0_64 = arith.constant 0 : index
    %1176 = vector.load %arg16[%c0_63, %c0_64] : memref<1x72xf32, #tpu.memory_space<vmem>>, vector<1x72xf32>
    %1177 = vector.broadcast %1176 : vector<1x72xf32> to vector<8x72xf32>
    %1178 = arith.addf %1175, %1177 : vector<8x72xf32>
    %c0_65 = arith.constant 0 : index
    %c0_66 = arith.constant 0 : index
    %1179 = vector.load %arg6[%c0_65, %c0_66] : memref<8x8xf32, #tpu.memory_space<vmem>>, vector<8x8xf32>
    %c0_67 = arith.constant 0 : index
    %c0_68 = arith.constant 0 : index
    %1180 = vector.load %arg17[%c0_67, %c0_68] : memref<8x72xf32, #tpu.memory_space<vmem>>, vector<8x72xf32>
    %cst_69 = arith.constant dense<0.000000e+00> : vector<8x72xf32>
    %1181 = tpu.matmul %1179, %1180, %cst_69 {dimension_numbers = #tpu.dot_dimension_numbers<[1], [0], [0], [1], [0, 0, 1, 1], [], []>} : vector<8x8xf32>, vector<8x72xf32>, vector<8x72xf32> -> vector<8x72xf32>
    %1182 = arith.mulf %1178, %1181 : vector<8x72xf32>
    %1183 = vector.extract_strided_slice %1182 {offsets = [0, 0], sizes = [8, 8], strides = [1, 1]} : vector<8x72xf32> to vector<8x8xf32>
    %1184 = arith.mulf %576, %1183 : vector<8x8xf32>
    %1185 = vector.extract_strided_slice %1182 {offsets = [0, 8], sizes = [8, 8], strides = [1, 1]} : vector<8x72xf32> to vector<8x8xf32>
    %1186 = arith.mulf %809, %1185 : vector<8x8xf32>
    %1187 = vector.extract_strided_slice %1182 {offsets = [0, 16], sizes = [8, 8], strides = [1, 1]} : vector<8x72xf32> to vector<8x8xf32>
    %1188 = arith.mulf %1069, %1187 : vector<8x8xf32>
    %1189 = vector.extract_strided_slice %1182 {offsets = [0, 24], sizes = [8, 8], strides = [1, 1]} : vector<8x72xf32> to vector<8x8xf32>
    %1190 = arith.mulf %556, %1189 : vector<8x8xf32>
    %1191 = arith.mulf %557, %1189 : vector<8x8xf32>
    %1192 = arith.mulf %558, %1189 : vector<8x8xf32>
    %1193 = tpu.concatenate %1190, %1191, %1192 in 1 : vector<8x8xf32>, vector<8x8xf32>, vector<8x8xf32> -> vector<8x24xf32>
    %1194 = vector.extract_strided_slice %1182 {offsets = [0, 32], sizes = [8, 8], strides = [1, 1]} : vector<8x72xf32> to vector<8x8xf32>
    %1195 = arith.mulf %780, %1194 : vector<8x8xf32>
    %1196 = arith.mulf %781, %1194 : vector<8x8xf32>
    %1197 = arith.mulf %782, %1194 : vector<8x8xf32>
    %1198 = tpu.concatenate %1195, %1196, %1197 in 1 : vector<8x8xf32>, vector<8x8xf32>, vector<8x8xf32> -> vector<8x24xf32>
    %1199 = vector.extract_strided_slice %1182 {offsets = [0, 40], sizes = [8, 8], strides = [1, 1]} : vector<8x72xf32> to vector<8x8xf32>
    %1200 = arith.mulf %1040, %1199 : vector<8x8xf32>
    %1201 = arith.mulf %1041, %1199 : vector<8x8xf32>
    %1202 = arith.mulf %1042, %1199 : vector<8x8xf32>
    %1203 = tpu.concatenate %1200, %1201, %1202 in 1 : vector<8x8xf32>, vector<8x8xf32>, vector<8x8xf32> -> vector<8x24xf32>
    %1204 = vector.extract_strided_slice %1182 {offsets = [0, 48], sizes = [8, 8], strides = [1, 1]} : vector<8x72xf32> to vector<8x8xf32>
    %1205 = arith.mulf %622, %1204 : vector<8x8xf32>
    %1206 = arith.mulf %623, %1204 : vector<8x8xf32>
    %1207 = arith.mulf %624, %1204 : vector<8x8xf32>
    %1208 = arith.mulf %625, %1204 : vector<8x8xf32>
    %1209 = arith.mulf %626, %1204 : vector<8x8xf32>
    %1210 = arith.mulf %627, %1204 : vector<8x8xf32>
    %1211 = arith.mulf %628, %1204 : vector<8x8xf32>
    %1212 = arith.mulf %629, %1204 : vector<8x8xf32>
    %1213 = arith.mulf %630, %1204 : vector<8x8xf32>
    %1214 = tpu.concatenate %1205, %1206, %1207, %1208, %1209, %1210, %1211, %1212, %1213 in 1 : vector<8x8xf32>, vector<8x8xf32>, vector<8x8xf32>, vector<8x8xf32>, vector<8x8xf32>, vector<8x8xf32>, vector<8x8xf32>, vector<8x8xf32>, vector<8x8xf32> -> vector<8x72xf32>
    %1215 = vector.extract_strided_slice %1182 {offsets = [0, 56], sizes = [8, 8], strides = [1, 1]} : vector<8x72xf32> to vector<8x8xf32>
    %1216 = arith.mulf %882, %1215 : vector<8x8xf32>
    %1217 = arith.mulf %883, %1215 : vector<8x8xf32>
    %1218 = arith.mulf %884, %1215 : vector<8x8xf32>
    %1219 = arith.mulf %885, %1215 : vector<8x8xf32>
    %1220 = arith.mulf %886, %1215 : vector<8x8xf32>
    %1221 = arith.mulf %887, %1215 : vector<8x8xf32>
    %1222 = arith.mulf %888, %1215 : vector<8x8xf32>
    %1223 = arith.mulf %889, %1215 : vector<8x8xf32>
    %1224 = arith.mulf %890, %1215 : vector<8x8xf32>
    %1225 = tpu.concatenate %1216, %1217, %1218, %1219, %1220, %1221, %1222, %1223, %1224 in 1 : vector<8x8xf32>, vector<8x8xf32>, vector<8x8xf32>, vector<8x8xf32>, vector<8x8xf32>, vector<8x8xf32>, vector<8x8xf32>, vector<8x8xf32>, vector<8x8xf32> -> vector<8x72xf32>
    %1226 = vector.extract_strided_slice %1182 {offsets = [0, 64], sizes = [8, 8], strides = [1, 1]} : vector<8x72xf32> to vector<8x8xf32>
    %1227 = arith.mulf %1142, %1226 : vector<8x8xf32>
    %1228 = arith.mulf %1143, %1226 : vector<8x8xf32>
    %1229 = arith.mulf %1144, %1226 : vector<8x8xf32>
    %1230 = arith.mulf %1145, %1226 : vector<8x8xf32>
    %1231 = arith.mulf %1146, %1226 : vector<8x8xf32>
    %1232 = arith.mulf %1147, %1226 : vector<8x8xf32>
    %1233 = arith.mulf %1148, %1226 : vector<8x8xf32>
    %1234 = arith.mulf %1149, %1226 : vector<8x8xf32>
    %1235 = arith.mulf %1150, %1226 : vector<8x8xf32>
    %1236 = tpu.concatenate %1227, %1228, %1229, %1230, %1231, %1232, %1233, %1234, %1235 in 1 : vector<8x8xf32>, vector<8x8xf32>, vector<8x8xf32>, vector<8x8xf32>, vector<8x8xf32>, vector<8x8xf32>, vector<8x8xf32>, vector<8x8xf32>, vector<8x8xf32> -> vector<8x72xf32>
    %1237 = tpu.concatenate %1184, %1186, %1188, %1193, %1198, %1203, %1214, %1225, %1236 in 1 : vector<8x8xf32>, vector<8x8xf32>, vector<8x8xf32>, vector<8x24xf32>, vector<8x24xf32>, vector<8x24xf32>, vector<8x72xf32>, vector<8x72xf32>, vector<8x72xf32> -> vector<8x312xf32>
    %1238 = tpu.iota {dimensions = array<i32: 0>} : vector<8x8xi32>
    %c0_70 = arith.constant 0 : index
    %c0_71 = arith.constant 0 : index
    %c0_72 = arith.constant 0 : index
    %1239 = vector.load %arg4[%c0_70, %c0_71, %c0_72] : memref<1x1x8xi32, #tpu.memory_space<vmem>>, vector<1x1x8xi32>
    %1240 = vector.shape_cast %1239 : vector<1x1x8xi32> to vector<1x8xi32>
    %1241 = vector.broadcast %1240 : vector<1x8xi32> to vector<8x8xi32>
    %1242 = arith.cmpi eq, %1238, %1241 : vector<8x8xi32>
    %1243 = arith.extui %1242 : vector<8x8xi1> to vector<8x8xi32>
    %1244 = arith.sitofp %1243 : vector<8x8xi32> to vector<8x8xf32>
    %c0_73 = arith.constant 0 : index
    %c0_74 = arith.constant 0 : index
    %1245 = vector.load %arg24[%c0_73, %c0_74] : memref<8x312xf32, #tpu.memory_space<vmem>>, vector<8x312xf32>
    %cst_75 = arith.constant dense<0.000000e+00> : vector<8x312xf32>
    %1246 = tpu.matmul %1244, %1237, %cst_75 {dimension_numbers = #tpu.dot_dimension_numbers<[1], [0], [0], [1], [0, 0, 1, 1], [], []>} : vector<8x8xf32>, vector<8x312xf32>, vector<8x312xf32> -> vector<8x312xf32>
    %1247 = arith.addf %1245, %1246 : vector<8x312xf32>
    %c0_76 = arith.constant 0 : index
    %c0_77 = arith.constant 0 : index
    %1248 = vector.load %arg24[%c0_76, %c0_77] : memref<8x312xf32, #tpu.memory_space<vmem>>, vector<8x312xf32>
    tpu.vector_store %arg24[%c0_76, %c0_77], %1247 {strides = array<i32>} : memref<8x312xf32, #tpu.memory_space<vmem>>, vector<8x312xf32>,
    %c1_i32 = arith.constant 1 : i32
    %1249 = arith.cmpi eq, %arg0, %c1_i32 : i32
    %1250 = arith.extui %1249 : i1 to i32
    %c0_i32_78 = arith.constant 0 : i32
    %1251 = arith.cmpi ne, %1250, %c0_i32_78 : i32
    scf.if %1251 {
      %1252 = vector.extract_strided_slice %3 {offsets = [0, 0], sizes = [8, 8], strides = [1, 1]} : vector<8x128xf32> to vector<8x8xf32>
      %1253 = vector.extract_strided_slice %3 {offsets = [0, 8], sizes = [8, 8], strides = [1, 1]} : vector<8x128xf32> to vector<8x8xf32>
      %1254 = vector.extract_strided_slice %3 {offsets = [0, 16], sizes = [8, 8], strides = [1, 1]} : vector<8x128xf32> to vector<8x8xf32>
      %1255 = vector.extract_strided_slice %3 {offsets = [0, 24], sizes = [8, 8], strides = [1, 1]} : vector<8x128xf32> to vector<8x8xf32>
      %1256 = vector.extract_strided_slice %3 {offsets = [0, 32], sizes = [8, 8], strides = [1, 1]} : vector<8x128xf32> to vector<8x8xf32>
      %1257 = vector.extract_strided_slice %3 {offsets = [0, 40], sizes = [8, 8], strides = [1, 1]} : vector<8x128xf32> to vector<8x8xf32>
      %1258 = vector.extract_strided_slice %3 {offsets = [0, 48], sizes = [8, 8], strides = [1, 1]} : vector<8x128xf32> to vector<8x8xf32>
      %1259 = vector.extract_strided_slice %3 {offsets = [0, 56], sizes = [8, 8], strides = [1, 1]} : vector<8x128xf32> to vector<8x8xf32>
      %1260 = vector.extract_strided_slice %3 {offsets = [0, 64], sizes = [8, 8], strides = [1, 1]} : vector<8x128xf32> to vector<8x8xf32>
      %1261 = vector.extract_strided_slice %3 {offsets = [0, 72], sizes = [8, 8], strides = [1, 1]} : vector<8x128xf32> to vector<8x8xf32>
      %1262 = vector.extract_strided_slice %3 {offsets = [0, 80], sizes = [8, 8], strides = [1, 1]} : vector<8x128xf32> to vector<8x8xf32>
      %1263 = vector.extract_strided_slice %3 {offsets = [0, 88], sizes = [8, 8], strides = [1, 1]} : vector<8x128xf32> to vector<8x8xf32>
      %1264 = vector.extract_strided_slice %3 {offsets = [0, 96], sizes = [8, 8], strides = [1, 1]} : vector<8x128xf32> to vector<8x8xf32>
      %c0_79 = arith.constant 0 : index
      %c0_80 = arith.constant 0 : index
      %c0_81 = arith.constant 0 : index
      %1265 = vector.load %arg7[%c0_79, %c0_80, %c0_81] : memref<3x8x16xf32, #tpu.memory_space<vmem>>, vector<1x8x16xf32>
      %1266 = vector.shape_cast %1265 : vector<1x8x16xf32> to vector<8x16xf32>
      %cst_82 = arith.constant dense<0.000000e+00> : vector<8x16xf32>
      %1267 = tpu.matmul %1252, %1266, %cst_82 {dimension_numbers = #tpu.dot_dimension_numbers<[1], [0], [0], [1], [0, 0, 1, 1], [], []>} : vector<8x8xf32>, vector<8x16xf32>, vector<8x16xf32> -> vector<8x16xf32>
      %1268 = vector.extract_strided_slice %1267 {offsets = [0, 0], sizes = [8, 8], strides = [1, 1]} : vector<8x16xf32> to vector<8x8xf32>
      %1269 = vector.extract_strided_slice %1267 {offsets = [0, 8], sizes = [8, 8], strides = [1, 1]} : vector<8x16xf32> to vector<8x8xf32>
      %c1_83 = arith.constant 1 : index
      %c0_84 = arith.constant 0 : index
      %c0_85 = arith.constant 0 : index
      %1270 = vector.load %arg7[%c1_83, %c0_84, %c0_85] : memref<3x8x16xf32, #tpu.memory_space<vmem>>, vector<1x8x16xf32>
      %1271 = vector.shape_cast %1270 : vector<1x8x16xf32> to vector<8x16xf32>
      %1272 = tpu.concatenate %1253, %1254, %1255 in 0 : vector<8x8xf32>, vector<8x8xf32>, vector<8x8xf32> -> vector<24x8xf32>
      %cst_86 = arith.constant dense<0.000000e+00> : vector<24x16xf32>
      %1273 = tpu.matmul %1272, %1271, %cst_86 {dimension_numbers = #tpu.dot_dimension_numbers<[1], [0], [0], [1], [0, 0, 1, 1], [], []>} : vector<24x8xf32>, vector<8x16xf32>, vector<24x16xf32> -> vector<24x16xf32>
      %1274 = vector.extract_strided_slice %1273 {offsets = [0, 0], sizes = [8, 8], strides = [1, 1]} : vector<24x16xf32> to vector<8x8xf32>
      %1275 = vector.extract_strided_slice %1273 {offsets = [8, 0], sizes = [8, 8], strides = [1, 1]} : vector<24x16xf32> to vector<8x8xf32>
      %1276 = vector.extract_strided_slice %1273 {offsets = [16, 0], sizes = [8, 8], strides = [1, 1]} : vector<24x16xf32> to vector<8x8xf32>
      %1277 = vector.extract_strided_slice %1273 {offsets = [0, 8], sizes = [8, 8], strides = [1, 1]} : vector<24x16xf32> to vector<8x8xf32>
      %1278 = vector.extract_strided_slice %1273 {offsets = [8, 8], sizes = [8, 8], strides = [1, 1]} : vector<24x16xf32> to vector<8x8xf32>
      %1279 = vector.extract_strided_slice %1273 {offsets = [16, 8], sizes = [8, 8], strides = [1, 1]} : vector<24x16xf32> to vector<8x8xf32>
      %c2_87 = arith.constant 2 : index
      %c0_88 = arith.constant 0 : index
      %c0_89 = arith.constant 0 : index
      %1280 = vector.load %arg7[%c2_87, %c0_88, %c0_89] : memref<3x8x16xf32, #tpu.memory_space<vmem>>, vector<1x8x16xf32>
      %1281 = vector.shape_cast %1280 : vector<1x8x16xf32> to vector<8x16xf32>
      %1282 = tpu.concatenate %1256, %1257, %1258, %1259, %1260, %1261, %1262, %1263, %1264 in 0 : vector<8x8xf32>, vector<8x8xf32>, vector<8x8xf32>, vector<8x8xf32>, vector<8x8xf32>, vector<8x8xf32>, vector<8x8xf32>, vector<8x8xf32>, vector<8x8xf32> -> vector<72x8xf32>
      %cst_90 = arith.constant dense<0.000000e+00> : vector<72x16xf32>
      %1283 = tpu.matmul %1282, %1281, %cst_90 {dimension_numbers = #tpu.dot_dimension_numbers<[1], [0], [0], [1], [0, 0, 1, 1], [], []>} : vector<72x8xf32>, vector<8x16xf32>, vector<72x16xf32> -> vector<72x16xf32>
      %1284 = vector.extract_strided_slice %1283 {offsets = [0, 0], sizes = [8, 8], strides = [1, 1]} : vector<72x16xf32> to vector<8x8xf32>
      %1285 = vector.extract_strided_slice %1283 {offsets = [8, 0], sizes = [8, 8], strides = [1, 1]} : vector<72x16xf32> to vector<8x8xf32>
      %1286 = vector.extract_strided_slice %1283 {offsets = [16, 0], sizes = [8, 8], strides = [1, 1]} : vector<72x16xf32> to vector<8x8xf32>
      %1287 = vector.extract_strided_slice %1283 {offsets = [24, 0], sizes = [8, 8], strides = [1, 1]} : vector<72x16xf32> to vector<8x8xf32>
      %1288 = vector.extract_strided_slice %1283 {offsets = [32, 0], sizes = [8, 8], strides = [1, 1]} : vector<72x16xf32> to vector<8x8xf32>
      %1289 = vector.extract_strided_slice %1283 {offsets = [40, 0], sizes = [8, 8], strides = [1, 1]} : vector<72x16xf32> to vector<8x8xf32>
      %1290 = vector.extract_strided_slice %1283 {offsets = [48, 0], sizes = [8, 8], strides = [1, 1]} : vector<72x16xf32> to vector<8x8xf32>
      %1291 = vector.extract_strided_slice %1283 {offsets = [56, 0], sizes = [8, 8], strides = [1, 1]} : vector<72x16xf32> to vector<8x8xf32>
      %1292 = vector.extract_strided_slice %1283 {offsets = [64, 0], sizes = [8, 8], strides = [1, 1]} : vector<72x16xf32> to vector<8x8xf32>
      %1293 = vector.extract_strided_slice %1283 {offsets = [0, 8], sizes = [8, 8], strides = [1, 1]} : vector<72x16xf32> to vector<8x8xf32>
      %1294 = vector.extract_strided_slice %1283 {offsets = [8, 8], sizes = [8, 8], strides = [1, 1]} : vector<72x16xf32> to vector<8x8xf32>
      %1295 = vector.extract_strided_slice %1283 {offsets = [16, 8], sizes = [8, 8], strides = [1, 1]} : vector<72x16xf32> to vector<8x8xf32>
      %1296 = vector.extract_strided_slice %1283 {offsets = [24, 8], sizes = [8, 8], strides = [1, 1]} : vector<72x16xf32> to vector<8x8xf32>
      %1297 = vector.extract_strided_slice %1283 {offsets = [32, 8], sizes = [8, 8], strides = [1, 1]} : vector<72x16xf32> to vector<8x8xf32>
      %1298 = vector.extract_strided_slice %1283 {offsets = [40, 8], sizes = [8, 8], strides = [1, 1]} : vector<72x16xf32> to vector<8x8xf32>
      %1299 = vector.extract_strided_slice %1283 {offsets = [48, 8], sizes = [8, 8], strides = [1, 1]} : vector<72x16xf32> to vector<8x8xf32>
      %1300 = vector.extract_strided_slice %1283 {offsets = [56, 8], sizes = [8, 8], strides = [1, 1]} : vector<72x16xf32> to vector<8x8xf32>
      %1301 = vector.extract_strided_slice %1283 {offsets = [64, 8], sizes = [8, 8], strides = [1, 1]} : vector<72x16xf32> to vector<8x8xf32>
      %1302 = arith.mulf %1268, %1269 : vector<8x8xf32>
      %1303 = arith.mulf %1268, %1277 : vector<8x8xf32>
      %1304 = arith.mulf %1268, %1278 : vector<8x8xf32>
      %1305 = arith.mulf %1268, %1279 : vector<8x8xf32>
      %1306 = arith.mulf %1268, %1293 : vector<8x8xf32>
      %1307 = arith.mulf %1268, %1294 : vector<8x8xf32>
      %1308 = arith.mulf %1268, %1295 : vector<8x8xf32>
      %1309 = arith.mulf %1268, %1296 : vector<8x8xf32>
      %1310 = arith.mulf %1268, %1297 : vector<8x8xf32>
      %1311 = arith.mulf %1268, %1298 : vector<8x8xf32>
      %1312 = arith.mulf %1268, %1299 : vector<8x8xf32>
      %1313 = arith.mulf %1268, %1300 : vector<8x8xf32>
      %1314 = arith.mulf %1268, %1301 : vector<8x8xf32>
      %1315 = arith.mulf %1274, %1269 : vector<8x8xf32>
      %1316 = arith.mulf %1275, %1269 : vector<8x8xf32>
      %1317 = arith.mulf %1276, %1269 : vector<8x8xf32>
      %1318 = arith.addf %1303, %1315 : vector<8x8xf32>
      %1319 = arith.addf %1304, %1316 : vector<8x8xf32>
      %1320 = arith.addf %1305, %1317 : vector<8x8xf32>
      %1321 = arith.mulf %1274, %1277 : vector<8x8xf32>
      %1322 = arith.mulf %1275, %1278 : vector<8x8xf32>
      %1323 = arith.addf %1321, %1322 : vector<8x8xf32>
      %1324 = arith.mulf %1276, %1279 : vector<8x8xf32>
      %1325 = arith.addf %1323, %1324 : vector<8x8xf32>
      %1326 = arith.addf %1302, %1325 : vector<8x8xf32>
      %1327 = arith.mulf %1274, %1277 : vector<8x8xf32>
      %1328 = arith.mulf %1274, %1278 : vector<8x8xf32>
      %1329 = arith.mulf %1274, %1279 : vector<8x8xf32>
      %1330 = arith.mulf %1275, %1277 : vector<8x8xf32>
      %1331 = arith.mulf %1275, %1278 : vector<8x8xf32>
      %1332 = arith.mulf %1275, %1279 : vector<8x8xf32>
      %1333 = arith.mulf %1276, %1277 : vector<8x8xf32>
      %1334 = arith.mulf %1276, %1278 : vector<8x8xf32>
      %1335 = arith.mulf %1276, %1279 : vector<8x8xf32>
      %1336 = arith.addf %1306, %1327 : vector<8x8xf32>
      %1337 = arith.addf %1307, %1328 : vector<8x8xf32>
      %1338 = arith.addf %1308, %1329 : vector<8x8xf32>
      %1339 = arith.addf %1309, %1330 : vector<8x8xf32>
      %1340 = arith.addf %1310, %1331 : vector<8x8xf32>
      %1341 = arith.addf %1311, %1332 : vector<8x8xf32>
      %1342 = arith.addf %1312, %1333 : vector<8x8xf32>
      %1343 = arith.addf %1313, %1334 : vector<8x8xf32>
      %1344 = arith.addf %1314, %1335 : vector<8x8xf32>
      %1345 = arith.mulf %1274, %1293 : vector<8x8xf32>
      %1346 = arith.mulf %1275, %1296 : vector<8x8xf32>
      %1347 = arith.addf %1345, %1346 : vector<8x8xf32>
      %1348 = arith.mulf %1276, %1299 : vector<8x8xf32>
      %1349 = arith.addf %1347, %1348 : vector<8x8xf32>
      %1350 = arith.mulf %1274, %1294 : vector<8x8xf32>
      %1351 = arith.mulf %1275, %1297 : vector<8x8xf32>
      %1352 = arith.addf %1350, %1351 : vector<8x8xf32>
      %1353 = arith.mulf %1276, %1300 : vector<8x8xf32>
      %1354 = arith.addf %1352, %1353 : vector<8x8xf32>
      %1355 = arith.mulf %1274, %1295 : vector<8x8xf32>
      %1356 = arith.mulf %1275, %1298 : vector<8x8xf32>
      %1357 = arith.addf %1355, %1356 : vector<8x8xf32>
      %1358 = arith.mulf %1276, %1301 : vector<8x8xf32>
      %1359 = arith.addf %1357, %1358 : vector<8x8xf32>
      %1360 = arith.addf %1318, %1349 : vector<8x8xf32>
      %1361 = arith.addf %1319, %1354 : vector<8x8xf32>
      %1362 = arith.addf %1320, %1359 : vector<8x8xf32>
      %1363 = arith.mulf %1284, %1269 : vector<8x8xf32>
      %1364 = arith.mulf %1285, %1269 : vector<8x8xf32>
      %1365 = arith.mulf %1286, %1269 : vector<8x8xf32>
      %1366 = arith.mulf %1287, %1269 : vector<8x8xf32>
      %1367 = arith.mulf %1288, %1269 : vector<8x8xf32>
      %1368 = arith.mulf %1289, %1269 : vector<8x8xf32>
      %1369 = arith.mulf %1290, %1269 : vector<8x8xf32>
      %1370 = arith.mulf %1291, %1269 : vector<8x8xf32>
      %1371 = arith.mulf %1292, %1269 : vector<8x8xf32>
      %1372 = arith.addf %1336, %1363 : vector<8x8xf32>
      %1373 = arith.addf %1337, %1364 : vector<8x8xf32>
      %1374 = arith.addf %1338, %1365 : vector<8x8xf32>
      %1375 = arith.addf %1339, %1366 : vector<8x8xf32>
      %1376 = arith.addf %1340, %1367 : vector<8x8xf32>
      %1377 = arith.addf %1341, %1368 : vector<8x8xf32>
      %1378 = arith.addf %1342, %1369 : vector<8x8xf32>
      %1379 = arith.addf %1343, %1370 : vector<8x8xf32>
      %1380 = arith.addf %1344, %1371 : vector<8x8xf32>
      %1381 = arith.mulf %1284, %1277 : vector<8x8xf32>
      %1382 = arith.mulf %1285, %1278 : vector<8x8xf32>
      %1383 = arith.addf %1381, %1382 : vector<8x8xf32>
      %1384 = arith.mulf %1286, %1279 : vector<8x8xf32>
      %1385 = arith.addf %1383, %1384 : vector<8x8xf32>
      %1386 = arith.mulf %1287, %1277 : vector<8x8xf32>
      %1387 = arith.mulf %1288, %1278 : vector<8x8xf32>
      %1388 = arith.addf %1386, %1387 : vector<8x8xf32>
      %1389 = arith.mulf %1289, %1279 : vector<8x8xf32>
      %1390 = arith.addf %1388, %1389 : vector<8x8xf32>
      %1391 = arith.mulf %1290, %1277 : vector<8x8xf32>
      %1392 = arith.mulf %1291, %1278 : vector<8x8xf32>
      %1393 = arith.addf %1391, %1392 : vector<8x8xf32>
      %1394 = arith.mulf %1292, %1279 : vector<8x8xf32>
      %1395 = arith.addf %1393, %1394 : vector<8x8xf32>
      %1396 = arith.addf %1360, %1385 : vector<8x8xf32>
      %1397 = arith.addf %1361, %1390 : vector<8x8xf32>
      %1398 = arith.addf %1362, %1395 : vector<8x8xf32>
      %1399 = arith.mulf %1284, %1293 : vector<8x8xf32>
      %1400 = arith.mulf %1285, %1294 : vector<8x8xf32>
      %1401 = arith.addf %1399, %1400 : vector<8x8xf32>
      %1402 = arith.mulf %1286, %1295 : vector<8x8xf32>
      %1403 = arith.addf %1401, %1402 : vector<8x8xf32>
      %1404 = arith.mulf %1287, %1296 : vector<8x8xf32>
      %1405 = arith.addf %1403, %1404 : vector<8x8xf32>
      %1406 = arith.mulf %1288, %1297 : vector<8x8xf32>
      %1407 = arith.addf %1405, %1406 : vector<8x8xf32>
      %1408 = arith.mulf %1289, %1298 : vector<8x8xf32>
      %1409 = arith.addf %1407, %1408 : vector<8x8xf32>
      %1410 = arith.mulf %1290, %1299 : vector<8x8xf32>
      %1411 = arith.addf %1409, %1410 : vector<8x8xf32>
      %1412 = arith.mulf %1291, %1300 : vector<8x8xf32>
      %1413 = arith.addf %1411, %1412 : vector<8x8xf32>
      %1414 = arith.mulf %1292, %1301 : vector<8x8xf32>
      %1415 = arith.addf %1413, %1414 : vector<8x8xf32>
      %1416 = arith.addf %1326, %1415 : vector<8x8xf32>
      %1417 = arith.mulf %1284, %1293 : vector<8x8xf32>
      %1418 = arith.mulf %1285, %1296 : vector<8x8xf32>
      %1419 = arith.addf %1417, %1418 : vector<8x8xf32>
      %1420 = arith.mulf %1286, %1299 : vector<8x8xf32>
      %1421 = arith.addf %1419, %1420 : vector<8x8xf32>
      %1422 = arith.mulf %1284, %1294 : vector<8x8xf32>
      %1423 = arith.mulf %1285, %1297 : vector<8x8xf32>
      %1424 = arith.addf %1422, %1423 : vector<8x8xf32>
      %1425 = arith.mulf %1286, %1300 : vector<8x8xf32>
      %1426 = arith.addf %1424, %1425 : vector<8x8xf32>
      %1427 = arith.mulf %1284, %1295 : vector<8x8xf32>
      %1428 = arith.mulf %1285, %1298 : vector<8x8xf32>
      %1429 = arith.addf %1427, %1428 : vector<8x8xf32>
      %1430 = arith.mulf %1286, %1301 : vector<8x8xf32>
      %1431 = arith.addf %1429, %1430 : vector<8x8xf32>
      %1432 = arith.mulf %1287, %1293 : vector<8x8xf32>
      %1433 = arith.mulf %1288, %1296 : vector<8x8xf32>
      %1434 = arith.addf %1432, %1433 : vector<8x8xf32>
      %1435 = arith.mulf %1289, %1299 : vector<8x8xf32>
      %1436 = arith.addf %1434, %1435 : vector<8x8xf32>
      %1437 = arith.mulf %1287, %1294 : vector<8x8xf32>
      %1438 = arith.mulf %1288, %1297 : vector<8x8xf32>
      %1439 = arith.addf %1437, %1438 : vector<8x8xf32>
      %1440 = arith.mulf %1289, %1300 : vector<8x8xf32>
      %1441 = arith.addf %1439, %1440 : vector<8x8xf32>
      %1442 = arith.mulf %1287, %1295 : vector<8x8xf32>
      %1443 = arith.mulf %1288, %1298 : vector<8x8xf32>
      %1444 = arith.addf %1442, %1443 : vector<8x8xf32>
      %1445 = arith.mulf %1289, %1301 : vector<8x8xf32>
      %1446 = arith.addf %1444, %1445 : vector<8x8xf32>
      %1447 = arith.mulf %1290, %1293 : vector<8x8xf32>
      %1448 = arith.mulf %1291, %1296 : vector<8x8xf32>
      %1449 = arith.addf %1447, %1448 : vector<8x8xf32>
      %1450 = arith.mulf %1292, %1299 : vector<8x8xf32>
      %1451 = arith.addf %1449, %1450 : vector<8x8xf32>
      %1452 = arith.mulf %1290, %1294 : vector<8x8xf32>
      %1453 = arith.mulf %1291, %1297 : vector<8x8xf32>
      %1454 = arith.addf %1452, %1453 : vector<8x8xf32>
      %1455 = arith.mulf %1292, %1300 : vector<8x8xf32>
      %1456 = arith.addf %1454, %1455 : vector<8x8xf32>
      %1457 = arith.mulf %1290, %1295 : vector<8x8xf32>
      %1458 = arith.mulf %1291, %1298 : vector<8x8xf32>
      %1459 = arith.addf %1457, %1458 : vector<8x8xf32>
      %1460 = arith.mulf %1292, %1301 : vector<8x8xf32>
      %1461 = arith.addf %1459, %1460 : vector<8x8xf32>
      %1462 = arith.addf %1372, %1421 : vector<8x8xf32>
      %1463 = arith.addf %1373, %1426 : vector<8x8xf32>
      %1464 = arith.addf %1374, %1431 : vector<8x8xf32>
      %1465 = arith.addf %1375, %1436 : vector<8x8xf32>
      %1466 = arith.addf %1376, %1441 : vector<8x8xf32>
      %1467 = arith.addf %1377, %1446 : vector<8x8xf32>
      %1468 = arith.addf %1378, %1451 : vector<8x8xf32>
      %1469 = arith.addf %1379, %1456 : vector<8x8xf32>
      %1470 = arith.addf %1380, %1461 : vector<8x8xf32>
      %c0_91 = arith.constant 0 : index
      %c0_92 = arith.constant 0 : index
      %1471 = vector.load %arg24[%c0_91, %c0_92] : memref<8x312xf32, #tpu.memory_space<vmem>>, vector<8x312xf32>
      %1472 = vector.extract_strided_slice %1471 {offsets = [0, 0], sizes = [8, 8], strides = [1, 1]} : vector<8x312xf32> to vector<8x8xf32>
      %1473 = vector.extract_strided_slice %1471 {offsets = [0, 8], sizes = [8, 8], strides = [1, 1]} : vector<8x312xf32> to vector<8x8xf32>
      %1474 = vector.extract_strided_slice %1471 {offsets = [0, 16], sizes = [8, 8], strides = [1, 1]} : vector<8x312xf32> to vector<8x8xf32>
      %1475 = tpu.concatenate %1416, %1252, %1472, %1473, %1474 in 1 : vector<8x8xf32>, vector<8x8xf32>, vector<8x8xf32>, vector<8x8xf32>, vector<8x8xf32> -> vector<8x40xf32>
      %c0_93 = arith.constant 0 : index
      %c0_94 = arith.constant 0 : index
      %c0_95 = arith.constant 0 : index
      %1476 = vector.load %arg18[%c0_93, %c0_94, %c0_95] : memref<3x40x8xf32, #tpu.memory_space<vmem>>, vector<1x40x8xf32>
      %1477 = vector.shape_cast %1476 : vector<1x40x8xf32> to vector<40x8xf32>
      %cst_96 = arith.constant dense<0.000000e+00> : vector<8x8xf32>
      %1478 = tpu.matmul %1475, %1477, %cst_96 {dimension_numbers = #tpu.dot_dimension_numbers<[1], [0], [0], [1], [0, 0, 1, 1], [], []>} : vector<8x40xf32>, vector<40x8xf32>, vector<8x8xf32> -> vector<8x8xf32>
      %c0_97 = arith.constant 0 : index
      %c0_98 = arith.constant 0 : index
      %1479 = vector.load %arg19[%c0_97, %c0_98] : memref<1x8xf32, #tpu.memory_space<vmem>>, vector<1x8xf32>
      %1480 = vector.broadcast %1479 : vector<1x8xf32> to vector<8x8xf32>
      %1481 = arith.addf %1478, %1480 : vector<8x8xf32>
      %1482 = arith.negf %1481 : vector<8x8xf32>
      %1483 = math.exp %1482 : vector<8x8xf32>
      %cst_99 = arith.constant 1.000000e+00 : f32
      %1484 = vector.broadcast %cst_99 : f32 to vector<8x8xf32>
      %1485 = arith.addf %1484, %1483 : vector<8x8xf32>
      %1486 = arith.divf %1484, %1485 : vector<8x8xf32>
      %1487 = arith.mulf %1481, %1486 : vector<8x8xf32>
      %c0_100 = arith.constant 0 : index
      %c0_101 = arith.constant 0 : index
      %1488 = vector.load %arg20[%c0_100, %c0_101] : memref<8x8xf32, #tpu.memory_space<vmem>>, vector<8x8xf32>
      %cst_102 = arith.constant dense<0.000000e+00> : vector<8x8xf32>
      %1489 = tpu.matmul %1487, %1488, %cst_102 {dimension_numbers = #tpu.dot_dimension_numbers<[1], [0], [0], [1], [0, 0, 1, 1], [], []>} : vector<8x8xf32>, vector<8x8xf32>, vector<8x8xf32> -> vector<8x8xf32>
      %c0_103 = arith.constant 0 : index
      %c0_104 = arith.constant 0 : index
      %1490 = vector.load %arg21[%c0_103, %c0_104] : memref<1x8xf32, #tpu.memory_space<vmem>>, vector<1x8xf32>
      %1491 = vector.broadcast %1490 : vector<1x8xf32> to vector<8x8xf32>
      %1492 = arith.addf %1489, %1491 : vector<8x8xf32>
      %1493 = tpu.concatenate %1396, %1397, %1398 in 0 : vector<8x8xf32>, vector<8x8xf32>, vector<8x8xf32> -> vector<24x8xf32>
      %1494 = tpu.concatenate %1253, %1254, %1255 in 0 : vector<8x8xf32>, vector<8x8xf32>, vector<8x8xf32> -> vector<24x8xf32>
      %1495 = vector.extract_strided_slice %1471 {offsets = [0, 24], sizes = [8, 8], strides = [1, 1]} : vector<8x312xf32> to vector<8x8xf32>
      %1496 = vector.extract_strided_slice %1471 {offsets = [0, 32], sizes = [8, 8], strides = [1, 1]} : vector<8x312xf32> to vector<8x8xf32>
      %1497 = vector.extract_strided_slice %1471 {offsets = [0, 40], sizes = [8, 8], strides = [1, 1]} : vector<8x312xf32> to vector<8x8xf32>
      %1498 = tpu.concatenate %1495, %1496, %1497 in 0 : vector<8x8xf32>, vector<8x8xf32>, vector<8x8xf32> -> vector<24x8xf32>
      %1499 = vector.extract_strided_slice %1471 {offsets = [0, 48], sizes = [8, 8], strides = [1, 1]} : vector<8x312xf32> to vector<8x8xf32>
      %1500 = vector.extract_strided_slice %1471 {offsets = [0, 56], sizes = [8, 8], strides = [1, 1]} : vector<8x312xf32> to vector<8x8xf32>
      %1501 = vector.extract_strided_slice %1471 {offsets = [0, 64], sizes = [8, 8], strides = [1, 1]} : vector<8x312xf32> to vector<8x8xf32>
      %1502 = tpu.concatenate %1499, %1500, %1501 in 0 : vector<8x8xf32>, vector<8x8xf32>, vector<8x8xf32> -> vector<24x8xf32>
      %1503 = vector.extract_strided_slice %1471 {offsets = [0, 72], sizes = [8, 8], strides = [1, 1]} : vector<8x312xf32> to vector<8x8xf32>
      %1504 = vector.extract_strided_slice %1471 {offsets = [0, 80], sizes = [8, 8], strides = [1, 1]} : vector<8x312xf32> to vector<8x8xf32>
      %1505 = vector.extract_strided_slice %1471 {offsets = [0, 88], sizes = [8, 8], strides = [1, 1]} : vector<8x312xf32> to vector<8x8xf32>
      %1506 = tpu.concatenate %1503, %1504, %1505 in 0 : vector<8x8xf32>, vector<8x8xf32>, vector<8x8xf32> -> vector<24x8xf32>
      %1507 = tpu.concatenate %1493, %1494, %1498, %1502, %1506 in 1 : vector<24x8xf32>, vector<24x8xf32>, vector<24x8xf32>, vector<24x8xf32>, vector<24x8xf32> -> vector<24x40xf32>
      %c1_105 = arith.constant 1 : index
      %c0_106 = arith.constant 0 : index
      %c0_107 = arith.constant 0 : index
      %1508 = vector.load %arg18[%c1_105, %c0_106, %c0_107] : memref<3x40x8xf32, #tpu.memory_space<vmem>>, vector<1x40x8xf32>
      %1509 = vector.shape_cast %1508 : vector<1x40x8xf32> to vector<40x8xf32>
      %cst_108 = arith.constant dense<0.000000e+00> : vector<24x8xf32>
      %1510 = tpu.matmul %1507, %1509, %cst_108 {dimension_numbers = #tpu.dot_dimension_numbers<[1], [0], [0], [1], [0, 0, 1, 1], [], []>} : vector<24x40xf32>, vector<40x8xf32>, vector<24x8xf32> -> vector<24x8xf32>
      %1511 = vector.extract_strided_slice %1510 {offsets = [0, 0], sizes = [8, 8], strides = [1, 1]} : vector<24x8xf32> to vector<8x8xf32>
      %1512 = vector.extract_strided_slice %1510 {offsets = [8, 0], sizes = [8, 8], strides = [1, 1]} : vector<24x8xf32> to vector<8x8xf32>
      %1513 = vector.extract_strided_slice %1510 {offsets = [16, 0], sizes = [8, 8], strides = [1, 1]} : vector<24x8xf32> to vector<8x8xf32>
      %1514 = tpu.concatenate %1511, %1512, %1513 in 1 : vector<8x8xf32>, vector<8x8xf32>, vector<8x8xf32> -> vector<8x24xf32>
      %1515 = tpu.concatenate %1462, %1463, %1464, %1465, %1466, %1467, %1468, %1469, %1470 in 0 : vector<8x8xf32>, vector<8x8xf32>, vector<8x8xf32>, vector<8x8xf32>, vector<8x8xf32>, vector<8x8xf32>, vector<8x8xf32>, vector<8x8xf32>, vector<8x8xf32> -> vector<72x8xf32>
      %1516 = tpu.concatenate %1256, %1257, %1258, %1259, %1260, %1261, %1262, %1263, %1264 in 0 : vector<8x8xf32>, vector<8x8xf32>, vector<8x8xf32>, vector<8x8xf32>, vector<8x8xf32>, vector<8x8xf32>, vector<8x8xf32>, vector<8x8xf32>, vector<8x8xf32> -> vector<72x8xf32>
      %1517 = vector.extract_strided_slice %1471 {offsets = [0, 96], sizes = [8, 8], strides = [1, 1]} : vector<8x312xf32> to vector<8x8xf32>
      %1518 = vector.extract_strided_slice %1471 {offsets = [0, 104], sizes = [8, 8], strides = [1, 1]} : vector<8x312xf32> to vector<8x8xf32>
      %1519 = vector.extract_strided_slice %1471 {offsets = [0, 112], sizes = [8, 8], strides = [1, 1]} : vector<8x312xf32> to vector<8x8xf32>
      %1520 = vector.extract_strided_slice %1471 {offsets = [0, 120], sizes = [8, 8], strides = [1, 1]} : vector<8x312xf32> to vector<8x8xf32>
      %1521 = vector.extract_strided_slice %1471 {offsets = [0, 128], sizes = [8, 8], strides = [1, 1]} : vector<8x312xf32> to vector<8x8xf32>
      %1522 = vector.extract_strided_slice %1471 {offsets = [0, 136], sizes = [8, 8], strides = [1, 1]} : vector<8x312xf32> to vector<8x8xf32>
      %1523 = vector.extract_strided_slice %1471 {offsets = [0, 144], sizes = [8, 8], strides = [1, 1]} : vector<8x312xf32> to vector<8x8xf32>
      %1524 = vector.extract_strided_slice %1471 {offsets = [0, 152], sizes = [8, 8], strides = [1, 1]} : vector<8x312xf32> to vector<8x8xf32>
      %1525 = vector.extract_strided_slice %1471 {offsets = [0, 160], sizes = [8, 8], strides = [1, 1]} : vector<8x312xf32> to vector<8x8xf32>
      %1526 = tpu.concatenate %1517, %1518, %1519, %1520, %1521, %1522, %1523, %1524, %1525 in 0 : vector<8x8xf32>, vector<8x8xf32>, vector<8x8xf32>, vector<8x8xf32>, vector<8x8xf32>, vector<8x8xf32>, vector<8x8xf32>, vector<8x8xf32>, vector<8x8xf32> -> vector<72x8xf32>
      %1527 = vector.extract_strided_slice %1471 {offsets = [0, 168], sizes = [8, 8], strides = [1, 1]} : vector<8x312xf32> to vector<8x8xf32>
      %1528 = vector.extract_strided_slice %1471 {offsets = [0, 176], sizes = [8, 8], strides = [1, 1]} : vector<8x312xf32> to vector<8x8xf32>
      %1529 = vector.extract_strided_slice %1471 {offsets = [0, 184], sizes = [8, 8], strides = [1, 1]} : vector<8x312xf32> to vector<8x8xf32>
      %1530 = vector.extract_strided_slice %1471 {offsets = [0, 192], sizes = [8, 8], strides = [1, 1]} : vector<8x312xf32> to vector<8x8xf32>
      %1531 = vector.extract_strided_slice %1471 {offsets = [0, 200], sizes = [8, 8], strides = [1, 1]} : vector<8x312xf32> to vector<8x8xf32>
      %1532 = vector.extract_strided_slice %1471 {offsets = [0, 208], sizes = [8, 8], strides = [1, 1]} : vector<8x312xf32> to vector<8x8xf32>
      %1533 = vector.extract_strided_slice %1471 {offsets = [0, 216], sizes = [8, 8], strides = [1, 1]} : vector<8x312xf32> to vector<8x8xf32>
      %1534 = vector.extract_strided_slice %1471 {offsets = [0, 224], sizes = [8, 8], strides = [1, 1]} : vector<8x312xf32> to vector<8x8xf32>
      %1535 = vector.extract_strided_slice %1471 {offsets = [0, 232], sizes = [8, 8], strides = [1, 1]} : vector<8x312xf32> to vector<8x8xf32>
      %1536 = tpu.concatenate %1527, %1528, %1529, %1530, %1531, %1532, %1533, %1534, %1535 in 0 : vector<8x8xf32>, vector<8x8xf32>, vector<8x8xf32>, vector<8x8xf32>, vector<8x8xf32>, vector<8x8xf32>, vector<8x8xf32>, vector<8x8xf32>, vector<8x8xf32> -> vector<72x8xf32>
      %1537 = vector.extract_strided_slice %1471 {offsets = [0, 240], sizes = [8, 8], strides = [1, 1]} : vector<8x312xf32> to vector<8x8xf32>
      %1538 = vector.extract_strided_slice %1471 {offsets = [0, 248], sizes = [8, 8], strides = [1, 1]} : vector<8x312xf32> to vector<8x8xf32>
      %1539 = vector.extract_strided_slice %1471 {offsets = [0, 256], sizes = [8, 8], strides = [1, 1]} : vector<8x312xf32> to vector<8x8xf32>
      %1540 = vector.extract_strided_slice %1471 {offsets = [0, 264], sizes = [8, 8], strides = [1, 1]} : vector<8x312xf32> to vector<8x8xf32>
      %1541 = vector.extract_strided_slice %1471 {offsets = [0, 272], sizes = [8, 8], strides = [1, 1]} : vector<8x312xf32> to vector<8x8xf32>
      %1542 = vector.extract_strided_slice %1471 {offsets = [0, 280], sizes = [8, 8], strides = [1, 1]} : vector<8x312xf32> to vector<8x8xf32>
      %1543 = vector.extract_strided_slice %1471 {offsets = [0, 288], sizes = [8, 8], strides = [1, 1]} : vector<8x312xf32> to vector<8x8xf32>
      %1544 = vector.extract_strided_slice %1471 {offsets = [0, 296], sizes = [8, 8], strides = [1, 1]} : vector<8x312xf32> to vector<8x8xf32>
      %1545 = vector.extract_strided_slice %1471 {offsets = [0, 304], sizes = [8, 8], strides = [1, 1]} : vector<8x312xf32> to vector<8x8xf32>
      %1546 = tpu.concatenate %1537, %1538, %1539, %1540, %1541, %1542, %1543, %1544, %1545 in 0 : vector<8x8xf32>, vector<8x8xf32>, vector<8x8xf32>, vector<8x8xf32>, vector<8x8xf32>, vector<8x8xf32>, vector<8x8xf32>, vector<8x8xf32>, vector<8x8xf32> -> vector<72x8xf32>
      %1547 = tpu.concatenate %1515, %1516, %1526, %1536, %1546 in 1 : vector<72x8xf32>, vector<72x8xf32>, vector<72x8xf32>, vector<72x8xf32>, vector<72x8xf32> -> vector<72x40xf32>
      %c2_109 = arith.constant 2 : index
      %c0_110 = arith.constant 0 : index
      %c0_111 = arith.constant 0 : index
      %1548 = vector.load %arg18[%c2_109, %c0_110, %c0_111] : memref<3x40x8xf32, #tpu.memory_space<vmem>>, vector<1x40x8xf32>
      %1549 = vector.shape_cast %1548 : vector<1x40x8xf32> to vector<40x8xf32>
      %cst_112 = arith.constant dense<0.000000e+00> : vector<72x8xf32>
      %1550 = tpu.matmul %1547, %1549, %cst_112 {dimension_numbers = #tpu.dot_dimension_numbers<[1], [0], [0], [1], [0, 0, 1, 1], [], []>} : vector<72x40xf32>, vector<40x8xf32>, vector<72x8xf32> -> vector<72x8xf32>
      %1551 = vector.extract_strided_slice %1550 {offsets = [0, 0], sizes = [8, 8], strides = [1, 1]} : vector<72x8xf32> to vector<8x8xf32>
      %1552 = vector.extract_strided_slice %1550 {offsets = [8, 0], sizes = [8, 8], strides = [1, 1]} : vector<72x8xf32> to vector<8x8xf32>
      %1553 = vector.extract_strided_slice %1550 {offsets = [16, 0], sizes = [8, 8], strides = [1, 1]} : vector<72x8xf32> to vector<8x8xf32>
      %1554 = vector.extract_strided_slice %1550 {offsets = [24, 0], sizes = [8, 8], strides = [1, 1]} : vector<72x8xf32> to vector<8x8xf32>
      %1555 = vector.extract_strided_slice %1550 {offsets = [32, 0], sizes = [8, 8], strides = [1, 1]} : vector<72x8xf32> to vector<8x8xf32>
      %1556 = vector.extract_strided_slice %1550 {offsets = [40, 0], sizes = [8, 8], strides = [1, 1]} : vector<72x8xf32> to vector<8x8xf32>
      %1557 = vector.extract_strided_slice %1550 {offsets = [48, 0], sizes = [8, 8], strides = [1, 1]} : vector<72x8xf32> to vector<8x8xf32>
      %1558 = vector.extract_strided_slice %1550 {offsets = [56, 0], sizes = [8, 8], strides = [1, 1]} : vector<72x8xf32> to vector<8x8xf32>
      %1559 = vector.extract_strided_slice %1550 {offsets = [64, 0], sizes = [8, 8], strides = [1, 1]} : vector<72x8xf32> to vector<8x8xf32>
      %1560 = tpu.concatenate %1551, %1552, %1553, %1554, %1555, %1556, %1557, %1558, %1559 in 1 : vector<8x8xf32>, vector<8x8xf32>, vector<8x8xf32>, vector<8x8xf32>, vector<8x8xf32>, vector<8x8xf32>, vector<8x8xf32>, vector<8x8xf32>, vector<8x8xf32> -> vector<8x72xf32>
      %cst_113 = arith.constant 0.000000e+00 : f32
      %1561 = vector.broadcast %cst_113 : f32 to vector<8x24xf32>
      %1562 = tpu.concatenate %1492, %1514, %1560, %1561 in 1 : vector<8x8xf32>, vector<8x24xf32>, vector<8x72xf32>, vector<8x24xf32> -> vector<8x128xf32>
      %c0_114 = arith.constant 0 : index
      %c0_115 = arith.constant 0 : index
      %1563 = vector.load %arg22[%c0_114, %c0_115] : memref<8x128xf32, #tpu.memory_space<vmem>>, vector<8x128xf32>
      tpu.vector_store %arg22[%c0_114, %c0_115], %1562 {strides = array<i32>} : memref<8x128xf32, #tpu.memory_space<vmem>>, vector<8x128xf32>,
    } else {
    }
    return
  }
  func.func @transform_0(%arg0: i32) -> (i32, i32) {
    %c0_i32 = arith.constant 0 : i32
    %c0_i32_0 = arith.constant 0 : i32
    %c0_i32_1 = arith.constant 0 : i32
    return %c0_i32, %c0_i32_0 : i32, i32
  }
  func.func @transform_1(%arg0: i32) -> (i32, i32) {
    %c0_i32 = arith.constant 0 : i32
    %c0_i32_0 = arith.constant 0 : i32
    return %arg0, %c0_i32 : i32, i32
  }
  func.func @transform_2(%arg0: i32) -> (i32, i32) {
    %c0_i32 = arith.constant 0 : i32
    %c0_i32_0 = arith.constant 0 : i32
    return %arg0, %c0_i32 : i32, i32
  }
  func.func @transform_3(%arg0: i32) -> (i32, i32, i32) {
    %c0_i32 = arith.constant 0 : i32
    %c0_i32_0 = arith.constant 0 : i32
    %c0_i32_1 = arith.constant 0 : i32
    return %arg0, %c0_i32, %c0_i32_0 : i32, i32, i32
  }
  func.func @transform_4(%arg0: i32) -> (i32, i32) {
    %c0_i32 = arith.constant 0 : i32
    %c0_i32_0 = arith.constant 0 : i32
    return %arg0, %c0_i32 : i32, i32
  }
  func.func @transform_5(%arg0: i32) -> (i32, i32) {
    %c0_i32 = arith.constant 0 : i32
    %c0_i32_0 = arith.constant 0 : i32
    return %arg0, %c0_i32 : i32, i32
  }
  func.func @transform_6(%arg0: i32) -> (i32, i32, i32) {
    %c0_i32 = arith.constant 0 : i32
    %c0_i32_0 = arith.constant 0 : i32
    %c0_i32_1 = arith.constant 0 : i32
    %c0_i32_2 = arith.constant 0 : i32
    return %c0_i32, %c0_i32_0, %c0_i32_1 : i32, i32, i32
  }
  func.func @transform_7(%arg0: i32) -> (i32, i32, i32) {
    %c0_i32 = arith.constant 0 : i32
    %c0_i32_0 = arith.constant 0 : i32
    %c0_i32_1 = arith.constant 0 : i32
    %c0_i32_2 = arith.constant 0 : i32
    return %c0_i32, %c0_i32_0, %c0_i32_1 : i32, i32, i32
  }
  func.func @transform_8(%arg0: i32) -> (i32, i32, i32) {
    %c0_i32 = arith.constant 0 : i32
    %c0_i32_0 = arith.constant 0 : i32
    %c0_i32_1 = arith.constant 0 : i32
    %c0_i32_2 = arith.constant 0 : i32
    return %c0_i32, %c0_i32_0, %c0_i32_1 : i32, i32, i32
  }
  func.func @transform_9(%arg0: i32) -> (i32, i32, i32) {
    %c0_i32 = arith.constant 0 : i32
    %c0_i32_0 = arith.constant 0 : i32
    %c0_i32_1 = arith.constant 0 : i32
    %c0_i32_2 = arith.constant 0 : i32
    return %c0_i32, %c0_i32_0, %c0_i32_1 : i32, i32, i32
  }
  func.func @transform_10(%arg0: i32) -> (i32, i32) {
    %c0_i32 = arith.constant 0 : i32
    %c0_i32_0 = arith.constant 0 : i32
    %c0_i32_1 = arith.constant 0 : i32
    return %c0_i32, %c0_i32_0 : i32, i32
  }
  func.func @transform_11(%arg0: i32) -> (i32, i32) {
    %c0_i32 = arith.constant 0 : i32
    %c0_i32_0 = arith.constant 0 : i32
    %c0_i32_1 = arith.constant 0 : i32
    return %c0_i32, %c0_i32_0 : i32, i32
  }
  func.func @transform_12(%arg0: i32) -> (i32, i32) {
    %c0_i32 = arith.constant 0 : i32
    %c0_i32_0 = arith.constant 0 : i32
    %c0_i32_1 = arith.constant 0 : i32
    return %c0_i32, %c0_i32_0 : i32, i32
  }
  func.func @transform_13(%arg0: i32) -> (i32, i32) {
    %c0_i32 = arith.constant 0 : i32
    %c0_i32_0 = arith.constant 0 : i32
    %c0_i32_1 = arith.constant 0 : i32
    return %c0_i32, %c0_i32_0 : i32, i32
  }
  func.func @transform_14(%arg0: i32) -> (i32, i32) {
    %c0_i32 = arith.constant 0 : i32
    %c0_i32_0 = arith.constant 0 : i32
    %c0_i32_1 = arith.constant 0 : i32
    return %c0_i32, %c0_i32_0 : i32, i32
  }
  func.func @transform_15(%arg0: i32) -> (i32, i32) {
    %c0_i32 = arith.constant 0 : i32
    %c0_i32_0 = arith.constant 0 : i32
    %c0_i32_1 = arith.constant 0 : i32
    return %c0_i32, %c0_i32_0 : i32, i32
  }
  func.func @transform_16(%arg0: i32) -> (i32, i32) {
    %c0_i32 = arith.constant 0 : i32
    %c0_i32_0 = arith.constant 0 : i32
    %c0_i32_1 = arith.constant 0 : i32
    return %c0_i32, %c0_i32_0 : i32, i32
  }
  func.func @transform_17(%arg0: i32) -> (i32, i32, i32) {
    %c0_i32 = arith.constant 0 : i32
    %c0_i32_0 = arith.constant 0 : i32
    %c0_i32_1 = arith.constant 0 : i32
    %c0_i32_2 = arith.constant 0 : i32
    return %c0_i32, %c0_i32_0, %c0_i32_1 : i32, i32, i32
  }
  func.func @transform_18(%arg0: i32) -> (i32, i32) {
    %c0_i32 = arith.constant 0 : i32
    %c0_i32_0 = arith.constant 0 : i32
    %c0_i32_1 = arith.constant 0 : i32
    return %c0_i32, %c0_i32_0 : i32, i32
  }
  func.func @transform_19(%arg0: i32) -> (i32, i32) {
    %c0_i32 = arith.constant 0 : i32
    %c0_i32_0 = arith.constant 0 : i32
    %c0_i32_1 = arith.constant 0 : i32
    return %c0_i32, %c0_i32_0 : i32, i32
  }
  func.func @transform_20(%arg0: i32) -> (i32, i32) {
    %c0_i32 = arith.constant 0 : i32
    %c0_i32_0 = arith.constant 0 : i32
    %c0_i32_1 = arith.constant 0 : i32
    return %c0_i32, %c0_i32_0 : i32, i32
  }
  func.func @transform_21(%arg0: i32) -> (i32, i32) {
    %c0_i32 = arith.constant 0 : i32
    %c0_i32_0 = arith.constant 0 : i32
    %c0_i32_1 = arith.constant 0 : i32
    return %c0_i32, %c0_i32_0 : i32, i32
  }
}

</mosaic_0001>

<llo_original>
// kernel: tpu_custom_call.1
$region0: #{tpu_custom_call.1}
  #allocation0 [shape = 'u32[]', space=smem, size = 0x4, offset = 0x4, fixed_abs, tag = 'smem constant byte address 0x4 - core index']
  #allocation1 [shape = 'u32[144,128]{1,0:T(1,128)}', space=vmem, size = 0x12000, scoped, tag = 'internal scratch']
  #allocation2 [shape = 'f32[8,128]{1,0:T(8,128)}', space=vmem, size = 0x1000, scoped, tag = 'scratch operand']
  #allocation3 [shape = 'f32[8,312]{1,0:T(8,128)}', space=vmem, size = 0x3000, scoped, tag = 'scratch operand']
  %s0 = inlined_call_operand.hbm [shape: f32[8,128], index: 0, kind: input, shape index: {}]
  %s1 = inlined_call_operand.vmem [shape: s32[16,1], index: 1, kind: input, shape index: {}]
  %s2 = inlined_call_operand.vmem [shape: s32[16,1], index: 2, kind: input, shape index: {}]
  %s3 = inlined_call_operand.hbm [shape: s32[2,1,8], index: 3, kind: input, shape index: {}]
  %s4 = inlined_call_operand.vmem [shape: f32[16,3], index: 4, kind: input, shape index: {}]
  %s5 = inlined_call_operand.vmem [shape: f32[16,8], index: 5, kind: input, shape index: {}]
  %s6 = inlined_call_operand.vmem [shape: f32[3,8,16], index: 6, kind: input, shape index: {}]
  %s7 = inlined_call_operand.vmem [shape: f32[3,8,24], index: 7, kind: input, shape index: {}]
  %s8 = inlined_call_operand.hbm [shape: f32[3,8,24], index: 8, kind: input, shape index: {}]
  %s9 = inlined_call_operand.hbm [shape: f32[3,8,8], index: 9, kind: input, shape index: {}]
  %s10 = inlined_call_operand.vmem [shape: f32[48,72], index: 10, kind: input, shape index: {}]
  %s11 = inlined_call_operand.vmem [shape: f32[1,72], index: 11, kind: input, shape index: {}]
  %s12 = inlined_call_operand.vmem [shape: f32[72,72], index: 12, kind: input, shape index: {}]
  %s13 = inlined_call_operand.vmem [shape: f32[1,72], index: 13, kind: input, shape index: {}]
  %s14 = inlined_call_operand.vmem [shape: f32[72,72], index: 14, kind: input, shape index: {}]
  %s15 = inlined_call_operand.hbm [shape: f32[1,72], index: 15, kind: input, shape index: {}]
  %s16 = inlined_call_operand.vmem [shape: f32[8,72], index: 16, kind: input, shape index: {}]
  %s17 = inlined_call_operand.vmem [shape: f32[3,40,8], index: 17, kind: input, shape index: {}]
  %s18 = inlined_call_operand.vmem [shape: f32[1,8], index: 18, kind: input, shape index: {}]
  %s19 = inlined_call_operand.vmem [shape: f32[8,8], index: 19, kind: input, shape index: {}]
  %s20 = inlined_call_operand.vmem [shape: f32[1,8], index: 20, kind: input, shape index: {}]
  %s21 = inlined_call_operand.hbm [shape: f32[8,128], index: 21, kind: output, shape index: {}]
  %s22 = sld [smem:[#allocation0]]
  $region145: #{tpu_custom_call.1} parent=0
    _
  %s24 = ssub.s32 1, %s22
  %s25 = scalar_select 0, %s24, %s22
  $region1: #{tpu_custom_call.1} parent=0
    #allocation4 [shape = 'u8[4096]{0}', space=vmem, size = 0x1000, scoped, tag = 'input window, operand 0, single buffered']
    #allocation5 [shape = 's32[2]{0}', space=sflag, size = 0x8, scoped, tag = 'scoped memory for tpu_custom_call.1']
    #allocation6 [shape = 's32[2]{0}', space=sflag, size = 0x8, scoped, tag = 'scoped memory for tpu_custom_call.1']
    #allocation7 [shape = 'u8[1024]{0}', space=vmem, size = 0x400, scoped, tag = 'input window, operand 3']
    #allocation8 [shape = 's32[2]{0}', space=sflag, size = 0x8, scoped, tag = 'scoped memory for tpu_custom_call.1']
    #allocation9 [shape = 'u8[12288]{0}', space=vmem, size = 0x3000, scoped, tag = 'input window, operand 8, single buffered']
    #allocation10 [shape = 'u8[12288]{0}', space=vmem, size = 0x3000, scoped, tag = 'input window, operand 9, single buffered']
    #allocation11 [shape = 's32[1]{0}', space=sflag, size = 0x4, scoped, tag = 'scoped memory for tpu_custom_call.1']
    #allocation12 [shape = 'u8[512]{0}', space=vmem, size = 0x400, scoped, tag = 'input window, operand 15, single buffered']
    #allocation13 [shape = 'u8[4096]{0}', space=vmem, size = 0x1000, scoped, tag = 'output window, operand 0, single buffered']
    %26 = vsyncpa [#allocation5], 0
    %27 = vsyncpa [#allocation8], 0
    %s28 = scalar_lea.sflag [#allocation8], 1
    %29 = vsyncpa %s28, 0
    %30 = vsyncpa [#allocation11], 0
    %31 = vsyncpa [#allocation6], 0
    loop: start=0, step=1, limit=4
    $region2: #{tpu_custom_call.1} parent=1 // loop_pre_header
      _
    $region3: #{tpu_custom_call.1} parent=1 // loop_header
      %s33 = sphi 0, %s37
      %p34 = scmp.ge.s32.totalorder %s33, 4
      %s41 = sphi 0, %s41
      %s43 = sphi 0, %s41
      %s44 = sphi 0, %s43
      %s58 = sphi 0, %s44
      %s64 = sphi 0, %s66
      %s67 = sphi 0, %s64
      %s68 = sphi 0, %s67
      %s84 = sphi 0, %s68
      %s90 = sphi 0, %s92
      %s93 = sphi 0, %s90
      %s94 = sphi 0, %s93
      %s110 = sphi 0, %s94
      %s116 = sphi 0, %s118
      %s119 = sphi 0, %s116
      %s120 = sphi 0, %s119
      %s136 = sphi 0, %s120
      %s142 = sphi 0, %s144
      %s145 = sphi 0, %s142
      %s146 = sphi 0, %s145
      %s162 = sphi 0, %s146
      %s168 = sphi 0, %s170
      %s171 = sphi 0, %s168
      %s172 = sphi 0, %s171
      %s188 = sphi 0, %s172
      %s192 = sphi 0, %s192
      %s194 = sphi 0, %s192
      %s195 = sphi 0, %s194
      %s209 = sphi 0, %s195
      %s213 = sphi 0, %s213
      %s215 = sphi 0, %s213
      %s216 = sphi 0, %s215
      %s230 = sphi 0, %s216
      %s234 = sphi 0, %s234
      %s236 = sphi 0, %s234
      %s237 = sphi 0, %s236
      %s251 = sphi 0, %s237
      %s255 = sphi 0, %s255
      %s257 = sphi 0, %s255
      %s258 = sphi 0, %s257
      %s272 = sphi 0, %s258
      %s276 = sphi 0, %s276
      %s278 = sphi 0, %s276
      %s279 = sphi 0, %s278
      %s293 = sphi 0, %s279
      %s297 = sphi 0, %s297
      %s299 = sphi 0, %s297
      %s300 = sphi 0, %s299
      %s314 = sphi 0, %s300
      %s318 = sphi 0, %s318
      %s320 = sphi 0, %s318
      %s321 = sphi 0, %s320
      %s335 = sphi 0, %s321
      %s339 = sphi 0, %s339
      %s341 = sphi 0, %s339
      %s342 = sphi 0, %s341
      %s356 = sphi 0, %s342
      %s360 = sphi 0, %s360
      %s362 = sphi 0, %s360
      %s363 = sphi 0, %s362
      %s377 = sphi 0, %s363
      %s381 = sphi 0, %s381
      %s383 = sphi 0, %s381
      %s384 = sphi 0, %s383
      %s398 = sphi 0, %s384
      %s402 = sphi 0, %s402
      %s404 = sphi 0, %s402
      %s405 = sphi 0, %s404
      %s419 = sphi 0, %s405
      %s423 = sphi 0, %s423
      %s425 = sphi 0, %s423
      %s426 = sphi 0, %s425
      %s440 = sphi 0, %s426
      %s444 = sphi 0, %s444
      %s446 = sphi 0, %s444
      %s447 = sphi 0, %s446
      %s461 = sphi 0, %s447
      %s465 = sphi 0, %s465
      %s467 = sphi 0, %s465
      %s468 = sphi 0, %s467
      %s482 = sphi 0, %s468
      %s486 = sphi 0, %s486
      %s488 = sphi 0, %s486
      %s489 = sphi 0, %s488
      %s503 = sphi 0, %s489
      %s507 = sphi 0, %s507
      %s509 = sphi 0, %s507
      %s510 = sphi 0, %s509
      %s524 = sphi 0, %s510
    $region4: #{tpu_custom_call.1} parent=1 // loop_header_branch
      %36 = sbr.rel (%p34) target = $region8
    $region5: #{tpu_custom_call.1} parent=1 // loop_body
      %s38 = ssub.s32 %s33, 1
      %s39 = ssub.s32 %s33, 2
      %s40 = sadd.s32 %s33, 1
      %s42 = sadd.s32 %s41, 1
      %p45 = scmp.eq.s32.totalorder %s33, 1
      %p46 = scmp.ne.s32.totalorder %s41, %s43
      %p47 = scmp.eq.s32.totalorder %s33, 0
      %p48 = por %p46, %p47
      %p49 = scmp.ne.s32.totalorder %s41, %s43
      %p50 = scmp.eq.s32.totalorder %s38, 1
      %p51 = por %p49, %p50
      %p52 = scmp.ne.s32.totalorder %s43, %s44
      %p53 = scmp.eq.s32.totalorder %s38, 0
      %p54 = por %p52, %p53
      %p55 = scmp.ne.s32.totalorder %s43, %s44
      %p56 = scmp.eq.s32.totalorder %s39, 1
      %p57 = por %p55, %p56
      %p59 = scmp.ne.s32.totalorder %s44, %s58
      %p60 = scmp.eq.s32.totalorder %s39, 0
      %p61 = por %p59, %p60
      %s62 = ssub.s32 %s33, %s40
      %p63 = scmp.eq.s32.totalorder %s62, 0
      %s65 = sadd.s32 %s64, 1
      %s66 = scalar_select %p63, %s64, %s65
      %p69 = pneg %p63
      %p70 = scmp.eq.s32.totalorder %s33, 1
      %p71 = por %p69, %p70
      %p72 = scmp.ne.s32.totalorder %s64, %s67
      %p73 = scmp.eq.s32.totalorder %s33, 0
      %p74 = por %p72, %p73
      %p75 = scmp.ne.s32.totalorder %s64, %s67
      %p76 = scmp.eq.s32.totalorder %s38, 1
      %p77 = por %p75, %p76
      %p78 = scmp.ne.s32.totalorder %s67, %s68
      %p79 = scmp.eq.s32.totalorder %s38, 0
      %p80 = por %p78, %p79
      %p81 = scmp.ne.s32.totalorder %s67, %s68
      %p82 = scmp.eq.s32.totalorder %s39, 1
      %p83 = por %p81, %p82
      %p85 = scmp.ne.s32.totalorder %s68, %s84
      %p86 = scmp.eq.s32.totalorder %s39, 0
      %p87 = por %p85, %p86
      %s88 = ssub.s32 %s33, %s40
      %p89 = scmp.eq.s32.totalorder %s88, 0
      %s91 = sadd.s32 %s90, 1
      %s92 = scalar_select %p89, %s90, %s91
      %p95 = pneg %p89
      %p96 = scmp.eq.s32.totalorder %s33, 1
      %p97 = por %p95, %p96
      %p98 = scmp.ne.s32.totalorder %s90, %s93
      %p99 = scmp.eq.s32.totalorder %s33, 0
      %p100 = por %p98, %p99
      %p101 = scmp.ne.s32.totalorder %s90, %s93
      %p102 = scmp.eq.s32.totalorder %s38, 1
      %p103 = por %p101, %p102
      %p104 = scmp.ne.s32.totalorder %s93, %s94
      %p105 = scmp.eq.s32.totalorder %s38, 0
      %p106 = por %p104, %p105
      %p107 = scmp.ne.s32.totalorder %s93, %s94
      %p108 = scmp.eq.s32.totalorder %s39, 1
      %p109 = por %p107, %p108
      %p111 = scmp.ne.s32.totalorder %s94, %s110
      %p112 = scmp.eq.s32.totalorder %s39, 0
      %p113 = por %p111, %p112
      %s114 = ssub.s32 %s33, %s40
      %p115 = scmp.eq.s32.totalorder %s114, 0
      %s117 = sadd.s32 %s116, 1
      %s118 = scalar_select %p115, %s116, %s117
      %p121 = pneg %p115
      %p122 = scmp.eq.s32.totalorder %s33, 1
      %p123 = por %p121, %p122
      %p124 = scmp.ne.s32.totalorder %s116, %s119
      %p125 = scmp.eq.s32.totalorder %s33, 0
      %p126 = por %p124, %p125
      %p127 = scmp.ne.s32.totalorder %s116, %s119
      %p128 = scmp.eq.s32.totalorder %s38, 1
      %p129 = por %p127, %p128
      %p130 = scmp.ne.s32.totalorder %s119, %s120
      %p131 = scmp.eq.s32.totalorder %s38, 0
      %p132 = por %p130, %p131
      %p133 = scmp.ne.s32.totalorder %s119, %s120
      %p134 = scmp.eq.s32.totalorder %s39, 1
      %p135 = por %p133, %p134
      %p137 = scmp.ne.s32.totalorder %s120, %s136
      %p138 = scmp.eq.s32.totalorder %s39, 0
      %p139 = por %p137, %p138
      %s140 = ssub.s32 %s33, %s40
      %p141 = scmp.eq.s32.totalorder %s140, 0
      %s143 = sadd.s32 %s142, 1
      %s144 = scalar_select %p141, %s142, %s143
      %p147 = pneg %p141
      %p148 = scmp.eq.s32.totalorder %s33, 1
      %p149 = por %p147, %p148
      %p150 = scmp.ne.s32.totalorder %s142, %s145
      %p151 = scmp.eq.s32.totalorder %s33, 0
      %p152 = por %p150, %p151
      %p153 = scmp.ne.s32.totalorder %s142, %s145
      %p154 = scmp.eq.s32.totalorder %s38, 1
      %p155 = por %p153, %p154
      %p156 = scmp.ne.s32.totalorder %s145, %s146
      %p157 = scmp.eq.s32.totalorder %s38, 0
      %p158 = por %p156, %p157
      %p159 = scmp.ne.s32.totalorder %s145, %s146
      %p160 = scmp.eq.s32.totalorder %s39, 1
      %p161 = por %p159, %p160
      %p163 = scmp.ne.s32.totalorder %s146, %s162
      %p164 = scmp.eq.s32.totalorder %s39, 0
      %p165 = por %p163, %p164
      %s166 = ssub.s32 %s33, %s40
      %p167 = scmp.eq.s32.totalorder %s166, 0
      %s169 = sadd.s32 %s168, 1
      %s170 = scalar_select %p167, %s168, %s169
      %p173 = pneg %p167
      %p174 = scmp.eq.s32.totalorder %s33, 1
      %p175 = por %p173, %p174
      %p176 = scmp.ne.s32.totalorder %s168, %s171
      %p177 = scmp.eq.s32.totalorder %s33, 0
      %p178 = por %p176, %p177
      %p179 = scmp.ne.s32.totalorder %s168, %s171
      %p180 = scmp.eq.s32.totalorder %s38, 1
      %p181 = por %p179, %p180
      %p182 = scmp.ne.s32.totalorder %s171, %s172
      %p183 = scmp.eq.s32.totalorder %s38, 0
      %p184 = por %p182, %p183
      %p185 = scmp.ne.s32.totalorder %s171, %s172
      %p186 = scmp.eq.s32.totalorder %s39, 1
      %p187 = por %p185, %p186
      %p189 = scmp.ne.s32.totalorder %s172, %s188
      %p190 = scmp.eq.s32.totalorder %s39, 0
      %p191 = por %p189, %p190
      %s193 = sadd.s32 %s192, 1
      %p196 = scmp.eq.s32.totalorder %s33, 1
      %p197 = scmp.ne.s32.totalorder %s192, %s194
      %p198 = scmp.eq.s32.totalorder %s33, 0
      %p199 = por %p197, %p198
      %p200 = scmp.ne.s32.totalorder %s192, %s194
      %p201 = scmp.eq.s32.totalorder %s38, 1
      %p202 = por %p200, %p201
      %p203 = scmp.ne.s32.totalorder %s194, %s195
      %p204 = scmp.eq.s32.totalorder %s38, 0
      %p205 = por %p203, %p204
      %p206 = scmp.ne.s32.totalorder %s194, %s195
      %p207 = scmp.eq.s32.totalorder %s39, 1
      %p208 = por %p206, %p207
      %p210 = scmp.ne.s32.totalorder %s195, %s209
      %p211 = scmp.eq.s32.totalorder %s39, 0
      %p212 = por %p210, %p211
      %s214 = sadd.s32 %s213, 1
      %p217 = scmp.eq.s32.totalorder %s33, 1
      %p218 = scmp.ne.s32.totalorder %s213, %s215
      %p219 = scmp.eq.s32.totalorder %s33, 0
      %p220 = por %p218, %p219
      %p221 = scmp.ne.s32.totalorder %s213, %s215
      %p222 = scmp.eq.s32.totalorder %s38, 1
      %p223 = por %p221, %p222
      %p224 = scmp.ne.s32.totalorder %s215, %s216
      %p225 = scmp.eq.s32.totalorder %s38, 0
      %p226 = por %p224, %p225
      %p227 = scmp.ne.s32.totalorder %s215, %s216
      %p228 = scmp.eq.s32.totalorder %s39, 1
      %p229 = por %p227, %p228
      %p231 = scmp.ne.s32.totalorder %s216, %s230
      %p232 = scmp.eq.s32.totalorder %s39, 0
      %p233 = por %p231, %p232
      %s235 = sadd.s32 %s234, 1
      %p238 = scmp.eq.s32.totalorder %s33, 1
      %p239 = scmp.ne.s32.totalorder %s234, %s236
      %p240 = scmp.eq.s32.totalorder %s33, 0
      %p241 = por %p239, %p240
      %p242 = scmp.ne.s32.totalorder %s234, %s236
      %p243 = scmp.eq.s32.totalorder %s38, 1
      %p244 = por %p242, %p243
      %p245 = scmp.ne.s32.totalorder %s236, %s237
      %p246 = scmp.eq.s32.totalorder %s38, 0
      %p247 = por %p245, %p246
      %p248 = scmp.ne.s32.totalorder %s236, %s237
      %p249 = scmp.eq.s32.totalorder %s39, 1
      %p250 = por %p248, %p249
      %p252 = scmp.ne.s32.totalorder %s237, %s251
      %p253 = scmp.eq.s32.totalorder %s39, 0
      %p254 = por %p252, %p253
      %s256 = sadd.s32 %s255, 1
      %p259 = scmp.eq.s32.totalorder %s33, 1
      %p260 = scmp.ne.s32.totalorder %s255, %s257
      %p261 = scmp.eq.s32.totalorder %s33, 0
      %p262 = por %p260, %p261
      %p263 = scmp.ne.s32.totalorder %s255, %s257
      %p264 = scmp.eq.s32.totalorder %s38, 1
      %p265 = por %p263, %p264
      %p266 = scmp.ne.s32.totalorder %s257, %s258
      %p267 = scmp.eq.s32.totalorder %s38, 0
      %p268 = por %p266, %p267
      %p269 = scmp.ne.s32.totalorder %s257, %s258
      %p270 = scmp.eq.s32.totalorder %s39, 1
      %p271 = por %p269, %p270
      %p273 = scmp.ne.s32.totalorder %s258, %s272
      %p274 = scmp.eq.s32.totalorder %s39, 0
      %p275 = por %p273, %p274
      %s277 = sadd.s32 %s276, 1
      %p280 = scmp.eq.s32.totalorder %s33, 1
      %p281 = scmp.ne.s32.totalorder %s276, %s278
      %p282 = scmp.eq.s32.totalorder %s33, 0
      %p283 = por %p281, %p282
      %p284 = scmp.ne.s32.totalorder %s276, %s278
      %p285 = scmp.eq.s32.totalorder %s38, 1
      %p286 = por %p284, %p285
      %p287 = scmp.ne.s32.totalorder %s278, %s279
      %p288 = scmp.eq.s32.totalorder %s38, 0
      %p289 = por %p287, %p288
      %p290 = scmp.ne.s32.totalorder %s278, %s279
      %p291 = scmp.eq.s32.totalorder %s39, 1
      %p292 = por %p290, %p291
      %p294 = scmp.ne.s32.totalorder %s279, %s293
      %p295 = scmp.eq.s32.totalorder %s39, 0
      %p296 = por %p294, %p295
      %s298 = sadd.s32 %s297, 1
      %p301 = scmp.eq.s32.totalorder %s33, 1
      %p302 = scmp.ne.s32.totalorder %s297, %s299
      %p303 = scmp.eq.s32.totalorder %s33, 0
      %p304 = por %p302, %p303
      %p305 = scmp.ne.s32.totalorder %s297, %s299
      %p306 = scmp.eq.s32.totalorder %s38, 1
      %p307 = por %p305, %p306
      %p308 = scmp.ne.s32.totalorder %s299, %s300
      %p309 = scmp.eq.s32.totalorder %s38, 0
      %p310 = por %p308, %p309
      %p311 = scmp.ne.s32.totalorder %s299, %s300
      %p312 = scmp.eq.s32.totalorder %s39, 1
      %p313 = por %p311, %p312
      %p315 = scmp.ne.s32.totalorder %s300, %s314
      %p316 = scmp.eq.s32.totalorder %s39, 0
      %p317 = por %p315, %p316
      %s319 = sadd.s32 %s318, 1
      %p322 = scmp.eq.s32.totalorder %s33, 1
      %p323 = scmp.ne.s32.totalorder %s318, %s320
      %p324 = scmp.eq.s32.totalorder %s33, 0
      %p325 = por %p323, %p324
      %p326 = scmp.ne.s32.totalorder %s318, %s320
      %p327 = scmp.eq.s32.totalorder %s38, 1
      %p328 = por %p326, %p327
      %p329 = scmp.ne.s32.totalorder %s320, %s321
      %p330 = scmp.eq.s32.totalorder %s38, 0
      %p331 = por %p329, %p330
      %p332 = scmp.ne.s32.totalorder %s320, %s321
      %p333 = scmp.eq.s32.totalorder %s39, 1
      %p334 = por %p332, %p333
      %p336 = scmp.ne.s32.totalorder %s321, %s335
      %p337 = scmp.eq.s32.totalorder %s39, 0
      %p338 = por %p336, %p337
      %s340 = sadd.s32 %s339, 1
      %p343 = scmp.eq.s32.totalorder %s33, 1
      %p344 = scmp.ne.s32.totalorder %s339, %s341
      %p345 = scmp.eq.s32.totalorder %s33, 0
      %p346 = por %p344, %p345
      %p347 = scmp.ne.s32.totalorder %s339, %s341
      %p348 = scmp.eq.s32.totalorder %s38, 1
      %p349 = por %p347, %p348
      %p350 = scmp.ne.s32.totalorder %s341, %s342
      %p351 = scmp.eq.s32.totalorder %s38, 0
      %p352 = por %p350, %p351
      %p353 = scmp.ne.s32.totalorder %s341, %s342
      %p354 = scmp.eq.s32.totalorder %s39, 1
      %p355 = por %p353, %p354
      %p357 = scmp.ne.s32.totalorder %s342, %s356
      %p358 = scmp.eq.s32.totalorder %s39, 0
      %p359 = por %p357, %p358
      %s361 = sadd.s32 %s360, 1
      %p364 = scmp.eq.s32.totalorder %s33, 1
      %p365 = scmp.ne.s32.totalorder %s360, %s362
      %p366 = scmp.eq.s32.totalorder %s33, 0
      %p367 = por %p365, %p366
      %p368 = scmp.ne.s32.totalorder %s360, %s362
      %p369 = scmp.eq.s32.totalorder %s38, 1
      %p370 = por %p368, %p369
      %p371 = scmp.ne.s32.totalorder %s362, %s363
      %p372 = scmp.eq.s32.totalorder %s38, 0
      %p373 = por %p371, %p372
      %p374 = scmp.ne.s32.totalorder %s362, %s363
      %p375 = scmp.eq.s32.totalorder %s39, 1
      %p376 = por %p374, %p375
      %p378 = scmp.ne.s32.totalorder %s363, %s377
      %p379 = scmp.eq.s32.totalorder %s39, 0
      %p380 = por %p378, %p379
      %s382 = sadd.s32 %s381, 1
      %p385 = scmp.eq.s32.totalorder %s33, 1
      %p386 = scmp.ne.s32.totalorder %s381, %s383
      %p387 = scmp.eq.s32.totalorder %s33, 0
      %p388 = por %p386, %p387
      %p389 = scmp.ne.s32.totalorder %s381, %s383
      %p390 = scmp.eq.s32.totalorder %s38, 1
      %p391 = por %p389, %p390
      %p392 = scmp.ne.s32.totalorder %s383, %s384
      %p393 = scmp.eq.s32.totalorder %s38, 0
      %p394 = por %p392, %p393
      %p395 = scmp.ne.s32.totalorder %s383, %s384
      %p396 = scmp.eq.s32.totalorder %s39, 1
      %p397 = por %p395, %p396
      %p399 = scmp.ne.s32.totalorder %s384, %s398
      %p400 = scmp.eq.s32.totalorder %s39, 0
      %p401 = por %p399, %p400
      %s403 = sadd.s32 %s402, 1
      %p406 = scmp.eq.s32.totalorder %s33, 1
      %p407 = scmp.ne.s32.totalorder %s402, %s404
      %p408 = scmp.eq.s32.totalorder %s33, 0
      %p409 = por %p407, %p408
      %p410 = scmp.ne.s32.totalorder %s402, %s404
      %p411 = scmp.eq.s32.totalorder %s38, 1
      %p412 = por %p410, %p411
      %p413 = scmp.ne.s32.totalorder %s404, %s405
      %p414 = scmp.eq.s32.totalorder %s38, 0
      %p415 = por %p413, %p414
      %p416 = scmp.ne.s32.totalorder %s404, %s405
      %p417 = scmp.eq.s32.totalorder %s39, 1
      %p418 = por %p416, %p417
      %p420 = scmp.ne.s32.totalorder %s405, %s419
      %p421 = scmp.eq.s32.totalorder %s39, 0
      %p422 = por %p420, %p421
      %s424 = sadd.s32 %s423, 1
      %p427 = scmp.eq.s32.totalorder %s33, 1
      %p428 = scmp.ne.s32.totalorder %s423, %s425
      %p429 = scmp.eq.s32.totalorder %s33, 0
      %p430 = por %p428, %p429
      %p431 = scmp.ne.s32.totalorder %s423, %s425
      %p432 = scmp.eq.s32.totalorder %s38, 1
      %p433 = por %p431, %p432
      %p434 = scmp.ne.s32.totalorder %s425, %s426
      %p435 = scmp.eq.s32.totalorder %s38, 0
      %p436 = por %p434, %p435
      %p437 = scmp.ne.s32.totalorder %s425, %s426
      %p438 = scmp.eq.s32.totalorder %s39, 1
      %p439 = por %p437, %p438
      %p441 = scmp.ne.s32.totalorder %s426, %s440
      %p442 = scmp.eq.s32.totalorder %s39, 0
      %p443 = por %p441, %p442
      %s445 = sadd.s32 %s444, 1
      %p448 = scmp.eq.s32.totalorder %s33, 1
      %p449 = scmp.ne.s32.totalorder %s444, %s446
      %p450 = scmp.eq.s32.totalorder %s33, 0
      %p451 = por %p449, %p450
      %p452 = scmp.ne.s32.totalorder %s444, %s446
      %p453 = scmp.eq.s32.totalorder %s38, 1
      %p454 = por %p452, %p453
      %p455 = scmp.ne.s32.totalorder %s446, %s447
      %p456 = scmp.eq.s32.totalorder %s38, 0
      %p457 = por %p455, %p456
      %p458 = scmp.ne.s32.totalorder %s446, %s447
      %p459 = scmp.eq.s32.totalorder %s39, 1
      %p460 = por %p458, %p459
      %p462 = scmp.ne.s32.totalorder %s447, %s461
      %p463 = scmp.eq.s32.totalorder %s39, 0
      %p464 = por %p462, %p463
      %s466 = sadd.s32 %s465, 1
      %p469 = scmp.eq.s32.totalorder %s33, 1
      %p470 = scmp.ne.s32.totalorder %s465, %s467
      %p471 = scmp.eq.s32.totalorder %s33, 0
      %p472 = por %p470, %p471
      %p473 = scmp.ne.s32.totalorder %s465, %s467
      %p474 = scmp.eq.s32.totalorder %s38, 1
      %p475 = por %p473, %p474
      %p476 = scmp.ne.s32.totalorder %s467, %s468
      %p477 = scmp.eq.s32.totalorder %s38, 0
      %p478 = por %p476, %p477
      %p479 = scmp.ne.s32.totalorder %s467, %s468
      %p480 = scmp.eq.s32.totalorder %s39, 1
      %p481 = por %p479, %p480
      %p483 = scmp.ne.s32.totalorder %s468, %s482
      %p484 = scmp.eq.s32.totalorder %s39, 0
      %p485 = por %p483, %p484
      %s487 = sadd.s32 %s486, 1
      %p490 = scmp.eq.s32.totalorder %s33, 1
      %p491 = scmp.ne.s32.totalorder %s486, %s488
      %p492 = scmp.eq.s32.totalorder %s33, 0
      %p493 = por %p491, %p492
      %p494 = scmp.ne.s32.totalorder %s486, %s488
      %p495 = scmp.eq.s32.totalorder %s38, 1
      %p496 = por %p494, %p495
      %p497 = scmp.ne.s32.totalorder %s488, %s489
      %p498 = scmp.eq.s32.totalorder %s38, 0
      %p499 = por %p497, %p498
      %p500 = scmp.ne.s32.totalorder %s488, %s489
      %p501 = scmp.eq.s32.totalorder %s39, 1
      %p502 = por %p500, %p501
      %p504 = scmp.ne.s32.totalorder %s489, %s503
      %p505 = scmp.eq.s32.totalorder %s39, 0
      %p506 = por %p504, %p505
      %s508 = sadd.s32 %s507, 1
      %p511 = scmp.eq.s32.totalorder %s33, 1
      %p512 = scmp.ne.s32.totalorder %s507, %s509
      %p513 = scmp.eq.s32.totalorder %s33, 0
      %p514 = por %p512, %p513
      %p515 = scmp.ne.s32.totalorder %s507, %s509
      %p516 = scmp.eq.s32.totalorder %s38, 1
      %p517 = por %p515, %p516
      %p518 = scmp.ne.s32.totalorder %s509, %s510
      %p519 = scmp.eq.s32.totalorder %s38, 0
      %p520 = por %p518, %p519
      %p521 = scmp.ne.s32.totalorder %s509, %s510
      %p522 = scmp.eq.s32.totalorder %s39, 1
      %p523 = por %p521, %p522
      %p525 = scmp.ne.s32.totalorder %s510, %s524
      %p526 = scmp.eq.s32.totalorder %s39, 0
      %p527 = por %p525, %p526
      %p528 = scmp.le.s32.totalorder 1, %s33
      %p529 = scmp.lt.s32.totalorder %s33, 3
      %p530 = pnand %p528, %p529
      %p531 = pneg %p530
      // Predicated region
      $region9: #{tpu_custom_call.1} parent=5 // pred_check
        _
      $region10: #{tpu_custom_call.1} parent=5 // pred_check_branch
        %533 = sbr.rel (%p530) target = $region12
      $region11: #{tpu_custom_call.1} parent=5 // pred_region
        %s534 = ssub.s32 %s33, 1
        // Predicated region
        $region13: #{tpu_custom_call.1} parent=11 // pred_check
          %p535 = pneg %p54
        $region14: #{tpu_custom_call.1} parent=11 // pred_check_branch
          %537 = sbr.rel (%p535) target = $region16
        $region15: #{tpu_custom_call.1} parent=11 // pred_region
          %s539 = ssub.s32 128, 128
          %540 = vsyncadd [#allocation5], %s539
          %s542 = sshll.u32 [#allocation4], 4
          %s543 = int_to_ptr.vmem [resolvable:$true] %s542
          %545 = dma.hbm_to_vmem [thread:$0]  %s0, 128, %s543, [#allocation5]
        $region16: #{tpu_custom_call.1} parent=11 // pred_fallthru
          _
        // Predicated region
        $region17: #{tpu_custom_call.1} parent=11 // pred_check
          %p546 = pneg %p205
        $region18: #{tpu_custom_call.1} parent=11 // pred_check_branch
          %548 = sbr.rel (%p546) target = $region20
        $region19: #{tpu_custom_call.1} parent=11 // pred_region
          _
        $region20: #{tpu_custom_call.1} parent=11 // pred_fallthru
          _
        // Predicated region
        $region21: #{tpu_custom_call.1} parent=11 // pred_check
          %p549 = pneg %p226
        $region22: #{tpu_custom_call.1} parent=11 // pred_check_branch
          %551 = sbr.rel (%p549) target = $region24
        $region23: #{tpu_custom_call.1} parent=11 // pred_region
          _
        $region24: #{tpu_custom_call.1} parent=11 // pred_fallthru
          _
        // Predicated region
        $region25: #{tpu_custom_call.1} parent=11 // pred_check
          %p552 = pneg %p247
        $region26: #{tpu_custom_call.1} parent=11 // pred_check_branch
          %554 = sbr.rel (%p552) target = $region28
        $region27: #{tpu_custom_call.1} parent=11 // pred_region
          %s556 = ssub.s32 384, 384
          %557 = vsyncadd [#allocation8], %s556
          %s558 = sshll.u32 [#allocation9], 4
          %s559 = int_to_ptr.vmem [resolvable:$true] %s558
          %564 = dma.hbm_to_vmem [thread:$0]  %s8, 384, %s559, [#allocation8], 128, 128, 8
        $region28: #{tpu_custom_call.1} parent=11 // pred_fallthru
          _
        // Predicated region
        $region29: #{tpu_custom_call.1} parent=11 // pred_check
          %p565 = pneg %p268
        $region30: #{tpu_custom_call.1} parent=11 // pred_check_branch
          %567 = sbr.rel (%p565) target = $region32
        $region31: #{tpu_custom_call.1} parent=11 // pred_region
          %s569 = ssub.s32 384, 384
          %570 = vsyncadd [#allocation11], %s569
          %s571 = sshll.u32 [#allocation10], 4
          %s572 = int_to_ptr.vmem [resolvable:$true] %s571
          %577 = dma.hbm_to_vmem [thread:$0]  %s9, 384, %s572, [#allocation11], 128, 128, 8
        $region32: #{tpu_custom_call.1} parent=11 // pred_fallthru
          _
        // Predicated region
        $region33: #{tpu_custom_call.1} parent=11 // pred_check
          %p578 = pneg %p289
        $region34: #{tpu_custom_call.1} parent=11 // pred_check_branch
          %580 = sbr.rel (%p578) target = $region36
        $region35: #{tpu_custom_call.1} parent=11 // pred_region
          _
        $region36: #{tpu_custom_call.1} parent=11 // pred_fallthru
          _
        // Predicated region
        $region37: #{tpu_custom_call.1} parent=11 // pred_check
          %p581 = pneg %p310
        $region38: #{tpu_custom_call.1} parent=11 // pred_check_branch
          %583 = sbr.rel (%p581) target = $region40
        $region39: #{tpu_custom_call.1} parent=11 // pred_region
          _
        $region40: #{tpu_custom_call.1} parent=11 // pred_fallthru
          _
        // Predicated region
        $region41: #{tpu_custom_call.1} parent=11 // pred_check
          %p584 = pneg %p331
        $region42: #{tpu_custom_call.1} parent=11 // pred_check_branch
          %586 = sbr.rel (%p584) target = $region44
        $region43: #{tpu_custom_call.1} parent=11 // pred_region
          _
        $region44: #{tpu_custom_call.1} parent=11 // pred_fallthru
          _
        // Predicated region
        $region45: #{tpu_custom_call.1} parent=11 // pred_check
          %p587 = pneg %p352
        $region46: #{tpu_custom_call.1} parent=11 // pred_check_branch
          %589 = sbr.rel (%p587) target = $region48
        $region47: #{tpu_custom_call.1} parent=11 // pred_region
          _
        $region48: #{tpu_custom_call.1} parent=11 // pred_fallthru
          _
        // Predicated region
        $region49: #{tpu_custom_call.1} parent=11 // pred_check
          %p590 = pneg %p373
        $region50: #{tpu_custom_call.1} parent=11 // pred_check_branch
          %592 = sbr.rel (%p590) target = $region52
        $region51: #{tpu_custom_call.1} parent=11 // pred_region
          _
        $region52: #{tpu_custom_call.1} parent=11 // pred_fallthru
          _
        // Predicated region
        $region53: #{tpu_custom_call.1} parent=11 // pred_check
          %p593 = pneg %p394
        $region54: #{tpu_custom_call.1} parent=11 // pred_check_branch
          %595 = sbr.rel (%p593) target = $region56
        $region55: #{tpu_custom_call.1} parent=11 // pred_region
          %s597 = ssub.s32 16, 16
          %598 = vsyncadd [#allocation11], %s597
          %s600 = sshll.u32 [#allocation12], 4
          %s601 = int_to_ptr.vmem [resolvable:$true] %s600
          %603 = dma.hbm_to_vmem [thread:$0]  %s15, 16, %s601, [#allocation11]
        $region56: #{tpu_custom_call.1} parent=11 // pred_fallthru
          _
        // Predicated region
        $region57: #{tpu_custom_call.1} parent=11 // pred_check
          %p604 = pneg %p415
        $region58: #{tpu_custom_call.1} parent=11 // pred_check_branch
          %606 = sbr.rel (%p604) target = $region60
        $region59: #{tpu_custom_call.1} parent=11 // pred_region
          _
        $region60: #{tpu_custom_call.1} parent=11 // pred_fallthru
          _
        // Predicated region
        $region61: #{tpu_custom_call.1} parent=11 // pred_check
          %p607 = pneg %p436
        $region62: #{tpu_custom_call.1} parent=11 // pred_check_branch
          %609 = sbr.rel (%p607) target = $region64
        $region63: #{tpu_custom_call.1} parent=11 // pred_region
          _
        $region64: #{tpu_custom_call.1} parent=11 // pred_fallthru
          _
        // Predicated region
        $region65: #{tpu_custom_call.1} parent=11 // pred_check
          %p610 = pneg %p457
        $region66: #{tpu_custom_call.1} parent=11 // pred_check_branch
          %612 = sbr.rel (%p610) target = $region68
        $region67: #{tpu_custom_call.1} parent=11 // pred_region
          _
        $region68: #{tpu_custom_call.1} parent=11 // pred_fallthru
          _
        // Predicated region
        $region69: #{tpu_custom_call.1} parent=11 // pred_check
          %p613 = pneg %p478
        $region70: #{tpu_custom_call.1} parent=11 // pred_check_branch
          %615 = sbr.rel (%p613) target = $region72
        $region71: #{tpu_custom_call.1} parent=11 // pred_region
          _
        $region72: #{tpu_custom_call.1} parent=11 // pred_fallthru
          _
        // Predicated region
        $region73: #{tpu_custom_call.1} parent=11 // pred_check
          %p616 = pneg %p499
        $region74: #{tpu_custom_call.1} parent=11 // pred_check_branch
          %618 = sbr.rel (%p616) target = $region76
        $region75: #{tpu_custom_call.1} parent=11 // pred_region
          _
        $region76: #{tpu_custom_call.1} parent=11 // pred_fallthru
          _
      $region12: #{tpu_custom_call.1} parent=5 // pred_fallthru
        _
      %p619 = scmp.lt.s32.totalorder %s33, 2
      // Predicated region
      $region77: #{tpu_custom_call.1} parent=5 // pred_check
        %p620 = pneg %p619
      $region78: #{tpu_custom_call.1} parent=5 // pred_check_branch
        %622 = sbr.rel (%p620) target = $region80
      $region79: #{tpu_custom_call.1} parent=5 // pred_region
        // Predicated region
        $region81: #{tpu_custom_call.1} parent=79 // pred_check
          %p623 = pneg %p74
        $region82: #{tpu_custom_call.1} parent=79 // pred_check_branch
          %625 = sbr.rel (%p623) target = $region84
        $region83: #{tpu_custom_call.1} parent=79 // pred_region
          %p626 = scmp.lt.s32.totalorder %s33, 1
          %s627 = scalar_select %p626, %s33, 1
          %s628 = smul.addr %s627, 8
          %s629 = scalar_lea.vmem %s1, %s628
        $region84: #{tpu_custom_call.1} parent=79 // pred_fallthru
          _
        // Predicated region
        $region85: #{tpu_custom_call.1} parent=79 // pred_check
          %p630 = pneg %p100
        $region86: #{tpu_custom_call.1} parent=79 // pred_check_branch
          %632 = sbr.rel (%p630) target = $region88
        $region87: #{tpu_custom_call.1} parent=79 // pred_region
          %p633 = scmp.lt.s32.totalorder %s33, 1
          %s634 = scalar_select %p633, %s33, 1
          %s635 = smul.addr %s634, 8
          %s636 = scalar_lea.vmem %s2, %s635
        $region88: #{tpu_custom_call.1} parent=79 // pred_fallthru
          _
        // Predicated region
        $region89: #{tpu_custom_call.1} parent=79 // pred_check
          %p637 = pneg %p126
        $region90: #{tpu_custom_call.1} parent=79 // pred_check_branch
          %639 = sbr.rel (%p637) target = $region92
        $region91: #{tpu_custom_call.1} parent=79 // pred_region
          %s640 = sand.u32 %s33, 1
          %s641 = scalar_lea.sflag [#allocation8], %s640
          %s642 = sand.u32 %s116, 1
          %s643 = scalar_lea.vmem [#allocation7], %s642
          %s645 = ssub.s32 16, 16
          %646 = vsyncadd %s641, %s645
          %s647 = smul.addr %s33, 16
          %s648 = scalar_lea.hbm %s3, %s647
          %s650 = sshll.u32 %s643, 4
          %s651 = int_to_ptr.vmem [resolvable:$true] %s650
          %653 = dma.hbm_to_vmem [thread:$0]  %s648, 16, %s651, %s641
        $region92: #{tpu_custom_call.1} parent=79 // pred_fallthru
          _
        // Predicated region
        $region93: #{tpu_custom_call.1} parent=79 // pred_check
          %p654 = pneg %p152
        $region94: #{tpu_custom_call.1} parent=79 // pred_check_branch
          %656 = sbr.rel (%p654) target = $region96
        $region95: #{tpu_custom_call.1} parent=79 // pred_region
          %p657 = scmp.lt.s32.totalorder %s33, 1
          %s658 = scalar_select %p657, %s33, 1
          %s659 = smul.addr %s658, 8
          %s660 = scalar_lea.vmem %s4, %s659
        $region96: #{tpu_custom_call.1} parent=79 // pred_fallthru
          _
        // Predicated region
        $region97: #{tpu_custom_call.1} parent=79 // pred_check
          %p661 = pneg %p178
        $region98: #{tpu_custom_call.1} parent=79 // pred_check_branch
          %663 = sbr.rel (%p661) target = $region100
        $region99: #{tpu_custom_call.1} parent=79 // pred_region
          %p664 = scmp.lt.s32.totalorder %s33, 1
          %s665 = scalar_select %p664, %s33, 1
          %s666 = smul.addr %s665, 8
          %s667 = scalar_lea.vmem %s5, %s666
        $region100: #{tpu_custom_call.1} parent=79 // pred_fallthru
          _
      $region80: #{tpu_custom_call.1} parent=5 // pred_fallthru
        _
      %p668 = scmp.le.s32.totalorder 1, %s33
      %p669 = scmp.lt.s32.totalorder %s33, 3
      %p670 = pnand %p668, %p669
      %p671 = pneg %p670
      // Predicated region
      $region101: #{tpu_custom_call.1} parent=5 // pred_check
        _
      $region102: #{tpu_custom_call.1} parent=5 // pred_check_branch
        %673 = sbr.rel (%p670) target = $region104
      $region103: #{tpu_custom_call.1} parent=5 // pred_region
        %s674 = ssub.s32 %s33, 1
        // Predicated region
        $region105: #{tpu_custom_call.1} parent=103 // pred_check
          %p675 = pneg %p54
        $region106: #{tpu_custom_call.1} parent=103 // pred_check_branch
          %677 = sbr.rel (%p675) target = $region108
        $region107: #{tpu_custom_call.1} parent=103 // pred_region
          %678 = dma.done [#allocation5], 128
        $region108: #{tpu_custom_call.1} parent=103 // pred_fallthru
          _
        %s679 = sand.u32 %s38, 1
        %s680 = scalar_lea.sflag [#allocation8], %s679
        %s681 = sand.u32 %s119, 1
        %s682 = scalar_lea.vmem [#allocation7], %s681
        // Predicated region
        $region109: #{tpu_custom_call.1} parent=103 // pred_check
          %p683 = pneg %p132
        $region110: #{tpu_custom_call.1} parent=103 // pred_check_branch
          %685 = sbr.rel (%p683) target = $region112
        $region111: #{tpu_custom_call.1} parent=103 // pred_region
          %686 = dma.done %s680, 16
        $region112: #{tpu_custom_call.1} parent=103 // pred_fallthru
          _
        // Predicated region
        $region113: #{tpu_custom_call.1} parent=103 // pred_check
          %p687 = pneg %p247
        $region114: #{tpu_custom_call.1} parent=103 // pred_check_branch
          %689 = sbr.rel (%p687) target = $region116
        $region115: #{tpu_custom_call.1} parent=103 // pred_region
          %690 = dma.done [#allocation8], 384
        $region116: #{tpu_custom_call.1} parent=103 // pred_fallthru
          _
        // Predicated region
        $region117: #{tpu_custom_call.1} parent=103 // pred_check
          %p691 = pneg %p268
        $region118: #{tpu_custom_call.1} parent=103 // pred_check_branch
          %693 = sbr.rel (%p691) target = $region120
        $region119: #{tpu_custom_call.1} parent=103 // pred_region
          %694 = dma.done [#allocation11], 384
        $region120: #{tpu_custom_call.1} parent=103 // pred_fallthru
          _
        // Predicated region
        $region121: #{tpu_custom_call.1} parent=103 // pred_check
          %p695 = pneg %p394
        $region122: #{tpu_custom_call.1} parent=103 // pred_check_branch
          %697 = sbr.rel (%p695) target = $region124
        $region123: #{tpu_custom_call.1} parent=103 // pred_region
          %698 = dma.done [#allocation11], 16
        $region124: #{tpu_custom_call.1} parent=103 // pred_fallthru
          _
        %p699 = pneg %p54
        %p700 = pneg %p51
        %p701 = scmp.lt.s32.totalorder %s38, 1
        %s702 = scalar_select %p701, %s38, 1
        %s703 = smul.addr %s702, 8
        %s704 = scalar_lea.vmem %s1, %s703
        %p705 = pneg %p80
        %p706 = pneg %p77
        %p707 = scmp.lt.s32.totalorder %s38, 1
        %s708 = scalar_select %p707, %s38, 1
        %s709 = smul.addr %s708, 8
        %s710 = scalar_lea.vmem %s2, %s709
        %p711 = pneg %p106
        %p712 = pneg %p103
        %s713 = sand.u32 %s38, 1
        %s714 = scalar_lea.sflag [#allocation8], %s713
        %s715 = sand.u32 %s119, 1
        %s716 = scalar_lea.vmem [#allocation7], %s715
        %p717 = pneg %p132
        %p718 = pneg %p129
        %p719 = scmp.lt.s32.totalorder %s38, 1
        %s720 = scalar_select %p719, %s38, 1
        %s721 = smul.addr %s720, 8
        %s722 = scalar_lea.vmem %s4, %s721
        %p723 = pneg %p158
        %p724 = pneg %p155
        %p725 = scmp.lt.s32.totalorder %s38, 1
        %s726 = scalar_select %p725, %s38, 1
        %s727 = smul.addr %s726, 8
        %s728 = scalar_lea.vmem %s5, %s727
        %p729 = pneg %p184
        %p730 = pneg %p181
        %p731 = pneg %p205
        %p732 = pneg %p202
        %p733 = pneg %p226
        %p734 = pneg %p223
        %p735 = pneg %p247
        %p736 = pneg %p244
        %p737 = pneg %p268
        %p738 = pneg %p265
        %p739 = pneg %p289
        %p740 = pneg %p286
        %p741 = pneg %p310
        %p742 = pneg %p307
        %p743 = pneg %p331
        %p744 = pneg %p328
        %p745 = pneg %p352
        %p746 = pneg %p349
        %p747 = pneg %p373
        %p748 = pneg %p370
        %p749 = pneg %p394
        %p750 = pneg %p391
        %p751 = pneg %p415
        %p752 = pneg %p412
        %p753 = pneg %p436
        %p754 = pneg %p433
        %p755 = pneg %p457
        %p756 = pneg %p454
        %p757 = pneg %p478
        %p758 = pneg %p475
        %p759 = pneg %p499
        %p760 = pneg %p496
        %p761 = pneg %p520
        %p762 = pneg %p517
        %p763 = scmp.lt.s32.totalorder %s38, 1
        %s764 = scalar_select %p763, %s38, 1
        %s765 = smul.addr %s764, 8
        %s766 = scalar_lea.vmem %s1, %s765
        %p767 = scmp.lt.s32.totalorder %s38, 1
        %s768 = scalar_select %p767, %s38, 1
        %s769 = smul.addr %s768, 8
        %s770 = scalar_lea.vmem %s2, %s769
        %p771 = scmp.lt.s32.totalorder %s38, 1
        %s772 = scalar_select %p771, %s38, 1
        %s773 = smul.addr %s772, 8
        %s774 = scalar_lea.vmem %s4, %s773
        %p775 = scmp.lt.s32.totalorder %s38, 1
        %s776 = scalar_select %p775, %s38, 1
        %s777 = smul.addr %s776, 8
        %s778 = scalar_lea.vmem %s5, %s777
        %p779 = scmp.eq.s32.totalorder %s38, 0
        // Predicated region
        $region125: #{tpu_custom_call.1} parent=103 // pred_check
          %p780 = pneg %p779
        $region126: #{tpu_custom_call.1} parent=103 // pred_check_branch
          %782 = sbr.rel (%p780) target = $region128
        $region127: #{tpu_custom_call.1} parent=103 // pred_region
          %v783 = vld [vmem:[#allocation4] sm:$0xff]
          %v784 = vmul.f32 %v783, %v783
          %vm785 = vcmask 64512
          %v786 = vsel %vm785, %v784, 0.0
          %787 = vadd.xlane.f32.xlu0 %v786
          %v788 = vpop.xlane.xlu0 %787
          %v789 = vrcp.pop 8.0
          %v790 = vmul.f32 %v788, %v789
          %v791 = vadd.f32 %v790, 1.0
          %v792 = vrsqrt.pop %v791
          %v793 = vmul.f32 %v783, %v792
          %795 = vrot.lane.b32.xlu0 %v784, 120
          %v796 = vpop.permute.xlu0 %795
          %vm798 = vcmask 195584
          %v799 = vsel %vm798, %v796, 0.0
          %800 = vadd.xlane.f32.xlu0 %v799
          %v801 = vpop.xlane.xlu0 %800
          %v802 = vrcp.pop 24.0
          %v803 = vmul.f32 %v801, %v802
          %v804 = vadd.f32 %v803, 1.0
          %v805 = vrsqrt.pop %v804
          %v806 = vmul.f32 %v783, %v805
          %807 = vrot.lane.b32.xlu0 %v784, 96
          %v808 = vpop.permute.xlu0 %807
          %vm810 = vcmask 588800
          %v811 = vsel %vm810, %v808, 0.0
          %812 = vadd.xlane.f32.xlu0 %v811
          %v813 = vpop.xlane.xlu0 %812
          %v814 = vrcp.pop 72.0
          %v815 = vmul.f32 %v813, %v814
          %v816 = vadd.f32 %v815, 1.0
          %v817 = vrsqrt.pop %v816
          %v818 = vmul.f32 %v783, %v817
          %v819 = vsel %vm785, %v793, %v806
          %vm820 = vcmask 261120
          %v821 = vsel %vm820, %v819, %v818
          %vm822 = vcmask 850944
          %v823 = vsel %vm822, %v821, 0.0
          %824 = vst [vmem:[#allocation2] sm:$0xff] %v823
          %825 = vst [vmem:[#allocation3] sm:$0xff] 0.0
          %826 = vst [vmem:[#allocation3 + $0x8] sm:$0xff] 0.0
          %vm827 = vcmask 457728
          %828 = vst.msk [vmem:[#allocation3 + $0x10] sm:$0xff] %vm827, 0.0
        $region128: #{tpu_custom_call.1} parent=103 // pred_fallthru
          _
        %v829 = vld [vmem:[#allocation2] sm:$0xff]
        %v830 = vlaneseq
        %v831 = vand.u32 %v830, 127
        %v832 = vld [vmem:[%s766] sm:$0xff]
        %833 = vset.pattern.permute.xlu0 0
        %834 = vperm.xlu0 %833, %v832
        %v835 = vpop.permute.xlu0 %834
        %vm836 = vcmp.eq.s32.totalorder %v835, %v831
        %v837 = vsel %vm836, 1, 0
        %v838 = vcvt.s32.f32 %v837
        %v839 = vld [vmem:[%s770] sm:$0xff]
        %840 = vset.pattern.permute.xlu0 0
        %841 = vperm.xlu0 %840, %v839
        %v842 = vpop.permute.xlu0 %841
        %vm843 = vcmp.eq.s32.totalorder %v842, %v831
        %v844 = vsel %vm843, 1, 0
        %v845 = vcvt.s32.f32 %v844
        %vm846 = vcmask 64512
        %v848 = vsel %vm846, %v838, 0
        %850 = vmatprep.subr.mxu0 0.0
        %851 = vmatpush1.msra.mxu0 %v829
        %852 = vmatprep.subr.mxu0 0.0
        %853 = vmatpush1.msra.mxu0 0.0
        %854 = vmatprep.subr.mxu0 0.0
        %855 = vmatpush1.msra.mxu0 0.0
        %856 = vmatprep.subr.mxu0 0.0
        %857 = vmatpush1.msra.mxu0 0.0
        %858 = vmatprep.subr.mxu0 0.0
        %859 = vmatpush1.msra.mxu0 0.0
        %860 = vmatprep.subr.mxu0 0.0
        %861 = vmatpush1.msra.mxu0 0.0
        %862 = vmatprep.subr.mxu0 0.0
        %863 = vmatpush1.msra.mxu0 0.0
        %864 = vmatprep.subr.mxu0 0.0
        %865 = vmatpush1.msra.mxu0 0.0
        %866 = vmatprep.subr.mxu0 0.0
        %867 = vmatpush1.msra.mxu0 0.0
        %868 = vmatprep.subr.mxu0 0.0
        %869 = vmatpush1.msra.mxu0 0.0
        %870 = vmatprep.subr.mxu0 0.0
        %871 = vmatpush1.msra.mxu0 0.0
        %872 = vmatprep.subr.mxu0 0.0
        %873 = vmatpush1.msra.mxu0 0.0
        %874 = vmatprep.subr.mxu0 0.0
        %875 = vmatpush1.msra.mxu0 0.0
        %876 = vmatprep.subr.mxu0 0.0
        %877 = vmatpush1.msra.mxu0 0.0
        %878 = vmatprep.subr.mxu0 0.0
        %879 = vmatpush1.msra.mxu0 0.0
        %880 = vmatprep.subr.mxu0 0.0
        %881 = vmatpush1.msra.mxu0 0.0
        %882 = vmatprep.subr.mxu0 0.0
        %883 = vmatpush1.msra.mxu0 0.0
        %884 = vmatprep.subr.mxu0 0.0
        %885 = vmatpush1.msra.mxu0 0.0
        %886 = vmatprep.subr.mxu0 0.0
        %887 = vmatpush1.msra.mxu0 0.0
        %888 = vmatprep.subr.mxu0 0.0
        %889 = vmatpush1.msra.mxu0 0.0
        %890 = vmatprep.subr.mxu0 0.0
        %891 = vmatpush1.msra.mxu0 0.0
        %892 = vmatprep.subr.mxu0 0.0
        %893 = vmatpush1.msra.mxu0 0.0
        %894 = vmatprep.subr.mxu0 0.0
        %895 = vmatpush1.msra.mxu0 0.0
        %896 = vmatprep.subr.mxu0 0.0
        %897 = vmatpush1.msra.mxu0 0.0
        %898 = vmatprep.subr.mxu0 0.0
        %899 = vmatpush1.msra.mxu0 0.0
        %900 = vmatprep.subr.mxu0 0.0
        %901 = vmatpush1.msra.mxu0 0.0
        %902 = vmatprep.subr.mxu0 0.0
        %903 = vmatpush1.msra.mxu0 0.0
        %904 = vmatprep.subr.mxu0 0.0
        %905 = vmatpush1.msra.mxu0 0.0
        %906 = vmatprep.subr.mxu0 0.0
        %907 = vmatpush1.msra.mxu0 0.0
        %908 = vmatprep.subr.mxu0 0.0
        %909 = vmatpush1.msra.mxu0 0.0
        %910 = vmatprep.subr.mxu0 0.0
        %911 = vmatpush1.msra.mxu0 0.0
        %912 = vmatprep.subr.mxu0 0.0
        %913 = vmatpush1.msra.mxu0 0.0
        %914 = vmatprep.mubr.f32.mxu0 0.0
        %915 = vmatmul.mubr.f32.gmra.mrb[0].mxu0 %v848
        %v916 = vpop.f32.mrb[0].mxu0
        %v917 = vadd.f32 0.0, %v916
        %v918 = vpop.f32.mrb[0].mxu0
        %919 = vdwg.mxu0
        %v921 = vsel %vm846, %v845, 0
        %923 = vmatprep.subr.mxu0 0.0
        %924 = vmatpush1.msra.mxu0 %v829
        %925 = vmatprep.subr.mxu0 0.0
        %926 = vmatpush1.msra.mxu0 0.0
        %927 = vmatprep.subr.mxu0 0.0
        %928 = vmatpush1.msra.mxu0 0.0
        %929 = vmatprep.subr.mxu0 0.0
        %930 = vmatpush1.msra.mxu0 0.0
        %931 = vmatprep.subr.mxu0 0.0
        %932 = vmatpush1.msra.mxu0 0.0
        %933 = vmatprep.subr.mxu0 0.0
        %934 = vmatpush1.msra.mxu0 0.0
        %935 = vmatprep.subr.mxu0 0.0
        %936 = vmatpush1.msra.mxu0 0.0
        %937 = vmatprep.subr.mxu0 0.0
        %938 = vmatpush1.msra.mxu0 0.0
        %939 = vmatprep.subr.mxu0 0.0
        %940 = vmatpush1.msra.mxu0 0.0
        %941 = vmatprep.subr.mxu0 0.0
        %942 = vmatpush1.msra.mxu0 0.0
        %943 = vmatprep.subr.mxu0 0.0
        %944 = vmatpush1.msra.mxu0 0.0
        %945 = vmatprep.subr.mxu0 0.0
        %946 = vmatpush1.msra.mxu0 0.0
        %947 = vmatprep.subr.mxu0 0.0
        %948 = vmatpush1.msra.mxu0 0.0
        %949 = vmatprep.subr.mxu0 0.0
        %950 = vmatpush1.msra.mxu0 0.0
        %951 = vmatprep.subr.mxu0 0.0
        %952 = vmatpush1.msra.mxu0 0.0
        %953 = vmatprep.subr.mxu0 0.0
        %954 = vmatpush1.msra.mxu0 0.0
        %955 = vmatprep.subr.mxu0 0.0
        %956 = vmatpush1.msra.mxu0 0.0
        %957 = vmatprep.subr.mxu0 0.0
        %958 = vmatpush1.msra.mxu0 0.0
        %959 = vmatprep.subr.mxu0 0.0
        %960 = vmatpush1.msra.mxu0 0.0
        %961 = vmatprep.subr.mxu0 0.0
        %962 = vmatpush1.msra.mxu0 0.0
        %963 = vmatprep.subr.mxu0 0.0
        %964 = vmatpush1.msra.mxu0 0.0
        %965 = vmatprep.subr.mxu0 0.0
        %966 = vmatpush1.msra.mxu0 0.0
        %967 = vmatprep.subr.mxu0 0.0
        %968 = vmatpush1.msra.mxu0 0.0
        %969 = vmatprep.subr.mxu0 0.0
        %970 = vmatpush1.msra.mxu0 0.0
        %971 = vmatprep.subr.mxu0 0.0
        %972 = vmatpush1.msra.mxu0 0.0
        %973 = vmatprep.subr.mxu0 0.0
        %974 = vmatpush1.msra.mxu0 0.0
        %975 = vmatprep.subr.mxu0 0.0
        %976 = vmatpush1.msra.mxu0 0.0
        %977 = vmatprep.subr.mxu0 0.0
        %978 = vmatpush1.msra.mxu0 0.0
        %979 = vmatprep.subr.mxu0 0.0
        %980 = vmatpush1.msra.mxu0 0.0
        %981 = vmatprep.subr.mxu0 0.0
        %982 = vmatpush1.msra.mxu0 0.0
        %983 = vmatprep.subr.mxu0 0.0
        %984 = vmatpush1.msra.mxu0 0.0
        %985 = vmatprep.subr.mxu0 0.0
        %986 = vmatpush1.msra.mxu0 0.0
        %987 = vmatprep.mubr.f32.mxu0 0.0
        %988 = vmatmul.mubr.f32.gmra.mrb[0].mxu0 %v921
        %v989 = vpop.f32.mrb[0].mxu0
        %v990 = vadd.f32 0.0, %v989
        %v991 = vpop.f32.mrb[0].mxu0
        %992 = vdwg.mxu0
        %v993 = vld [vmem:[%s774] sm:$0xff]
        %v994 = vmul.f32 %v993, %v993
        %996 = vrot.lane.b32.xlu0 %v993, 127
        %v997 = vpop.permute.xlu0 %996
        %v999 = vmul.f32 %v993, %v997
        %1000 = vrot.lane.b32.xlu0 %v993, 126
        %v1001 = vpop.permute.xlu0 %1000
        %v1003 = vmul.f32 %v993, %v1001
        %v1004 = vld [vmem:[%s7] sm:$0xff]
        %v1006 = vsel %vm846, %v917, 0
        %1008 = vmatprep.subr.mxu0 0.0
        %1009 = vmatpush1.msra.mxu0 %v1004
        %1010 = vmatprep.subr.mxu0 0.0
        %1011 = vmatpush1.msra.mxu0 0.0
        %1012 = vmatprep.subr.mxu0 0.0
        %1013 = vmatpush1.msra.mxu0 0.0
        %1014 = vmatprep.subr.mxu0 0.0
        %1015 = vmatpush1.msra.mxu0 0.0
        %1016 = vmatprep.subr.mxu0 0.0
        %1017 = vmatpush1.msra.mxu0 0.0
        %1018 = vmatprep.subr.mxu0 0.0
        %1019 = vmatpush1.msra.mxu0 0.0
        %1020 = vmatprep.subr.mxu0 0.0
        %1021 = vmatpush1.msra.mxu0 0.0
        %1022 = vmatprep.subr.mxu0 0.0
        %1023 = vmatpush1.msra.mxu0 0.0
        %1024 = vmatprep.subr.mxu0 0.0
        %1025 = vmatpush1.msra.mxu0 0.0
        %1026 = vmatprep.subr.mxu0 0.0
        %1027 = vmatpush1.msra.mxu0 0.0
        %1028 = vmatprep.subr.mxu0 0.0
        %1029 = vmatpush1.msra.mxu0 0.0
        %1030 = vmatprep.subr.mxu0 0.0
        %1031 = vmatpush1.msra.mxu0 0.0
        %1032 = vmatprep.subr.mxu0 0.0
        %1033 = vmatpush1.msra.mxu0 0.0
        %1034 = vmatprep.subr.mxu0 0.0
        %1035 = vmatpush1.msra.mxu0 0.0
        %1036 = vmatprep.subr.mxu0 0.0
        %1037 = vmatpush1.msra.mxu0 0.0
        %1038 = vmatprep.subr.mxu0 0.0
        %1039 = vmatpush1.msra.mxu0 0.0
        %1040 = vmatprep.subr.mxu0 0.0
        %1041 = vmatpush1.msra.mxu0 0.0
        %1042 = vmatprep.subr.mxu0 0.0
        %1043 = vmatpush1.msra.mxu0 0.0
        %1044 = vmatprep.subr.mxu0 0.0
        %1045 = vmatpush1.msra.mxu0 0.0
        %1046 = vmatprep.subr.mxu0 0.0
        %1047 = vmatpush1.msra.mxu0 0.0
        %1048 = vmatprep.subr.mxu0 0.0
        %1049 = vmatpush1.msra.mxu0 0.0
        %1050 = vmatprep.subr.mxu0 0.0
        %1051 = vmatpush1.msra.mxu0 0.0
        %1052 = vmatprep.subr.mxu0 0.0
        %1053 = vmatpush1.msra.mxu0 0.0
        %1054 = vmatprep.subr.mxu0 0.0
        %1055 = vmatpush1.msra.mxu0 0.0
        %1056 = vmatprep.subr.mxu0 0.0
        %1057 = vmatpush1.msra.mxu0 0.0
        %1058 = vmatprep.subr.mxu0 0.0
        %1059 = vmatpush1.msra.mxu0 0.0
        %1060 = vmatprep.subr.mxu0 0.0
        %1061 = vmatpush1.msra.mxu0 0.0
        %1062 = vmatprep.subr.mxu0 0.0
        %1063 = vmatpush1.msra.mxu0 0.0
        %1064 = vmatprep.subr.mxu0 0.0
        %1065 = vmatpush1.msra.mxu0 0.0
        %1066 = vmatprep.subr.mxu0 0.0
        %1067 = vmatpush1.msra.mxu0 0.0
        %1068 = vmatprep.subr.mxu0 0.0
        %1069 = vmatpush1.msra.mxu0 0.0
        %1070 = vmatprep.subr.mxu0 0.0
        %1071 = vmatpush1.msra.mxu0 0.0
        %1072 = vmatprep.mubr.f32.mxu0 0.0
        %1073 = vmatmul.mubr.f32.gmra.mrb[0].mxu0 %v1006
        %v1074 = vpop.f32.mrb[0].mxu0
        %v1075 = vadd.f32 0.0, %v1074
        %v1076 = vpop.f32.mrb[0].mxu0
        %1077 = vdwg.mxu0
        %v1078 = vld [vmem:[#allocation9] sm:$0xff]
        %v1080 = vsel %vm846, %v990, 0
        %1082 = vmatprep.subr.mxu0 0.0
        %1083 = vmatpush1.msra.mxu0 %v1078
        %1084 = vmatprep.subr.mxu0 0.0
        %1085 = vmatpush1.msra.mxu0 0.0
        %1086 = vmatprep.subr.mxu0 0.0
        %1087 = vmatpush1.msra.mxu0 0.0
        %1088 = vmatprep.subr.mxu0 0.0
        %1089 = vmatpush1.msra.mxu0 0.0
        %1090 = vmatprep.subr.mxu0 0.0
        %1091 = vmatpush1.msra.mxu0 0.0
        %1092 = vmatprep.subr.mxu0 0.0
        %1093 = vmatpush1.msra.mxu0 0.0
        %1094 = vmatprep.subr.mxu0 0.0
        %1095 = vmatpush1.msra.mxu0 0.0
        %1096 = vmatprep.subr.mxu0 0.0
        %1097 = vmatpush1.msra.mxu0 0.0
        %1098 = vmatprep.subr.mxu0 0.0
        %1099 = vmatpush1.msra.mxu0 0.0
        %1100 = vmatprep.subr.mxu0 0.0
        %1101 = vmatpush1.msra.mxu0 0.0
        %1102 = vmatprep.subr.mxu0 0.0
        %1103 = vmatpush1.msra.mxu0 0.0
        %1104 = vmatprep.subr.mxu0 0.0
        %1105 = vmatpush1.msra.mxu0 0.0
        %1106 = vmatprep.subr.mxu0 0.0
        %1107 = vmatpush1.msra.mxu0 0.0
        %1108 = vmatprep.subr.mxu0 0.0
        %1109 = vmatpush1.msra.mxu0 0.0
        %1110 = vmatprep.subr.mxu0 0.0
        %1111 = vmatpush1.msra.mxu0 0.0
        %1112 = vmatprep.subr.mxu0 0.0
        %1113 = vmatpush1.msra.mxu0 0.0
        %1114 = vmatprep.subr.mxu0 0.0
        %1115 = vmatpush1.msra.mxu0 0.0
        %1116 = vmatprep.subr.mxu0 0.0
        %1117 = vmatpush1.msra.mxu0 0.0
        %1118 = vmatprep.subr.mxu0 0.0
        %1119 = vmatpush1.msra.mxu0 0.0
        %1120 = vmatprep.subr.mxu0 0.0
        %1121 = vmatpush1.msra.mxu0 0.0
        %1122 = vmatprep.subr.mxu0 0.0
        %1123 = vmatpush1.msra.mxu0 0.0
        %1124 = vmatprep.subr.mxu0 0.0
        %1125 = vmatpush1.msra.mxu0 0.0
        %1126 = vmatprep.subr.mxu0 0.0
        %1127 = vmatpush1.msra.mxu0 0.0
        %1128 = vmatprep.subr.mxu0 0.0
        %1129 = vmatpush1.msra.mxu0 0.0
        %1130 = vmatprep.subr.mxu0 0.0
        %1131 = vmatpush1.msra.mxu0 0.0
        %1132 = vmatprep.subr.mxu0 0.0
        %1133 = vmatpush1.msra.mxu0 0.0
        %1134 = vmatprep.subr.mxu0 0.0
        %1135 = vmatpush1.msra.mxu0 0.0
        %1136 = vmatprep.subr.mxu0 0.0
        %1137 = vmatpush1.msra.mxu0 0.0
        %1138 = vmatprep.subr.mxu0 0.0
        %1139 = vmatpush1.msra.mxu0 0.0
        %1140 = vmatprep.subr.mxu0 0.0
        %1141 = vmatpush1.msra.mxu0 0.0
        %1142 = vmatprep.subr.mxu0 0.0
        %1143 = vmatpush1.msra.mxu0 0.0
        %1144 = vmatprep.subr.mxu0 0.0
        %1145 = vmatpush1.msra.mxu0 0.0
        %1146 = vmatprep.mubr.f32.mxu0 0.0
        %1147 = vmatmul.mubr.f32.gmra.mrb[0].mxu0 %v1080
        %v1148 = vpop.f32.mrb[0].mxu0
        %v1149 = vadd.f32 0.0, %v1148
        %v1150 = vpop.f32.mrb[0].mxu0
        %1151 = vdwg.mxu0
        %s1152 = scalar_lea.vmem %s7, 8
        %v1153 = vld [vmem:[%s1152] sm:$0xff]
        %1154 = vrot.lane.b32.xlu0 %v917, 120
        %v1155 = vpop.permute.xlu0 %1154
        %1156 = vrot.lane.b32.xlu0 %v917, 112
        %v1157 = vpop.permute.xlu0 %1156
        %1158 = vrot.lane.b32.xlu0 %v1155, 120
        %v1159 = vpop.permute.xlu0 %1158
        %1160 = vrot.lane.b32.xlu0 %v1157, 120
        %v1161 = vpop.permute.xlu0 %1160
        %v1162 = vsel %vm846, %v1155, 0
        %v1164 = vsel %vm846, %v1159, 0
        %v1166 = vsel %vm846, %v1161, 0
        %1168 = vmatprep.subr.mxu0 0.0
        %1169 = vmatpush1.msra.mxu0 %v1153
        %1170 = vmatprep.subr.mxu0 0.0
        %1171 = vmatpush1.msra.mxu0 0.0
        %1172 = vmatprep.subr.mxu0 0.0
        %1173 = vmatpush1.msra.mxu0 0.0
        %1174 = vmatprep.subr.mxu0 0.0
        %1175 = vmatpush1.msra.mxu0 0.0
        %1176 = vmatprep.subr.mxu0 0.0
        %1177 = vmatpush1.msra.mxu0 0.0
        %1178 = vmatprep.subr.mxu0 0.0
        %1179 = vmatpush1.msra.mxu0 0.0
        %1180 = vmatprep.subr.mxu0 0.0
        %1181 = vmatpush1.msra.mxu0 0.0
        %1182 = vmatprep.subr.mxu0 0.0
        %1183 = vmatpush1.msra.mxu0 0.0
        %1184 = vmatprep.subr.mxu0 0.0
        %1185 = vmatpush1.msra.mxu0 0.0
        %1186 = vmatprep.subr.mxu0 0.0
        %1187 = vmatpush1.msra.mxu0 0.0
        %1188 = vmatprep.subr.mxu0 0.0
        %1189 = vmatpush1.msra.mxu0 0.0
        %1190 = vmatprep.subr.mxu0 0.0
        %1191 = vmatpush1.msra.mxu0 0.0
        %1192 = vmatprep.subr.mxu0 0.0
        %1193 = vmatpush1.msra.mxu0 0.0
        %1194 = vmatprep.subr.mxu0 0.0
        %1195 = vmatpush1.msra.mxu0 0.0
        %1196 = vmatprep.subr.mxu0 0.0
        %1197 = vmatpush1.msra.mxu0 0.0
        %1198 = vmatprep.subr.mxu0 0.0
        %1199 = vmatpush1.msra.mxu0 0.0
        %1200 = vmatprep.subr.mxu0 0.0
        %1201 = vmatpush1.msra.mxu0 0.0
        %1202 = vmatprep.subr.mxu0 0.0
        %1203 = vmatpush1.msra.mxu0 0.0
        %1204 = vmatprep.subr.mxu0 0.0
        %1205 = vmatpush1.msra.mxu0 0.0
        %1206 = vmatprep.subr.mxu0 0.0
        %1207 = vmatpush1.msra.mxu0 0.0
        %1208 = vmatprep.subr.mxu0 0.0
        %1209 = vmatpush1.msra.mxu0 0.0
        %1210 = vmatprep.subr.mxu0 0.0
        %1211 = vmatpush1.msra.mxu0 0.0
        %1212 = vmatprep.subr.mxu0 0.0
        %1213 = vmatpush1.msra.mxu0 0.0
        %1214 = vmatprep.subr.mxu0 0.0
        %1215 = vmatpush1.msra.mxu0 0.0
        %1216 = vmatprep.subr.mxu0 0.0
        %1217 = vmatpush1.msra.mxu0 0.0
        %1218 = vmatprep.subr.mxu0 0.0
        %1219 = vmatpush1.msra.mxu0 0.0
        %1220 = vmatprep.subr.mxu0 0.0
        %1221 = vmatpush1.msra.mxu0 0.0
        %1222 = vmatprep.subr.mxu0 0.0
        %1223 = vmatpush1.msra.mxu0 0.0
        %1224 = vmatprep.subr.mxu0 0.0
        %1225 = vmatpush1.msra.mxu0 0.0
        %1226 = vmatprep.subr.mxu0 0.0
        %1227 = vmatpush1.msra.mxu0 0.0
        %1228 = vmatprep.subr.mxu0 0.0
        %1229 = vmatpush1.msra.mxu0 0.0
        %1230 = vmatprep.subr.mxu0 0.0
        %1231 = vmatpush1.msra.mxu0 0.0
        %1232 = vmatprep.mubr.f32.mxu0 0.0
        %1233 = vmatmul.mubr.f32.gmra.mrb[0].mxu0 %v1162
        %v1234 = vpop.f32.mrb[0].mxu0
        %v1235 = vadd.f32 0.0, %v1234
        %v1236 = vpop.f32.mrb[0].mxu0
        %1237 = vmatprep.mubr.f32.mxu0 0.0
        %1238 = vmatmul.mubr.f32.gmra.mrb[0].mxu0 %v1164
        %v1239 = vpop.f32.mrb[0].mxu0
        %v1240 = vadd.f32 0.0, %v1239
        %v1241 = vpop.f32.mrb[0].mxu0
        %1242 = vmatprep.mubr.f32.mxu0 0.0
        %1243 = vmatmul.mubr.f32.gmra.mrb[0].mxu0 %v1166
        %v1244 = vpop.f32.mrb[0].mxu0
        %v1245 = vadd.f32 0.0, %v1244
        %v1246 = vpop.f32.mrb[0].mxu0
        %1247 = vdwg.mxu0
        %s1248 = scalar_lea.vmem [#allocation9], 8
        %v1249 = vld [vmem:[%s1248] sm:$0xff]
        %1250 = vrot.lane.b32.xlu0 %v990, 120
        %v1251 = vpop.permute.xlu0 %1250
        %1252 = vrot.lane.b32.xlu0 %v990, 112
        %v1253 = vpop.permute.xlu0 %1252
        %1254 = vrot.lane.b32.xlu0 %v1251, 120
        %v1255 = vpop.permute.xlu0 %1254
        %1256 = vrot.lane.b32.xlu0 %v1253, 120
        %v1257 = vpop.permute.xlu0 %1256
        %v1258 = vsel %vm846, %v1251, 0
        %v1260 = vsel %vm846, %v1255, 0
        %v1262 = vsel %vm846, %v1257, 0
        %1264 = vmatprep.subr.mxu0 0.0
        %1265 = vmatpush1.msra.mxu0 %v1249
        %1266 = vmatprep.subr.mxu0 0.0
        %1267 = vmatpush1.msra.mxu0 0.0
        %1268 = vmatprep.subr.mxu0 0.0
        %1269 = vmatpush1.msra.mxu0 0.0
        %1270 = vmatprep.subr.mxu0 0.0
        %1271 = vmatpush1.msra.mxu0 0.0
        %1272 = vmatprep.subr.mxu0 0.0
        %1273 = vmatpush1.msra.mxu0 0.0
        %1274 = vmatprep.subr.mxu0 0.0
        %1275 = vmatpush1.msra.mxu0 0.0
        %1276 = vmatprep.subr.mxu0 0.0
        %1277 = vmatpush1.msra.mxu0 0.0
        %1278 = vmatprep.subr.mxu0 0.0
        %1279 = vmatpush1.msra.mxu0 0.0
        %1280 = vmatprep.subr.mxu0 0.0
        %1281 = vmatpush1.msra.mxu0 0.0
        %1282 = vmatprep.subr.mxu0 0.0
        %1283 = vmatpush1.msra.mxu0 0.0
        %1284 = vmatprep.subr.mxu0 0.0
        %1285 = vmatpush1.msra.mxu0 0.0
        %1286 = vmatprep.subr.mxu0 0.0
        %1287 = vmatpush1.msra.mxu0 0.0
        %1288 = vmatprep.subr.mxu0 0.0
        %1289 = vmatpush1.msra.mxu0 0.0
        %1290 = vmatprep.subr.mxu0 0.0
        %1291 = vmatpush1.msra.mxu0 0.0
        %1292 = vmatprep.subr.mxu0 0.0
        %1293 = vmatpush1.msra.mxu0 0.0
        %1294 = vmatprep.subr.mxu0 0.0
        %1295 = vmatpush1.msra.mxu0 0.0
        %1296 = vmatprep.subr.mxu0 0.0
        %1297 = vmatpush1.msra.mxu0 0.0
        %1298 = vmatprep.subr.mxu0 0.0
        %1299 = vmatpush1.msra.mxu0 0.0
        %1300 = vmatprep.subr.mxu0 0.0
        %1301 = vmatpush1.msra.mxu0 0.0
        %1302 = vmatprep.subr.mxu0 0.0
        %1303 = vmatpush1.msra.mxu0 0.0
        %1304 = vmatprep.subr.mxu0 0.0
        %1305 = vmatpush1.msra.mxu0 0.0
        %1306 = vmatprep.subr.mxu0 0.0
        %1307 = vmatpush1.msra.mxu0 0.0
        %1308 = vmatprep.subr.mxu0 0.0
        %1309 = vmatpush1.msra.mxu0 0.0
        %1310 = vmatprep.subr.mxu0 0.0
        %1311 = vmatpush1.msra.mxu0 0.0
        %1312 = vmatprep.subr.mxu0 0.0
        %1313 = vmatpush1.msra.mxu0 0.0
        %1314 = vmatprep.subr.mxu0 0.0
        %1315 = vmatpush1.msra.mxu0 0.0
        %1316 = vmatprep.subr.mxu0 0.0
        %1317 = vmatpush1.msra.mxu0 0.0
        %1318 = vmatprep.subr.mxu0 0.0
        %1319 = vmatpush1.msra.mxu0 0.0
        %1320 = vmatprep.subr.mxu0 0.0
        %1321 = vmatpush1.msra.mxu0 0.0
        %1322 = vmatprep.subr.mxu0 0.0
        %1323 = vmatpush1.msra.mxu0 0.0
        %1324 = vmatprep.subr.mxu0 0.0
        %1325 = vmatpush1.msra.mxu0 0.0
        %1326 = vmatprep.subr.mxu0 0.0
        %1327 = vmatpush1.msra.mxu0 0.0
        %1328 = vmatprep.mubr.f32.mxu0 0.0
        %1329 = vmatmul.mubr.f32.gmra.mrb[0].mxu0 %v1258
        %v1330 = vpop.f32.mrb[0].mxu0
        %v1331 = vadd.f32 0.0, %v1330
        %v1332 = vpop.f32.mrb[0].mxu0
        %1333 = vmatprep.mubr.f32.mxu0 0.0
        %1334 = vmatmul.mubr.f32.gmra.mrb[0].mxu0 %v1260
        %v1335 = vpop.f32.mrb[0].mxu0
        %v1336 = vadd.f32 0.0, %v1335
        %v1337 = vpop.f32.mrb[0].mxu0
        %1338 = vmatprep.mubr.f32.mxu0 0.0
        %1339 = vmatmul.mubr.f32.gmra.mrb[0].mxu0 %v1262
        %v1340 = vpop.f32.mrb[0].mxu0
        %v1341 = vadd.f32 0.0, %v1340
        %v1342 = vpop.f32.mrb[0].mxu0
        %1343 = vdwg.mxu0
        %s1344 = scalar_lea.vmem %s7, 16
        %v1345 = vld [vmem:[%s1344] sm:$0xff]
        %1346 = vrot.lane.b32.xlu0 %v917, 104
        %v1347 = vpop.permute.xlu0 %1346
        %1348 = vrot.lane.b32.xlu0 %v917, 96
        %v1349 = vpop.permute.xlu0 %1348
        %1350 = vrot.lane.b32.xlu0 %v917, 88
        %v1351 = vpop.permute.xlu0 %1350
        %1352 = vrot.lane.b32.xlu0 %v917, 80
        %v1353 = vpop.permute.xlu0 %1352
        %1354 = vrot.lane.b32.xlu0 %v917, 72
        %v1355 = vpop.permute.xlu0 %1354
        %1356 = vrot.lane.b32.xlu0 %v917, 64
        %v1357 = vpop.permute.xlu0 %1356
        %1358 = vrot.lane.b32.xlu0 %v1155, 96
        %v1359 = vpop.permute.xlu0 %1358
        %1360 = vrot.lane.b32.xlu0 %v1157, 96
        %v1361 = vpop.permute.xlu0 %1360
        %1362 = vrot.lane.b32.xlu0 %v1347, 96
        %v1363 = vpop.permute.xlu0 %1362
        %1364 = vrot.lane.b32.xlu0 %v1349, 96
        %v1365 = vpop.permute.xlu0 %1364
        %1366 = vrot.lane.b32.xlu0 %v1351, 96
        %v1367 = vpop.permute.xlu0 %1366
        %1368 = vrot.lane.b32.xlu0 %v1353, 96
        %v1369 = vpop.permute.xlu0 %1368
        %1370 = vrot.lane.b32.xlu0 %v1355, 96
        %v1371 = vpop.permute.xlu0 %1370
        %1372 = vrot.lane.b32.xlu0 %v1357, 96
        %v1373 = vpop.permute.xlu0 %1372
        %v1374 = vsel %vm846, %v1349, 0
        %v1376 = vsel %vm846, %v1359, 0
        %v1378 = vsel %vm846, %v1361, 0
        %v1380 = vsel %vm846, %v1363, 0
        %v1382 = vsel %vm846, %v1365, 0
        %v1384 = vsel %vm846, %v1367, 0
        %v1386 = vsel %vm846, %v1369, 0
        %v1388 = vsel %vm846, %v1371, 0
        %v1390 = vsel %vm846, %v1373, 0
        %1392 = vmatprep.subr.mxu0 0.0
        %1393 = vmatpush1.msra.mxu0 %v1345
        %1394 = vmatprep.subr.mxu0 0.0
        %1395 = vmatpush1.msra.mxu0 0.0
        %1396 = vmatprep.subr.mxu0 0.0
        %1397 = vmatpush1.msra.mxu0 0.0
        %1398 = vmatprep.subr.mxu0 0.0
        %1399 = vmatpush1.msra.mxu0 0.0
        %1400 = vmatprep.subr.mxu0 0.0
        %1401 = vmatpush1.msra.mxu0 0.0
        %1402 = vmatprep.subr.mxu0 0.0
        %1403 = vmatpush1.msra.mxu0 0.0
        %1404 = vmatprep.subr.mxu0 0.0
        %1405 = vmatpush1.msra.mxu0 0.0
        %1406 = vmatprep.subr.mxu0 0.0
        %1407 = vmatpush1.msra.mxu0 0.0
        %1408 = vmatprep.subr.mxu0 0.0
        %1409 = vmatpush1.msra.mxu0 0.0
        %1410 = vmatprep.subr.mxu0 0.0
        %1411 = vmatpush1.msra.mxu0 0.0
        %1412 = vmatprep.subr.mxu0 0.0
        %1413 = vmatpush1.msra.mxu0 0.0
        %1414 = vmatprep.subr.mxu0 0.0
        %1415 = vmatpush1.msra.mxu0 0.0
        %1416 = vmatprep.subr.mxu0 0.0
        %1417 = vmatpush1.msra.mxu0 0.0
        %1418 = vmatprep.subr.mxu0 0.0
        %1419 = vmatpush1.msra.mxu0 0.0
        %1420 = vmatprep.subr.mxu0 0.0
        %1421 = vmatpush1.msra.mxu0 0.0
        %1422 = vmatprep.subr.mxu0 0.0
        %1423 = vmatpush1.msra.mxu0 0.0
        %1424 = vmatprep.subr.mxu0 0.0
        %1425 = vmatpush1.msra.mxu0 0.0
        %1426 = vmatprep.subr.mxu0 0.0
        %1427 = vmatpush1.msra.mxu0 0.0
        %1428 = vmatprep.subr.mxu0 0.0
        %1429 = vmatpush1.msra.mxu0 0.0
        %1430 = vmatprep.subr.mxu0 0.0
        %1431 = vmatpush1.msra.mxu0 0.0
        %1432 = vmatprep.subr.mxu0 0.0
        %1433 = vmatpush1.msra.mxu0 0.0
        %1434 = vmatprep.subr.mxu0 0.0
        %1435 = vmatpush1.msra.mxu0 0.0
        %1436 = vmatprep.subr.mxu0 0.0
        %1437 = vmatpush1.msra.mxu0 0.0
        %1438 = vmatprep.subr.mxu0 0.0
        %1439 = vmatpush1.msra.mxu0 0.0
        %1440 = vmatprep.subr.mxu0 0.0
        %1441 = vmatpush1.msra.mxu0 0.0
        %1442 = vmatprep.subr.mxu0 0.0
        %1443 = vmatpush1.msra.mxu0 0.0
        %1444 = vmatprep.subr.mxu0 0.0
        %1445 = vmatpush1.msra.mxu0 0.0
        %1446 = vmatprep.subr.mxu0 0.0
        %1447 = vmatpush1.msra.mxu0 0.0
        %1448 = vmatprep.subr.mxu0 0.0
        %1449 = vmatpush1.msra.mxu0 0.0
        %1450 = vmatprep.subr.mxu0 0.0
        %1451 = vmatpush1.msra.mxu0 0.0
        %1452 = vmatprep.subr.mxu0 0.0
        %1453 = vmatpush1.msra.mxu0 0.0
        %1454 = vmatprep.subr.mxu0 0.0
        %1455 = vmatpush1.msra.mxu0 0.0
        %1456 = vmatprep.mubr.f32.mxu0 0.0
        %1457 = vmatmul.mubr.f32.gmra.mrb[0].mxu0 %v1374
        %v1458 = vpop.f32.mrb[0].mxu0
        %v1459 = vadd.f32 0.0, %v1458
        %v1460 = vpop.f32.mrb[0].mxu0
        %1461 = vmatprep.mubr.f32.mxu0 0.0
        %1462 = vmatmul.mubr.f32.gmra.mrb[0].mxu0 %v1376
        %v1463 = vpop.f32.mrb[0].mxu0
        %v1464 = vadd.f32 0.0, %v1463
        %v1465 = vpop.f32.mrb[0].mxu0
        %1466 = vmatprep.mubr.f32.mxu0 0.0
        %1467 = vmatmul.mubr.f32.gmra.mrb[0].mxu0 %v1378
        %v1468 = vpop.f32.mrb[0].mxu0
        %v1469 = vadd.f32 0.0, %v1468
        %v1470 = vpop.f32.mrb[0].mxu0
        %1471 = vmatprep.mubr.f32.mxu0 0.0
        %1472 = vmatmul.mubr.f32.gmra.mrb[0].mxu0 %v1380
        %v1473 = vpop.f32.mrb[0].mxu0
        %v1474 = vadd.f32 0.0, %v1473
        %v1475 = vpop.f32.mrb[0].mxu0
        %1476 = vmatprep.mubr.f32.mxu0 0.0
        %1477 = vmatmul.mubr.f32.gmra.mrb[0].mxu0 %v1382
        %v1478 = vpop.f32.mrb[0].mxu0
        %v1479 = vadd.f32 0.0, %v1478
        %v1480 = vpop.f32.mrb[0].mxu0
        %1481 = vmatprep.mubr.f32.mxu0 0.0
        %1482 = vmatmul.mubr.f32.gmra.mrb[0].mxu0 %v1384
        %v1483 = vpop.f32.mrb[0].mxu0
        %v1484 = vadd.f32 0.0, %v1483
        %v1485 = vpop.f32.mrb[0].mxu0
        %1486 = vmatprep.mubr.f32.mxu0 0.0
        %1487 = vmatmul.mubr.f32.gmra.mrb[0].mxu0 %v1386
        %v1488 = vpop.f32.mrb[0].mxu0
        %v1489 = vadd.f32 0.0, %v1488
        %v1490 = vpop.f32.mrb[0].mxu0
        %1491 = vmatprep.mubr.f32.mxu0 0.0
        %1492 = vmatmul.mubr.f32.gmra.mrb[0].mxu0 %v1388
        %v1493 = vpop.f32.mrb[0].mxu0
        %v1494 = vadd.f32 0.0, %v1493
        %v1495 = vpop.f32.mrb[0].mxu0
        %1496 = vmatprep.mubr.f32.mxu0 0.0
        %1497 = vmatmul.mubr.f32.gmra.mrb[0].mxu0 %v1390
        %v1498 = vpop.f32.mrb[0].mxu0
        %v1499 = vadd.f32 0.0, %v1498
        %v1500 = vpop.f32.mrb[0].mxu0
        %1501 = vdwg.mxu0
        %s1502 = scalar_lea.vmem [#allocation9], 16
        %v1503 = vld [vmem:[%s1502] sm:$0xff]
        %1504 = vrot.lane.b32.xlu0 %v990, 104
        %v1505 = vpop.permute.xlu0 %1504
        %1506 = vrot.lane.b32.xlu0 %v990, 96
        %v1507 = vpop.permute.xlu0 %1506
        %1508 = vrot.lane.b32.xlu0 %v990, 88
        %v1509 = vpop.permute.xlu0 %1508
        %1510 = vrot.lane.b32.xlu0 %v990, 80
        %v1511 = vpop.permute.xlu0 %1510
        %1512 = vrot.lane.b32.xlu0 %v990, 72
        %v1513 = vpop.permute.xlu0 %1512
        %1514 = vrot.lane.b32.xlu0 %v990, 64
        %v1515 = vpop.permute.xlu0 %1514
        %1516 = vrot.lane.b32.xlu0 %v1251, 96
        %v1517 = vpop.permute.xlu0 %1516
        %1518 = vrot.lane.b32.xlu0 %v1253, 96
        %v1519 = vpop.permute.xlu0 %1518
        %1520 = vrot.lane.b32.xlu0 %v1505, 96
        %v1521 = vpop.permute.xlu0 %1520
        %1522 = vrot.lane.b32.xlu0 %v1507, 96
        %v1523 = vpop.permute.xlu0 %1522
        %1524 = vrot.lane.b32.xlu0 %v1509, 96
        %v1525 = vpop.permute.xlu0 %1524
        %1526 = vrot.lane.b32.xlu0 %v1511, 96
        %v1527 = vpop.permute.xlu0 %1526
        %1528 = vrot.lane.b32.xlu0 %v1513, 96
        %v1529 = vpop.permute.xlu0 %1528
        %1530 = vrot.lane.b32.xlu0 %v1515, 96
        %v1531 = vpop.permute.xlu0 %1530
        %v1532 = vsel %vm846, %v1507, 0
        %v1534 = vsel %vm846, %v1517, 0
        %v1536 = vsel %vm846, %v1519, 0
        %v1538 = vsel %vm846, %v1521, 0
        %v1540 = vsel %vm846, %v1523, 0
        %v1542 = vsel %vm846, %v1525, 0
        %v1544 = vsel %vm846, %v1527, 0
        %v1546 = vsel %vm846, %v1529, 0
        %v1548 = vsel %vm846, %v1531, 0
        %1550 = vmatprep.subr.mxu0 0.0
        %1551 = vmatpush1.msra.mxu0 %v1503
        %1552 = vmatprep.subr.mxu0 0.0
        %1553 = vmatpush1.msra.mxu0 0.0
        %1554 = vmatprep.subr.mxu0 0.0
        %1555 = vmatpush1.msra.mxu0 0.0
        %1556 = vmatprep.subr.mxu0 0.0
        %1557 = vmatpush1.msra.mxu0 0.0
        %1558 = vmatprep.subr.mxu0 0.0
        %1559 = vmatpush1.msra.mxu0 0.0
        %1560 = vmatprep.subr.mxu0 0.0
        %1561 = vmatpush1.msra.mxu0 0.0
        %1562 = vmatprep.subr.mxu0 0.0
        %1563 = vmatpush1.msra.mxu0 0.0
        %1564 = vmatprep.subr.mxu0 0.0
        %1565 = vmatpush1.msra.mxu0 0.0
        %1566 = vmatprep.subr.mxu0 0.0
        %1567 = vmatpush1.msra.mxu0 0.0
        %1568 = vmatprep.subr.mxu0 0.0
        %1569 = vmatpush1.msra.mxu0 0.0
        %1570 = vmatprep.subr.mxu0 0.0
        %1571 = vmatpush1.msra.mxu0 0.0
        %1572 = vmatprep.subr.mxu0 0.0
        %1573 = vmatpush1.msra.mxu0 0.0
        %1574 = vmatprep.subr.mxu0 0.0
        %1575 = vmatpush1.msra.mxu0 0.0
        %1576 = vmatprep.subr.mxu0 0.0
        %1577 = vmatpush1.msra.mxu0 0.0
        %1578 = vmatprep.subr.mxu0 0.0
        %1579 = vmatpush1.msra.mxu0 0.0
        %1580 = vmatprep.subr.mxu0 0.0
        %1581 = vmatpush1.msra.mxu0 0.0
        %1582 = vmatprep.subr.mxu0 0.0
        %1583 = vmatpush1.msra.mxu0 0.0
        %1584 = vmatprep.subr.mxu0 0.0
        %1585 = vmatpush1.msra.mxu0 0.0
        %1586 = vmatprep.subr.mxu0 0.0
        %1587 = vmatpush1.msra.mxu0 0.0
        %1588 = vmatprep.subr.mxu0 0.0
        %1589 = vmatpush1.msra.mxu0 0.0
        %1590 = vmatprep.subr.mxu0 0.0
        %1591 = vmatpush1.msra.mxu0 0.0
        %1592 = vmatprep.subr.mxu0 0.0
        %1593 = vmatpush1.msra.mxu0 0.0
        %1594 = vmatprep.subr.mxu0 0.0
        %1595 = vmatpush1.msra.mxu0 0.0
        %1596 = vmatprep.subr.mxu0 0.0
        %1597 = vmatpush1.msra.mxu0 0.0
        %1598 = vmatprep.subr.mxu0 0.0
        %1599 = vmatpush1.msra.mxu0 0.0
        %1600 = vmatprep.subr.mxu0 0.0
        %1601 = vmatpush1.msra.mxu0 0.0
        %1602 = vmatprep.subr.mxu0 0.0
        %1603 = vmatpush1.msra.mxu0 0.0
        %1604 = vmatprep.subr.mxu0 0.0
        %1605 = vmatpush1.msra.mxu0 0.0
        %1606 = vmatprep.subr.mxu0 0.0
        %1607 = vmatpush1.msra.mxu0 0.0
        %1608 = vmatprep.subr.mxu0 0.0
        %1609 = vmatpush1.msra.mxu0 0.0
        %1610 = vmatprep.subr.mxu0 0.0
        %1611 = vmatpush1.msra.mxu0 0.0
        %1612 = vmatprep.subr.mxu0 0.0
        %1613 = vmatpush1.msra.mxu0 0.0
        %1614 = vmatprep.mubr.f32.mxu0 0.0
        %1615 = vmatmul.mubr.f32.gmra.mrb[0].mxu0 %v1532
        %v1616 = vpop.f32.mrb[0].mxu0
        %v1617 = vadd.f32 0.0, %v1616
        %v1618 = vpop.f32.mrb[0].mxu0
        %1619 = vmatprep.mubr.f32.mxu0 0.0
        %1620 = vmatmul.mubr.f32.gmra.mrb[0].mxu0 %v1534
        %v1621 = vpop.f32.mrb[0].mxu0
        %v1622 = vadd.f32 0.0, %v1621
        %v1623 = vpop.f32.mrb[0].mxu0
        %1624 = vmatprep.mubr.f32.mxu0 0.0
        %1625 = vmatmul.mubr.f32.gmra.mrb[0].mxu0 %v1536
        %v1626 = vpop.f32.mrb[0].mxu0
        %v1627 = vadd.f32 0.0, %v1626
        %v1628 = vpop.f32.mrb[0].mxu0
        %1629 = vmatprep.mubr.f32.mxu0 0.0
        %1630 = vmatmul.mubr.f32.gmra.mrb[0].mxu0 %v1538
        %v1631 = vpop.f32.mrb[0].mxu0
        %v1632 = vadd.f32 0.0, %v1631
        %v1633 = vpop.f32.mrb[0].mxu0
        %1634 = vmatprep.mubr.f32.mxu0 0.0
        %1635 = vmatmul.mubr.f32.gmra.mrb[0].mxu0 %v1540
        %v1636 = vpop.f32.mrb[0].mxu0
        %v1637 = vadd.f32 0.0, %v1636
        %v1638 = vpop.f32.mrb[0].mxu0
        %1639 = vmatprep.mubr.f32.mxu0 0.0
        %1640 = vmatmul.mubr.f32.gmra.mrb[0].mxu0 %v1542
        %v1641 = vpop.f32.mrb[0].mxu0
        %v1642 = vadd.f32 0.0, %v1641
        %v1643 = vpop.f32.mrb[0].mxu0
        %1644 = vmatprep.mubr.f32.mxu0 0.0
        %1645 = vmatmul.mubr.f32.gmra.mrb[0].mxu0 %v1544
        %v1646 = vpop.f32.mrb[0].mxu0
        %v1647 = vadd.f32 0.0, %v1646
        %v1648 = vpop.f32.mrb[0].mxu0
        %1649 = vmatprep.mubr.f32.mxu0 0.0
        %1650 = vmatmul.mubr.f32.gmra.mrb[0].mxu0 %v1546
        %v1651 = vpop.f32.mrb[0].mxu0
        %v1652 = vadd.f32 0.0, %v1651
        %v1653 = vpop.f32.mrb[0].mxu0
        %1654 = vmatprep.mubr.f32.mxu0 0.0
        %1655 = vmatmul.mubr.f32.gmra.mrb[0].mxu0 %v1548
        %v1656 = vpop.f32.mrb[0].mxu0
        %v1657 = vadd.f32 0.0, %v1656
        %v1658 = vpop.f32.mrb[0].mxu0
        %1659 = vdwg.mxu0
        %v1660 = vmul.f32 %v1075, %v1149
        %v1661 = vmul.f32 %v1235, %v1331
        %v1662 = vmul.f32 %v1240, %v1336
        %v1663 = vadd.f32 %v1661, %v1662
        %v1664 = vmul.f32 %v1245, %v1341
        %v1665 = vadd.f32 %v1663, %v1664
        %v1666 = vmul.f32 %v1459, %v1617
        %v1667 = vmul.f32 %v1464, %v1622
        %v1668 = vadd.f32 %v1666, %v1667
        %v1669 = vmul.f32 %v1469, %v1627
        %v1670 = vadd.f32 %v1668, %v1669
        %v1671 = vmul.f32 %v1474, %v1632
        %v1672 = vadd.f32 %v1670, %v1671
        %v1673 = vmul.f32 %v1479, %v1637
        %v1674 = vadd.f32 %v1672, %v1673
        %v1675 = vmul.f32 %v1484, %v1642
        %v1676 = vadd.f32 %v1674, %v1675
        %v1677 = vmul.f32 %v1489, %v1647
        %v1678 = vadd.f32 %v1676, %v1677
        %v1679 = vmul.f32 %v1494, %v1652
        %v1680 = vadd.f32 %v1678, %v1679
        %v1681 = vmul.f32 %v1499, %v1657
        %v1682 = vadd.f32 %v1680, %v1681
        %1683 = vset.pattern.permute.xlu0 0
        %1684 = vperm.xlu0 %1683, %v993
        %v1685 = vpop.permute.xlu0 %1684
        %v1687 = vmul.f32 %v1685, %v1149
        %1688 = vset.pattern.permute.xlu0 1
        %1689 = vperm.xlu0 %1688, %v993
        %v1690 = vpop.permute.xlu0 %1689
        %v1692 = vmul.f32 %v1690, %v1149
        %1693 = vset.pattern.permute.xlu0 2
        %1694 = vperm.xlu0 %1693, %v993
        %v1695 = vpop.permute.xlu0 %1694
        %v1697 = vmul.f32 %v1695, %v1149
        %v1698 = vadd.f32 %v1331, %v1687
        %v1699 = vadd.f32 %v1336, %v1692
        %v1700 = vadd.f32 %v1341, %v1697
        %v1701 = vmul.f32 %v1685, %v1331
        %v1702 = vmul.f32 %v1690, %v1336
        %v1703 = vadd.f32 %v1701, %v1702
        %v1704 = vmul.f32 %v1695, %v1341
        %v1705 = vadd.f32 %v1703, %v1704
        %v1706 = vadd.f32 %v1149, %v1705
        %v1707 = vmul.f32 %v1685, %v1336
        %v1708 = vmul.f32 %v1685, %v1341
        %v1709 = vmul.f32 %v1690, %v1331
        %v1710 = vmul.f32 %v1690, %v1341
        %v1711 = vmul.f32 %v1695, %v1331
        %v1712 = vmul.f32 %v1695, %v1336
        %v1713 = vadd.f32 %v1617, %v1701
        %v1714 = vadd.f32 %v1622, %v1707
        %v1715 = vadd.f32 %v1627, %v1708
        %v1716 = vadd.f32 %v1632, %v1709
        %v1717 = vadd.f32 %v1637, %v1702
        %v1718 = vadd.f32 %v1642, %v1710
        %v1719 = vadd.f32 %v1647, %v1711
        %v1720 = vadd.f32 %v1652, %v1712
        %v1721 = vadd.f32 %v1657, %v1704
        %v1722 = vmul.f32 %v1685, %v1617
        %v1723 = vmul.f32 %v1690, %v1632
        %v1724 = vadd.f32 %v1722, %v1723
        %v1725 = vmul.f32 %v1695, %v1647
        %v1726 = vadd.f32 %v1724, %v1725
        %v1727 = vmul.f32 %v1685, %v1622
        %v1728 = vmul.f32 %v1690, %v1637
        %v1729 = vadd.f32 %v1727, %v1728
        %v1730 = vmul.f32 %v1695, %v1652
        %v1731 = vadd.f32 %v1729, %v1730
        %v1732 = vmul.f32 %v1685, %v1627
        %v1733 = vmul.f32 %v1690, %v1642
        %v1734 = vadd.f32 %v1732, %v1733
        %v1735 = vmul.f32 %v1695, %v1657
        %v1736 = vadd.f32 %v1734, %v1735
        %v1737 = vadd.f32 %v1698, %v1726
        %v1738 = vadd.f32 %v1699, %v1731
        %v1739 = vadd.f32 %v1700, %v1736
        %1741 = vset.pattern.permute.xlu0 0
        %1742 = vperm.xlu0 %1741, %v994
        %v1743 = vpop.permute.xlu0 %1742
        %v1745 = vmul.f32 %v1743, %v1149
        %1747 = vset.pattern.permute.xlu0 0
        %1748 = vperm.xlu0 %1747, %v999
        %v1749 = vpop.permute.xlu0 %1748
        %v1751 = vmul.f32 %v1749, %v1149
        %1753 = vset.pattern.permute.xlu0 0
        %1754 = vperm.xlu0 %1753, %v1003
        %v1755 = vpop.permute.xlu0 %1754
        %v1757 = vmul.f32 %v1755, %v1149
        %1758 = vset.pattern.permute.xlu0 1
        %1759 = vperm.xlu0 %1758, %v994
        %v1760 = vpop.permute.xlu0 %1759
        %v1762 = vmul.f32 %v1760, %v1149
        %1763 = vset.pattern.permute.xlu0 1
        %1764 = vperm.xlu0 %1763, %v999
        %v1765 = vpop.permute.xlu0 %1764
        %v1767 = vmul.f32 %v1765, %v1149
        %1768 = vset.pattern.permute.xlu0 2
        %1769 = vperm.xlu0 %1768, %v994
        %v1770 = vpop.permute.xlu0 %1769
        %v1772 = vmul.f32 %v1770, %v1149
        %v1773 = vadd.f32 %v1713, %v1745
        %v1774 = vadd.f32 %v1714, %v1751
        %v1775 = vadd.f32 %v1715, %v1757
        %v1776 = vadd.f32 %v1716, %v1751
        %v1777 = vadd.f32 %v1717, %v1762
        %v1778 = vadd.f32 %v1718, %v1767
        %v1779 = vadd.f32 %v1719, %v1757
        %v1780 = vadd.f32 %v1720, %v1767
        %v1781 = vadd.f32 %v1721, %v1772
        %v1782 = vmul.f32 %v1743, %v1331
        %v1783 = vmul.f32 %v1749, %v1336
        %v1784 = vadd.f32 %v1782, %v1783
        %v1785 = vmul.f32 %v1755, %v1341
        %v1786 = vadd.f32 %v1784, %v1785
        %v1787 = vmul.f32 %v1749, %v1331
        %v1788 = vmul.f32 %v1760, %v1336
        %v1789 = vadd.f32 %v1787, %v1788
        %v1790 = vmul.f32 %v1765, %v1341
        %v1791 = vadd.f32 %v1789, %v1790
        %v1792 = vmul.f32 %v1755, %v1331
        %v1793 = vmul.f32 %v1765, %v1336
        %v1794 = vadd.f32 %v1792, %v1793
        %v1795 = vmul.f32 %v1770, %v1341
        %v1796 = vadd.f32 %v1794, %v1795
        %v1797 = vadd.f32 %v1737, %v1786
        %v1798 = vadd.f32 %v1738, %v1791
        %v1799 = vadd.f32 %v1739, %v1796
        %v1800 = vmul.f32 %v1743, %v1617
        %v1801 = vmul.f32 %v1749, %v1622
        %v1802 = vadd.f32 %v1800, %v1801
        %v1803 = vmul.f32 %v1755, %v1627
        %v1804 = vadd.f32 %v1802, %v1803
        %v1805 = vmul.f32 %v1749, %v1632
        %v1806 = vadd.f32 %v1804, %v1805
        %v1807 = vmul.f32 %v1760, %v1637
        %v1808 = vadd.f32 %v1806, %v1807
        %v1809 = vmul.f32 %v1765, %v1642
        %v1810 = vadd.f32 %v1808, %v1809
        %v1811 = vmul.f32 %v1755, %v1647
        %v1812 = vadd.f32 %v1810, %v1811
        %v1813 = vmul.f32 %v1765, %v1652
        %v1814 = vadd.f32 %v1812, %v1813
        %v1815 = vmul.f32 %v1770, %v1657
        %v1816 = vadd.f32 %v1814, %v1815
        %v1817 = vadd.f32 %v1706, %v1816
        %v1818 = vadd.f32 %v1800, %v1805
        %v1819 = vadd.f32 %v1818, %v1811
        %v1820 = vmul.f32 %v1743, %v1622
        %v1821 = vmul.f32 %v1749, %v1637
        %v1822 = vadd.f32 %v1820, %v1821
        %v1823 = vmul.f32 %v1755, %v1652
        %v1824 = vadd.f32 %v1822, %v1823
        %v1825 = vmul.f32 %v1743, %v1627
        %v1826 = vmul.f32 %v1749, %v1642
        %v1827 = vadd.f32 %v1825, %v1826
        %v1828 = vmul.f32 %v1755, %v1657
        %v1829 = vadd.f32 %v1827, %v1828
        %v1830 = vmul.f32 %v1749, %v1617
        %v1831 = vmul.f32 %v1760, %v1632
        %v1832 = vadd.f32 %v1830, %v1831
        %v1833 = vmul.f32 %v1765, %v1647
        %v1834 = vadd.f32 %v1832, %v1833
        %v1835 = vadd.f32 %v1801, %v1807
        %v1836 = vadd.f32 %v1835, %v1813
        %v1837 = vmul.f32 %v1749, %v1627
        %v1838 = vmul.f32 %v1760, %v1642
        %v1839 = vadd.f32 %v1837, %v1838
        %v1840 = vmul.f32 %v1765, %v1657
        %v1841 = vadd.f32 %v1839, %v1840
        %v1842 = vmul.f32 %v1755, %v1617
        %v1843 = vmul.f32 %v1765, %v1632
        %v1844 = vadd.f32 %v1842, %v1843
        %v1845 = vmul.f32 %v1770, %v1647
        %v1846 = vadd.f32 %v1844, %v1845
        %v1847 = vmul.f32 %v1755, %v1622
        %v1848 = vmul.f32 %v1765, %v1637
        %v1849 = vadd.f32 %v1847, %v1848
        %v1850 = vmul.f32 %v1770, %v1652
        %v1851 = vadd.f32 %v1849, %v1850
        %v1852 = vadd.f32 %v1803, %v1809
        %v1853 = vadd.f32 %v1852, %v1815
        %v1854 = vadd.f32 %v1773, %v1819
        %v1855 = vadd.f32 %v1774, %v1824
        %v1856 = vadd.f32 %v1775, %v1829
        %v1857 = vadd.f32 %v1776, %v1834
        %v1858 = vadd.f32 %v1777, %v1836
        %v1859 = vadd.f32 %v1778, %v1841
        %v1860 = vadd.f32 %v1779, %v1846
        %v1861 = vadd.f32 %v1780, %v1851
        %v1862 = vadd.f32 %v1781, %v1853
        %v1863 = vld [vmem:[#allocation10] sm:$0xff]
        %1865 = vrot.lane.b32.xlu0 %v1817, 120
        %v1866 = vpop.permute.xlu0 %1865
        %v1867 = vsel %vm846, %v1866, 0
        %1869 = vmatprep.subr.mxu0 0.0
        %1870 = vmatpush1.msra.mxu0 %v1863
        %1871 = vmatprep.subr.mxu0 0.0
        %1872 = vmatpush1.msra.mxu0 0.0
        %1873 = vmatprep.subr.mxu0 0.0
        %1874 = vmatpush1.msra.mxu0 0.0
        %1875 = vmatprep.subr.mxu0 0.0
        %1876 = vmatpush1.msra.mxu0 0.0
        %1877 = vmatprep.subr.mxu0 0.0
        %1878 = vmatpush1.msra.mxu0 0.0
        %1879 = vmatprep.subr.mxu0 0.0
        %1880 = vmatpush1.msra.mxu0 0.0
        %1881 = vmatprep.subr.mxu0 0.0
        %1882 = vmatpush1.msra.mxu0 0.0
        %1883 = vmatprep.subr.mxu0 0.0
        %1884 = vmatpush1.msra.mxu0 0.0
        %1885 = vmatprep.subr.mxu0 0.0
        %1886 = vmatpush1.msra.mxu0 0.0
        %1887 = vmatprep.subr.mxu0 0.0
        %1888 = vmatpush1.msra.mxu0 0.0
        %1889 = vmatprep.subr.mxu0 0.0
        %1890 = vmatpush1.msra.mxu0 0.0
        %1891 = vmatprep.subr.mxu0 0.0
        %1892 = vmatpush1.msra.mxu0 0.0
        %1893 = vmatprep.subr.mxu0 0.0
        %1894 = vmatpush1.msra.mxu0 0.0
        %1895 = vmatprep.subr.mxu0 0.0
        %1896 = vmatpush1.msra.mxu0 0.0
        %1897 = vmatprep.subr.mxu0 0.0
        %1898 = vmatpush1.msra.mxu0 0.0
        %1899 = vmatprep.subr.mxu0 0.0
        %1900 = vmatpush1.msra.mxu0 0.0
        %1901 = vmatprep.subr.mxu0 0.0
        %1902 = vmatpush1.msra.mxu0 0.0
        %1903 = vmatprep.subr.mxu0 0.0
        %1904 = vmatpush1.msra.mxu0 0.0
        %1905 = vmatprep.subr.mxu0 0.0
        %1906 = vmatpush1.msra.mxu0 0.0
        %1907 = vmatprep.subr.mxu0 0.0
        %1908 = vmatpush1.msra.mxu0 0.0
        %1909 = vmatprep.subr.mxu0 0.0
        %1910 = vmatpush1.msra.mxu0 0.0
        %1911 = vmatprep.subr.mxu0 0.0
        %1912 = vmatpush1.msra.mxu0 0.0
        %1913 = vmatprep.subr.mxu0 0.0
        %1914 = vmatpush1.msra.mxu0 0.0
        %1915 = vmatprep.subr.mxu0 0.0
        %1916 = vmatpush1.msra.mxu0 0.0
        %1917 = vmatprep.subr.mxu0 0.0
        %1918 = vmatpush1.msra.mxu0 0.0
        %1919 = vmatprep.subr.mxu0 0.0
        %1920 = vmatpush1.msra.mxu0 0.0
        %1921 = vmatprep.subr.mxu0 0.0
        %1922 = vmatpush1.msra.mxu0 0.0
        %1923 = vmatprep.subr.mxu0 0.0
        %1924 = vmatpush1.msra.mxu0 0.0
        %1925 = vmatprep.subr.mxu0 0.0
        %1926 = vmatpush1.msra.mxu0 0.0
        %1927 = vmatprep.subr.mxu0 0.0
        %1928 = vmatpush1.msra.mxu0 0.0
        %1929 = vmatprep.subr.mxu0 0.0
        %1930 = vmatpush1.msra.mxu0 0.0
        %1931 = vmatprep.subr.mxu0 0.0
        %1932 = vmatpush1.msra.mxu0 0.0
        %1933 = vmatprep.mubr.f32.mxu0 0.0
        %1934 = vmatmul.mubr.f32.gmra.mrb[0].mxu0 %v1867
        %v1935 = vpop.f32.mrb[0].mxu0
        %v1936 = vadd.f32 0.0, %v1935
        %v1937 = vpop.f32.mrb[0].mxu0
        %1938 = vdwg.mxu0
        %s1939 = scalar_lea.vmem [#allocation10], 8
        %v1940 = vld [vmem:[%s1939] sm:$0xff]
        %1944 = vrot.lane.b32.xlu0 %v1797, 120
        %v1945 = vpop.permute.xlu0 %1944
        %1946 = vrot.lane.b32.xlu0 %v1798, 120
        %v1947 = vpop.permute.xlu0 %1946
        %1948 = vrot.lane.b32.xlu0 %v1799, 120
        %v1949 = vpop.permute.xlu0 %1948
        %v1950 = vsel %vm846, %v1945, 0
        %v1952 = vsel %vm846, %v1947, 0
        %v1954 = vsel %vm846, %v1949, 0
        %1956 = vmatprep.subr.mxu0 0.0
        %1957 = vmatpush1.msra.mxu0 %v1940
        %1958 = vmatprep.subr.mxu0 0.0
        %1959 = vmatpush1.msra.mxu0 0.0
        %1960 = vmatprep.subr.mxu0 0.0
        %1961 = vmatpush1.msra.mxu0 0.0
        %1962 = vmatprep.subr.mxu0 0.0
        %1963 = vmatpush1.msra.mxu0 0.0
        %1964 = vmatprep.subr.mxu0 0.0
        %1965 = vmatpush1.msra.mxu0 0.0
        %1966 = vmatprep.subr.mxu0 0.0
        %1967 = vmatpush1.msra.mxu0 0.0
        %1968 = vmatprep.subr.mxu0 0.0
        %1969 = vmatpush1.msra.mxu0 0.0
        %1970 = vmatprep.subr.mxu0 0.0
        %1971 = vmatpush1.msra.mxu0 0.0
        %1972 = vmatprep.subr.mxu0 0.0
        %1973 = vmatpush1.msra.mxu0 0.0
        %1974 = vmatprep.subr.mxu0 0.0
        %1975 = vmatpush1.msra.mxu0 0.0
        %1976 = vmatprep.subr.mxu0 0.0
        %1977 = vmatpush1.msra.mxu0 0.0
        %1978 = vmatprep.subr.mxu0 0.0
        %1979 = vmatpush1.msra.mxu0 0.0
        %1980 = vmatprep.subr.mxu0 0.0
        %1981 = vmatpush1.msra.mxu0 0.0
        %1982 = vmatprep.subr.mxu0 0.0
        %1983 = vmatpush1.msra.mxu0 0.0
        %1984 = vmatprep.subr.mxu0 0.0
        %1985 = vmatpush1.msra.mxu0 0.0
        %1986 = vmatprep.subr.mxu0 0.0
        %1987 = vmatpush1.msra.mxu0 0.0
        %1988 = vmatprep.subr.mxu0 0.0
        %1989 = vmatpush1.msra.mxu0 0.0
        %1990 = vmatprep.subr.mxu0 0.0
        %1991 = vmatpush1.msra.mxu0 0.0
        %1992 = vmatprep.subr.mxu0 0.0
        %1993 = vmatpush1.msra.mxu0 0.0
        %1994 = vmatprep.subr.mxu0 0.0
        %1995 = vmatpush1.msra.mxu0 0.0
        %1996 = vmatprep.subr.mxu0 0.0
        %1997 = vmatpush1.msra.mxu0 0.0
        %1998 = vmatprep.subr.mxu0 0.0
        %1999 = vmatpush1.msra.mxu0 0.0
        %2000 = vmatprep.subr.mxu0 0.0
        %2001 = vmatpush1.msra.mxu0 0.0
        %2002 = vmatprep.subr.mxu0 0.0
        %2003 = vmatpush1.msra.mxu0 0.0
        %2004 = vmatprep.subr.mxu0 0.0
        %2005 = vmatpush1.msra.mxu0 0.0
        %2006 = vmatprep.subr.mxu0 0.0
        %2007 = vmatpush1.msra.mxu0 0.0
        %2008 = vmatprep.subr.mxu0 0.0
        %2009 = vmatpush1.msra.mxu0 0.0
        %2010 = vmatprep.subr.mxu0 0.0
        %2011 = vmatpush1.msra.mxu0 0.0
        %2012 = vmatprep.subr.mxu0 0.0
        %2013 = vmatpush1.msra.mxu0 0.0
        %2014 = vmatprep.subr.mxu0 0.0
        %2015 = vmatpush1.msra.mxu0 0.0
        %2016 = vmatprep.subr.mxu0 0.0
        %2017 = vmatpush1.msra.mxu0 0.0
        %2018 = vmatprep.subr.mxu0 0.0
        %2019 = vmatpush1.msra.mxu0 0.0
        %2020 = vmatprep.mubr.f32.mxu0 0.0
        %2021 = vmatmul.mubr.f32.gmra.mrb[0].mxu0 %v1950
        %v2022 = vpop.f32.mrb[0].mxu0
        %v2023 = vadd.f32 0.0, %v2022
        %v2024 = vpop.f32.mrb[0].mxu0
        %2025 = vmatprep.mubr.f32.mxu0 0.0
        %2026 = vmatmul.mubr.f32.gmra.mrb[0].mxu0 %v1952
        %v2027 = vpop.f32.mrb[0].mxu0
        %v2028 = vadd.f32 0.0, %v2027
        %v2029 = vpop.f32.mrb[0].mxu0
        %2030 = vmatprep.mubr.f32.mxu0 0.0
        %2031 = vmatmul.mubr.f32.gmra.mrb[0].mxu0 %v1954
        %v2032 = vpop.f32.mrb[0].mxu0
        %v2033 = vadd.f32 0.0, %v2032
        %v2034 = vpop.f32.mrb[0].mxu0
        %2035 = vdwg.mxu0
        %s2036 = scalar_lea.vmem [#allocation10], 16
        %v2037 = vld [vmem:[%s2036] sm:$0xff]
        %2047 = vrot.lane.b32.xlu0 %v1854, 120
        %v2048 = vpop.permute.xlu0 %2047
        %2049 = vrot.lane.b32.xlu0 %v1855, 120
        %v2050 = vpop.permute.xlu0 %2049
        %2051 = vrot.lane.b32.xlu0 %v1856, 120
        %v2052 = vpop.permute.xlu0 %2051
        %2053 = vrot.lane.b32.xlu0 %v1857, 120
        %v2054 = vpop.permute.xlu0 %2053
        %2055 = vrot.lane.b32.xlu0 %v1858, 120
        %v2056 = vpop.permute.xlu0 %2055
        %2057 = vrot.lane.b32.xlu0 %v1859, 120
        %v2058 = vpop.permute.xlu0 %2057
        %2059 = vrot.lane.b32.xlu0 %v1860, 120
        %v2060 = vpop.permute.xlu0 %2059
        %2061 = vrot.lane.b32.xlu0 %v1861, 120
        %v2062 = vpop.permute.xlu0 %2061
        %2063 = vrot.lane.b32.xlu0 %v1862, 120
        %v2064 = vpop.permute.xlu0 %2063
        %v2065 = vsel %vm846, %v2048, 0
        %v2067 = vsel %vm846, %v2050, 0
        %v2069 = vsel %vm846, %v2052, 0
        %v2071 = vsel %vm846, %v2054, 0
        %v2073 = vsel %vm846, %v2056, 0
        %v2075 = vsel %vm846, %v2058, 0
        %v2077 = vsel %vm846, %v2060, 0
        %v2079 = vsel %vm846, %v2062, 0
        %v2081 = vsel %vm846, %v2064, 0
        %2083 = vmatprep.subr.mxu0 0.0
        %2084 = vmatpush1.msra.mxu0 %v2037
        %2085 = vmatprep.subr.mxu0 0.0
        %2086 = vmatpush1.msra.mxu0 0.0
        %2087 = vmatprep.subr.mxu0 0.0
        %2088 = vmatpush1.msra.mxu0 0.0
        %2089 = vmatprep.subr.mxu0 0.0
        %2090 = vmatpush1.msra.mxu0 0.0
        %2091 = vmatprep.subr.mxu0 0.0
        %2092 = vmatpush1.msra.mxu0 0.0
        %2093 = vmatprep.subr.mxu0 0.0
        %2094 = vmatpush1.msra.mxu0 0.0
        %2095 = vmatprep.subr.mxu0 0.0
        %2096 = vmatpush1.msra.mxu0 0.0
        %2097 = vmatprep.subr.mxu0 0.0
        %2098 = vmatpush1.msra.mxu0 0.0
        %2099 = vmatprep.subr.mxu0 0.0
        %2100 = vmatpush1.msra.mxu0 0.0
        %2101 = vmatprep.subr.mxu0 0.0
        %2102 = vmatpush1.msra.mxu0 0.0
        %2103 = vmatprep.subr.mxu0 0.0
        %2104 = vmatpush1.msra.mxu0 0.0
        %2105 = vmatprep.subr.mxu0 0.0
        %2106 = vmatpush1.msra.mxu0 0.0
        %2107 = vmatprep.subr.mxu0 0.0
        %2108 = vmatpush1.msra.mxu0 0.0
        %2109 = vmatprep.subr.mxu0 0.0
        %2110 = vmatpush1.msra.mxu0 0.0
        %2111 = vmatprep.subr.mxu0 0.0
        %2112 = vmatpush1.msra.mxu0 0.0
        %2113 = vmatprep.subr.mxu0 0.0
        %2114 = vmatpush1.msra.mxu0 0.0
        %2115 = vmatprep.subr.mxu0 0.0
        %2116 = vmatpush1.msra.mxu0 0.0
        %2117 = vmatprep.subr.mxu0 0.0
        %2118 = vmatpush1.msra.mxu0 0.0
        %2119 = vmatprep.subr.mxu0 0.0
        %2120 = vmatpush1.msra.mxu0 0.0
        %2121 = vmatprep.subr.mxu0 0.0
        %2122 = vmatpush1.msra.mxu0 0.0
        %2123 = vmatprep.subr.mxu0 0.0
        %2124 = vmatpush1.msra.mxu0 0.0
        %2125 = vmatprep.subr.mxu0 0.0
        %2126 = vmatpush1.msra.mxu0 0.0
        %2127 = vmatprep.subr.mxu0 0.0
        %2128 = vmatpush1.msra.mxu0 0.0
        %2129 = vmatprep.subr.mxu0 0.0
        %2130 = vmatpush1.msra.mxu0 0.0
        %2131 = vmatprep.subr.mxu0 0.0
        %2132 = vmatpush1.msra.mxu0 0.0
        %2133 = vmatprep.subr.mxu0 0.0
        %2134 = vmatpush1.msra.mxu0 0.0
        %2135 = vmatprep.subr.mxu0 0.0
        %2136 = vmatpush1.msra.mxu0 0.0
        %2137 = vmatprep.subr.mxu0 0.0
        %2138 = vmatpush1.msra.mxu0 0.0
        %2139 = vmatprep.subr.mxu0 0.0
        %2140 = vmatpush1.msra.mxu0 0.0
        %2141 = vmatprep.subr.mxu0 0.0
        %2142 = vmatpush1.msra.mxu0 0.0
        %2143 = vmatprep.subr.mxu0 0.0
        %2144 = vmatpush1.msra.mxu0 0.0
        %2145 = vmatprep.subr.mxu0 0.0
        %2146 = vmatpush1.msra.mxu0 0.0
        %2147 = vmatprep.mubr.f32.mxu0 0.0
        %2148 = vmatmul.mubr.f32.gmra.mrb[0].mxu0 %v2065
        %v2149 = vpop.f32.mrb[0].mxu0
        %v2150 = vadd.f32 0.0, %v2149
        %v2151 = vpop.f32.mrb[0].mxu0
        %2152 = vmatprep.mubr.f32.mxu0 0.0
        %2153 = vmatmul.mubr.f32.gmra.mrb[0].mxu0 %v2067
        %v2154 = vpop.f32.mrb[0].mxu0
        %v2155 = vadd.f32 0.0, %v2154
        %v2156 = vpop.f32.mrb[0].mxu0
        %2157 = vmatprep.mubr.f32.mxu0 0.0
        %2158 = vmatmul.mubr.f32.gmra.mrb[0].mxu0 %v2069
        %v2159 = vpop.f32.mrb[0].mxu0
        %v2160 = vadd.f32 0.0, %v2159
        %v2161 = vpop.f32.mrb[0].mxu0
        %2162 = vmatprep.mubr.f32.mxu0 0.0
        %2163 = vmatmul.mubr.f32.gmra.mrb[0].mxu0 %v2071
        %v2164 = vpop.f32.mrb[0].mxu0
        %v2165 = vadd.f32 0.0, %v2164
        %v2166 = vpop.f32.mrb[0].mxu0
        %2167 = vmatprep.mubr.f32.mxu0 0.0
        %2168 = vmatmul.mubr.f32.gmra.mrb[0].mxu0 %v2073
        %v2169 = vpop.f32.mrb[0].mxu0
        %v2170 = vadd.f32 0.0, %v2169
        %v2171 = vpop.f32.mrb[0].mxu0
        %2172 = vmatprep.mubr.f32.mxu0 0.0
        %2173 = vmatmul.mubr.f32.gmra.mrb[0].mxu0 %v2075
        %v2174 = vpop.f32.mrb[0].mxu0
        %v2175 = vadd.f32 0.0, %v2174
        %v2176 = vpop.f32.mrb[0].mxu0
        %2177 = vmatprep.mubr.f32.mxu0 0.0
        %2178 = vmatmul.mubr.f32.gmra.mrb[0].mxu0 %v2077
        %v2179 = vpop.f32.mrb[0].mxu0
        %v2180 = vadd.f32 0.0, %v2179
        %v2181 = vpop.f32.mrb[0].mxu0
        %2182 = vmatprep.mubr.f32.mxu0 0.0
        %2183 = vmatmul.mubr.f32.gmra.mrb[0].mxu0 %v2079
        %v2184 = vpop.f32.mrb[0].mxu0
        %v2185 = vadd.f32 0.0, %v2184
        %v2186 = vpop.f32.mrb[0].mxu0
        %2187 = vmatprep.mubr.f32.mxu0 0.0
        %2188 = vmatmul.mubr.f32.gmra.mrb[0].mxu0 %v2081
        %v2189 = vpop.f32.mrb[0].mxu0
        %v2190 = vadd.f32 0.0, %v2189
        %v2191 = vpop.f32.mrb[0].mxu0
        %2192 = vdwg.mxu0
        %2194 = vrot.lane.b32.xlu0 %v1936, 8
        %v2195 = vpop.permute.xlu0 %2194
        %v2197 = vmul.f32 %v1075, %v2195
        %2199 = vrot.lane.b32.xlu0 %v2023, 8
        %v2200 = vpop.permute.xlu0 %2199
        %v2202 = vmul.f32 %v1075, %v2200
        %2204 = vrot.lane.b32.xlu0 %v2028, 8
        %v2205 = vpop.permute.xlu0 %2204
        %v2207 = vmul.f32 %v1075, %v2205
        %2209 = vrot.lane.b32.xlu0 %v2033, 8
        %v2210 = vpop.permute.xlu0 %2209
        %v2212 = vmul.f32 %v1075, %v2210
        %2214 = vrot.lane.b32.xlu0 %v2150, 8
        %v2215 = vpop.permute.xlu0 %2214
        %v2217 = vmul.f32 %v1075, %v2215
        %2219 = vrot.lane.b32.xlu0 %v2155, 8
        %v2220 = vpop.permute.xlu0 %2219
        %v2222 = vmul.f32 %v1075, %v2220
        %2224 = vrot.lane.b32.xlu0 %v2160, 8
        %v2225 = vpop.permute.xlu0 %2224
        %v2227 = vmul.f32 %v1075, %v2225
        %2229 = vrot.lane.b32.xlu0 %v2165, 8
        %v2230 = vpop.permute.xlu0 %2229
        %v2232 = vmul.f32 %v1075, %v2230
        %2234 = vrot.lane.b32.xlu0 %v2170, 8
        %v2235 = vpop.permute.xlu0 %2234
        %v2237 = vmul.f32 %v1075, %v2235
        %2239 = vrot.lane.b32.xlu0 %v2175, 8
        %v2240 = vpop.permute.xlu0 %2239
        %v2242 = vmul.f32 %v1075, %v2240
        %2244 = vrot.lane.b32.xlu0 %v2180, 8
        %v2245 = vpop.permute.xlu0 %2244
        %v2247 = vmul.f32 %v1075, %v2245
        %2249 = vrot.lane.b32.xlu0 %v2185, 8
        %v2250 = vpop.permute.xlu0 %2249
        %v2252 = vmul.f32 %v1075, %v2250
        %2254 = vrot.lane.b32.xlu0 %v2190, 8
        %v2255 = vpop.permute.xlu0 %2254
        %v2257 = vmul.f32 %v1075, %v2255
        %v2258 = vmul.f32 %v1235, %v2195
        %v2259 = vmul.f32 %v1240, %v2195
        %v2260 = vmul.f32 %v1245, %v2195
        %v2261 = vadd.f32 %v2202, %v2258
        %v2262 = vadd.f32 %v2207, %v2259
        %v2263 = vadd.f32 %v2212, %v2260
        %v2264 = vmul.f32 %v1235, %v2200
        %v2265 = vmul.f32 %v1240, %v2205
        %v2266 = vadd.f32 %v2264, %v2265
        %v2267 = vmul.f32 %v1245, %v2210
        %v2268 = vadd.f32 %v2266, %v2267
        %v2269 = vadd.f32 %v2197, %v2268
        %v2270 = vmul.f32 %v1235, %v2205
        %v2271 = vmul.f32 %v1235, %v2210
        %v2272 = vmul.f32 %v1240, %v2200
        %v2273 = vmul.f32 %v1240, %v2210
        %v2274 = vmul.f32 %v1245, %v2200
        %v2275 = vmul.f32 %v1245, %v2205
        %v2276 = vadd.f32 %v2217, %v2264
        %v2277 = vadd.f32 %v2222, %v2270
        %v2278 = vadd.f32 %v2227, %v2271
        %v2279 = vadd.f32 %v2232, %v2272
        %v2280 = vadd.f32 %v2237, %v2265
        %v2281 = vadd.f32 %v2242, %v2273
        %v2282 = vadd.f32 %v2247, %v2274
        %v2283 = vadd.f32 %v2252, %v2275
        %v2284 = vadd.f32 %v2257, %v2267
        %v2285 = vmul.f32 %v1235, %v2215
        %v2286 = vmul.f32 %v1240, %v2230
        %v2287 = vadd.f32 %v2285, %v2286
        %v2288 = vmul.f32 %v1245, %v2245
        %v2289 = vadd.f32 %v2287, %v2288
        %v2290 = vmul.f32 %v1235, %v2220
        %v2291 = vmul.f32 %v1240, %v2235
        %v2292 = vadd.f32 %v2290, %v2291
        %v2293 = vmul.f32 %v1245, %v2250
        %v2294 = vadd.f32 %v2292, %v2293
        %v2295 = vmul.f32 %v1235, %v2225
        %v2296 = vmul.f32 %v1240, %v2240
        %v2297 = vadd.f32 %v2295, %v2296
        %v2298 = vmul.f32 %v1245, %v2255
        %v2299 = vadd.f32 %v2297, %v2298
        %v2300 = vadd.f32 %v2261, %v2289
        %v2301 = vadd.f32 %v2262, %v2294
        %v2302 = vadd.f32 %v2263, %v2299
        %v2303 = vmul.f32 %v1459, %v2195
        %v2304 = vmul.f32 %v1464, %v2195
        %v2305 = vmul.f32 %v1469, %v2195
        %v2306 = vmul.f32 %v1474, %v2195
        %v2307 = vmul.f32 %v1479, %v2195
        %v2308 = vmul.f32 %v1484, %v2195
        %v2309 = vmul.f32 %v1489, %v2195
        %v2310 = vmul.f32 %v1494, %v2195
        %v2311 = vmul.f32 %v1499, %v2195
        %v2312 = vadd.f32 %v2276, %v2303
        %v2313 = vadd.f32 %v2277, %v2304
        %v2314 = vadd.f32 %v2278, %v2305
        %v2315 = vadd.f32 %v2279, %v2306
        %v2316 = vadd.f32 %v2280, %v2307
        %v2317 = vadd.f32 %v2281, %v2308
        %v2318 = vadd.f32 %v2282, %v2309
        %v2319 = vadd.f32 %v2283, %v2310
        %v2320 = vadd.f32 %v2284, %v2311
        %v2321 = vmul.f32 %v1459, %v2200
        %v2322 = vmul.f32 %v1464, %v2205
        %v2323 = vadd.f32 %v2321, %v2322
        %v2324 = vmul.f32 %v1469, %v2210
        %v2325 = vadd.f32 %v2323, %v2324
        %v2326 = vmul.f32 %v1474, %v2200
        %v2327 = vmul.f32 %v1479, %v2205
        %v2328 = vadd.f32 %v2326, %v2327
        %v2329 = vmul.f32 %v1484, %v2210
        %v2330 = vadd.f32 %v2328, %v2329
        %v2331 = vmul.f32 %v1489, %v2200
        %v2332 = vmul.f32 %v1494, %v2205
        %v2333 = vadd.f32 %v2331, %v2332
        %v2334 = vmul.f32 %v1499, %v2210
        %v2335 = vadd.f32 %v2333, %v2334
        %v2336 = vadd.f32 %v2300, %v2325
        %v2337 = vadd.f32 %v2301, %v2330
        %v2338 = vadd.f32 %v2302, %v2335
        %v2339 = vmul.f32 %v1459, %v2215
        %v2340 = vmul.f32 %v1464, %v2220
        %v2341 = vadd.f32 %v2339, %v2340
        %v2342 = vmul.f32 %v1469, %v2225
        %v2343 = vadd.f32 %v2341, %v2342
        %v2344 = vmul.f32 %v1474, %v2230
        %v2345 = vadd.f32 %v2343, %v2344
        %v2346 = vmul.f32 %v1479, %v2235
        %v2347 = vadd.f32 %v2345, %v2346
        %v2348 = vmul.f32 %v1484, %v2240
        %v2349 = vadd.f32 %v2347, %v2348
        %v2350 = vmul.f32 %v1489, %v2245
        %v2351 = vadd.f32 %v2349, %v2350
        %v2352 = vmul.f32 %v1494, %v2250
        %v2353 = vadd.f32 %v2351, %v2352
        %v2354 = vmul.f32 %v1499, %v2255
        %v2355 = vadd.f32 %v2353, %v2354
        %v2356 = vadd.f32 %v2269, %v2355
        %v2357 = vmul.f32 %v1464, %v2230
        %v2358 = vadd.f32 %v2339, %v2357
        %v2359 = vmul.f32 %v1469, %v2245
        %v2360 = vadd.f32 %v2358, %v2359
        %v2361 = vmul.f32 %v1459, %v2220
        %v2362 = vmul.f32 %v1464, %v2235
        %v2363 = vadd.f32 %v2361, %v2362
        %v2364 = vmul.f32 %v1469, %v2250
        %v2365 = vadd.f32 %v2363, %v2364
        %v2366 = vmul.f32 %v1459, %v2225
        %v2367 = vmul.f32 %v1464, %v2240
        %v2368 = vadd.f32 %v2366, %v2367
        %v2369 = vmul.f32 %v1469, %v2255
        %v2370 = vadd.f32 %v2368, %v2369
        %v2371 = vmul.f32 %v1474, %v2215
        %v2372 = vmul.f32 %v1479, %v2230
        %v2373 = vadd.f32 %v2371, %v2372
        %v2374 = vmul.f32 %v1484, %v2245
        %v2375 = vadd.f32 %v2373, %v2374
        %v2376 = vmul.f32 %v1474, %v2220
        %v2377 = vadd.f32 %v2376, %v2346
        %v2378 = vmul.f32 %v1484, %v2250
        %v2379 = vadd.f32 %v2377, %v2378
        %v2380 = vmul.f32 %v1474, %v2225
        %v2381 = vmul.f32 %v1479, %v2240
        %v2382 = vadd.f32 %v2380, %v2381
        %v2383 = vmul.f32 %v1484, %v2255
        %v2384 = vadd.f32 %v2382, %v2383
        %v2385 = vmul.f32 %v1489, %v2215
        %v2386 = vmul.f32 %v1494, %v2230
        %v2387 = vadd.f32 %v2385, %v2386
        %v2388 = vmul.f32 %v1499, %v2245
        %v2389 = vadd.f32 %v2387, %v2388
        %v2390 = vmul.f32 %v1489, %v2220
        %v2391 = vmul.f32 %v1494, %v2235
        %v2392 = vadd.f32 %v2390, %v2391
        %v2393 = vmul.f32 %v1499, %v2250
        %v2394 = vadd.f32 %v2392, %v2393
        %v2395 = vmul.f32 %v1489, %v2225
        %v2396 = vmul.f32 %v1494, %v2240
        %v2397 = vadd.f32 %v2395, %v2396
        %v2398 = vadd.f32 %v2397, %v2354
        %v2399 = vadd.f32 %v2312, %v2360
        %v2400 = vadd.f32 %v2313, %v2365
        %v2401 = vadd.f32 %v2314, %v2370
        %v2402 = vadd.f32 %v2315, %v2375
        %v2403 = vadd.f32 %v2316, %v2379
        %v2404 = vadd.f32 %v2317, %v2384
        %v2405 = vadd.f32 %v2318, %v2389
        %v2406 = vadd.f32 %v2319, %v2394
        %v2407 = vadd.f32 %v2320, %v2398
        %v2408 = vmul.f32 %v1075, %v1685
        %v2409 = vmul.f32 %v1075, %v1690
        %v2410 = vmul.f32 %v1075, %v1695
        %v2411 = vmul.f32 %v1075, %v1743
        %v2412 = vmul.f32 %v1075, %v1749
        %v2413 = vmul.f32 %v1075, %v1755
        %v2414 = vmul.f32 %v1075, %v1760
        %v2415 = vmul.f32 %v1075, %v1765
        %v2416 = vmul.f32 %v1075, %v1770
        %v2417 = vadd.f32 %v2408, %v1235
        %v2418 = vadd.f32 %v2409, %v1240
        %v2419 = vadd.f32 %v2410, %v1245
        %v2420 = vmul.f32 %v1235, %v1685
        %v2421 = vmul.f32 %v1240, %v1690
        %v2422 = vadd.f32 %v2420, %v2421
        %v2423 = vmul.f32 %v1245, %v1695
        %v2424 = vadd.f32 %v2422, %v2423
        %v2425 = vadd.f32 %v1075, %v2424
        %v2426 = vmul.f32 %v1235, %v1690
        %v2427 = vmul.f32 %v1235, %v1695
        %v2428 = vmul.f32 %v1240, %v1685
        %v2429 = vmul.f32 %v1240, %v1695
        %v2430 = vmul.f32 %v1245, %v1685
        %v2431 = vmul.f32 %v1245, %v1690
        %v2432 = vadd.f32 %v2411, %v2420
        %v2433 = vadd.f32 %v2412, %v2426
        %v2434 = vadd.f32 %v2413, %v2427
        %v2435 = vadd.f32 %v2412, %v2428
        %v2436 = vadd.f32 %v2414, %v2421
        %v2437 = vadd.f32 %v2415, %v2429
        %v2438 = vadd.f32 %v2413, %v2430
        %v2439 = vadd.f32 %v2415, %v2431
        %v2440 = vadd.f32 %v2416, %v2423
        %v2441 = vmul.f32 %v1235, %v1743
        %v2442 = vmul.f32 %v1240, %v1749
        %v2443 = vadd.f32 %v2441, %v2442
        %v2444 = vmul.f32 %v1245, %v1755
        %v2445 = vadd.f32 %v2443, %v2444
        %v2446 = vmul.f32 %v1235, %v1749
        %v2447 = vmul.f32 %v1240, %v1760
        %v2448 = vadd.f32 %v2446, %v2447
        %v2449 = vmul.f32 %v1245, %v1765
        %v2450 = vadd.f32 %v2448, %v2449
        %v2451 = vmul.f32 %v1235, %v1755
        %v2452 = vmul.f32 %v1240, %v1765
        %v2453 = vadd.f32 %v2451, %v2452
        %v2454 = vmul.f32 %v1245, %v1770
        %v2455 = vadd.f32 %v2453, %v2454
        %v2456 = vadd.f32 %v2417, %v2445
        %v2457 = vadd.f32 %v2418, %v2450
        %v2458 = vadd.f32 %v2419, %v2455
        %v2459 = vadd.f32 %v2432, %v1459
        %v2460 = vadd.f32 %v2433, %v1464
        %v2461 = vadd.f32 %v2434, %v1469
        %v2462 = vadd.f32 %v2435, %v1474
        %v2463 = vadd.f32 %v2436, %v1479
        %v2464 = vadd.f32 %v2437, %v1484
        %v2465 = vadd.f32 %v2438, %v1489
        %v2466 = vadd.f32 %v2439, %v1494
        %v2467 = vadd.f32 %v2440, %v1499
        %v2468 = vmul.f32 %v1459, %v1685
        %v2469 = vmul.f32 %v1464, %v1690
        %v2470 = vadd.f32 %v2468, %v2469
        %v2471 = vmul.f32 %v1469, %v1695
        %v2472 = vadd.f32 %v2470, %v2471
        %v2473 = vmul.f32 %v1474, %v1685
        %v2474 = vmul.f32 %v1479, %v1690
        %v2475 = vadd.f32 %v2473, %v2474
        %v2476 = vmul.f32 %v1484, %v1695
        %v2477 = vadd.f32 %v2475, %v2476
        %v2478 = vmul.f32 %v1489, %v1685
        %v2479 = vmul.f32 %v1494, %v1690
        %v2480 = vadd.f32 %v2478, %v2479
        %v2481 = vmul.f32 %v1499, %v1695
        %v2482 = vadd.f32 %v2480, %v2481
        %v2483 = vadd.f32 %v2456, %v2472
        %v2484 = vadd.f32 %v2457, %v2477
        %v2485 = vadd.f32 %v2458, %v2482
        %v2486 = vmul.f32 %v1459, %v1743
        %v2487 = vmul.f32 %v1464, %v1749
        %v2488 = vadd.f32 %v2486, %v2487
        %v2489 = vmul.f32 %v1469, %v1755
        %v2490 = vadd.f32 %v2488, %v2489
        %v2491 = vmul.f32 %v1474, %v1749
        %v2492 = vadd.f32 %v2490, %v2491
        %v2493 = vmul.f32 %v1479, %v1760
        %v2494 = vadd.f32 %v2492, %v2493
        %v2495 = vmul.f32 %v1484, %v1765
        %v2496 = vadd.f32 %v2494, %v2495
        %v2497 = vmul.f32 %v1489, %v1755
        %v2498 = vadd.f32 %v2496, %v2497
        %v2499 = vmul.f32 %v1494, %v1765
        %v2500 = vadd.f32 %v2498, %v2499
        %v2501 = vmul.f32 %v1499, %v1770
        %v2502 = vadd.f32 %v2500, %v2501
        %v2503 = vadd.f32 %v2425, %v2502
        %v2504 = vmul.f32 %v1459, %v1749
        %v2505 = vmul.f32 %v1464, %v1760
        %v2506 = vadd.f32 %v2504, %v2505
        %v2507 = vmul.f32 %v1469, %v1765
        %v2508 = vadd.f32 %v2506, %v2507
        %v2509 = vmul.f32 %v1459, %v1755
        %v2510 = vmul.f32 %v1464, %v1765
        %v2511 = vadd.f32 %v2509, %v2510
        %v2512 = vmul.f32 %v1469, %v1770
        %v2513 = vadd.f32 %v2511, %v2512
        %v2514 = vmul.f32 %v1474, %v1743
        %v2515 = vmul.f32 %v1479, %v1749
        %v2516 = vadd.f32 %v2514, %v2515
        %v2517 = vmul.f32 %v1484, %v1755
        %v2518 = vadd.f32 %v2516, %v2517
        %v2519 = vadd.f32 %v2491, %v2493
        %v2520 = vadd.f32 %v2519, %v2495
        %v2521 = vmul.f32 %v1474, %v1755
        %v2522 = vmul.f32 %v1479, %v1765
        %v2523 = vadd.f32 %v2521, %v2522
        %v2524 = vmul.f32 %v1484, %v1770
        %v2525 = vadd.f32 %v2523, %v2524
        %v2526 = vmul.f32 %v1489, %v1743
        %v2527 = vmul.f32 %v1494, %v1749
        %v2528 = vadd.f32 %v2526, %v2527
        %v2529 = vmul.f32 %v1499, %v1755
        %v2530 = vadd.f32 %v2528, %v2529
        %v2531 = vmul.f32 %v1489, %v1749
        %v2532 = vmul.f32 %v1494, %v1760
        %v2533 = vadd.f32 %v2531, %v2532
        %v2534 = vmul.f32 %v1499, %v1765
        %v2535 = vadd.f32 %v2533, %v2534
        %v2536 = vadd.f32 %v2497, %v2499
        %v2537 = vadd.f32 %v2536, %v2501
        %v2538 = vadd.f32 %v2459, %v2490
        %v2539 = vadd.f32 %v2460, %v2508
        %v2540 = vadd.f32 %v2461, %v2513
        %v2541 = vadd.f32 %v2462, %v2518
        %v2542 = vadd.f32 %v2463, %v2520
        %v2543 = vadd.f32 %v2464, %v2525
        %v2544 = vadd.f32 %v2465, %v2530
        %v2545 = vadd.f32 %v2466, %v2535
        %v2546 = vadd.f32 %v2467, %v2537
        %2548 = vrot.lane.b32.xlu0 %v1665, 8
        %v2549 = vpop.permute.xlu0 %2548
        %2552 = vrot.lane.b32.xlu0 %v1682, 16
        %v2553 = vpop.permute.xlu0 %2552
        %2556 = vrot.lane.b32.xlu0 %v2356, 16
        %v2557 = vpop.permute.xlu0 %2556
        %2560 = vrot.lane.b32.xlu0 %v2503, 16
        %v2561 = vpop.permute.xlu0 %2560
        %2563 = vrot.lane.b32.xlu0 %v1817, 24
        %v2564 = vpop.permute.xlu0 %2563
        %v2566 = vsel %vm846, %v1660, %v2549
        %vm2567 = vcmask 130048
        %v2568 = vsel %vm2567, %v2566, %v2553
        %vm2569 = vcmask 195584
        %v2570 = vsel %vm2569, %v2568, %v2557
        %vm2571 = vcmask 261120
        %v2572 = vsel %vm2571, %v2570, %v2561
        %vm2573 = vcmask 326656
        %v2574 = vsel %vm2573, %v2572, %v2564
        %v2575 = vld [vmem:[%s10] sm:$0xff]
        %v2576 = vld [vmem:[%s10 + $0x8] sm:$0xff]
        %v2577 = vld [vmem:[%s10 + $0x10] sm:$0xff]
        %v2578 = vld [vmem:[%s10 + $0x18] sm:$0xff]
        %v2579 = vld [vmem:[%s10 + $0x20] sm:$0xff]
        %v2580 = vld [vmem:[%s10 + $0x28] sm:$0xff]
        %v2581 = vld [vmem:[%s11] sm:$0x1]
        %v2583 = vlaneseq
        %v2584 = vshrl.u32 %v2583, 7
        %v2585 = vsub.s32 0, %v2584
        %v2586 = vrot.slane %v2581, %v2585
        %vm2588 = vcmask 392192
        %v2590 = vsel %vm2588, %v2574, 0
        %2592 = vmatprep.subr.mxu0 0.0
        %2593 = vmatpush1.msra.mxu0 %v2575
        %2594 = vmatprep.subr.mxu0 0.0
        %2595 = vmatpush1.msra.mxu0 %v2576
        %2596 = vmatprep.subr.mxu0 0.0
        %2597 = vmatpush1.msra.mxu0 %v2577
        %2598 = vmatprep.subr.mxu0 0.0
        %2599 = vmatpush1.msra.mxu0 %v2578
        %2600 = vmatprep.subr.mxu0 0.0
        %2601 = vmatpush1.msra.mxu0 %v2579
        %2602 = vmatprep.subr.mxu0 0.0
        %2603 = vmatpush1.msra.mxu0 %v2580
        %2604 = vmatprep.subr.mxu0 0.0
        %2605 = vmatpush1.msra.mxu0 0.0
        %2606 = vmatprep.subr.mxu0 0.0
        %2607 = vmatpush1.msra.mxu0 0.0
        %2608 = vmatprep.subr.mxu0 0.0
        %2609 = vmatpush1.msra.mxu0 0.0
        %2610 = vmatprep.subr.mxu0 0.0
        %2611 = vmatpush1.msra.mxu0 0.0
        %2612 = vmatprep.subr.mxu0 0.0
        %2613 = vmatpush1.msra.mxu0 0.0
        %2614 = vmatprep.subr.mxu0 0.0
        %2615 = vmatpush1.msra.mxu0 0.0
        %2616 = vmatprep.subr.mxu0 0.0
        %2617 = vmatpush1.msra.mxu0 0.0
        %2618 = vmatprep.subr.mxu0 0.0
        %2619 = vmatpush1.msra.mxu0 0.0
        %2620 = vmatprep.subr.mxu0 0.0
        %2621 = vmatpush1.msra.mxu0 0.0
        %2622 = vmatprep.subr.mxu0 0.0
        %2623 = vmatpush1.msra.mxu0 0.0
        %2624 = vmatprep.subr.mxu0 0.0
        %2625 = vmatpush1.msra.mxu0 0.0
        %2626 = vmatprep.subr.mxu0 0.0
        %2627 = vmatpush1.msra.mxu0 0.0
        %2628 = vmatprep.subr.mxu0 0.0
        %2629 = vmatpush1.msra.mxu0 0.0
        %2630 = vmatprep.subr.mxu0 0.0
        %2631 = vmatpush1.msra.mxu0 0.0
        %2632 = vmatprep.subr.mxu0 0.0
        %2633 = vmatpush1.msra.mxu0 0.0
        %2634 = vmatprep.subr.mxu0 0.0
        %2635 = vmatpush1.msra.mxu0 0.0
        %2636 = vmatprep.subr.mxu0 0.0
        %2637 = vmatpush1.msra.mxu0 0.0
        %2638 = vmatprep.subr.mxu0 0.0
        %2639 = vmatpush1.msra.mxu0 0.0
        %2640 = vmatprep.subr.mxu0 0.0
        %2641 = vmatpush1.msra.mxu0 0.0
        %2642 = vmatprep.subr.mxu0 0.0
        %2643 = vmatpush1.msra.mxu0 0.0
        %2644 = vmatprep.subr.mxu0 0.0
        %2645 = vmatpush1.msra.mxu0 0.0
        %2646 = vmatprep.subr.mxu0 0.0
        %2647 = vmatpush1.msra.mxu0 0.0
        %2648 = vmatprep.subr.mxu0 0.0
        %2649 = vmatpush1.msra.mxu0 0.0
        %2650 = vmatprep.subr.mxu0 0.0
        %2651 = vmatpush1.msra.mxu0 0.0
        %2652 = vmatprep.subr.mxu0 0.0
        %2653 = vmatpush1.msra.mxu0 0.0
        %2654 = vmatprep.subr.mxu0 0.0
        %2655 = vmatpush1.msra.mxu0 0.0
        %2656 = vmatprep.mubr.f32.mxu0 0.0
        %2657 = vmatmul.mubr.f32.gmra.mrb[0].mxu0 %v2590
        %v2658 = vpop.f32.mrb[0].mxu0
        %v2659 = vadd.f32 %v2586, %v2658
        %v2660 = vpop.f32.mrb[0].mxu0
        %2661 = vdwg.mxu0
        %v2662 = vxor.u32 %v2659, 2147483648
        %v2663 = vmul.f32 %v2662, 1.442695
        %v2664 = vpow.pop %v2663
        %v2665 = vadd.f32 %v2664, 1.0
        %v2666 = vrcp.pop %v2665
        %v2667 = vmul.f32 1.0, %v2666
        %v2668 = vmul.f32 %v2659, %v2667
        %v2669 = vld [vmem:[%s12] sm:$0xff]
        %v2670 = vld [vmem:[%s12 + $0x8] sm:$0xff]
        %v2671 = vld [vmem:[%s12 + $0x10] sm:$0xff]
        %v2672 = vld [vmem:[%s12 + $0x18] sm:$0xff]
        %v2673 = vld [vmem:[%s12 + $0x20] sm:$0xff]
        %v2674 = vld [vmem:[%s12 + $0x28] sm:$0xff]
        %v2675 = vld [vmem:[%s12 + $0x30] sm:$0xff]
        %v2676 = vld [vmem:[%s12 + $0x38] sm:$0xff]
        %v2677 = vld [vmem:[%s12 + $0x40] sm:$0xff]
        %v2678 = vld [vmem:[%s13] sm:$0x1]
        %v2680 = vlaneseq
        %v2681 = vshrl.u32 %v2680, 7
        %v2682 = vsub.s32 0, %v2681
        %v2683 = vrot.slane %v2678, %v2682
        %vm2685 = vcmask 588800
        %v2687 = vsel %vm2685, %v2668, 0
        %2689 = vmatprep.subr.mxu0 0.0
        %2690 = vmatpush1.msra.mxu0 %v2669
        %2691 = vmatprep.subr.mxu0 0.0
        %2692 = vmatpush1.msra.mxu0 %v2670
        %2693 = vmatprep.subr.mxu0 0.0
        %2694 = vmatpush1.msra.mxu0 %v2671
        %2695 = vmatprep.subr.mxu0 0.0
        %2696 = vmatpush1.msra.mxu0 %v2672
        %2697 = vmatprep.subr.mxu0 0.0
        %2698 = vmatpush1.msra.mxu0 %v2673
        %2699 = vmatprep.subr.mxu0 0.0
        %2700 = vmatpush1.msra.mxu0 %v2674
        %2701 = vmatprep.subr.mxu0 0.0
        %2702 = vmatpush1.msra.mxu0 %v2675
        %2703 = vmatprep.subr.mxu0 0.0
        %2704 = vmatpush1.msra.mxu0 %v2676
        %2705 = vmatprep.subr.mxu0 0.0
        %2706 = vmatpush1.msra.mxu0 %v2677
        %2707 = vmatprep.subr.mxu0 0.0
        %2708 = vmatpush1.msra.mxu0 0.0
        %2709 = vmatprep.subr.mxu0 0.0
        %2710 = vmatpush1.msra.mxu0 0.0
        %2711 = vmatprep.subr.mxu0 0.0
        %2712 = vmatpush1.msra.mxu0 0.0
        %2713 = vmatprep.subr.mxu0 0.0
        %2714 = vmatpush1.msra.mxu0 0.0
        %2715 = vmatprep.subr.mxu0 0.0
        %2716 = vmatpush1.msra.mxu0 0.0
        %2717 = vmatprep.subr.mxu0 0.0
        %2718 = vmatpush1.msra.mxu0 0.0
        %2719 = vmatprep.subr.mxu0 0.0
        %2720 = vmatpush1.msra.mxu0 0.0
        %2721 = vmatprep.subr.mxu0 0.0
        %2722 = vmatpush1.msra.mxu0 0.0
        %2723 = vmatprep.subr.mxu0 0.0
        %2724 = vmatpush1.msra.mxu0 0.0
        %2725 = vmatprep.subr.mxu0 0.0
        %2726 = vmatpush1.msra.mxu0 0.0
        %2727 = vmatprep.subr.mxu0 0.0
        %2728 = vmatpush1.msra.mxu0 0.0
        %2729 = vmatprep.subr.mxu0 0.0
        %2730 = vmatpush1.msra.mxu0 0.0
        %2731 = vmatprep.subr.mxu0 0.0
        %2732 = vmatpush1.msra.mxu0 0.0
        %2733 = vmatprep.subr.mxu0 0.0
        %2734 = vmatpush1.msra.mxu0 0.0
        %2735 = vmatprep.subr.mxu0 0.0
        %2736 = vmatpush1.msra.mxu0 0.0
        %2737 = vmatprep.subr.mxu0 0.0
        %2738 = vmatpush1.msra.mxu0 0.0
        %2739 = vmatprep.subr.mxu0 0.0
        %2740 = vmatpush1.msra.mxu0 0.0
        %2741 = vmatprep.subr.mxu0 0.0
        %2742 = vmatpush1.msra.mxu0 0.0
        %2743 = vmatprep.subr.mxu0 0.0
        %2744 = vmatpush1.msra.mxu0 0.0
        %2745 = vmatprep.subr.mxu0 0.0
        %2746 = vmatpush1.msra.mxu0 0.0
        %2747 = vmatprep.subr.mxu0 0.0
        %2748 = vmatpush1.msra.mxu0 0.0
        %2749 = vmatprep.subr.mxu0 0.0
        %2750 = vmatpush1.msra.mxu0 0.0
        %2751 = vmatprep.subr.mxu0 0.0
        %2752 = vmatpush1.msra.mxu0 0.0
        %2753 = vmatprep.mubr.f32.mxu0 0.0
        %2754 = vmatmul.mubr.f32.gmra.mrb[0].mxu0 %v2687
        %v2755 = vpop.f32.mrb[0].mxu0
        %v2756 = vadd.f32 %v2683, %v2755
        %v2757 = vpop.f32.mrb[0].mxu0
        %2758 = vdwg.mxu0
        %v2759 = vxor.u32 %v2756, 2147483648
        %v2760 = vmul.f32 %v2759, 1.442695
        %v2761 = vpow.pop %v2760
        %v2762 = vadd.f32 %v2761, 1.0
        %v2763 = vrcp.pop %v2762
        %v2764 = vmul.f32 1.0, %v2763
        %v2765 = vmul.f32 %v2756, %v2764
        %v2766 = vld [vmem:[%s14] sm:$0xff]
        %v2767 = vld [vmem:[%s14 + $0x8] sm:$0xff]
        %v2768 = vld [vmem:[%s14 + $0x10] sm:$0xff]
        %v2769 = vld [vmem:[%s14 + $0x18] sm:$0xff]
        %v2770 = vld [vmem:[%s14 + $0x20] sm:$0xff]
        %v2771 = vld [vmem:[%s14 + $0x28] sm:$0xff]
        %v2772 = vld [vmem:[%s14 + $0x30] sm:$0xff]
        %v2773 = vld [vmem:[%s14 + $0x38] sm:$0xff]
        %v2774 = vld [vmem:[%s14 + $0x40] sm:$0xff]
        %v2775 = vld [vmem:[#allocation12] sm:$0x1]
        %v2777 = vlaneseq
        %v2778 = vshrl.u32 %v2777, 7
        %v2779 = vsub.s32 0, %v2778
        %v2780 = vrot.slane %v2775, %v2779
        %v2783 = vsel %vm2685, %v2765, 0
        %2785 = vmatprep.subr.mxu0 0.0
        %2786 = vmatpush1.msra.mxu0 %v2766
        %2787 = vmatprep.subr.mxu0 0.0
        %2788 = vmatpush1.msra.mxu0 %v2767
        %2789 = vmatprep.subr.mxu0 0.0
        %2790 = vmatpush1.msra.mxu0 %v2768
        %2791 = vmatprep.subr.mxu0 0.0
        %2792 = vmatpush1.msra.mxu0 %v2769
        %2793 = vmatprep.subr.mxu0 0.0
        %2794 = vmatpush1.msra.mxu0 %v2770
        %2795 = vmatprep.subr.mxu0 0.0
        %2796 = vmatpush1.msra.mxu0 %v2771
        %2797 = vmatprep.subr.mxu0 0.0
        %2798 = vmatpush1.msra.mxu0 %v2772
        %2799 = vmatprep.subr.mxu0 0.0
        %2800 = vmatpush1.msra.mxu0 %v2773
        %2801 = vmatprep.subr.mxu0 0.0
        %2802 = vmatpush1.msra.mxu0 %v2774
        %2803 = vmatprep.subr.mxu0 0.0
        %2804 = vmatpush1.msra.mxu0 0.0
        %2805 = vmatprep.subr.mxu0 0.0
        %2806 = vmatpush1.msra.mxu0 0.0
        %2807 = vmatprep.subr.mxu0 0.0
        %2808 = vmatpush1.msra.mxu0 0.0
        %2809 = vmatprep.subr.mxu0 0.0
        %2810 = vmatpush1.msra.mxu0 0.0
        %2811 = vmatprep.subr.mxu0 0.0
        %2812 = vmatpush1.msra.mxu0 0.0
        %2813 = vmatprep.subr.mxu0 0.0
        %2814 = vmatpush1.msra.mxu0 0.0
        %2815 = vmatprep.subr.mxu0 0.0
        %2816 = vmatpush1.msra.mxu0 0.0
        %2817 = vmatprep.subr.mxu0 0.0
        %2818 = vmatpush1.msra.mxu0 0.0
        %2819 = vmatprep.subr.mxu0 0.0
        %2820 = vmatpush1.msra.mxu0 0.0
        %2821 = vmatprep.subr.mxu0 0.0
        %2822 = vmatpush1.msra.mxu0 0.0
        %2823 = vmatprep.subr.mxu0 0.0
        %2824 = vmatpush1.msra.mxu0 0.0
        %2825 = vmatprep.subr.mxu0 0.0
        %2826 = vmatpush1.msra.mxu0 0.0
        %2827 = vmatprep.subr.mxu0 0.0
        %2828 = vmatpush1.msra.mxu0 0.0
        %2829 = vmatprep.subr.mxu0 0.0
        %2830 = vmatpush1.msra.mxu0 0.0
        %2831 = vmatprep.subr.mxu0 0.0
        %2832 = vmatpush1.msra.mxu0 0.0
        %2833 = vmatprep.subr.mxu0 0.0
        %2834 = vmatpush1.msra.mxu0 0.0
        %2835 = vmatprep.subr.mxu0 0.0
        %2836 = vmatpush1.msra.mxu0 0.0
        %2837 = vmatprep.subr.mxu0 0.0
        %2838 = vmatpush1.msra.mxu0 0.0
        %2839 = vmatprep.subr.mxu0 0.0
        %2840 = vmatpush1.msra.mxu0 0.0
        %2841 = vmatprep.subr.mxu0 0.0
        %2842 = vmatpush1.msra.mxu0 0.0
        %2843 = vmatprep.subr.mxu0 0.0
        %2844 = vmatpush1.msra.mxu0 0.0
        %2845 = vmatprep.subr.mxu0 0.0
        %2846 = vmatpush1.msra.mxu0 0.0
        %2847 = vmatprep.subr.mxu0 0.0
        %2848 = vmatpush1.msra.mxu0 0.0
        %2849 = vmatprep.mubr.f32.mxu0 0.0
        %2850 = vmatmul.mubr.f32.gmra.mrb[0].mxu0 %v2783
        %v2851 = vpop.f32.mrb[0].mxu0
        %v2852 = vadd.f32 %v2780, %v2851
        %v2853 = vpop.f32.mrb[0].mxu0
        %2854 = vdwg.mxu0
        %v2855 = vld [vmem:[%s778] sm:$0xff]
        %v2856 = vld [vmem:[%s16] sm:$0xff]
        %v2858 = vsel %vm846, %v2855, 0
        %2860 = vmatprep.subr.mxu0 0.0
        %2861 = vmatpush1.msra.mxu0 %v2856
        %2862 = vmatprep.subr.mxu0 0.0
        %2863 = vmatpush1.msra.mxu0 0.0
        %2864 = vmatprep.subr.mxu0 0.0
        %2865 = vmatpush1.msra.mxu0 0.0
        %2866 = vmatprep.subr.mxu0 0.0
        %2867 = vmatpush1.msra.mxu0 0.0
        %2868 = vmatprep.subr.mxu0 0.0
        %2869 = vmatpush1.msra.mxu0 0.0
        %2870 = vmatprep.subr.mxu0 0.0
        %2871 = vmatpush1.msra.mxu0 0.0
        %2872 = vmatprep.subr.mxu0 0.0
        %2873 = vmatpush1.msra.mxu0 0.0
        %2874 = vmatprep.subr.mxu0 0.0
        %2875 = vmatpush1.msra.mxu0 0.0
        %2876 = vmatprep.subr.mxu0 0.0
        %2877 = vmatpush1.msra.mxu0 0.0
        %2878 = vmatprep.subr.mxu0 0.0
        %2879 = vmatpush1.msra.mxu0 0.0
        %2880 = vmatprep.subr.mxu0 0.0
        %2881 = vmatpush1.msra.mxu0 0.0
        %2882 = vmatprep.subr.mxu0 0.0
        %2883 = vmatpush1.msra.mxu0 0.0
        %2884 = vmatprep.subr.mxu0 0.0
        %2885 = vmatpush1.msra.mxu0 0.0
        %2886 = vmatprep.subr.mxu0 0.0
        %2887 = vmatpush1.msra.mxu0 0.0
        %2888 = vmatprep.subr.mxu0 0.0
        %2889 = vmatpush1.msra.mxu0 0.0
        %2890 = vmatprep.subr.mxu0 0.0
        %2891 = vmatpush1.msra.mxu0 0.0
        %2892 = vmatprep.subr.mxu0 0.0
        %2893 = vmatpush1.msra.mxu0 0.0
        %2894 = vmatprep.subr.mxu0 0.0
        %2895 = vmatpush1.msra.mxu0 0.0
        %2896 = vmatprep.subr.mxu0 0.0
        %2897 = vmatpush1.msra.mxu0 0.0
        %2898 = vmatprep.subr.mxu0 0.0
        %2899 = vmatpush1.msra.mxu0 0.0
        %2900 = vmatprep.subr.mxu0 0.0
        %2901 = vmatpush1.msra.mxu0 0.0
        %2902 = vmatprep.subr.mxu0 0.0
        %2903 = vmatpush1.msra.mxu0 0.0
        %2904 = vmatprep.subr.mxu0 0.0
        %2905 = vmatpush1.msra.mxu0 0.0
        %2906 = vmatprep.subr.mxu0 0.0
        %2907 = vmatpush1.msra.mxu0 0.0
        %2908 = vmatprep.subr.mxu0 0.0
        %2909 = vmatpush1.msra.mxu0 0.0
        %2910 = vmatprep.subr.mxu0 0.0
        %2911 = vmatpush1.msra.mxu0 0.0
        %2912 = vmatprep.subr.mxu0 0.0
        %2913 = vmatpush1.msra.mxu0 0.0
        %2914 = vmatprep.subr.mxu0 0.0
        %2915 = vmatpush1.msra.mxu0 0.0
        %2916 = vmatprep.subr.mxu0 0.0
        %2917 = vmatpush1.msra.mxu0 0.0
        %2918 = vmatprep.subr.mxu0 0.0
        %2919 = vmatpush1.msra.mxu0 0.0
        %2920 = vmatprep.subr.mxu0 0.0
        %2921 = vmatpush1.msra.mxu0 0.0
        %2922 = vmatprep.subr.mxu0 0.0
        %2923 = vmatpush1.msra.mxu0 0.0
        %2924 = vmatprep.mubr.f32.mxu0 0.0
        %2925 = vmatmul.mubr.f32.gmra.mrb[0].mxu0 %v2858
        %v2926 = vpop.f32.mrb[0].mxu0
        %v2927 = vadd.f32 0.0, %v2926
        %v2928 = vpop.f32.mrb[0].mxu0
        %2929 = vdwg.mxu0
        %v2930 = vmul.f32 %v2852, %v2927
        %2932 = vrot.lane.b32.xlu0 %v2930, 8
        %v2933 = vpop.permute.xlu0 %2932
        %v2935 = vmul.f32 %v2356, %v2933
        %v2936 = vmul.f32 %v2503, %v2933
        %v2937 = vmul.f32 %v1817, %v2930
        %2938 = vrot.lane.b32.xlu0 %v2930, 112
        %v2939 = vpop.permute.xlu0 %2938
        %v2941 = vmul.f32 %v2336, %v2939
        %v2942 = vmul.f32 %v2337, %v2939
        %v2943 = vmul.f32 %v2338, %v2939
        %2945 = vrot.lane.b32.xlu0 %v2941, 120
        %v2946 = vpop.permute.xlu0 %2945
        %2949 = vrot.lane.b32.xlu0 %v2943, 8
        %v2950 = vpop.permute.xlu0 %2949
        %v2952 = vsel %vm846, %v2946, %v2942
        %v2953 = vsel %vm2567, %v2952, %v2950
        %v2954 = vmul.f32 %v2483, %v2939
        %v2955 = vmul.f32 %v2484, %v2939
        %v2956 = vmul.f32 %v2485, %v2939
        %2958 = vrot.lane.b32.xlu0 %v2954, 112
        %v2959 = vpop.permute.xlu0 %2958
        %2962 = vrot.lane.b32.xlu0 %v2955, 120
        %v2963 = vpop.permute.xlu0 %2962
        %v2965 = vsel %vm846, %v2959, %v2963
        %v2966 = vsel %vm2567, %v2965, %v2956
        %2967 = vrot.lane.b32.xlu0 %v2930, 104
        %v2968 = vpop.permute.xlu0 %2967
        %v2970 = vmul.f32 %v1797, %v2968
        %v2971 = vmul.f32 %v1798, %v2968
        %v2972 = vmul.f32 %v1799, %v2968
        %2974 = vrot.lane.b32.xlu0 %v2970, 112
        %v2975 = vpop.permute.xlu0 %2974
        %2978 = vrot.lane.b32.xlu0 %v2971, 120
        %v2979 = vpop.permute.xlu0 %2978
        %v2981 = vsel %vm846, %v2975, %v2979
        %v2982 = vsel %vm2567, %v2981, %v2972
        %2983 = vrot.lane.b32.xlu0 %v2930, 88
        %v2984 = vpop.permute.xlu0 %2983
        %v2986 = vmul.f32 %v2399, %v2984
        %v2987 = vmul.f32 %v2400, %v2984
        %v2988 = vmul.f32 %v2401, %v2984
        %v2989 = vmul.f32 %v2402, %v2984
        %v2990 = vmul.f32 %v2403, %v2984
        %v2991 = vmul.f32 %v2404, %v2984
        %v2992 = vmul.f32 %v2405, %v2984
        %v2993 = vmul.f32 %v2406, %v2984
        %v2994 = vmul.f32 %v2407, %v2984
        %2996 = vrot.lane.b32.xlu0 %v2986, 120
        %v2997 = vpop.permute.xlu0 %2996
        %3000 = vrot.lane.b32.xlu0 %v2988, 8
        %v3001 = vpop.permute.xlu0 %3000
        %3004 = vrot.lane.b32.xlu0 %v2989, 16
        %v3005 = vpop.permute.xlu0 %3004
        %3008 = vrot.lane.b32.xlu0 %v2990, 24
        %v3009 = vpop.permute.xlu0 %3008
        %3012 = vrot.lane.b32.xlu0 %v2991, 32
        %v3013 = vpop.permute.xlu0 %3012
        %3016 = vrot.lane.b32.xlu0 %v2992, 40
        %v3017 = vpop.permute.xlu0 %3016
        %3020 = vrot.lane.b32.xlu0 %v2993, 48
        %v3021 = vpop.permute.xlu0 %3020
        %3024 = vrot.lane.b32.xlu0 %v2994, 56
        %v3025 = vpop.permute.xlu0 %3024
        %v3027 = vsel %vm846, %v2997, %v2987
        %v3028 = vsel %vm2567, %v3027, %v3001
        %v3029 = vsel %vm2569, %v3028, %v3005
        %v3030 = vsel %vm2571, %v3029, %v3009
        %v3031 = vsel %vm2573, %v3030, %v3013
        %v3032 = vsel %vm2588, %v3031, %v3017
        %vm3033 = vcmask 457728
        %v3034 = vsel %vm3033, %v3032, %v3021
        %vm3035 = vcmask 523264
        %v3036 = vsel %vm3035, %v3034, %v3025
        %v3037 = vmul.f32 %v2538, %v2984
        %v3038 = vmul.f32 %v2539, %v2984
        %v3039 = vmul.f32 %v2540, %v2984
        %v3040 = vmul.f32 %v2541, %v2984
        %v3041 = vmul.f32 %v2542, %v2984
        %v3042 = vmul.f32 %v2543, %v2984
        %v3043 = vmul.f32 %v2544, %v2984
        %v3044 = vmul.f32 %v2545, %v2984
        %v3045 = vmul.f32 %v2546, %v2984
        %3047 = vrot.lane.b32.xlu0 %v3037, 112
        %v3048 = vpop.permute.xlu0 %3047
        %3051 = vrot.lane.b32.xlu0 %v3038, 120
        %v3052 = vpop.permute.xlu0 %3051
        %3055 = vrot.lane.b32.xlu0 %v3040, 8
        %v3056 = vpop.permute.xlu0 %3055
        %3059 = vrot.lane.b32.xlu0 %v3041, 16
        %v3060 = vpop.permute.xlu0 %3059
        %3063 = vrot.lane.b32.xlu0 %v3042, 24
        %v3064 = vpop.permute.xlu0 %3063
        %3067 = vrot.lane.b32.xlu0 %v3043, 32
        %v3068 = vpop.permute.xlu0 %3067
        %3071 = vrot.lane.b32.xlu0 %v3044, 40
        %v3072 = vpop.permute.xlu0 %3071
        %3075 = vrot.lane.b32.xlu0 %v3045, 48
        %v3076 = vpop.permute.xlu0 %3075
        %v3078 = vsel %vm846, %v3048, %v3052
        %v3079 = vsel %vm2567, %v3078, %v3039
        %v3080 = vsel %vm2569, %v3079, %v3056
        %v3081 = vsel %vm2571, %v3080, %v3060
        %v3082 = vsel %vm2573, %v3081, %v3064
        %v3083 = vsel %vm2588, %v3082, %v3068
        %v3084 = vsel %vm3033, %v3083, %v3072
        %v3085 = vsel %vm3035, %v3084, %v3076
        %3086 = vrot.lane.b32.xlu0 %v2930, 80
        %v3087 = vpop.permute.xlu0 %3086
        %v3089 = vmul.f32 %v1854, %v3087
        %v3090 = vmul.f32 %v1855, %v3087
        %v3091 = vmul.f32 %v1856, %v3087
        %v3092 = vmul.f32 %v1857, %v3087
        %v3093 = vmul.f32 %v1858, %v3087
        %v3094 = vmul.f32 %v1859, %v3087
        %v3095 = vmul.f32 %v1860, %v3087
        %v3096 = vmul.f32 %v1861, %v3087
        %v3097 = vmul.f32 %v1862, %v3087
        %3099 = vrot.lane.b32.xlu0 %v3089, 112
        %v3100 = vpop.permute.xlu0 %3099
        %3103 = vrot.lane.b32.xlu0 %v3090, 120
        %v3104 = vpop.permute.xlu0 %3103
        %3107 = vrot.lane.b32.xlu0 %v3092, 8
        %v3108 = vpop.permute.xlu0 %3107
        %3111 = vrot.lane.b32.xlu0 %v3093, 16
        %v3112 = vpop.permute.xlu0 %3111
        %3115 = vrot.lane.b32.xlu0 %v3094, 24
        %v3116 = vpop.permute.xlu0 %3115
        %3119 = vrot.lane.b32.xlu0 %v3095, 32
        %v3120 = vpop.permute.xlu0 %3119
        %3123 = vrot.lane.b32.xlu0 %v3096, 40
        %v3124 = vpop.permute.xlu0 %3123
        %3127 = vrot.lane.b32.xlu0 %v3097, 48
        %v3128 = vpop.permute.xlu0 %3127
        %v3130 = vsel %vm846, %v3100, %v3104
        %v3131 = vsel %vm2567, %v3130, %v3091
        %v3132 = vsel %vm2569, %v3131, %v3108
        %v3133 = vsel %vm2571, %v3132, %v3112
        %v3134 = vsel %vm2573, %v3133, %v3116
        %v3135 = vsel %vm2588, %v3134, %v3120
        %v3136 = vsel %vm3033, %v3135, %v3124
        %v3137 = vsel %vm3035, %v3136, %v3128
        %3139 = vrot.lane.b32.xlu0 %v2935, 120
        %v3140 = vpop.permute.xlu0 %3139
        %3143 = vrot.lane.b32.xlu0 %v2936, 120
        %v3144 = vpop.permute.xlu0 %3143
        %3147 = vrot.lane.b32.xlu0 %v2953, 24
        %v3148 = vpop.permute.xlu0 %3147
        %3151 = vrot.lane.b32.xlu0 %v2966, 48
        %v3152 = vpop.permute.xlu0 %3151
        %3155 = vrot.lane.b32.xlu0 %v2982, 72
        %v3156 = vpop.permute.xlu0 %3155
        %3159 = vrot.lane.b32.xlu0 %v3036, 96
        %v3160 = vpop.permute.xlu0 %3159
        %3163 = vrot.lane.b32.xlu0 %v3085, 40
        %v3164 = vpop.permute.xlu0 %3163
        %3167 = vrot.lane.b32.xlu0 %v3137, 112
        %v3168 = vpop.permute.xlu0 %3167
        %v3170 = vsel %vm846, %v3140, %v3144
        %v3171 = vsel %vm2567, %v3170, %v2937
        %v3172 = vsel %vm2569, %v3171, %v3148
        %v3173 = vsel %vm2588, %v3172, %v3152
        %v3174 = vsel %vm2685, %v3173, %v3156
        %vm3175 = vcmask 785408
        %v3176 = vsel %vm3175, %v3174, %v3160
        %v3177 = vsel %vm2573, %v3160, %v3164
        %vm3178 = vcmask 916480
        %v3179 = vsel %vm3178, %v3177, %v3168
        %v3180 = vlaneseq
        %v3181 = vshrl.u32 %v3180, 7
        %v3182 = vld [vmem:[%s682] sm:$0x1]
        %v3183 = vlaneseq
        %v3184 = vshrl.u32 %v3183, 7
        %v3185 = vsub.s32 0, %v3184
        %v3186 = vrot.slane %v3182, %v3185
        %vm3187 = vcmp.eq.s32.totalorder %v3181, %v3186
        %v3188 = vsel %vm3187, 1, 0
        %v3189 = vcvt.s32.f32 %v3188
        %v3190 = vld [vmem:[#allocation3] sm:$0xff]
        %v3191 = vld [vmem:[#allocation3 + $0x8] sm:$0xff]
        %v3192 = vld [vmem:[#allocation3 + $0x10] sm:$0xff]
        %v3194 = vsel %vm846, %v3189, 0
        %3196 = vmatprep.subr.mxu0 %v3179
        %3197 = vmatpush1.msra.mxu0 %v3176
        %3198 = vmatprep.subr.mxu0 0.0
        %3199 = vmatpush1.msra.mxu0 0.0
        %3200 = vmatprep.subr.mxu0 0.0
        %3201 = vmatpush1.msra.mxu0 0.0
        %3202 = vmatprep.subr.mxu0 0.0
        %3203 = vmatpush1.msra.mxu0 0.0
        %3204 = vmatprep.subr.mxu0 0.0
        %3205 = vmatpush1.msra.mxu0 0.0
        %3206 = vmatprep.subr.mxu0 0.0
        %3207 = vmatpush1.msra.mxu0 0.0
        %3208 = vmatprep.subr.mxu0 0.0
        %3209 = vmatpush1.msra.mxu0 0.0
        %3210 = vmatprep.subr.mxu0 0.0
        %3211 = vmatpush1.msra.mxu0 0.0
        %3212 = vmatprep.subr.mxu0 0.0
        %3213 = vmatpush1.msra.mxu0 0.0
        %3214 = vmatprep.subr.mxu0 0.0
        %3215 = vmatpush1.msra.mxu0 0.0
        %3216 = vmatprep.subr.mxu0 0.0
        %3217 = vmatpush1.msra.mxu0 0.0
        %3218 = vmatprep.subr.mxu0 0.0
        %3219 = vmatpush1.msra.mxu0 0.0
        %3220 = vmatprep.subr.mxu0 0.0
        %3221 = vmatpush1.msra.mxu0 0.0
        %3222 = vmatprep.subr.mxu0 0.0
        %3223 = vmatpush1.msra.mxu0 0.0
        %3224 = vmatprep.subr.mxu0 0.0
        %3225 = vmatpush1.msra.mxu0 0.0
        %3226 = vmatprep.subr.mxu0 0.0
        %3227 = vmatpush1.msra.mxu0 0.0
        %3228 = vmatprep.subr.mxu0 0.0
        %3229 = vmatpush1.msra.mxu0 0.0
        %3230 = vmatprep.subr.mxu0 0.0
        %3231 = vmatpush1.msra.mxu0 0.0
        %3232 = vmatprep.subr.mxu0 0.0
        %3233 = vmatpush1.msra.mxu0 0.0
        %3234 = vmatprep.subr.mxu0 0.0
        %3235 = vmatpush1.msra.mxu0 0.0
        %3236 = vmatprep.subr.mxu0 0.0
        %3237 = vmatpush1.msra.mxu0 0.0
        %3238 = vmatprep.subr.mxu0 0.0
        %3239 = vmatpush1.msra.mxu0 0.0
        %3240 = vmatprep.subr.mxu0 0.0
        %3241 = vmatpush1.msra.mxu0 0.0
        %3242 = vmatprep.subr.mxu0 0.0
        %3243 = vmatpush1.msra.mxu0 0.0
        %3244 = vmatprep.subr.mxu0 0.0
        %3245 = vmatpush1.msra.mxu0 0.0
        %3246 = vmatprep.subr.mxu0 0.0
        %3247 = vmatpush1.msra.mxu0 0.0
        %3248 = vmatprep.subr.mxu0 0.0
        %3249 = vmatpush1.msra.mxu0 0.0
        %3250 = vmatprep.subr.mxu0 0.0
        %3251 = vmatpush1.msra.mxu0 0.0
        %3252 = vmatprep.subr.mxu0 0.0
        %3253 = vmatpush1.msra.mxu0 0.0
        %3254 = vmatprep.subr.mxu0 0.0
        %3255 = vmatpush1.msra.mxu0 0.0
        %3256 = vmatprep.subr.mxu0 0.0
        %3257 = vmatpush1.msra.mxu0 0.0
        %3258 = vmatprep.subr.mxu0 0.0
        %3259 = vmatpush1.msra.mxu0 0.0
        %3260 = vmatprep.mubr.f32.mxu0 0.0
        %3261 = vmatmul.mubr.f32.gmra.mrb[0].mxu0 %v3194
        %v3262 = vpop.f32.mrb[0].mxu0
        %v3263 = vadd.f32 0.0, %v3262
        %v3264 = vpop.f32.mrb[0].mxu0
        %v3265 = vadd.f32 0.0, %v3264
        %3266 = vdwg.mxu0
        %3267 = vmatprep.subr.mxu0 0.0
        %3268 = vmatpush1.msra.mxu0 %v3168
        %3269 = vmatprep.subr.mxu0 0.0
        %3270 = vmatpush1.msra.mxu0 0.0
        %3271 = vmatprep.subr.mxu0 0.0
        %3272 = vmatpush1.msra.mxu0 0.0
        %3273 = vmatprep.subr.mxu0 0.0
        %3274 = vmatpush1.msra.mxu0 0.0
        %3275 = vmatprep.subr.mxu0 0.0
        %3276 = vmatpush1.msra.mxu0 0.0
        %3277 = vmatprep.subr.mxu0 0.0
        %3278 = vmatpush1.msra.mxu0 0.0
        %3279 = vmatprep.subr.mxu0 0.0
        %3280 = vmatpush1.msra.mxu0 0.0
        %3281 = vmatprep.subr.mxu0 0.0
        %3282 = vmatpush1.msra.mxu0 0.0
        %3283 = vmatprep.subr.mxu0 0.0
        %3284 = vmatpush1.msra.mxu0 0.0
        %3285 = vmatprep.subr.mxu0 0.0
        %3286 = vmatpush1.msra.mxu0 0.0
        %3287 = vmatprep.subr.mxu0 0.0
        %3288 = vmatpush1.msra.mxu0 0.0
        %3289 = vmatprep.subr.mxu0 0.0
        %3290 = vmatpush1.msra.mxu0 0.0
        %3291 = vmatprep.subr.mxu0 0.0
        %3292 = vmatpush1.msra.mxu0 0.0
        %3293 = vmatprep.subr.mxu0 0.0
        %3294 = vmatpush1.msra.mxu0 0.0
        %3295 = vmatprep.subr.mxu0 0.0
        %3296 = vmatpush1.msra.mxu0 0.0
        %3297 = vmatprep.subr.mxu0 0.0
        %3298 = vmatpush1.msra.mxu0 0.0
        %3299 = vmatprep.subr.mxu0 0.0
        %3300 = vmatpush1.msra.mxu0 0.0
        %3301 = vmatprep.subr.mxu0 0.0
        %3302 = vmatpush1.msra.mxu0 0.0
        %3303 = vmatprep.subr.mxu0 0.0
        %3304 = vmatpush1.msra.mxu0 0.0
        %3305 = vmatprep.subr.mxu0 0.0
        %3306 = vmatpush1.msra.mxu0 0.0
        %3307 = vmatprep.subr.mxu0 0.0
        %3308 = vmatpush1.msra.mxu0 0.0
        %3309 = vmatprep.subr.mxu0 0.0
        %3310 = vmatpush1.msra.mxu0 0.0
        %3311 = vmatprep.subr.mxu0 0.0
        %3312 = vmatpush1.msra.mxu0 0.0
        %3313 = vmatprep.subr.mxu0 0.0
        %3314 = vmatpush1.msra.mxu0 0.0
        %3315 = vmatprep.subr.mxu0 0.0
        %3316 = vmatpush1.msra.mxu0 0.0
        %3317 = vmatprep.subr.mxu0 0.0
        %3318 = vmatpush1.msra.mxu0 0.0
        %3319 = vmatprep.subr.mxu0 0.0
        %3320 = vmatpush1.msra.mxu0 0.0
        %3321 = vmatprep.subr.mxu0 0.0
        %3322 = vmatpush1.msra.mxu0 0.0
        %3323 = vmatprep.subr.mxu0 0.0
        %3324 = vmatpush1.msra.mxu0 0.0
        %3325 = vmatprep.subr.mxu0 0.0
        %3326 = vmatpush1.msra.mxu0 0.0
        %3327 = vmatprep.subr.mxu0 0.0
        %3328 = vmatpush1.msra.mxu0 0.0
        %3329 = vmatprep.subr.mxu0 0.0
        %3330 = vmatpush1.msra.mxu0 0.0
        %3331 = vmatprep.mubr.f32.mxu0 0.0
        %3332 = vmatmul.mubr.f32.gmra.mrb[0].mxu0 %v3194
        %v3333 = vpop.f32.mrb[0].mxu0
        %v3334 = vadd.f32 0.0, %v3333
        %v3335 = vpop.f32.mrb[0].mxu0
        %3336 = vdwg.mxu0
        %v3337 = vadd.f32 %v3190, %v3263
        %v3338 = vadd.f32 %v3191, %v3265
        %v3339 = vadd.f32 %v3192, %v3334
        %3340 = vst [vmem:[#allocation3] sm:$0xff] %v3337
        %3341 = vst [vmem:[#allocation3 + $0x8] sm:$0xff] %v3338
        %3342 = vst.msk [vmem:[#allocation3 + $0x10] sm:$0xff] %vm3033, %v3339
        %p3343 = scmp.eq.s32.totalorder %s38, 1
        // Predicated region
        $region129: #{tpu_custom_call.1} parent=103 // pred_check
          %p3344 = pneg %p3343
        $region130: #{tpu_custom_call.1} parent=103 // pred_check_branch
          %3346 = sbr.rel (%p3344) target = $region132
        $region131: #{tpu_custom_call.1} parent=103 // pred_region
          %v3347 = vld [vmem:[%s6] sm:$0xff]
          %v3349 = vsel %vm846, %v829, 0
          %3351 = vmatprep.subr.mxu0 0.0
          %3352 = vmatpush1.msra.mxu0 %v3347
          %3353 = vmatprep.subr.mxu0 0.0
          %3354 = vmatpush1.msra.mxu0 0.0
          %3355 = vmatprep.subr.mxu0 0.0
          %3356 = vmatpush1.msra.mxu0 0.0
          %3357 = vmatprep.subr.mxu0 0.0
          %3358 = vmatpush1.msra.mxu0 0.0
          %3359 = vmatprep.subr.mxu0 0.0
          %3360 = vmatpush1.msra.mxu0 0.0
          %3361 = vmatprep.subr.mxu0 0.0
          %3362 = vmatpush1.msra.mxu0 0.0
          %3363 = vmatprep.subr.mxu0 0.0
          %3364 = vmatpush1.msra.mxu0 0.0
          %3365 = vmatprep.subr.mxu0 0.0
          %3366 = vmatpush1.msra.mxu0 0.0
          %3367 = vmatprep.subr.mxu0 0.0
          %3368 = vmatpush1.msra.mxu0 0.0
          %3369 = vmatprep.subr.mxu0 0.0
          %3370 = vmatpush1.msra.mxu0 0.0
          %3371 = vmatprep.subr.mxu0 0.0
          %3372 = vmatpush1.msra.mxu0 0.0
          %3373 = vmatprep.subr.mxu0 0.0
          %3374 = vmatpush1.msra.mxu0 0.0
          %3375 = vmatprep.subr.mxu0 0.0
          %3376 = vmatpush1.msra.mxu0 0.0
          %3377 = vmatprep.subr.mxu0 0.0
          %3378 = vmatpush1.msra.mxu0 0.0
          %3379 = vmatprep.subr.mxu0 0.0
          %3380 = vmatpush1.msra.mxu0 0.0
          %3381 = vmatprep.subr.mxu0 0.0
          %3382 = vmatpush1.msra.mxu0 0.0
          %3383 = vmatprep.subr.mxu0 0.0
          %3384 = vmatpush1.msra.mxu0 0.0
          %3385 = vmatprep.subr.mxu0 0.0
          %3386 = vmatpush1.msra.mxu0 0.0
          %3387 = vmatprep.subr.mxu0 0.0
          %3388 = vmatpush1.msra.mxu0 0.0
          %3389 = vmatprep.subr.mxu0 0.0
          %3390 = vmatpush1.msra.mxu0 0.0
          %3391 = vmatprep.subr.mxu0 0.0
          %3392 = vmatpush1.msra.mxu0 0.0
          %3393 = vmatprep.subr.mxu0 0.0
          %3394 = vmatpush1.msra.mxu0 0.0
          %3395 = vmatprep.subr.mxu0 0.0
          %3396 = vmatpush1.msra.mxu0 0.0
          %3397 = vmatprep.subr.mxu0 0.0
          %3398 = vmatpush1.msra.mxu0 0.0
          %3399 = vmatprep.subr.mxu0 0.0
          %3400 = vmatpush1.msra.mxu0 0.0
          %3401 = vmatprep.subr.mxu0 0.0
          %3402 = vmatpush1.msra.mxu0 0.0
          %3403 = vmatprep.subr.mxu0 0.0
          %3404 = vmatpush1.msra.mxu0 0.0
          %3405 = vmatprep.subr.mxu0 0.0
          %3406 = vmatpush1.msra.mxu0 0.0
          %3407 = vmatprep.subr.mxu0 0.0
          %3408 = vmatpush1.msra.mxu0 0.0
          %3409 = vmatprep.subr.mxu0 0.0
          %3410 = vmatpush1.msra.mxu0 0.0
          %3411 = vmatprep.subr.mxu0 0.0
          %3412 = vmatpush1.msra.mxu0 0.0
          %3413 = vmatprep.subr.mxu0 0.0
          %3414 = vmatpush1.msra.mxu0 0.0
          %3415 = vmatprep.mubr.f32.mxu0 0.0
          %3416 = vmatmul.mubr.f32.gmra.mrb[0].mxu0 %v3349
          %v3417 = vpop.f32.mrb[0].mxu0
          %v3418 = vadd.f32 0.0, %v3417
          %v3419 = vpop.f32.mrb[0].mxu0
          %3420 = vdwg.mxu0
          %s3421 = scalar_lea.vmem %s6, 8
          %v3422 = vld [vmem:[%s3421] sm:$0xff]
          %3423 = vrot.lane.b32.xlu0 %v829, 120
          %v3424 = vpop.permute.xlu0 %3423
          %3426 = vrot.lane.b32.xlu0 %v829, 112
          %v3427 = vpop.permute.xlu0 %3426
          %3429 = vrot.lane.b32.xlu0 %v3424, 120
          %v3430 = vpop.permute.xlu0 %3429
          %3431 = vrot.lane.b32.xlu0 %v3427, 120
          %v3432 = vpop.permute.xlu0 %3431
          %v3433 = vsel %vm846, %v3424, 0
          %v3435 = vsel %vm846, %v3430, 0
          %v3437 = vsel %vm846, %v3432, 0
          %3439 = vmatprep.subr.mxu0 0.0
          %3440 = vmatpush1.msra.mxu0 %v3422
          %3441 = vmatprep.subr.mxu0 0.0
          %3442 = vmatpush1.msra.mxu0 0.0
          %3443 = vmatprep.subr.mxu0 0.0
          %3444 = vmatpush1.msra.mxu0 0.0
          %3445 = vmatprep.subr.mxu0 0.0
          %3446 = vmatpush1.msra.mxu0 0.0
          %3447 = vmatprep.subr.mxu0 0.0
          %3448 = vmatpush1.msra.mxu0 0.0
          %3449 = vmatprep.subr.mxu0 0.0
          %3450 = vmatpush1.msra.mxu0 0.0
          %3451 = vmatprep.subr.mxu0 0.0
          %3452 = vmatpush1.msra.mxu0 0.0
          %3453 = vmatprep.subr.mxu0 0.0
          %3454 = vmatpush1.msra.mxu0 0.0
          %3455 = vmatprep.subr.mxu0 0.0
          %3456 = vmatpush1.msra.mxu0 0.0
          %3457 = vmatprep.subr.mxu0 0.0
          %3458 = vmatpush1.msra.mxu0 0.0
          %3459 = vmatprep.subr.mxu0 0.0
          %3460 = vmatpush1.msra.mxu0 0.0
          %3461 = vmatprep.subr.mxu0 0.0
          %3462 = vmatpush1.msra.mxu0 0.0
          %3463 = vmatprep.subr.mxu0 0.0
          %3464 = vmatpush1.msra.mxu0 0.0
          %3465 = vmatprep.subr.mxu0 0.0
          %3466 = vmatpush1.msra.mxu0 0.0
          %3467 = vmatprep.subr.mxu0 0.0
          %3468 = vmatpush1.msra.mxu0 0.0
          %3469 = vmatprep.subr.mxu0 0.0
          %3470 = vmatpush1.msra.mxu0 0.0
          %3471 = vmatprep.subr.mxu0 0.0
          %3472 = vmatpush1.msra.mxu0 0.0
          %3473 = vmatprep.subr.mxu0 0.0
          %3474 = vmatpush1.msra.mxu0 0.0
          %3475 = vmatprep.subr.mxu0 0.0
          %3476 = vmatpush1.msra.mxu0 0.0
          %3477 = vmatprep.subr.mxu0 0.0
          %3478 = vmatpush1.msra.mxu0 0.0
          %3479 = vmatprep.subr.mxu0 0.0
          %3480 = vmatpush1.msra.mxu0 0.0
          %3481 = vmatprep.subr.mxu0 0.0
          %3482 = vmatpush1.msra.mxu0 0.0
          %3483 = vmatprep.subr.mxu0 0.0
          %3484 = vmatpush1.msra.mxu0 0.0
          %3485 = vmatprep.subr.mxu0 0.0
          %3486 = vmatpush1.msra.mxu0 0.0
          %3487 = vmatprep.subr.mxu0 0.0
          %3488 = vmatpush1.msra.mxu0 0.0
          %3489 = vmatprep.subr.mxu0 0.0
          %3490 = vmatpush1.msra.mxu0 0.0
          %3491 = vmatprep.subr.mxu0 0.0
          %3492 = vmatpush1.msra.mxu0 0.0
          %3493 = vmatprep.subr.mxu0 0.0
          %3494 = vmatpush1.msra.mxu0 0.0
          %3495 = vmatprep.subr.mxu0 0.0
          %3496 = vmatpush1.msra.mxu0 0.0
          %3497 = vmatprep.subr.mxu0 0.0
          %3498 = vmatpush1.msra.mxu0 0.0
          %3499 = vmatprep.subr.mxu0 0.0
          %3500 = vmatpush1.msra.mxu0 0.0
          %3501 = vmatprep.subr.mxu0 0.0
          %3502 = vmatpush1.msra.mxu0 0.0
          %3503 = vmatprep.mubr.f32.mxu0 0.0
          %3504 = vmatmul.mubr.f32.gmra.mrb[0].mxu0 %v3433
          %v3505 = vpop.f32.mrb[0].mxu0
          %v3506 = vadd.f32 0.0, %v3505
          %v3507 = vpop.f32.mrb[0].mxu0
          %3508 = vmatprep.mubr.f32.mxu0 0.0
          %3509 = vmatmul.mubr.f32.gmra.mrb[0].mxu0 %v3435
          %v3510 = vpop.f32.mrb[0].mxu0
          %v3511 = vadd.f32 0.0, %v3510
          %v3512 = vpop.f32.mrb[0].mxu0
          %3513 = vmatprep.mubr.f32.mxu0 0.0
          %3514 = vmatmul.mubr.f32.gmra.mrb[0].mxu0 %v3437
          %v3515 = vpop.f32.mrb[0].mxu0
          %v3516 = vadd.f32 0.0, %v3515
          %v3517 = vpop.f32.mrb[0].mxu0
          %3518 = vdwg.mxu0
          %s3519 = scalar_lea.vmem %s6, 16
          %v3520 = vld [vmem:[%s3519] sm:$0xff]
          %3521 = vrot.lane.b32.xlu0 %v829, 104
          %v3522 = vpop.permute.xlu0 %3521
          %3523 = vrot.lane.b32.xlu0 %v829, 96
          %v3524 = vpop.permute.xlu0 %3523
          %3525 = vrot.lane.b32.xlu0 %v829, 88
          %v3526 = vpop.permute.xlu0 %3525
          %3527 = vrot.lane.b32.xlu0 %v829, 80
          %v3528 = vpop.permute.xlu0 %3527
          %3529 = vrot.lane.b32.xlu0 %v829, 72
          %v3530 = vpop.permute.xlu0 %3529
          %3531 = vrot.lane.b32.xlu0 %v829, 64
          %v3532 = vpop.permute.xlu0 %3531
          %3533 = vrot.lane.b32.xlu0 %v3424, 96
          %v3534 = vpop.permute.xlu0 %3533
          %3535 = vrot.lane.b32.xlu0 %v3427, 96
          %v3536 = vpop.permute.xlu0 %3535
          %3537 = vrot.lane.b32.xlu0 %v3522, 96
          %v3538 = vpop.permute.xlu0 %3537
          %3539 = vrot.lane.b32.xlu0 %v3524, 96
          %v3540 = vpop.permute.xlu0 %3539
          %3541 = vrot.lane.b32.xlu0 %v3526, 96
          %v3542 = vpop.permute.xlu0 %3541
          %3543 = vrot.lane.b32.xlu0 %v3528, 96
          %v3544 = vpop.permute.xlu0 %3543
          %3545 = vrot.lane.b32.xlu0 %v3530, 96
          %v3546 = vpop.permute.xlu0 %3545
          %3547 = vrot.lane.b32.xlu0 %v3532, 96
          %v3548 = vpop.permute.xlu0 %3547
          %v3549 = vsel %vm846, %v3524, 0
          %v3551 = vsel %vm846, %v3534, 0
          %v3553 = vsel %vm846, %v3536, 0
          %v3555 = vsel %vm846, %v3538, 0
          %v3557 = vsel %vm846, %v3540, 0
          %v3559 = vsel %vm846, %v3542, 0
          %v3561 = vsel %vm846, %v3544, 0
          %v3563 = vsel %vm846, %v3546, 0
          %v3565 = vsel %vm846, %v3548, 0
          %3567 = vmatprep.subr.mxu0 0.0
          %3568 = vmatpush1.msra.mxu0 %v3520
          %3569 = vmatprep.subr.mxu0 0.0
          %3570 = vmatpush1.msra.mxu0 0.0
          %3571 = vmatprep.subr.mxu0 0.0
          %3572 = vmatpush1.msra.mxu0 0.0
          %3573 = vmatprep.subr.mxu0 0.0
          %3574 = vmatpush1.msra.mxu0 0.0
          %3575 = vmatprep.subr.mxu0 0.0
          %3576 = vmatpush1.msra.mxu0 0.0
          %3577 = vmatprep.subr.mxu0 0.0
          %3578 = vmatpush1.msra.mxu0 0.0
          %3579 = vmatprep.subr.mxu0 0.0
          %3580 = vmatpush1.msra.mxu0 0.0
          %3581 = vmatprep.subr.mxu0 0.0
          %3582 = vmatpush1.msra.mxu0 0.0
          %3583 = vmatprep.subr.mxu0 0.0
          %3584 = vmatpush1.msra.mxu0 0.0
          %3585 = vmatprep.subr.mxu0 0.0
          %3586 = vmatpush1.msra.mxu0 0.0
          %3587 = vmatprep.subr.mxu0 0.0
          %3588 = vmatpush1.msra.mxu0 0.0
          %3589 = vmatprep.subr.mxu0 0.0
          %3590 = vmatpush1.msra.mxu0 0.0
          %3591 = vmatprep.subr.mxu0 0.0
          %3592 = vmatpush1.msra.mxu0 0.0
          %3593 = vmatprep.subr.mxu0 0.0
          %3594 = vmatpush1.msra.mxu0 0.0
          %3595 = vmatprep.subr.mxu0 0.0
          %3596 = vmatpush1.msra.mxu0 0.0
          %3597 = vmatprep.subr.mxu0 0.0
          %3598 = vmatpush1.msra.mxu0 0.0
          %3599 = vmatprep.subr.mxu0 0.0
          %3600 = vmatpush1.msra.mxu0 0.0
          %3601 = vmatprep.subr.mxu0 0.0
          %3602 = vmatpush1.msra.mxu0 0.0
          %3603 = vmatprep.subr.mxu0 0.0
          %3604 = vmatpush1.msra.mxu0 0.0
          %3605 = vmatprep.subr.mxu0 0.0
          %3606 = vmatpush1.msra.mxu0 0.0
          %3607 = vmatprep.subr.mxu0 0.0
          %3608 = vmatpush1.msra.mxu0 0.0
          %3609 = vmatprep.subr.mxu0 0.0
          %3610 = vmatpush1.msra.mxu0 0.0
          %3611 = vmatprep.subr.mxu0 0.0
          %3612 = vmatpush1.msra.mxu0 0.0
          %3613 = vmatprep.subr.mxu0 0.0
          %3614 = vmatpush1.msra.mxu0 0.0
          %3615 = vmatprep.subr.mxu0 0.0
          %3616 = vmatpush1.msra.mxu0 0.0
          %3617 = vmatprep.subr.mxu0 0.0
          %3618 = vmatpush1.msra.mxu0 0.0
          %3619 = vmatprep.subr.mxu0 0.0
          %3620 = vmatpush1.msra.mxu0 0.0
          %3621 = vmatprep.subr.mxu0 0.0
          %3622 = vmatpush1.msra.mxu0 0.0
          %3623 = vmatprep.subr.mxu0 0.0
          %3624 = vmatpush1.msra.mxu0 0.0
          %3625 = vmatprep.subr.mxu0 0.0
          %3626 = vmatpush1.msra.mxu0 0.0
          %3627 = vmatprep.subr.mxu0 0.0
          %3628 = vmatpush1.msra.mxu0 0.0
          %3629 = vmatprep.subr.mxu0 0.0
          %3630 = vmatpush1.msra.mxu0 0.0
          %3631 = vmatprep.mubr.f32.mxu0 0.0
          %3632 = vmatmul.mubr.f32.gmra.mrb[0].mxu0 %v3549
          %v3633 = vpop.f32.mrb[0].mxu0
          %v3634 = vadd.f32 0.0, %v3633
          %v3635 = vpop.f32.mrb[0].mxu0
          %3636 = vmatprep.mubr.f32.mxu0 0.0
          %3637 = vmatmul.mubr.f32.gmra.mrb[0].mxu0 %v3551
          %v3638 = vpop.f32.mrb[0].mxu0
          %v3639 = vadd.f32 0.0, %v3638
          %v3640 = vpop.f32.mrb[0].mxu0
          %3641 = vmatprep.mubr.f32.mxu0 0.0
          %3642 = vmatmul.mubr.f32.gmra.mrb[0].mxu0 %v3553
          %v3643 = vpop.f32.mrb[0].mxu0
          %v3644 = vadd.f32 0.0, %v3643
          %v3645 = vpop.f32.mrb[0].mxu0
          %3646 = vmatprep.mubr.f32.mxu0 0.0
          %3647 = vmatmul.mubr.f32.gmra.mrb[0].mxu0 %v3555
          %v3648 = vpop.f32.mrb[0].mxu0
          %v3649 = vadd.f32 0.0, %v3648
          %v3650 = vpop.f32.mrb[0].mxu0
          %3651 = vmatprep.mubr.f32.mxu0 0.0
          %3652 = vmatmul.mubr.f32.gmra.mrb[0].mxu0 %v3557
          %v3653 = vpop.f32.mrb[0].mxu0
          %v3654 = vadd.f32 0.0, %v3653
          %v3655 = vpop.f32.mrb[0].mxu0
          %3656 = vmatprep.mubr.f32.mxu0 0.0
          %3657 = vmatmul.mubr.f32.gmra.mrb[0].mxu0 %v3559
          %v3658 = vpop.f32.mrb[0].mxu0
          %v3659 = vadd.f32 0.0, %v3658
          %v3660 = vpop.f32.mrb[0].mxu0
          %3661 = vmatprep.mubr.f32.mxu0 0.0
          %3662 = vmatmul.mubr.f32.gmra.mrb[0].mxu0 %v3561
          %v3663 = vpop.f32.mrb[0].mxu0
          %v3664 = vadd.f32 0.0, %v3663
          %v3665 = vpop.f32.mrb[0].mxu0
          %3666 = vmatprep.mubr.f32.mxu0 0.0
          %3667 = vmatmul.mubr.f32.gmra.mrb[0].mxu0 %v3563
          %v3668 = vpop.f32.mrb[0].mxu0
          %v3669 = vadd.f32 0.0, %v3668
          %v3670 = vpop.f32.mrb[0].mxu0
          %3671 = vmatprep.mubr.f32.mxu0 0.0
          %3672 = vmatmul.mubr.f32.gmra.mrb[0].mxu0 %v3565
          %v3673 = vpop.f32.mrb[0].mxu0
          %v3674 = vadd.f32 0.0, %v3673
          %v3675 = vpop.f32.mrb[0].mxu0
          %3676 = vdwg.mxu0
          %3678 = vrot.lane.b32.xlu0 %v3418, 120
          %v3679 = vpop.permute.xlu0 %3678
          %v3681 = vmul.f32 %v3418, %v3679
          %3683 = vrot.lane.b32.xlu0 %v3506, 120
          %v3684 = vpop.permute.xlu0 %3683
          %v3686 = vmul.f32 %v3418, %v3684
          %3688 = vrot.lane.b32.xlu0 %v3511, 120
          %v3689 = vpop.permute.xlu0 %3688
          %v3691 = vmul.f32 %v3418, %v3689
          %3693 = vrot.lane.b32.xlu0 %v3516, 120
          %v3694 = vpop.permute.xlu0 %3693
          %v3696 = vmul.f32 %v3418, %v3694
          %3698 = vrot.lane.b32.xlu0 %v3634, 120
          %v3699 = vpop.permute.xlu0 %3698
          %v3701 = vmul.f32 %v3418, %v3699
          %3703 = vrot.lane.b32.xlu0 %v3639, 120
          %v3704 = vpop.permute.xlu0 %3703
          %v3706 = vmul.f32 %v3418, %v3704
          %3708 = vrot.lane.b32.xlu0 %v3644, 120
          %v3709 = vpop.permute.xlu0 %3708
          %v3711 = vmul.f32 %v3418, %v3709
          %3713 = vrot.lane.b32.xlu0 %v3649, 120
          %v3714 = vpop.permute.xlu0 %3713
          %v3716 = vmul.f32 %v3418, %v3714
          %3718 = vrot.lane.b32.xlu0 %v3654, 120
          %v3719 = vpop.permute.xlu0 %3718
          %v3721 = vmul.f32 %v3418, %v3719
          %3723 = vrot.lane.b32.xlu0 %v3659, 120
          %v3724 = vpop.permute.xlu0 %3723
          %v3726 = vmul.f32 %v3418, %v3724
          %3728 = vrot.lane.b32.xlu0 %v3664, 120
          %v3729 = vpop.permute.xlu0 %3728
          %v3731 = vmul.f32 %v3418, %v3729
          %3733 = vrot.lane.b32.xlu0 %v3669, 120
          %v3734 = vpop.permute.xlu0 %3733
          %v3736 = vmul.f32 %v3418, %v3734
          %3738 = vrot.lane.b32.xlu0 %v3674, 120
          %v3739 = vpop.permute.xlu0 %3738
          %v3741 = vmul.f32 %v3418, %v3739
          %v3742 = vmul.f32 %v3506, %v3679
          %v3743 = vmul.f32 %v3511, %v3679
          %v3744 = vmul.f32 %v3516, %v3679
          %v3745 = vadd.f32 %v3686, %v3742
          %v3746 = vadd.f32 %v3691, %v3743
          %v3747 = vadd.f32 %v3696, %v3744
          %v3748 = vmul.f32 %v3506, %v3684
          %v3749 = vmul.f32 %v3511, %v3689
          %v3750 = vadd.f32 %v3748, %v3749
          %v3751 = vmul.f32 %v3516, %v3694
          %v3752 = vadd.f32 %v3750, %v3751
          %v3753 = vadd.f32 %v3681, %v3752
          %v3754 = vmul.f32 %v3506, %v3689
          %v3755 = vmul.f32 %v3506, %v3694
          %v3756 = vmul.f32 %v3511, %v3684
          %v3757 = vmul.f32 %v3511, %v3694
          %v3758 = vmul.f32 %v3516, %v3684
          %v3759 = vmul.f32 %v3516, %v3689
          %v3760 = vadd.f32 %v3701, %v3748
          %v3761 = vadd.f32 %v3706, %v3754
          %v3762 = vadd.f32 %v3711, %v3755
          %v3763 = vadd.f32 %v3716, %v3756
          %v3764 = vadd.f32 %v3721, %v3749
          %v3765 = vadd.f32 %v3726, %v3757
          %v3766 = vadd.f32 %v3731, %v3758
          %v3767 = vadd.f32 %v3736, %v3759
          %v3768 = vadd.f32 %v3741, %v3751
          %v3769 = vmul.f32 %v3506, %v3699
          %v3770 = vmul.f32 %v3511, %v3714
          %v3771 = vadd.f32 %v3769, %v3770
          %v3772 = vmul.f32 %v3516, %v3729
          %v3773 = vadd.f32 %v3771, %v3772
          %v3774 = vmul.f32 %v3506, %v3704
          %v3775 = vmul.f32 %v3511, %v3719
          %v3776 = vadd.f32 %v3774, %v3775
          %v3777 = vmul.f32 %v3516, %v3734
          %v3778 = vadd.f32 %v3776, %v3777
          %v3779 = vmul.f32 %v3506, %v3709
          %v3780 = vmul.f32 %v3511, %v3724
          %v3781 = vadd.f32 %v3779, %v3780
          %v3782 = vmul.f32 %v3516, %v3739
          %v3783 = vadd.f32 %v3781, %v3782
          %v3784 = vadd.f32 %v3745, %v3773
          %v3785 = vadd.f32 %v3746, %v3778
          %v3786 = vadd.f32 %v3747, %v3783
          %v3787 = vmul.f32 %v3634, %v3679
          %v3788 = vmul.f32 %v3639, %v3679
          %v3789 = vmul.f32 %v3644, %v3679
          %v3790 = vmul.f32 %v3649, %v3679
          %v3791 = vmul.f32 %v3654, %v3679
          %v3792 = vmul.f32 %v3659, %v3679
          %v3793 = vmul.f32 %v3664, %v3679
          %v3794 = vmul.f32 %v3669, %v3679
          %v3795 = vmul.f32 %v3674, %v3679
          %v3796 = vadd.f32 %v3760, %v3787
          %v3797 = vadd.f32 %v3761, %v3788
          %v3798 = vadd.f32 %v3762, %v3789
          %v3799 = vadd.f32 %v3763, %v3790
          %v3800 = vadd.f32 %v3764, %v3791
          %v3801 = vadd.f32 %v3765, %v3792
          %v3802 = vadd.f32 %v3766, %v3793
          %v3803 = vadd.f32 %v3767, %v3794
          %v3804 = vadd.f32 %v3768, %v3795
          %v3805 = vmul.f32 %v3634, %v3684
          %v3806 = vmul.f32 %v3639, %v3689
          %v3807 = vadd.f32 %v3805, %v3806
          %v3808 = vmul.f32 %v3644, %v3694
          %v3809 = vadd.f32 %v3807, %v3808
          %v3810 = vmul.f32 %v3649, %v3684
          %v3811 = vmul.f32 %v3654, %v3689
          %v3812 = vadd.f32 %v3810, %v3811
          %v3813 = vmul.f32 %v3659, %v3694
          %v3814 = vadd.f32 %v3812, %v3813
          %v3815 = vmul.f32 %v3664, %v3684
          %v3816 = vmul.f32 %v3669, %v3689
          %v3817 = vadd.f32 %v3815, %v3816
          %v3818 = vmul.f32 %v3674, %v3694
          %v3819 = vadd.f32 %v3817, %v3818
          %v3820 = vadd.f32 %v3784, %v3809
          %v3821 = vadd.f32 %v3785, %v3814
          %v3822 = vadd.f32 %v3786, %v3819
          %v3823 = vmul.f32 %v3634, %v3699
          %v3824 = vmul.f32 %v3639, %v3704
          %v3825 = vadd.f32 %v3823, %v3824
          %v3826 = vmul.f32 %v3644, %v3709
          %v3827 = vadd.f32 %v3825, %v3826
          %v3828 = vmul.f32 %v3649, %v3714
          %v3829 = vadd.f32 %v3827, %v3828
          %v3830 = vmul.f32 %v3654, %v3719
          %v3831 = vadd.f32 %v3829, %v3830
          %v3832 = vmul.f32 %v3659, %v3724
          %v3833 = vadd.f32 %v3831, %v3832
          %v3834 = vmul.f32 %v3664, %v3729
          %v3835 = vadd.f32 %v3833, %v3834
          %v3836 = vmul.f32 %v3669, %v3734
          %v3837 = vadd.f32 %v3835, %v3836
          %v3838 = vmul.f32 %v3674, %v3739
          %v3839 = vadd.f32 %v3837, %v3838
          %v3840 = vadd.f32 %v3753, %v3839
          %v3841 = vmul.f32 %v3639, %v3714
          %v3842 = vadd.f32 %v3823, %v3841
          %v3843 = vmul.f32 %v3644, %v3729
          %v3844 = vadd.f32 %v3842, %v3843
          %v3845 = vmul.f32 %v3634, %v3704
          %v3846 = vmul.f32 %v3639, %v3719
          %v3847 = vadd.f32 %v3845, %v3846
          %v3848 = vmul.f32 %v3644, %v3734
          %v3849 = vadd.f32 %v3847, %v3848
          %v3850 = vmul.f32 %v3634, %v3709
          %v3851 = vmul.f32 %v3639, %v3724
          %v3852 = vadd.f32 %v3850, %v3851
          %v3853 = vmul.f32 %v3644, %v3739
          %v3854 = vadd.f32 %v3852, %v3853
          %v3855 = vmul.f32 %v3649, %v3699
          %v3856 = vmul.f32 %v3654, %v3714
          %v3857 = vadd.f32 %v3855, %v3856
          %v3858 = vmul.f32 %v3659, %v3729
          %v3859 = vadd.f32 %v3857, %v3858
          %v3860 = vmul.f32 %v3649, %v3704
          %v3861 = vadd.f32 %v3860, %v3830
          %v3862 = vmul.f32 %v3659, %v3734
          %v3863 = vadd.f32 %v3861, %v3862
          %v3864 = vmul.f32 %v3649, %v3709
          %v3865 = vmul.f32 %v3654, %v3724
          %v3866 = vadd.f32 %v3864, %v3865
          %v3867 = vmul.f32 %v3659, %v3739
          %v3868 = vadd.f32 %v3866, %v3867
          %v3869 = vmul.f32 %v3664, %v3699
          %v3870 = vmul.f32 %v3669, %v3714
          %v3871 = vadd.f32 %v3869, %v3870
          %v3872 = vmul.f32 %v3674, %v3729
          %v3873 = vadd.f32 %v3871, %v3872
          %v3874 = vmul.f32 %v3664, %v3704
          %v3875 = vmul.f32 %v3669, %v3719
          %v3876 = vadd.f32 %v3874, %v3875
          %v3877 = vmul.f32 %v3674, %v3734
          %v3878 = vadd.f32 %v3876, %v3877
          %v3879 = vmul.f32 %v3664, %v3709
          %v3880 = vmul.f32 %v3669, %v3724
          %v3881 = vadd.f32 %v3879, %v3880
          %v3882 = vadd.f32 %v3881, %v3838
          %v3883 = vadd.f32 %v3796, %v3844
          %v3884 = vadd.f32 %v3797, %v3849
          %v3885 = vadd.f32 %v3798, %v3854
          %v3886 = vadd.f32 %v3799, %v3859
          %v3887 = vadd.f32 %v3800, %v3863
          %v3888 = vadd.f32 %v3801, %v3868
          %v3889 = vadd.f32 %v3802, %v3873
          %v3890 = vadd.f32 %v3803, %v3878
          %v3891 = vadd.f32 %v3804, %v3882
          %v3892 = vld [vmem:[#allocation3] sm:$0xff]
          %v3893 = vld [vmem:[#allocation3 + $0x8] sm:$0xff]
          %v3894 = vld [vmem:[#allocation3 + $0x10] sm:$0xff]
          %3895 = vrot.lane.b32.xlu0 %v829, 8
          %v3896 = vpop.permute.xlu0 %3895
          %3899 = vrot.lane.b32.xlu0 %v3892, 16
          %v3900 = vpop.permute.xlu0 %3899
          %v3902 = vsel %vm846, %v3840, %v3896
          %v3903 = vsel %vm2567, %v3902, %v3900
          %v3904 = vsel %vm2569, %v3903, %v3900
          %v3905 = vsel %vm2571, %v3904, %v3900
          %v3906 = vld [vmem:[%s17] sm:$0xff]
          %v3907 = vld [vmem:[%s17 + $0x8] sm:$0xff]
          %v3908 = vld [vmem:[%s17 + $0x10] sm:$0xff]
          %v3909 = vld [vmem:[%s17 + $0x18] sm:$0xff]
          %v3910 = vld [vmem:[%s17 + $0x20] sm:$0xff]
          %v3911 = vld [vmem:[%s18] sm:$0x1]
          %v3913 = vlaneseq
          %v3914 = vshrl.u32 %v3913, 7
          %v3915 = vsub.s32 0, %v3914
          %v3916 = vrot.slane %v3911, %v3915
          %v3919 = vsel %vm2573, %v3905, 0
          %3921 = vmatprep.subr.mxu0 0.0
          %3922 = vmatpush1.msra.mxu0 %v3906
          %3923 = vmatprep.subr.mxu0 0.0
          %3924 = vmatpush1.msra.mxu0 %v3907
          %3925 = vmatprep.subr.mxu0 0.0
          %3926 = vmatpush1.msra.mxu0 %v3908
          %3927 = vmatprep.subr.mxu0 0.0
          %3928 = vmatpush1.msra.mxu0 %v3909
          %3929 = vmatprep.subr.mxu0 0.0
          %3930 = vmatpush1.msra.mxu0 %v3910
          %3931 = vmatprep.subr.mxu0 0.0
          %3932 = vmatpush1.msra.mxu0 0.0
          %3933 = vmatprep.subr.mxu0 0.0
          %3934 = vmatpush1.msra.mxu0 0.0
          %3935 = vmatprep.subr.mxu0 0.0
          %3936 = vmatpush1.msra.mxu0 0.0
          %3937 = vmatprep.subr.mxu0 0.0
          %3938 = vmatpush1.msra.mxu0 0.0
          %3939 = vmatprep.subr.mxu0 0.0
          %3940 = vmatpush1.msra.mxu0 0.0
          %3941 = vmatprep.subr.mxu0 0.0
          %3942 = vmatpush1.msra.mxu0 0.0
          %3943 = vmatprep.subr.mxu0 0.0
          %3944 = vmatpush1.msra.mxu0 0.0
          %3945 = vmatprep.subr.mxu0 0.0
          %3946 = vmatpush1.msra.mxu0 0.0
          %3947 = vmatprep.subr.mxu0 0.0
          %3948 = vmatpush1.msra.mxu0 0.0
          %3949 = vmatprep.subr.mxu0 0.0
          %3950 = vmatpush1.msra.mxu0 0.0
          %3951 = vmatprep.subr.mxu0 0.0
          %3952 = vmatpush1.msra.mxu0 0.0
          %3953 = vmatprep.subr.mxu0 0.0
          %3954 = vmatpush1.msra.mxu0 0.0
          %3955 = vmatprep.subr.mxu0 0.0
          %3956 = vmatpush1.msra.mxu0 0.0
          %3957 = vmatprep.subr.mxu0 0.0
          %3958 = vmatpush1.msra.mxu0 0.0
          %3959 = vmatprep.subr.mxu0 0.0
          %3960 = vmatpush1.msra.mxu0 0.0
          %3961 = vmatprep.subr.mxu0 0.0
          %3962 = vmatpush1.msra.mxu0 0.0
          %3963 = vmatprep.subr.mxu0 0.0
          %3964 = vmatpush1.msra.mxu0 0.0
          %3965 = vmatprep.subr.mxu0 0.0
          %3966 = vmatpush1.msra.mxu0 0.0
          %3967 = vmatprep.subr.mxu0 0.0
          %3968 = vmatpush1.msra.mxu0 0.0
          %3969 = vmatprep.subr.mxu0 0.0
          %3970 = vmatpush1.msra.mxu0 0.0
          %3971 = vmatprep.subr.mxu0 0.0
          %3972 = vmatpush1.msra.mxu0 0.0
          %3973 = vmatprep.subr.mxu0 0.0
          %3974 = vmatpush1.msra.mxu0 0.0
          %3975 = vmatprep.subr.mxu0 0.0
          %3976 = vmatpush1.msra.mxu0 0.0
          %3977 = vmatprep.subr.mxu0 0.0
          %3978 = vmatpush1.msra.mxu0 0.0
          %3979 = vmatprep.subr.mxu0 0.0
          %3980 = vmatpush1.msra.mxu0 0.0
          %3981 = vmatprep.subr.mxu0 0.0
          %3982 = vmatpush1.msra.mxu0 0.0
          %3983 = vmatprep.subr.mxu0 0.0
          %3984 = vmatpush1.msra.mxu0 0.0
          %3985 = vmatprep.mubr.f32.mxu0 0.0
          %3986 = vmatmul.mubr.f32.gmra.mrb[0].mxu0 %v3919
          %v3987 = vpop.f32.mrb[0].mxu0
          %v3988 = vadd.f32 %v3916, %v3987
          %v3989 = vpop.f32.mrb[0].mxu0
          %3990 = vdwg.mxu0
          %v3991 = vxor.u32 %v3988, 2147483648
          %v3992 = vmul.f32 %v3991, 1.442695
          %v3993 = vpow.pop %v3992
          %v3994 = vadd.f32 %v3993, 1.0
          %v3995 = vrcp.pop %v3994
          %v3996 = vmul.f32 1.0, %v3995
          %v3997 = vmul.f32 %v3988, %v3996
          %v3998 = vld [vmem:[%s19] sm:$0xff]
          %v3999 = vld [vmem:[%s20] sm:$0x1]
          %v4001 = vlaneseq
          %v4002 = vshrl.u32 %v4001, 7
          %v4003 = vsub.s32 0, %v4002
          %v4004 = vrot.slane %v3999, %v4003
          %v4007 = vsel %vm846, %v3997, 0
          %4009 = vmatprep.subr.mxu0 0.0
          %4010 = vmatpush1.msra.mxu0 %v3998
          %4011 = vmatprep.subr.mxu0 0.0
          %4012 = vmatpush1.msra.mxu0 0.0
          %4013 = vmatprep.subr.mxu0 0.0
          %4014 = vmatpush1.msra.mxu0 0.0
          %4015 = vmatprep.subr.mxu0 0.0
          %4016 = vmatpush1.msra.mxu0 0.0
          %4017 = vmatprep.subr.mxu0 0.0
          %4018 = vmatpush1.msra.mxu0 0.0
          %4019 = vmatprep.subr.mxu0 0.0
          %4020 = vmatpush1.msra.mxu0 0.0
          %4021 = vmatprep.subr.mxu0 0.0
          %4022 = vmatpush1.msra.mxu0 0.0
          %4023 = vmatprep.subr.mxu0 0.0
          %4024 = vmatpush1.msra.mxu0 0.0
          %4025 = vmatprep.subr.mxu0 0.0
          %4026 = vmatpush1.msra.mxu0 0.0
          %4027 = vmatprep.subr.mxu0 0.0
          %4028 = vmatpush1.msra.mxu0 0.0
          %4029 = vmatprep.subr.mxu0 0.0
          %4030 = vmatpush1.msra.mxu0 0.0
          %4031 = vmatprep.subr.mxu0 0.0
          %4032 = vmatpush1.msra.mxu0 0.0
          %4033 = vmatprep.subr.mxu0 0.0
          %4034 = vmatpush1.msra.mxu0 0.0
          %4035 = vmatprep.subr.mxu0 0.0
          %4036 = vmatpush1.msra.mxu0 0.0
          %4037 = vmatprep.subr.mxu0 0.0
          %4038 = vmatpush1.msra.mxu0 0.0
          %4039 = vmatprep.subr.mxu0 0.0
          %4040 = vmatpush1.msra.mxu0 0.0
          %4041 = vmatprep.subr.mxu0 0.0
          %4042 = vmatpush1.msra.mxu0 0.0
          %4043 = vmatprep.subr.mxu0 0.0
          %4044 = vmatpush1.msra.mxu0 0.0
          %4045 = vmatprep.subr.mxu0 0.0
          %4046 = vmatpush1.msra.mxu0 0.0
          %4047 = vmatprep.subr.mxu0 0.0
          %4048 = vmatpush1.msra.mxu0 0.0
          %4049 = vmatprep.subr.mxu0 0.0
          %4050 = vmatpush1.msra.mxu0 0.0
          %4051 = vmatprep.subr.mxu0 0.0
          %4052 = vmatpush1.msra.mxu0 0.0
          %4053 = vmatprep.subr.mxu0 0.0
          %4054 = vmatpush1.msra.mxu0 0.0
          %4055 = vmatprep.subr.mxu0 0.0
          %4056 = vmatpush1.msra.mxu0 0.0
          %4057 = vmatprep.subr.mxu0 0.0
          %4058 = vmatpush1.msra.mxu0 0.0
          %4059 = vmatprep.subr.mxu0 0.0
          %4060 = vmatpush1.msra.mxu0 0.0
          %4061 = vmatprep.subr.mxu0 0.0
          %4062 = vmatpush1.msra.mxu0 0.0
          %4063 = vmatprep.subr.mxu0 0.0
          %4064 = vmatpush1.msra.mxu0 0.0
          %4065 = vmatprep.subr.mxu0 0.0
          %4066 = vmatpush1.msra.mxu0 0.0
          %4067 = vmatprep.subr.mxu0 0.0
          %4068 = vmatpush1.msra.mxu0 0.0
          %4069 = vmatprep.subr.mxu0 0.0
          %4070 = vmatpush1.msra.mxu0 0.0
          %4071 = vmatprep.subr.mxu0 0.0
          %4072 = vmatpush1.msra.mxu0 0.0
          %4073 = vmatprep.mubr.f32.mxu0 0.0
          %4074 = vmatmul.mubr.f32.gmra.mrb[0].mxu0 %v4007
          %v4075 = vpop.f32.mrb[0].mxu0
          %v4076 = vadd.f32 %v4004, %v4075
          %v4077 = vpop.f32.mrb[0].mxu0
          %4078 = vdwg.mxu0
          %4079 = vrot.lane.b32.xlu0 %v3892, 120
          %v4080 = vpop.permute.xlu0 %4079
          %4081 = vrot.lane.b32.xlu0 %v3892, 112
          %v4082 = vpop.permute.xlu0 %4081
          %4083 = vrot.lane.b32.xlu0 %v4080, 120
          %v4084 = vpop.permute.xlu0 %4083
          %4085 = vrot.lane.b32.xlu0 %v4082, 120
          %v4086 = vpop.permute.xlu0 %4085
          %4090 = vrot.lane.b32.xlu0 %v3892, 104
          %v4091 = vpop.permute.xlu0 %4090
          %4092 = vrot.lane.b32.xlu0 %v4080, 104
          %v4093 = vpop.permute.xlu0 %4092
          %4094 = vrot.lane.b32.xlu0 %v4082, 104
          %v4095 = vpop.permute.xlu0 %4094
          %4099 = vrot.lane.b32.xlu0 %v3892, 88
          %v4100 = vpop.permute.xlu0 %4099
          %4101 = vrot.lane.b32.xlu0 %v4080, 88
          %v4102 = vpop.permute.xlu0 %4101
          %4103 = vrot.lane.b32.xlu0 %v4082, 88
          %v4104 = vpop.permute.xlu0 %4103
          %v4108 = vsel %vm846, %v3820, %v829
          %v4109 = vsel %vm846, %v3821, %v3424
          %v4110 = vsel %vm846, %v3822, %v3427
          %v4111 = vsel %vm2567, %v4108, %v4080
          %v4112 = vsel %vm2567, %v4109, %v4084
          %v4113 = vsel %vm2567, %v4110, %v4086
          %v4114 = vsel %vm2569, %v4111, %v4091
          %v4115 = vsel %vm2569, %v4112, %v4093
          %v4116 = vsel %vm2569, %v4113, %v4095
          %v4117 = vsel %vm2571, %v4114, %v4100
          %v4118 = vsel %vm2571, %v4115, %v4102
          %v4119 = vsel %vm2571, %v4116, %v4104
          %s4120 = scalar_lea.vmem %s17, 40
          %v4121 = vld [vmem:[%s4120] sm:$0xff]
          %v4122 = vld [vmem:[%s4120 + $0x8] sm:$0xff]
          %v4123 = vld [vmem:[%s4120 + $0x10] sm:$0xff]
          %v4124 = vld [vmem:[%s4120 + $0x18] sm:$0xff]
          %v4125 = vld [vmem:[%s4120 + $0x20] sm:$0xff]
          %v4127 = vsel %vm2573, %v4117, 0
          %v4130 = vsel %vm2573, %v4118, 0
          %v4133 = vsel %vm2573, %v4119, 0
          %4135 = vmatprep.subr.mxu0 0.0
          %4136 = vmatpush1.msra.mxu0 %v4121
          %4137 = vmatprep.subr.mxu0 0.0
          %4138 = vmatpush1.msra.mxu0 %v4122
          %4139 = vmatprep.subr.mxu0 0.0
          %4140 = vmatpush1.msra.mxu0 %v4123
          %4141 = vmatprep.subr.mxu0 0.0
          %4142 = vmatpush1.msra.mxu0 %v4124
          %4143 = vmatprep.subr.mxu0 0.0
          %4144 = vmatpush1.msra.mxu0 %v4125
          %4145 = vmatprep.subr.mxu0 0.0
          %4146 = vmatpush1.msra.mxu0 0.0
          %4147 = vmatprep.subr.mxu0 0.0
          %4148 = vmatpush1.msra.mxu0 0.0
          %4149 = vmatprep.subr.mxu0 0.0
          %4150 = vmatpush1.msra.mxu0 0.0
          %4151 = vmatprep.subr.mxu0 0.0
          %4152 = vmatpush1.msra.mxu0 0.0
          %4153 = vmatprep.subr.mxu0 0.0
          %4154 = vmatpush1.msra.mxu0 0.0
          %4155 = vmatprep.subr.mxu0 0.0
          %4156 = vmatpush1.msra.mxu0 0.0
          %4157 = vmatprep.subr.mxu0 0.0
          %4158 = vmatpush1.msra.mxu0 0.0
          %4159 = vmatprep.subr.mxu0 0.0
          %4160 = vmatpush1.msra.mxu0 0.0
          %4161 = vmatprep.subr.mxu0 0.0
          %4162 = vmatpush1.msra.mxu0 0.0
          %4163 = vmatprep.subr.mxu0 0.0
          %4164 = vmatpush1.msra.mxu0 0.0
          %4165 = vmatprep.subr.mxu0 0.0
          %4166 = vmatpush1.msra.mxu0 0.0
          %4167 = vmatprep.subr.mxu0 0.0
          %4168 = vmatpush1.msra.mxu0 0.0
          %4169 = vmatprep.subr.mxu0 0.0
          %4170 = vmatpush1.msra.mxu0 0.0
          %4171 = vmatprep.subr.mxu0 0.0
          %4172 = vmatpush1.msra.mxu0 0.0
          %4173 = vmatprep.subr.mxu0 0.0
          %4174 = vmatpush1.msra.mxu0 0.0
          %4175 = vmatprep.subr.mxu0 0.0
          %4176 = vmatpush1.msra.mxu0 0.0
          %4177 = vmatprep.subr.mxu0 0.0
          %4178 = vmatpush1.msra.mxu0 0.0
          %4179 = vmatprep.subr.mxu0 0.0
          %4180 = vmatpush1.msra.mxu0 0.0
          %4181 = vmatprep.subr.mxu0 0.0
          %4182 = vmatpush1.msra.mxu0 0.0
          %4183 = vmatprep.subr.mxu0 0.0
          %4184 = vmatpush1.msra.mxu0 0.0
          %4185 = vmatprep.subr.mxu0 0.0
          %4186 = vmatpush1.msra.mxu0 0.0
          %4187 = vmatprep.subr.mxu0 0.0
          %4188 = vmatpush1.msra.mxu0 0.0
          %4189 = vmatprep.subr.mxu0 0.0
          %4190 = vmatpush1.msra.mxu0 0.0
          %4191 = vmatprep.subr.mxu0 0.0
          %4192 = vmatpush1.msra.mxu0 0.0
          %4193 = vmatprep.subr.mxu0 0.0
          %4194 = vmatpush1.msra.mxu0 0.0
          %4195 = vmatprep.subr.mxu0 0.0
          %4196 = vmatpush1.msra.mxu0 0.0
          %4197 = vmatprep.subr.mxu0 0.0
          %4198 = vmatpush1.msra.mxu0 0.0
          %4199 = vmatprep.mubr.f32.mxu0 0.0
          %4200 = vmatmul.mubr.f32.gmra.mrb[0].mxu0 %v4127
          %v4201 = vpop.f32.mrb[0].mxu0
          %v4202 = vadd.f32 0.0, %v4201
          %v4203 = vpop.f32.mrb[0].mxu0
          %4204 = vmatprep.mubr.f32.mxu0 0.0
          %4205 = vmatmul.mubr.f32.gmra.mrb[0].mxu0 %v4130
          %v4206 = vpop.f32.mrb[0].mxu0
          %v4207 = vadd.f32 0.0, %v4206
          %v4208 = vpop.f32.mrb[0].mxu0
          %4209 = vmatprep.mubr.f32.mxu0 0.0
          %4210 = vmatmul.mubr.f32.gmra.mrb[0].mxu0 %v4133
          %v4211 = vpop.f32.mrb[0].mxu0
          %v4212 = vadd.f32 0.0, %v4211
          %v4213 = vpop.f32.mrb[0].mxu0
          %4214 = vdwg.mxu0
          %4216 = vrot.lane.b32.xlu0 %v4207, 8
          %v4217 = vpop.permute.xlu0 %4216
          %4220 = vrot.lane.b32.xlu0 %v4212, 16
          %v4221 = vpop.permute.xlu0 %4220
          %v4223 = vsel %vm846, %v4202, %v4217
          %v4224 = vsel %vm2567, %v4223, %v4221
          %4226 = vrot.lane.b32.xlu0 %v3893, 96
          %v4227 = vpop.permute.xlu0 %4226
          %4228 = vrot.lane.b32.xlu0 %v3893, 88
          %v4229 = vpop.permute.xlu0 %4228
          %4230 = vrot.lane.b32.xlu0 %v3893, 80
          %v4231 = vpop.permute.xlu0 %4230
          %4232 = vrot.lane.b32.xlu0 %v3893, 72
          %v4233 = vpop.permute.xlu0 %4232
          %4234 = vrot.lane.b32.xlu0 %v3893, 64
          %v4235 = vpop.permute.xlu0 %4234
          %4236 = vrot.lane.b32.xlu0 %v3893, 120
          %v4237 = vpop.permute.xlu0 %4236
          %4238 = vrot.lane.b32.xlu0 %v3893, 112
          %v4239 = vpop.permute.xlu0 %4238
          %4240 = vrot.lane.b32.xlu0 %v3893, 104
          %v4241 = vpop.permute.xlu0 %4240
          %4243 = vrot.lane.b32.xlu0 %v3894, 112
          %v4244 = vpop.permute.xlu0 %4243
          %4245 = vrot.lane.b32.xlu0 %v3894, 104
          %v4246 = vpop.permute.xlu0 %4245
          %4247 = vrot.lane.b32.xlu0 %v3894, 96
          %v4248 = vpop.permute.xlu0 %4247
          %4249 = vrot.lane.b32.xlu0 %v3894, 88
          %v4250 = vpop.permute.xlu0 %4249
          %4251 = vrot.lane.b32.xlu0 %v3894, 80
          %v4252 = vpop.permute.xlu0 %4251
          %4253 = vrot.lane.b32.xlu0 %v3894, 72
          %v4254 = vpop.permute.xlu0 %4253
          %4255 = vrot.lane.b32.xlu0 %v3894, 64
          %v4256 = vpop.permute.xlu0 %4255
          %4257 = vrot.lane.b32.xlu0 %v3424, 104
          %v4258 = vpop.permute.xlu0 %4257
          %4259 = vrot.lane.b32.xlu0 %v3427, 104
          %v4260 = vpop.permute.xlu0 %4259
          %4261 = vrot.lane.b32.xlu0 %v3522, 104
          %v4262 = vpop.permute.xlu0 %4261
          %4263 = vrot.lane.b32.xlu0 %v3524, 104
          %v4264 = vpop.permute.xlu0 %4263
          %4265 = vrot.lane.b32.xlu0 %v3526, 104
          %v4266 = vpop.permute.xlu0 %4265
          %4267 = vrot.lane.b32.xlu0 %v3528, 104
          %v4268 = vpop.permute.xlu0 %4267
          %4269 = vrot.lane.b32.xlu0 %v3530, 104
          %v4270 = vpop.permute.xlu0 %4269
          %4271 = vrot.lane.b32.xlu0 %v3532, 104
          %v4272 = vpop.permute.xlu0 %4271
          %4282 = vrot.lane.b32.xlu0 %v3892, 48
          %v4283 = vpop.permute.xlu0 %4282
          %4284 = vrot.lane.b32.xlu0 %v4080, 48
          %v4285 = vpop.permute.xlu0 %4284
          %4286 = vrot.lane.b32.xlu0 %v4082, 48
          %v4287 = vpop.permute.xlu0 %4286
          %4288 = vrot.lane.b32.xlu0 %v4091, 48
          %v4289 = vpop.permute.xlu0 %4288
          %4290 = vrot.lane.b32.xlu0 %v4227, 48
          %v4291 = vpop.permute.xlu0 %4290
          %4292 = vrot.lane.b32.xlu0 %v4229, 48
          %v4293 = vpop.permute.xlu0 %4292
          %4294 = vrot.lane.b32.xlu0 %v4231, 48
          %v4295 = vpop.permute.xlu0 %4294
          %4296 = vrot.lane.b32.xlu0 %v4233, 48
          %v4297 = vpop.permute.xlu0 %4296
          %4298 = vrot.lane.b32.xlu0 %v4235, 48
          %v4299 = vpop.permute.xlu0 %4298
          %4309 = vrot.lane.b32.xlu0 %v4237, 112
          %v4310 = vpop.permute.xlu0 %4309
          %4311 = vrot.lane.b32.xlu0 %v4239, 112
          %v4312 = vpop.permute.xlu0 %4311
          %4313 = vrot.lane.b32.xlu0 %v4241, 112
          %v4314 = vpop.permute.xlu0 %4313
          %4315 = vrot.lane.b32.xlu0 %v4227, 112
          %v4316 = vpop.permute.xlu0 %4315
          %4317 = vrot.lane.b32.xlu0 %v4229, 112
          %v4318 = vpop.permute.xlu0 %4317
          %4319 = vrot.lane.b32.xlu0 %v4231, 112
          %v4320 = vpop.permute.xlu0 %4319
          %4321 = vrot.lane.b32.xlu0 %v4233, 112
          %v4322 = vpop.permute.xlu0 %4321
          %4323 = vrot.lane.b32.xlu0 %v4235, 112
          %v4324 = vpop.permute.xlu0 %4323
          %4334 = vrot.lane.b32.xlu0 %v3893, 48
          %v4335 = vpop.permute.xlu0 %4334
          %4336 = vrot.lane.b32.xlu0 %v4237, 48
          %v4337 = vpop.permute.xlu0 %4336
          %4338 = vrot.lane.b32.xlu0 %v4244, 48
          %v4339 = vpop.permute.xlu0 %4338
          %4340 = vrot.lane.b32.xlu0 %v4246, 48
          %v4341 = vpop.permute.xlu0 %4340
          %4342 = vrot.lane.b32.xlu0 %v4248, 48
          %v4343 = vpop.permute.xlu0 %4342
          %4344 = vrot.lane.b32.xlu0 %v4250, 48
          %v4345 = vpop.permute.xlu0 %4344
          %4346 = vrot.lane.b32.xlu0 %v4252, 48
          %v4347 = vpop.permute.xlu0 %4346
          %4348 = vrot.lane.b32.xlu0 %v4254, 48
          %v4349 = vpop.permute.xlu0 %4348
          %4350 = vrot.lane.b32.xlu0 %v4256, 48
          %v4351 = vpop.permute.xlu0 %4350
          %v4361 = vsel %vm846, %v3883, %v3522
          %v4362 = vsel %vm846, %v3884, %v4258
          %v4363 = vsel %vm846, %v3885, %v4260
          %v4364 = vsel %vm846, %v3886, %v4262
          %v4365 = vsel %vm846, %v3887, %v4264
          %v4366 = vsel %vm846, %v3888, %v4266
          %v4367 = vsel %vm846, %v3889, %v4268
          %v4368 = vsel %vm846, %v3890, %v4270
          %v4369 = vsel %vm846, %v3891, %v4272
          %v4370 = vsel %vm2567, %v4361, %v4283
          %v4371 = vsel %vm2567, %v4362, %v4285
          %v4372 = vsel %vm2567, %v4363, %v4287
          %v4373 = vsel %vm2567, %v4364, %v4289
          %v4374 = vsel %vm2567, %v4365, %v4291
          %v4375 = vsel %vm2567, %v4366, %v4293
          %v4376 = vsel %vm2567, %v4367, %v4295
          %v4377 = vsel %vm2567, %v4368, %v4297
          %v4378 = vsel %vm2567, %v4369, %v4299
          %v4379 = vsel %vm2569, %v4370, %v4239
          %v4380 = vsel %vm2569, %v4371, %v4310
          %v4381 = vsel %vm2569, %v4372, %v4312
          %v4382 = vsel %vm2569, %v4373, %v4314
          %v4383 = vsel %vm2569, %v4374, %v4316
          %v4384 = vsel %vm2569, %v4375, %v4318
          %v4385 = vsel %vm2569, %v4376, %v4320
          %v4386 = vsel %vm2569, %v4377, %v4322
          %v4387 = vsel %vm2569, %v4378, %v4324
          %v4388 = vsel %vm2571, %v4379, %v4335
          %v4389 = vsel %vm2571, %v4380, %v4337
          %v4390 = vsel %vm2571, %v4381, %v4339
          %v4391 = vsel %vm2571, %v4382, %v4341
          %v4392 = vsel %vm2571, %v4383, %v4343
          %v4393 = vsel %vm2571, %v4384, %v4345
          %v4394 = vsel %vm2571, %v4385, %v4347
          %v4395 = vsel %vm2571, %v4386, %v4349
          %v4396 = vsel %vm2571, %v4387, %v4351
          %s4397 = scalar_lea.vmem %s17, 80
          %v4398 = vld [vmem:[%s4397] sm:$0xff]
          %v4399 = vld [vmem:[%s4397 + $0x8] sm:$0xff]
          %v4400 = vld [vmem:[%s4397 + $0x10] sm:$0xff]
          %v4401 = vld [vmem:[%s4397 + $0x18] sm:$0xff]
          %v4402 = vld [vmem:[%s4397 + $0x20] sm:$0xff]
          %v4404 = vsel %vm2573, %v4388, 0
          %v4407 = vsel %vm2573, %v4389, 0
          %v4410 = vsel %vm2573, %v4390, 0
          %v4413 = vsel %vm2573, %v4391, 0
          %v4416 = vsel %vm2573, %v4392, 0
          %v4419 = vsel %vm2573, %v4393, 0
          %v4422 = vsel %vm2573, %v4394, 0
          %v4425 = vsel %vm2573, %v4395, 0
          %v4428 = vsel %vm2573, %v4396, 0
          %4430 = vmatprep.subr.mxu0 0.0
          %4431 = vmatpush1.msra.mxu0 %v4398
          %4432 = vmatprep.subr.mxu0 0.0
          %4433 = vmatpush1.msra.mxu0 %v4399
          %4434 = vmatprep.subr.mxu0 0.0
          %4435 = vmatpush1.msra.mxu0 %v4400
          %4436 = vmatprep.subr.mxu0 0.0
          %4437 = vmatpush1.msra.mxu0 %v4401
          %4438 = vmatprep.subr.mxu0 0.0
          %4439 = vmatpush1.msra.mxu0 %v4402
          %4440 = vmatprep.subr.mxu0 0.0
          %4441 = vmatpush1.msra.mxu0 0.0
          %4442 = vmatprep.subr.mxu0 0.0
          %4443 = vmatpush1.msra.mxu0 0.0
          %4444 = vmatprep.subr.mxu0 0.0
          %4445 = vmatpush1.msra.mxu0 0.0
          %4446 = vmatprep.subr.mxu0 0.0
          %4447 = vmatpush1.msra.mxu0 0.0
          %4448 = vmatprep.subr.mxu0 0.0
          %4449 = vmatpush1.msra.mxu0 0.0
          %4450 = vmatprep.subr.mxu0 0.0
          %4451 = vmatpush1.msra.mxu0 0.0
          %4452 = vmatprep.subr.mxu0 0.0
          %4453 = vmatpush1.msra.mxu0 0.0
          %4454 = vmatprep.subr.mxu0 0.0
          %4455 = vmatpush1.msra.mxu0 0.0
          %4456 = vmatprep.subr.mxu0 0.0
          %4457 = vmatpush1.msra.mxu0 0.0
          %4458 = vmatprep.subr.mxu0 0.0
          %4459 = vmatpush1.msra.mxu0 0.0
          %4460 = vmatprep.subr.mxu0 0.0
          %4461 = vmatpush1.msra.mxu0 0.0
          %4462 = vmatprep.subr.mxu0 0.0
          %4463 = vmatpush1.msra.mxu0 0.0
          %4464 = vmatprep.subr.mxu0 0.0
          %4465 = vmatpush1.msra.mxu0 0.0
          %4466 = vmatprep.subr.mxu0 0.0
          %4467 = vmatpush1.msra.mxu0 0.0
          %4468 = vmatprep.subr.mxu0 0.0
          %4469 = vmatpush1.msra.mxu0 0.0
          %4470 = vmatprep.subr.mxu0 0.0
          %4471 = vmatpush1.msra.mxu0 0.0
          %4472 = vmatprep.subr.mxu0 0.0
          %4473 = vmatpush1.msra.mxu0 0.0
          %4474 = vmatprep.subr.mxu0 0.0
          %4475 = vmatpush1.msra.mxu0 0.0
          %4476 = vmatprep.subr.mxu0 0.0
          %4477 = vmatpush1.msra.mxu0 0.0
          %4478 = vmatprep.subr.mxu0 0.0
          %4479 = vmatpush1.msra.mxu0 0.0
          %4480 = vmatprep.subr.mxu0 0.0
          %4481 = vmatpush1.msra.mxu0 0.0
          %4482 = vmatprep.subr.mxu0 0.0
          %4483 = vmatpush1.msra.mxu0 0.0
          %4484 = vmatprep.subr.mxu0 0.0
          %4485 = vmatpush1.msra.mxu0 0.0
          %4486 = vmatprep.subr.mxu0 0.0
          %4487 = vmatpush1.msra.mxu0 0.0
          %4488 = vmatprep.subr.mxu0 0.0
          %4489 = vmatpush1.msra.mxu0 0.0
          %4490 = vmatprep.subr.mxu0 0.0
          %4491 = vmatpush1.msra.mxu0 0.0
          %4492 = vmatprep.subr.mxu0 0.0
          %4493 = vmatpush1.msra.mxu0 0.0
          %4494 = vmatprep.mubr.f32.mxu0 0.0
          %4495 = vmatmul.mubr.f32.gmra.mrb[0].mxu0 %v4404
          %v4496 = vpop.f32.mrb[0].mxu0
          %v4497 = vadd.f32 0.0, %v4496
          %v4498 = vpop.f32.mrb[0].mxu0
          %4499 = vmatprep.mubr.f32.mxu0 0.0
          %4500 = vmatmul.mubr.f32.gmra.mrb[0].mxu0 %v4407
          %v4501 = vpop.f32.mrb[0].mxu0
          %v4502 = vadd.f32 0.0, %v4501
          %v4503 = vpop.f32.mrb[0].mxu0
          %4504 = vmatprep.mubr.f32.mxu0 0.0
          %4505 = vmatmul.mubr.f32.gmra.mrb[0].mxu0 %v4410
          %v4506 = vpop.f32.mrb[0].mxu0
          %v4507 = vadd.f32 0.0, %v4506
          %v4508 = vpop.f32.mrb[0].mxu0
          %4509 = vmatprep.mubr.f32.mxu0 0.0
          %4510 = vmatmul.mubr.f32.gmra.mrb[0].mxu0 %v4413
          %v4511 = vpop.f32.mrb[0].mxu0
          %v4512 = vadd.f32 0.0, %v4511
          %v4513 = vpop.f32.mrb[0].mxu0
          %4514 = vmatprep.mubr.f32.mxu0 0.0
          %4515 = vmatmul.mubr.f32.gmra.mrb[0].mxu0 %v4416
          %v4516 = vpop.f32.mrb[0].mxu0
          %v4517 = vadd.f32 0.0, %v4516
          %v4518 = vpop.f32.mrb[0].mxu0
          %4519 = vmatprep.mubr.f32.mxu0 0.0
          %4520 = vmatmul.mubr.f32.gmra.mrb[0].mxu0 %v4419
          %v4521 = vpop.f32.mrb[0].mxu0
          %v4522 = vadd.f32 0.0, %v4521
          %v4523 = vpop.f32.mrb[0].mxu0
          %4524 = vmatprep.mubr.f32.mxu0 0.0
          %4525 = vmatmul.mubr.f32.gmra.mrb[0].mxu0 %v4422
          %v4526 = vpop.f32.mrb[0].mxu0
          %v4527 = vadd.f32 0.0, %v4526
          %v4528 = vpop.f32.mrb[0].mxu0
          %4529 = vmatprep.mubr.f32.mxu0 0.0
          %4530 = vmatmul.mubr.f32.gmra.mrb[0].mxu0 %v4425
          %v4531 = vpop.f32.mrb[0].mxu0
          %v4532 = vadd.f32 0.0, %v4531
          %v4533 = vpop.f32.mrb[0].mxu0
          %4534 = vmatprep.mubr.f32.mxu0 0.0
          %4535 = vmatmul.mubr.f32.gmra.mrb[0].mxu0 %v4428
          %v4536 = vpop.f32.mrb[0].mxu0
          %v4537 = vadd.f32 0.0, %v4536
          %v4538 = vpop.f32.mrb[0].mxu0
          %4539 = vdwg.mxu0
          %4541 = vrot.lane.b32.xlu0 %v4502, 8
          %v4542 = vpop.permute.xlu0 %4541
          %4545 = vrot.lane.b32.xlu0 %v4507, 16
          %v4546 = vpop.permute.xlu0 %4545
          %4549 = vrot.lane.b32.xlu0 %v4512, 24
          %v4550 = vpop.permute.xlu0 %4549
          %4553 = vrot.lane.b32.xlu0 %v4517, 32
          %v4554 = vpop.permute.xlu0 %4553
          %4557 = vrot.lane.b32.xlu0 %v4522, 40
          %v4558 = vpop.permute.xlu0 %4557
          %4561 = vrot.lane.b32.xlu0 %v4527, 48
          %v4562 = vpop.permute.xlu0 %4561
          %4565 = vrot.lane.b32.xlu0 %v4532, 56
          %v4566 = vpop.permute.xlu0 %4565
          %4569 = vrot.lane.b32.xlu0 %v4537, 64
          %v4570 = vpop.permute.xlu0 %4569
          %v4572 = vsel %vm846, %v4497, %v4542
          %v4573 = vsel %vm2567, %v4572, %v4546
          %v4574 = vsel %vm2569, %v4573, %v4550
          %v4575 = vsel %vm2571, %v4574, %v4554
          %v4576 = vsel %vm2573, %v4575, %v4558
          %v4577 = vsel %vm2588, %v4576, %v4562
          %v4578 = vsel %vm3033, %v4577, %v4566
          %v4579 = vsel %vm3035, %v4578, %v4570
          %4581 = vrot.lane.b32.xlu0 %v4224, 8
          %v4582 = vpop.permute.xlu0 %4581
          %4585 = vrot.lane.b32.xlu0 %v4579, 32
          %v4586 = vpop.permute.xlu0 %4585
          %v4588 = vsel %vm846, %v4076, %v4582
          %v4589 = vsel %vm2571, %v4588, %v4586
          %vm4590 = vcmask 850944
          %v4591 = vsel %vm4590, %v4589, 0.0
          %4592 = vst [vmem:[#allocation13] sm:$0xff] %v4591
        $region132: #{tpu_custom_call.1} parent=103 // pred_fallthru
          _
        // Predicated region
        $region133: #{tpu_custom_call.1} parent=103 // pred_check
          %p4593 = pneg %p517
        $region134: #{tpu_custom_call.1} parent=103 // pred_check_branch
          %4595 = sbr.rel (%p4593) target = $region136
        $region135: #{tpu_custom_call.1} parent=103 // pred_region
          %s4597 = ssub.s32 128, 128
          %4598 = vsyncadd [#allocation6], %s4597
          %s4600 = sshll.u32 [#allocation13], 4
          %s4601 = int_to_ptr.vmem [resolvable:$true] %s4600
          %4603 = dma.vmem_to_hbm [thread:$0]  %s4601, 128, %s21, [#allocation6]
        $region136: #{tpu_custom_call.1} parent=103 // pred_fallthru
          _
        // Predicated region
        $region137: #{tpu_custom_call.1} parent=103 // pred_check
          %p4604 = pneg %p517
        $region138: #{tpu_custom_call.1} parent=103 // pred_check_branch
          %4606 = sbr.rel (%p4604) target = $region140
        $region139: #{tpu_custom_call.1} parent=103 // pred_region
          %4607 = dma.done [#allocation6], 128
        $region140: #{tpu_custom_call.1} parent=103 // pred_fallthru
          _
      $region104: #{tpu_custom_call.1} parent=5 // pred_fallthru
        _
      %p4608 = scmp.le.s32.totalorder 2, %s33
      // Predicated region
      $region141: #{tpu_custom_call.1} parent=5 // pred_check
        %p4609 = pneg %p4608
      $region142: #{tpu_custom_call.1} parent=5 // pred_check_branch
        %4611 = sbr.rel (%p4609) target = $region144
      $region143: #{tpu_custom_call.1} parent=5 // pred_region
        %s4612 = ssub.s32 %s33, 2
      $region144: #{tpu_custom_call.1} parent=5 // pred_fallthru
        _
    $region6: #{tpu_custom_call.1} parent=1 // loop_footer
      %s37 = sadd.s32 1, %s33
    $region7: #{tpu_custom_call.1} parent=1 // loop_footer_branch
      %32 = sbr.rel target = $region3
    $region8: #{tpu_custom_call.1} parent=1 // loop_exit
      _
    %4613 = vsyncpa [#allocation5], 1
    %s4614 = scalar_lea.sflag [#allocation5], 1
    %4615 = vsyncpa %s4614, 1
    %4616 = vsyncpa [#allocation8], 1
    %s4617 = scalar_lea.sflag [#allocation8], 1
    %4618 = vsyncpa %s4617, 1
    %4619 = vsyncpa [#allocation11], 1
    %4620 = vsyncpa [#allocation6], 1
    %s4621 = scalar_lea.sflag [#allocation6], 1
    %4622 = vsyncpa %s4621, 1

</llo_original>
